<compile_context>
chip_gen: v7x
topology: tpu7x:2x2x1
jax: 0.10.0
libtpu: 0.0.40
codegen_flags: <defaults>
</compile_context>

<pallas_src>
import functools

import jax
import jax.numpy as jnp
from jax.experimental import pallas as pl
from jax.experimental.pallas import tpu as pltpu

EPS = 1e-5          # PyTorch InstanceNorm2d default
NEG_SLOPE = 0.2     # LeakyReLU(0.2)


def _channel_sum_bcast(v, C, W):
    """v: (1, W*C).  Returns (1, W*C) where every lane holds the sum over the W
    lanes sharing its channel (lane index mod C), i.e. the per-channel spatial
    sum already broadcast back over the lanes.  Exact f32, XLU-only.
    Requires W to be a power of two."""
    r = v
    shift = C
    total = C * W
    while shift < total:
        r = r + pltpu.roll(r, shift, axis=1)
        shift *= 2
    return r


def _residual_encoder_kernel(x_ref, w_ref, b_ref, out_ref, *, C):
    # x_ref  : (1, H, W*C)        lane-dense input slab for this batch element
    # w_ref  : (3, 3, W*C, W*C)   block-banded conv weights [layer, dh, in, out]
    # b_ref  : (3, 1, W*C)        biases, tiled over the W lane groups
    # out_ref: (1, H, W*C)        lane-dense output slab
    _, H, WC = x_ref.shape
    W = WC // C
    HW = H * W
    inv_hw = 1.0 / float(HW)

    x = x_ref[0]                                        # (H, W*C) f32
    zrow = jnp.zeros((1, WC), jnp.float32)

    y = x
    for l in range(3):
        # row zero-padding only (column padding is folded into the banded weights)
        p = jnp.concatenate([zrow, y, zrow], axis=0)    # (H+2, W*C)

        # conv3x3 'same' == sum over dh of (row-shifted map) @ banded weight matrix
        acc = b_ref[l]                                  # (1, W*C), broadcasts over H
        for dh in range(3):
            acc = acc + jnp.dot(
                p[dh:dh + H],                           # (H, W*C) sublane slice
                w_ref[l, dh],                           # (W*C, W*C)
                preferred_element_type=jnp.float32,
                precision=jax.lax.Precision.HIGHEST)

        # InstanceNorm2d (biased var, eps=1e-5), per-channel over H*W
        s1 = _channel_sum_bcast(jnp.sum(acc, axis=0, keepdims=True), C, W)
        s2 = _channel_sum_bcast(jnp.sum(acc * acc, axis=0, keepdims=True), C, W)
        mean = s1 * inv_hw
        var = s2 * inv_hw - mean * mean
        yn = (acc - mean) * jax.lax.rsqrt(var + EPS)

        # LeakyReLU(0.2)
        y = jnp.where(yn >= 0.0, yn, NEG_SLOPE * yn)

    # residual add + lane-dense store
    out_ref[0] = x + y


def _pack_weights(params, W, C):
    """HWIO (3,3,C,C) conv kernels -> (3 layers, 3 dh, W*C, W*C) block-banded
    matrices acting on the lane-dense (lanes = w*C + c) representation.
    Zero 'same'-padding along W is baked in (out-of-range taps are dropped)."""
    WC = W * C
    wout = jnp.arange(W)
    mats = []
    for (k_hwio, _) in params:
        k = k_hwio.astype(jnp.float32)
        m = jnp.zeros((3, W, W, C, C), jnp.float32)      # [dh, w_in, w_out, ci, co]
        for dh in range(3):
            for dw in range(3):
                win = wout + dw - 1
                valid = (win >= 0) & (win < W)
                win_c = jnp.clip(win, 0, W - 1)
                upd = jnp.where(valid[:, None, None], k[dh, dw][None], 0.0)  # (W,C,C)
                m = m.at[dh, win_c, wout].add(upd)
        # -> [dh, w_in, ci, w_out, co] -> (3, W*C, W*C)
        mats.append(jnp.transpose(m, (0, 1, 3, 2, 4)).reshape(3, WC, WC))
    return jnp.stack(mats, axis=0)                        # (3, 3, WC, WC)


def residual_encoder(x_nchw, params):
    """x_nchw: (N, C, H, W) float32 ; params: [(w_hwio, b), ...] * 3."""
    N, C, H, W = x_nchw.shape
    WC = W * C
    assert (W & (W - 1)) == 0, "W must be a power of two (rotate-add channel reduce)"

    # NCHW -> NHWC -> lane-dense (N, H, W*C) slab
    x = jnp.transpose(x_nchw, (0, 2, 3, 1)).astype(jnp.float32).reshape(N, H, WC)

    w_all = _pack_weights(params, W, C)                                   # (3,3,WC,WC)
    b_all = jnp.stack([jnp.tile(b.astype(jnp.float32), W)
                       for (_, b) in params], axis=0).reshape(3, 1, WC)   # (3,1,WC)

    kernel = functools.partial(_residual_encoder_kernel, C=C)

    out = pl.pallas_call(
        kernel,
        out_shape=jax.ShapeDtypeStruct((N, H, WC), jnp.float32),
        grid_spec=pltpu.PrefetchScalarGridSpec(
            num_scalar_prefetch=0,
            grid=(N,),
            in_specs=[
                pl.BlockSpec((1, H, WC), lambda n: (n, 0, 0)),
                pl.BlockSpec((3, 3, WC, WC), lambda n: (0, 0, 0, 0)),
                pl.BlockSpec((3, 1, WC), lambda n: (0, 0, 0)),
            ],
            out_specs=pl.BlockSpec((1, H, WC), lambda n: (n, 0, 0)),
        ),
        compiler_params=pltpu.CompilerParams(
            dimension_semantics=("parallel",)),           # megacore on v7x
    )(x, w_all, b_all)

    out = out.reshape(N, H, W, C)
    return jnp.transpose(out, (0, 3, 1, 2))               # back to NCHW


def ref_forward(x_nchw, params):
    """Pure-JAX reference matching the PyTorch forward (NCHW, f32 conv)."""
    def basic(y, w, b):
        y = jax.lax.conv_general_dilated(
            y, w, window_strides=(1, 1), padding='SAME',
            dimension_numbers=('NCHW', 'HWIO', 'NCHW'),
            precision=jax.lax.Precision.HIGHEST)
        y = y + b[None, :, None, None]
        mean = jnp.mean(y, axis=(2, 3), keepdims=True)
        var = jnp.var(y, axis=(2, 3), keepdims=True)
        y = (y - mean) / jnp.sqrt(var + EPS)
        return jnp.where(y >= 0.0, y, NEG_SLOPE * y)

    residual = x_nchw
    y = x_nchw
    for (w, b) in params:
        y = basic(y, w, b)
    return residual + y


if __name__ == "__main__":
    N, C, H, W = 2, 8, 16, 16          # input_ch == filter_size == 8
    key = jax.random.PRNGKey(0)
    keys = jax.random.split(key, 7)

    x = jax.random.normal(keys[0], (N, C, H, W), dtype=jnp.float32)

    params = []
    for i in range(3):
        w = 0.1 * jax.random.normal(keys[1 + 2 * i], (3, 3, C, C), dtype=jnp.float32)
        b = 0.1 * jax.random.normal(keys[2 + 2 * i], (C,), dtype=jnp.float32)
        params.append((w, b))

    out = residual_encoder(x, params)
    out = jax.block_until_ready(out)
    assert out.shape == (N, C, H, W)

    ref = ref_forward(x, params)
    max_err = float(jnp.max(jnp.abs(out - ref)))
    if not (max_err < 1e-3):
        raise AssertionError(f"kernel mismatch vs reference, max abs err = {max_err}")

    print("KERNEL_OK")
</pallas_src>

<mosaic_0001>
module attributes {stable_mosaic.version = 11 : i64} {
  func.func @_residual_encoder_kernel(%arg0: i32, %arg1: memref<1x16x128xf32, #tpu.memory_space<vmem>>, %arg2: memref<3x3x128x128xf32, #tpu.memory_space<vmem>>, %arg3: memref<3x1x128xf32, #tpu.memory_space<vmem>>, %arg4: memref<1x16x128xf32, #tpu.memory_space<vmem>>) attributes {dimension_semantics = [#tpu.dimension_semantics<parallel>], iteration_bounds = array<i64: 2>, scalar_prefetch = 0 : i64, scratch_operands = 0 : i64, tpu.core_type = #tpu.core_type<tc>, window_params = [{transform_indices = @transform_0, window_bounds = array<i64: 1, 16, 128>}, {pipeline_mode = #tpu.pipeline_mode<synchronous>, transform_indices = @transform_1, window_bounds = array<i64: 3, 3, 128, 128>}, {pipeline_mode = #tpu.pipeline_mode<synchronous>, transform_indices = @transform_2, window_bounds = array<i64: 3, 1, 128>}, {transform_indices = @transform_3, window_bounds = array<i64: 1, 16, 128>}]} {
    %c0 = arith.constant 0 : index
    %c0_0 = arith.constant 0 : index
    %c0_1 = arith.constant 0 : index
    %0 = vector.load %arg1[%c0, %c0_0, %c0_1] : memref<1x16x128xf32, #tpu.memory_space<vmem>>, vector<1x16x128xf32>
    %1 = vector.shape_cast %0 : vector<1x16x128xf32> to vector<16x128xf32>
    %cst = arith.constant 0.000000e+00 : f32
    %2 = vector.broadcast %cst : f32 to vector<1x128xf32>
    %3 = tpu.concatenate %2, %1, %2 in 0 : vector<1x128xf32>, vector<16x128xf32>, vector<1x128xf32> -> vector<18x128xf32>
    %c0_2 = arith.constant 0 : index
    %c0_3 = arith.constant 0 : index
    %c0_4 = arith.constant 0 : index
    %4 = vector.load %arg3[%c0_2, %c0_3, %c0_4] : memref<3x1x128xf32, #tpu.memory_space<vmem>>, vector<1x1x128xf32>
    %5 = vector.shape_cast %4 : vector<1x1x128xf32> to vector<1x128xf32>
    %6 = vector.extract_strided_slice %3 {offsets = [0, 0], sizes = [16, 128], strides = [1, 1]} : vector<18x128xf32> to vector<16x128xf32>
    %c0_5 = arith.constant 0 : index
    %c0_6 = arith.constant 0 : index
    %c0_7 = arith.constant 0 : index
    %c0_8 = arith.constant 0 : index
    %7 = vector.load %arg2[%c0_5, %c0_6, %c0_7, %c0_8] : memref<3x3x128x128xf32, #tpu.memory_space<vmem>>, vector<1x1x128x128xf32>
    %8 = vector.shape_cast %7 : vector<1x1x128x128xf32> to vector<128x128xf32>
    %cst_9 = arith.constant dense<0.000000e+00> : vector<16x128xf32>
    %9 = tpu.matmul %6, %8, %cst_9 {dimension_numbers = #tpu.dot_dimension_numbers<[1], [0], [0], [1], [0, 0, 1, 1], [], []>, precision = #tpu.contract_precision<fp32>} : vector<16x128xf32>, vector<128x128xf32>, vector<16x128xf32> -> vector<16x128xf32>
    %10 = vector.broadcast %5 : vector<1x128xf32> to vector<16x128xf32>
    %11 = arith.addf %10, %9 : vector<16x128xf32>
    %12 = vector.extract_strided_slice %3 {offsets = [1, 0], sizes = [16, 128], strides = [1, 1]} : vector<18x128xf32> to vector<16x128xf32>
    %c0_10 = arith.constant 0 : index
    %c1 = arith.constant 1 : index
    %c0_11 = arith.constant 0 : index
    %c0_12 = arith.constant 0 : index
    %13 = vector.load %arg2[%c0_10, %c1, %c0_11, %c0_12] : memref<3x3x128x128xf32, #tpu.memory_space<vmem>>, vector<1x1x128x128xf32>
    %14 = vector.shape_cast %13 : vector<1x1x128x128xf32> to vector<128x128xf32>
    %cst_13 = arith.constant dense<0.000000e+00> : vector<16x128xf32>
    %15 = tpu.matmul %12, %14, %cst_13 {dimension_numbers = #tpu.dot_dimension_numbers<[1], [0], [0], [1], [0, 0, 1, 1], [], []>, precision = #tpu.contract_precision<fp32>} : vector<16x128xf32>, vector<128x128xf32>, vector<16x128xf32> -> vector<16x128xf32>
    %16 = arith.addf %11, %15 : vector<16x128xf32>
    %17 = vector.extract_strided_slice %3 {offsets = [2, 0], sizes = [16, 128], strides = [1, 1]} : vector<18x128xf32> to vector<16x128xf32>
    %c0_14 = arith.constant 0 : index
    %c2 = arith.constant 2 : index
    %c0_15 = arith.constant 0 : index
    %c0_16 = arith.constant 0 : index
    %18 = vector.load %arg2[%c0_14, %c2, %c0_15, %c0_16] : memref<3x3x128x128xf32, #tpu.memory_space<vmem>>, vector<1x1x128x128xf32>
    %19 = vector.shape_cast %18 : vector<1x1x128x128xf32> to vector<128x128xf32>
    %cst_17 = arith.constant dense<0.000000e+00> : vector<16x128xf32>
    %20 = tpu.matmul %17, %19, %cst_17 {dimension_numbers = #tpu.dot_dimension_numbers<[1], [0], [0], [1], [0, 0, 1, 1], [], []>, precision = #tpu.contract_precision<fp32>} : vector<16x128xf32>, vector<128x128xf32>, vector<16x128xf32> -> vector<16x128xf32>
    %21 = arith.addf %16, %20 : vector<16x128xf32>
    %cst_18 = arith.constant dense<0.000000e+00> : vector<128xf32>
    %22 = vector.multi_reduction <add>, %21, %cst_18 [0] : vector<16x128xf32> to vector<128xf32>
    %23 = vector.shape_cast %22 : vector<128xf32> to vector<1x128xf32>
    %c8_i32 = arith.constant 8 : i32
    %24 = tpu.dynamic_rotate %23 by %c8_i32 dim 1 : vector<1x128xf32>, i32 -> vector<1x128xf32>
    %25 = arith.addf %23, %24 : vector<1x128xf32>
    %c16_i32 = arith.constant 16 : i32
    %26 = tpu.dynamic_rotate %25 by %c16_i32 dim 1 : vector<1x128xf32>, i32 -> vector<1x128xf32>
    %27 = arith.addf %25, %26 : vector<1x128xf32>
    %c32_i32 = arith.constant 32 : i32
    %28 = tpu.dynamic_rotate %27 by %c32_i32 dim 1 : vector<1x128xf32>, i32 -> vector<1x128xf32>
    %29 = arith.addf %27, %28 : vector<1x128xf32>
    %c64_i32 = arith.constant 64 : i32
    %30 = tpu.dynamic_rotate %29 by %c64_i32 dim 1 : vector<1x128xf32>, i32 -> vector<1x128xf32>
    %31 = arith.addf %29, %30 : vector<1x128xf32>
    %32 = arith.mulf %21, %21 : vector<16x128xf32>
    %cst_19 = arith.constant dense<0.000000e+00> : vector<128xf32>
    %33 = vector.multi_reduction <add>, %32, %cst_19 [0] : vector<16x128xf32> to vector<128xf32>
    %34 = vector.shape_cast %33 : vector<128xf32> to vector<1x128xf32>
    %c8_i32_20 = arith.constant 8 : i32
    %35 = tpu.dynamic_rotate %34 by %c8_i32_20 dim 1 : vector<1x128xf32>, i32 -> vector<1x128xf32>
    %36 = arith.addf %34, %35 : vector<1x128xf32>
    %c16_i32_21 = arith.constant 16 : i32
    %37 = tpu.dynamic_rotate %36 by %c16_i32_21 dim 1 : vector<1x128xf32>, i32 -> vector<1x128xf32>
    %38 = arith.addf %36, %37 : vector<1x128xf32>
    %c32_i32_22 = arith.constant 32 : i32
    %39 = tpu.dynamic_rotate %38 by %c32_i32_22 dim 1 : vector<1x128xf32>, i32 -> vector<1x128xf32>
    %40 = arith.addf %38, %39 : vector<1x128xf32>
    %c64_i32_23 = arith.constant 64 : i32
    %41 = tpu.dynamic_rotate %40 by %c64_i32_23 dim 1 : vector<1x128xf32>, i32 -> vector<1x128xf32>
    %42 = arith.addf %40, %41 : vector<1x128xf32>
    %cst_24 = arith.constant 3.906250e-03 : f32
    %43 = vector.broadcast %cst_24 : f32 to vector<1x128xf32>
    %44 = arith.mulf %31, %43 : vector<1x128xf32>
    %cst_25 = arith.constant 3.906250e-03 : f32
    %45 = vector.broadcast %cst_25 : f32 to vector<1x128xf32>
    %46 = arith.mulf %42, %45 : vector<1x128xf32>
    %47 = arith.mulf %44, %44 : vector<1x128xf32>
    %48 = arith.subf %46, %47 : vector<1x128xf32>
    %49 = vector.broadcast %44 : vector<1x128xf32> to vector<16x128xf32>
    %50 = arith.subf %21, %49 : vector<16x128xf32>
    %cst_26 = arith.constant 9.99999974E-6 : f32
    %51 = vector.broadcast %cst_26 : f32 to vector<1x128xf32>
    %52 = arith.addf %48, %51 : vector<1x128xf32>
    %53 = math.rsqrt %52 : vector<1x128xf32>
    %54 = vector.broadcast %53 : vector<1x128xf32> to vector<16x128xf32>
    %55 = arith.mulf %50, %54 : vector<16x128xf32>
    %cst_27 = arith.constant 0.000000e+00 : f32
    %56 = vector.broadcast %cst_27 : f32 to vector<16x128xf32>
    %57 = arith.cmpf oge, %55, %56 : vector<16x128xf32>
    %cst_28 = arith.constant 2.000000e-01 : f32
    %58 = vector.broadcast %cst_28 : f32 to vector<16x128xf32>
    %59 = arith.mulf %58, %55 : vector<16x128xf32>
    %60 = arith.select %57, %55, %59 : vector<16x128xi1>, vector<16x128xf32>
    %61 = tpu.concatenate %2, %60, %2 in 0 : vector<1x128xf32>, vector<16x128xf32>, vector<1x128xf32> -> vector<18x128xf32>
    %c1_29 = arith.constant 1 : index
    %c0_30 = arith.constant 0 : index
    %c0_31 = arith.constant 0 : index
    %62 = vector.load %arg3[%c1_29, %c0_30, %c0_31] : memref<3x1x128xf32, #tpu.memory_space<vmem>>, vector<1x1x128xf32>
    %63 = vector.shape_cast %62 : vector<1x1x128xf32> to vector<1x128xf32>
    %64 = vector.extract_strided_slice %61 {offsets = [0, 0], sizes = [16, 128], strides = [1, 1]} : vector<18x128xf32> to vector<16x128xf32>
    %c1_32 = arith.constant 1 : index
    %c0_33 = arith.constant 0 : index
    %c0_34 = arith.constant 0 : index
    %c0_35 = arith.constant 0 : index
    %65 = vector.load %arg2[%c1_32, %c0_33, %c0_34, %c0_35] : memref<3x3x128x128xf32, #tpu.memory_space<vmem>>, vector<1x1x128x128xf32>
    %66 = vector.shape_cast %65 : vector<1x1x128x128xf32> to vector<128x128xf32>
    %cst_36 = arith.constant dense<0.000000e+00> : vector<16x128xf32>
    %67 = tpu.matmul %64, %66, %cst_36 {dimension_numbers = #tpu.dot_dimension_numbers<[1], [0], [0], [1], [0, 0, 1, 1], [], []>, precision = #tpu.contract_precision<fp32>} : vector<16x128xf32>, vector<128x128xf32>, vector<16x128xf32> -> vector<16x128xf32>
    %68 = vector.broadcast %63 : vector<1x128xf32> to vector<16x128xf32>
    %69 = arith.addf %68, %67 : vector<16x128xf32>
    %70 = vector.extract_strided_slice %61 {offsets = [1, 0], sizes = [16, 128], strides = [1, 1]} : vector<18x128xf32> to vector<16x128xf32>
    %c1_37 = arith.constant 1 : index
    %c1_38 = arith.constant 1 : index
    %c0_39 = arith.constant 0 : index
    %c0_40 = arith.constant 0 : index
    %71 = vector.load %arg2[%c1_37, %c1_38, %c0_39, %c0_40] : memref<3x3x128x128xf32, #tpu.memory_space<vmem>>, vector<1x1x128x128xf32>
    %72 = vector.shape_cast %71 : vector<1x1x128x128xf32> to vector<128x128xf32>
    %cst_41 = arith.constant dense<0.000000e+00> : vector<16x128xf32>
    %73 = tpu.matmul %70, %72, %cst_41 {dimension_numbers = #tpu.dot_dimension_numbers<[1], [0], [0], [1], [0, 0, 1, 1], [], []>, precision = #tpu.contract_precision<fp32>} : vector<16x128xf32>, vector<128x128xf32>, vector<16x128xf32> -> vector<16x128xf32>
    %74 = arith.addf %69, %73 : vector<16x128xf32>
    %75 = vector.extract_strided_slice %61 {offsets = [2, 0], sizes = [16, 128], strides = [1, 1]} : vector<18x128xf32> to vector<16x128xf32>
    %c1_42 = arith.constant 1 : index
    %c2_43 = arith.constant 2 : index
    %c0_44 = arith.constant 0 : index
    %c0_45 = arith.constant 0 : index
    %76 = vector.load %arg2[%c1_42, %c2_43, %c0_44, %c0_45] : memref<3x3x128x128xf32, #tpu.memory_space<vmem>>, vector<1x1x128x128xf32>
    %77 = vector.shape_cast %76 : vector<1x1x128x128xf32> to vector<128x128xf32>
    %cst_46 = arith.constant dense<0.000000e+00> : vector<16x128xf32>
    %78 = tpu.matmul %75, %77, %cst_46 {dimension_numbers = #tpu.dot_dimension_numbers<[1], [0], [0], [1], [0, 0, 1, 1], [], []>, precision = #tpu.contract_precision<fp32>} : vector<16x128xf32>, vector<128x128xf32>, vector<16x128xf32> -> vector<16x128xf32>
    %79 = arith.addf %74, %78 : vector<16x128xf32>
    %cst_47 = arith.constant dense<0.000000e+00> : vector<128xf32>
    %80 = vector.multi_reduction <add>, %79, %cst_47 [0] : vector<16x128xf32> to vector<128xf32>
    %81 = vector.shape_cast %80 : vector<128xf32> to vector<1x128xf32>
    %c8_i32_48 = arith.constant 8 : i32
    %82 = tpu.dynamic_rotate %81 by %c8_i32_48 dim 1 : vector<1x128xf32>, i32 -> vector<1x128xf32>
    %83 = arith.addf %81, %82 : vector<1x128xf32>
    %c16_i32_49 = arith.constant 16 : i32
    %84 = tpu.dynamic_rotate %83 by %c16_i32_49 dim 1 : vector<1x128xf32>, i32 -> vector<1x128xf32>
    %85 = arith.addf %83, %84 : vector<1x128xf32>
    %c32_i32_50 = arith.constant 32 : i32
    %86 = tpu.dynamic_rotate %85 by %c32_i32_50 dim 1 : vector<1x128xf32>, i32 -> vector<1x128xf32>
    %87 = arith.addf %85, %86 : vector<1x128xf32>
    %c64_i32_51 = arith.constant 64 : i32
    %88 = tpu.dynamic_rotate %87 by %c64_i32_51 dim 1 : vector<1x128xf32>, i32 -> vector<1x128xf32>
    %89 = arith.addf %87, %88 : vector<1x128xf32>
    %90 = arith.mulf %79, %79 : vector<16x128xf32>
    %cst_52 = arith.constant dense<0.000000e+00> : vector<128xf32>
    %91 = vector.multi_reduction <add>, %90, %cst_52 [0] : vector<16x128xf32> to vector<128xf32>
    %92 = vector.shape_cast %91 : vector<128xf32> to vector<1x128xf32>
    %c8_i32_53 = arith.constant 8 : i32
    %93 = tpu.dynamic_rotate %92 by %c8_i32_53 dim 1 : vector<1x128xf32>, i32 -> vector<1x128xf32>
    %94 = arith.addf %92, %93 : vector<1x128xf32>
    %c16_i32_54 = arith.constant 16 : i32
    %95 = tpu.dynamic_rotate %94 by %c16_i32_54 dim 1 : vector<1x128xf32>, i32 -> vector<1x128xf32>
    %96 = arith.addf %94, %95 : vector<1x128xf32>
    %c32_i32_55 = arith.constant 32 : i32
    %97 = tpu.dynamic_rotate %96 by %c32_i32_55 dim 1 : vector<1x128xf32>, i32 -> vector<1x128xf32>
    %98 = arith.addf %96, %97 : vector<1x128xf32>
    %c64_i32_56 = arith.constant 64 : i32
    %99 = tpu.dynamic_rotate %98 by %c64_i32_56 dim 1 : vector<1x128xf32>, i32 -> vector<1x128xf32>
    %100 = arith.addf %98, %99 : vector<1x128xf32>
    %cst_57 = arith.constant 3.906250e-03 : f32
    %101 = vector.broadcast %cst_57 : f32 to vector<1x128xf32>
    %102 = arith.mulf %89, %101 : vector<1x128xf32>
    %cst_58 = arith.constant 3.906250e-03 : f32
    %103 = vector.broadcast %cst_58 : f32 to vector<1x128xf32>
    %104 = arith.mulf %100, %103 : vector<1x128xf32>
    %105 = arith.mulf %102, %102 : vector<1x128xf32>
    %106 = arith.subf %104, %105 : vector<1x128xf32>
    %107 = vector.broadcast %102 : vector<1x128xf32> to vector<16x128xf32>
    %108 = arith.subf %79, %107 : vector<16x128xf32>
    %cst_59 = arith.constant 9.99999974E-6 : f32
    %109 = vector.broadcast %cst_59 : f32 to vector<1x128xf32>
    %110 = arith.addf %106, %109 : vector<1x128xf32>
    %111 = math.rsqrt %110 : vector<1x128xf32>
    %112 = vector.broadcast %111 : vector<1x128xf32> to vector<16x128xf32>
    %113 = arith.mulf %108, %112 : vector<16x128xf32>
    %cst_60 = arith.constant 0.000000e+00 : f32
    %114 = vector.broadcast %cst_60 : f32 to vector<16x128xf32>
    %115 = arith.cmpf oge, %113, %114 : vector<16x128xf32>
    %cst_61 = arith.constant 2.000000e-01 : f32
    %116 = vector.broadcast %cst_61 : f32 to vector<16x128xf32>
    %117 = arith.mulf %116, %113 : vector<16x128xf32>
    %118 = arith.select %115, %113, %117 : vector<16x128xi1>, vector<16x128xf32>
    %119 = tpu.concatenate %2, %118, %2 in 0 : vector<1x128xf32>, vector<16x128xf32>, vector<1x128xf32> -> vector<18x128xf32>
    %c2_62 = arith.constant 2 : index
    %c0_63 = arith.constant 0 : index
    %c0_64 = arith.constant 0 : index
    %120 = vector.load %arg3[%c2_62, %c0_63, %c0_64] : memref<3x1x128xf32, #tpu.memory_space<vmem>>, vector<1x1x128xf32>
    %121 = vector.shape_cast %120 : vector<1x1x128xf32> to vector<1x128xf32>
    %122 = vector.extract_strided_slice %119 {offsets = [0, 0], sizes = [16, 128], strides = [1, 1]} : vector<18x128xf32> to vector<16x128xf32>
    %c2_65 = arith.constant 2 : index
    %c0_66 = arith.constant 0 : index
    %c0_67 = arith.constant 0 : index
    %c0_68 = arith.constant 0 : index
    %123 = vector.load %arg2[%c2_65, %c0_66, %c0_67, %c0_68] : memref<3x3x128x128xf32, #tpu.memory_space<vmem>>, vector<1x1x128x128xf32>
    %124 = vector.shape_cast %123 : vector<1x1x128x128xf32> to vector<128x128xf32>
    %cst_69 = arith.constant dense<0.000000e+00> : vector<16x128xf32>
    %125 = tpu.matmul %122, %124, %cst_69 {dimension_numbers = #tpu.dot_dimension_numbers<[1], [0], [0], [1], [0, 0, 1, 1], [], []>, precision = #tpu.contract_precision<fp32>} : vector<16x128xf32>, vector<128x128xf32>, vector<16x128xf32> -> vector<16x128xf32>
    %126 = vector.broadcast %121 : vector<1x128xf32> to vector<16x128xf32>
    %127 = arith.addf %126, %125 : vector<16x128xf32>
    %128 = vector.extract_strided_slice %119 {offsets = [1, 0], sizes = [16, 128], strides = [1, 1]} : vector<18x128xf32> to vector<16x128xf32>
    %c2_70 = arith.constant 2 : index
    %c1_71 = arith.constant 1 : index
    %c0_72 = arith.constant 0 : index
    %c0_73 = arith.constant 0 : index
    %129 = vector.load %arg2[%c2_70, %c1_71, %c0_72, %c0_73] : memref<3x3x128x128xf32, #tpu.memory_space<vmem>>, vector<1x1x128x128xf32>
    %130 = vector.shape_cast %129 : vector<1x1x128x128xf32> to vector<128x128xf32>
    %cst_74 = arith.constant dense<0.000000e+00> : vector<16x128xf32>
    %131 = tpu.matmul %128, %130, %cst_74 {dimension_numbers = #tpu.dot_dimension_numbers<[1], [0], [0], [1], [0, 0, 1, 1], [], []>, precision = #tpu.contract_precision<fp32>} : vector<16x128xf32>, vector<128x128xf32>, vector<16x128xf32> -> vector<16x128xf32>
    %132 = arith.addf %127, %131 : vector<16x128xf32>
    %133 = vector.extract_strided_slice %119 {offsets = [2, 0], sizes = [16, 128], strides = [1, 1]} : vector<18x128xf32> to vector<16x128xf32>
    %c2_75 = arith.constant 2 : index
    %c2_76 = arith.constant 2 : index
    %c0_77 = arith.constant 0 : index
    %c0_78 = arith.constant 0 : index
    %134 = vector.load %arg2[%c2_75, %c2_76, %c0_77, %c0_78] : memref<3x3x128x128xf32, #tpu.memory_space<vmem>>, vector<1x1x128x128xf32>
    %135 = vector.shape_cast %134 : vector<1x1x128x128xf32> to vector<128x128xf32>
    %cst_79 = arith.constant dense<0.000000e+00> : vector<16x128xf32>
    %136 = tpu.matmul %133, %135, %cst_79 {dimension_numbers = #tpu.dot_dimension_numbers<[1], [0], [0], [1], [0, 0, 1, 1], [], []>, precision = #tpu.contract_precision<fp32>} : vector<16x128xf32>, vector<128x128xf32>, vector<16x128xf32> -> vector<16x128xf32>
    %137 = arith.addf %132, %136 : vector<16x128xf32>
    %cst_80 = arith.constant dense<0.000000e+00> : vector<128xf32>
    %138 = vector.multi_reduction <add>, %137, %cst_80 [0] : vector<16x128xf32> to vector<128xf32>
    %139 = vector.shape_cast %138 : vector<128xf32> to vector<1x128xf32>
    %c8_i32_81 = arith.constant 8 : i32
    %140 = tpu.dynamic_rotate %139 by %c8_i32_81 dim 1 : vector<1x128xf32>, i32 -> vector<1x128xf32>
    %141 = arith.addf %139, %140 : vector<1x128xf32>
    %c16_i32_82 = arith.constant 16 : i32
    %142 = tpu.dynamic_rotate %141 by %c16_i32_82 dim 1 : vector<1x128xf32>, i32 -> vector<1x128xf32>
    %143 = arith.addf %141, %142 : vector<1x128xf32>
    %c32_i32_83 = arith.constant 32 : i32
    %144 = tpu.dynamic_rotate %143 by %c32_i32_83 dim 1 : vector<1x128xf32>, i32 -> vector<1x128xf32>
    %145 = arith.addf %143, %144 : vector<1x128xf32>
    %c64_i32_84 = arith.constant 64 : i32
    %146 = tpu.dynamic_rotate %145 by %c64_i32_84 dim 1 : vector<1x128xf32>, i32 -> vector<1x128xf32>
    %147 = arith.addf %145, %146 : vector<1x128xf32>
    %148 = arith.mulf %137, %137 : vector<16x128xf32>
    %cst_85 = arith.constant dense<0.000000e+00> : vector<128xf32>
    %149 = vector.multi_reduction <add>, %148, %cst_85 [0] : vector<16x128xf32> to vector<128xf32>
    %150 = vector.shape_cast %149 : vector<128xf32> to vector<1x128xf32>
    %c8_i32_86 = arith.constant 8 : i32
    %151 = tpu.dynamic_rotate %150 by %c8_i32_86 dim 1 : vector<1x128xf32>, i32 -> vector<1x128xf32>
    %152 = arith.addf %150, %151 : vector<1x128xf32>
    %c16_i32_87 = arith.constant 16 : i32
    %153 = tpu.dynamic_rotate %152 by %c16_i32_87 dim 1 : vector<1x128xf32>, i32 -> vector<1x128xf32>
    %154 = arith.addf %152, %153 : vector<1x128xf32>
    %c32_i32_88 = arith.constant 32 : i32
    %155 = tpu.dynamic_rotate %154 by %c32_i32_88 dim 1 : vector<1x128xf32>, i32 -> vector<1x128xf32>
    %156 = arith.addf %154, %155 : vector<1x128xf32>
    %c64_i32_89 = arith.constant 64 : i32
    %157 = tpu.dynamic_rotate %156 by %c64_i32_89 dim 1 : vector<1x128xf32>, i32 -> vector<1x128xf32>
    %158 = arith.addf %156, %157 : vector<1x128xf32>
    %cst_90 = arith.constant 3.906250e-03 : f32
    %159 = vector.broadcast %cst_90 : f32 to vector<1x128xf32>
    %160 = arith.mulf %147, %159 : vector<1x128xf32>
    %cst_91 = arith.constant 3.906250e-03 : f32
    %161 = vector.broadcast %cst_91 : f32 to vector<1x128xf32>
    %162 = arith.mulf %158, %161 : vector<1x128xf32>
    %163 = arith.mulf %160, %160 : vector<1x128xf32>
    %164 = arith.subf %162, %163 : vector<1x128xf32>
    %165 = vector.broadcast %160 : vector<1x128xf32> to vector<16x128xf32>
    %166 = arith.subf %137, %165 : vector<16x128xf32>
    %cst_92 = arith.constant 9.99999974E-6 : f32
    %167 = vector.broadcast %cst_92 : f32 to vector<1x128xf32>
    %168 = arith.addf %164, %167 : vector<1x128xf32>
    %169 = math.rsqrt %168 : vector<1x128xf32>
    %170 = vector.broadcast %169 : vector<1x128xf32> to vector<16x128xf32>
    %171 = arith.mulf %166, %170 : vector<16x128xf32>
    %cst_93 = arith.constant 0.000000e+00 : f32
    %172 = vector.broadcast %cst_93 : f32 to vector<16x128xf32>
    %173 = arith.cmpf oge, %171, %172 : vector<16x128xf32>
    %cst_94 = arith.constant 2.000000e-01 : f32
    %174 = vector.broadcast %cst_94 : f32 to vector<16x128xf32>
    %175 = arith.mulf %174, %171 : vector<16x128xf32>
    %176 = arith.select %173, %171, %175 : vector<16x128xi1>, vector<16x128xf32>
    %177 = arith.addf %1, %176 : vector<16x128xf32>
    %c0_95 = arith.constant 0 : index
    %c0_96 = arith.constant 0 : index
    %c0_97 = arith.constant 0 : index
    %178 = vector.load %arg4[%c0_95, %c0_96, %c0_97] : memref<1x16x128xf32, #tpu.memory_space<vmem>>, vector<1x16x128xf32>
    %179 = vector.shape_cast %178 : vector<1x16x128xf32> to vector<16x128xf32>
    %180 = vector.shape_cast %177 : vector<16x128xf32> to vector<1x16x128xf32>
    tpu.vector_store %arg4[%c0_95, %c0_96, %c0_97], %180 {strides = array<i32>} : memref<1x16x128xf32, #tpu.memory_space<vmem>>, vector<1x16x128xf32>,
    return
  }
  func.func @transform_0(%arg0: i32) -> (i32, i32, i32) {
    %c0_i32 = arith.constant 0 : i32
    %c0_i32_0 = arith.constant 0 : i32
    %c0_i32_1 = arith.constant 0 : i32
    return %arg0, %c0_i32, %c0_i32_0 : i32, i32, i32
  }
  func.func @transform_1(%arg0: i32) -> (i32, i32, i32, i32) {
    %c0_i32 = arith.constant 0 : i32
    %c0_i32_0 = arith.constant 0 : i32
    %c0_i32_1 = arith.constant 0 : i32
    %c0_i32_2 = arith.constant 0 : i32
    %c0_i32_3 = arith.constant 0 : i32
    return %c0_i32, %c0_i32_0, %c0_i32_1, %c0_i32_2 : i32, i32, i32, i32
  }
  func.func @transform_2(%arg0: i32) -> (i32, i32, i32) {
    %c0_i32 = arith.constant 0 : i32
    %c0_i32_0 = arith.constant 0 : i32
    %c0_i32_1 = arith.constant 0 : i32
    %c0_i32_2 = arith.constant 0 : i32
    return %c0_i32, %c0_i32_0, %c0_i32_1 : i32, i32, i32
  }
  func.func @transform_3(%arg0: i32) -> (i32, i32, i32) {
    %c0_i32 = arith.constant 0 : i32
    %c0_i32_0 = arith.constant 0 : i32
    %c0_i32_1 = arith.constant 0 : i32
    return %arg0, %c0_i32, %c0_i32_0 : i32, i32, i32
  }
}

</mosaic_0001>

<llo_original>
// kernel: tpu_custom_call.1
$region0: #{tpu_custom_call.1}
  #allocation0 [shape = 'u32[]', space=smem, size = 0x4, offset = 0x4, fixed_abs, tag = 'smem constant byte address 0x4 - core index']
  #allocation1 [shape = 'u32[144,128]{1,0:T(1,128)}', space=vmem, size = 0x12000, scoped, tag = 'internal scratch']
  %s0 = inlined_call_operand.hbm [shape: f32[2,16,128], index: 0, kind: input, shape index: {}]
  %s1 = inlined_call_operand.hbm [shape: f32[3,3,128,128], index: 1, kind: input, shape index: {}]
  %s2 = inlined_call_operand.vmem [shape: f32[3,1,128], index: 2, kind: input, shape index: {}]
  %s3 = inlined_call_operand.hbm [shape: f32[2,16,128], index: 3, kind: output, shape index: {}]
  %s4 = sld [smem:[#allocation0]]
  $region53: #{tpu_custom_call.1} parent=0
    _
  %s6 = ssub.s32 1, %s4
  %s7 = scalar_select 0, %s6, %s4
  $region1: #{tpu_custom_call.1} parent=0
    #allocation2 [shape = 'u8[16384]{0}', space=vmem, size = 0x4000, scoped, tag = 'input window, operand 0']
    #allocation3 [shape = 's32[2]{0}', space=sflag, size = 0x8, scoped, tag = 'scoped memory for tpu_custom_call.1']
    #allocation4 [shape = 's32[2]{0}', space=sflag, size = 0x8, scoped, tag = 'scoped memory for tpu_custom_call.1']
    #allocation5 [shape = 'u8[589824]{0}', space=vmem, size = 0x90000, scoped, tag = 'input window, operand 1, single buffered']
    #allocation6 [shape = 's32[1]{0}', space=sflag, size = 0x4, scoped, tag = 'scoped memory for tpu_custom_call.1']
    #allocation7 [shape = 'u8[16384]{0}', space=vmem, size = 0x4000, scoped, tag = 'output window, operand 0']
    %8 = vsyncpa [#allocation3], 0
    %s9 = scalar_lea.sflag [#allocation3], 1
    %10 = vsyncpa %s9, 0
    %11 = vsyncpa [#allocation6], 0
    %12 = vsyncpa [#allocation4], 0
    %s13 = scalar_lea.sflag [#allocation4], 1
    %14 = vsyncpa %s13, 0
    loop: start=0, step=1, limit=4
    $region2: #{tpu_custom_call.1} parent=1 // loop_pre_header
      _
    $region3: #{tpu_custom_call.1} parent=1 // loop_header
      %s16 = sphi 0, %s20
      %p17 = scmp.ge.s32.totalorder %s16, 4
      %s26 = sphi 0, %s28
      %s29 = sphi 0, %s26
      %s30 = sphi 0, %s29
      %s46 = sphi 0, %s30
      %s50 = sphi 0, %s50
      %s52 = sphi 0, %s50
      %s53 = sphi 0, %s52
      %s67 = sphi 0, %s53
      %s71 = sphi 0, %s71
      %s73 = sphi 0, %s71
      %s74 = sphi 0, %s73
      %s88 = sphi 0, %s74
      %s94 = sphi 0, %s96
      %s97 = sphi 0, %s94
      %s98 = sphi 0, %s97
      %s114 = sphi 0, %s98
    $region4: #{tpu_custom_call.1} parent=1 // loop_header_branch
      %19 = sbr.rel (%p17) target = $region8
    $region5: #{tpu_custom_call.1} parent=1 // loop_body
      %s21 = ssub.s32 %s16, 1
      %s22 = ssub.s32 %s16, 2
      %s23 = sadd.s32 %s16, 1
      %s24 = ssub.s32 %s16, %s23
      %p25 = scmp.eq.s32.totalorder %s24, 0
      %s27 = sadd.s32 %s26, 1
      %s28 = scalar_select %p25, %s26, %s27
      %p31 = pneg %p25
      %p32 = scmp.eq.s32.totalorder %s16, 1
      %p33 = por %p31, %p32
      %p34 = scmp.ne.s32.totalorder %s26, %s29
      %p35 = scmp.eq.s32.totalorder %s16, 0
      %p36 = por %p34, %p35
      %p37 = scmp.ne.s32.totalorder %s26, %s29
      %p38 = scmp.eq.s32.totalorder %s21, 1
      %p39 = por %p37, %p38
      %p40 = scmp.ne.s32.totalorder %s29, %s30
      %p41 = scmp.eq.s32.totalorder %s21, 0
      %p42 = por %p40, %p41
      %p43 = scmp.ne.s32.totalorder %s29, %s30
      %p44 = scmp.eq.s32.totalorder %s22, 1
      %p45 = por %p43, %p44
      %p47 = scmp.ne.s32.totalorder %s30, %s46
      %p48 = scmp.eq.s32.totalorder %s22, 0
      %p49 = por %p47, %p48
      %s51 = sadd.s32 %s50, 1
      %p54 = scmp.eq.s32.totalorder %s16, 1
      %p55 = scmp.ne.s32.totalorder %s50, %s52
      %p56 = scmp.eq.s32.totalorder %s16, 0
      %p57 = por %p55, %p56
      %p58 = scmp.ne.s32.totalorder %s50, %s52
      %p59 = scmp.eq.s32.totalorder %s21, 1
      %p60 = por %p58, %p59
      %p61 = scmp.ne.s32.totalorder %s52, %s53
      %p62 = scmp.eq.s32.totalorder %s21, 0
      %p63 = por %p61, %p62
      %p64 = scmp.ne.s32.totalorder %s52, %s53
      %p65 = scmp.eq.s32.totalorder %s22, 1
      %p66 = por %p64, %p65
      %p68 = scmp.ne.s32.totalorder %s53, %s67
      %p69 = scmp.eq.s32.totalorder %s22, 0
      %p70 = por %p68, %p69
      %s72 = sadd.s32 %s71, 1
      %p75 = scmp.eq.s32.totalorder %s16, 1
      %p76 = scmp.ne.s32.totalorder %s71, %s73
      %p77 = scmp.eq.s32.totalorder %s16, 0
      %p78 = por %p76, %p77
      %p79 = scmp.ne.s32.totalorder %s71, %s73
      %p80 = scmp.eq.s32.totalorder %s21, 1
      %p81 = por %p79, %p80
      %p82 = scmp.ne.s32.totalorder %s73, %s74
      %p83 = scmp.eq.s32.totalorder %s21, 0
      %p84 = por %p82, %p83
      %p85 = scmp.ne.s32.totalorder %s73, %s74
      %p86 = scmp.eq.s32.totalorder %s22, 1
      %p87 = por %p85, %p86
      %p89 = scmp.ne.s32.totalorder %s74, %s88
      %p90 = scmp.eq.s32.totalorder %s22, 0
      %p91 = por %p89, %p90
      %s92 = ssub.s32 %s16, %s23
      %p93 = scmp.eq.s32.totalorder %s92, 0
      %s95 = sadd.s32 %s94, 1
      %s96 = scalar_select %p93, %s94, %s95
      %p99 = pneg %p93
      %p100 = scmp.eq.s32.totalorder %s16, 1
      %p101 = por %p99, %p100
      %p102 = scmp.ne.s32.totalorder %s94, %s97
      %p103 = scmp.eq.s32.totalorder %s16, 0
      %p104 = por %p102, %p103
      %p105 = scmp.ne.s32.totalorder %s94, %s97
      %p106 = scmp.eq.s32.totalorder %s21, 1
      %p107 = por %p105, %p106
      %p108 = scmp.ne.s32.totalorder %s97, %s98
      %p109 = scmp.eq.s32.totalorder %s21, 0
      %p110 = por %p108, %p109
      %p111 = scmp.ne.s32.totalorder %s97, %s98
      %p112 = scmp.eq.s32.totalorder %s22, 1
      %p113 = por %p111, %p112
      %p115 = scmp.ne.s32.totalorder %s98, %s114
      %p116 = scmp.eq.s32.totalorder %s22, 0
      %p117 = por %p115, %p116
      %p118 = scmp.le.s32.totalorder 1, %s16
      %p119 = scmp.lt.s32.totalorder %s16, 3
      %p120 = pnand %p118, %p119
      %p121 = pneg %p120
      // Predicated region
      $region9: #{tpu_custom_call.1} parent=5 // pred_check
        _
      $region10: #{tpu_custom_call.1} parent=5 // pred_check_branch
        %123 = sbr.rel (%p120) target = $region12
      $region11: #{tpu_custom_call.1} parent=5 // pred_region
        %s124 = ssub.s32 %s16, 1
        // Predicated region
        $region13: #{tpu_custom_call.1} parent=11 // pred_check
          %p125 = pneg %p63
        $region14: #{tpu_custom_call.1} parent=11 // pred_check_branch
          %127 = sbr.rel (%p125) target = $region16
        $region15: #{tpu_custom_call.1} parent=11 // pred_region
          %s129 = ssub.s32 18432, 18432
          %130 = vsyncadd [#allocation6], %s129
          %s131 = sshll.u32 [#allocation5], 4
          %s132 = int_to_ptr.vmem [resolvable:$true] %s131
          %137 = dma.hbm_to_vmem [thread:$0]  %s1, 18432, %s132, [#allocation6], 128, 128, 8
        $region16: #{tpu_custom_call.1} parent=11 // pred_fallthru
          _
        // Predicated region
        $region17: #{tpu_custom_call.1} parent=11 // pred_check
          %p138 = pneg %p84
        $region18: #{tpu_custom_call.1} parent=11 // pred_check_branch
          %140 = sbr.rel (%p138) target = $region20
        $region19: #{tpu_custom_call.1} parent=11 // pred_region
          _
        $region20: #{tpu_custom_call.1} parent=11 // pred_fallthru
          _
      $region12: #{tpu_custom_call.1} parent=5 // pred_fallthru
        _
      %p141 = scmp.lt.s32.totalorder %s16, 2
      // Predicated region
      $region21: #{tpu_custom_call.1} parent=5 // pred_check
        %p142 = pneg %p141
      $region22: #{tpu_custom_call.1} parent=5 // pred_check_branch
        %144 = sbr.rel (%p142) target = $region24
      $region23: #{tpu_custom_call.1} parent=5 // pred_region
        // Predicated region
        $region25: #{tpu_custom_call.1} parent=23 // pred_check
          %p145 = pneg %p36
        $region26: #{tpu_custom_call.1} parent=23 // pred_check_branch
          %147 = sbr.rel (%p145) target = $region28
        $region27: #{tpu_custom_call.1} parent=23 // pred_region
          %s148 = sand.u32 %s26, 1
          %s149 = scalar_lea.sflag [#allocation3], %s148
          %s150 = sand.u32 %s26, 1
          %s151 = smul.addr %s150, 16
          %s152 = scalar_lea.vmem [#allocation2], %s151
          %s154 = ssub.s32 256, 256
          %155 = vsyncadd %s149, %s154
          %s156 = smul.addr %s16, 2
          %s157 = smul.addr %s156, 128
          %s158 = scalar_lea.hbm %s0, %s157
          %s159 = sshll.u32 %s152, 4
          %s160 = int_to_ptr.vmem [resolvable:$true] %s159
          %165 = dma.hbm_to_vmem [thread:$0]  %s158, 256, %s160, %s149, 128, 128, 8
        $region28: #{tpu_custom_call.1} parent=23 // pred_fallthru
          _
      $region24: #{tpu_custom_call.1} parent=5 // pred_fallthru
        _
      %p166 = scmp.le.s32.totalorder 1, %s16
      %p167 = scmp.lt.s32.totalorder %s16, 3
      %p168 = pnand %p166, %p167
      %p169 = pneg %p168
      // Predicated region
      $region29: #{tpu_custom_call.1} parent=5 // pred_check
        _
      $region30: #{tpu_custom_call.1} parent=5 // pred_check_branch
        %171 = sbr.rel (%p168) target = $region32
      $region31: #{tpu_custom_call.1} parent=5 // pred_region
        %s172 = ssub.s32 %s16, 1
        %s173 = sand.u32 %s29, 1
        %s174 = scalar_lea.sflag [#allocation3], %s173
        %s175 = sand.u32 %s29, 1
        %s176 = smul.addr %s175, 16
        %s177 = scalar_lea.vmem [#allocation2], %s176
        // Predicated region
        $region33: #{tpu_custom_call.1} parent=31 // pred_check
          %p178 = pneg %p42
        $region34: #{tpu_custom_call.1} parent=31 // pred_check_branch
          %180 = sbr.rel (%p178) target = $region36
        $region35: #{tpu_custom_call.1} parent=31 // pred_region
          %181 = dma.done %s174, 256
        $region36: #{tpu_custom_call.1} parent=31 // pred_fallthru
          _
        // Predicated region
        $region37: #{tpu_custom_call.1} parent=31 // pred_check
          %p182 = pneg %p63
        $region38: #{tpu_custom_call.1} parent=31 // pred_check_branch
          %184 = sbr.rel (%p182) target = $region40
        $region39: #{tpu_custom_call.1} parent=31 // pred_region
          %185 = dma.done [#allocation6], 18432
        $region40: #{tpu_custom_call.1} parent=31 // pred_fallthru
          _
        %s186 = sand.u32 %s29, 1
        %s187 = scalar_lea.sflag [#allocation3], %s186
        %s188 = sand.u32 %s29, 1
        %s189 = smul.addr %s188, 16
        %s190 = scalar_lea.vmem [#allocation2], %s189
        %p191 = pneg %p42
        %p192 = pneg %p39
        %p193 = pneg %p63
        %p194 = pneg %p60
        %p195 = pneg %p84
        %p196 = pneg %p81
        %p197 = pneg %p110
        %p198 = pneg %p107
        %s199 = sand.u32 %s97, 1
        %s200 = scalar_lea.sflag [#allocation4], %s199
        %s201 = sand.u32 %s97, 1
        %s202 = smul.addr %s201, 16
        %s203 = scalar_lea.vmem [#allocation7], %s202
        %v204 = vld [vmem:[%s177] sm:$0xff]
        %v205 = vld [vmem:[%s177 + $0x8] sm:$0xff]
        %vm208 = vcmask 1040384
        %v209 = vrot.slane %v204, 7
        %v210 = vrot.slane %v205, 7
        %v211 = vsel %vm208, %v209, %v210
        %v215 = vsel %vm208, 0.0, %v209
        %v216 = vsel %vm208, %v210, 0.0
        %v217 = vld [vmem:[%s2] sm:$0x1]
        %v218 = vld [vmem:[#allocation5] sm:$0xff]
        %v219 = vld [vmem:[#allocation5 + $0x8] sm:$0xff]
        %v220 = vld [vmem:[#allocation5 + $0x10] sm:$0xff]
        %v221 = vld [vmem:[#allocation5 + $0x18] sm:$0xff]
        %v222 = vld [vmem:[#allocation5 + $0x20] sm:$0xff]
        %v223 = vld [vmem:[#allocation5 + $0x28] sm:$0xff]
        %v224 = vld [vmem:[#allocation5 + $0x30] sm:$0xff]
        %v225 = vld [vmem:[#allocation5 + $0x38] sm:$0xff]
        %v226 = vld [vmem:[#allocation5 + $0x40] sm:$0xff]
        %v227 = vld [vmem:[#allocation5 + $0x48] sm:$0xff]
        %v228 = vld [vmem:[#allocation5 + $0x50] sm:$0xff]
        %v229 = vld [vmem:[#allocation5 + $0x58] sm:$0xff]
        %v230 = vld [vmem:[#allocation5 + $0x60] sm:$0xff]
        %v231 = vld [vmem:[#allocation5 + $0x68] sm:$0xff]
        %v232 = vld [vmem:[#allocation5 + $0x70] sm:$0xff]
        %v233 = vld [vmem:[#allocation5 + $0x78] sm:$0xff]
        %234 = vmatprep.subr.mxu0 0.0
        %v235 = vand.u32 %v218, 4294901760
        %236 = vmatpush1.msra.mxu0 %v235
        %237 = vmatprep.subr.mxu0 0.0
        %v238 = vand.u32 %v219, 4294901760
        %239 = vmatpush1.msra.mxu0 %v238
        %240 = vmatprep.subr.mxu0 0.0
        %v241 = vand.u32 %v220, 4294901760
        %242 = vmatpush1.msra.mxu0 %v241
        %243 = vmatprep.subr.mxu0 0.0
        %v244 = vand.u32 %v221, 4294901760
        %245 = vmatpush1.msra.mxu0 %v244
        %246 = vmatprep.subr.mxu0 0.0
        %v247 = vand.u32 %v222, 4294901760
        %248 = vmatpush1.msra.mxu0 %v247
        %249 = vmatprep.subr.mxu0 0.0
        %v250 = vand.u32 %v223, 4294901760
        %251 = vmatpush1.msra.mxu0 %v250
        %252 = vmatprep.subr.mxu0 0.0
        %v253 = vand.u32 %v224, 4294901760
        %254 = vmatpush1.msra.mxu0 %v253
        %255 = vmatprep.subr.mxu0 0.0
        %v256 = vand.u32 %v225, 4294901760
        %257 = vmatpush1.msra.mxu0 %v256
        %258 = vmatprep.subr.mxu0 0.0
        %v259 = vand.u32 %v226, 4294901760
        %260 = vmatpush1.msra.mxu0 %v259
        %261 = vmatprep.subr.mxu0 0.0
        %v262 = vand.u32 %v227, 4294901760
        %263 = vmatpush1.msra.mxu0 %v262
        %264 = vmatprep.subr.mxu0 0.0
        %v265 = vand.u32 %v228, 4294901760
        %266 = vmatpush1.msra.mxu0 %v265
        %267 = vmatprep.subr.mxu0 0.0
        %v268 = vand.u32 %v229, 4294901760
        %269 = vmatpush1.msra.mxu0 %v268
        %270 = vmatprep.subr.mxu0 0.0
        %v271 = vand.u32 %v230, 4294901760
        %272 = vmatpush1.msra.mxu0 %v271
        %273 = vmatprep.subr.mxu0 0.0
        %v274 = vand.u32 %v231, 4294901760
        %275 = vmatpush1.msra.mxu0 %v274
        %276 = vmatprep.subr.mxu0 0.0
        %v277 = vand.u32 %v232, 4294901760
        %278 = vmatpush1.msra.mxu0 %v277
        %279 = vmatprep.subr.mxu0 0.0
        %v280 = vand.u32 %v233, 4294901760
        %281 = vmatpush1.msra.mxu0 %v280
        %282 = vmatprep.subr.mxu0 0.0
        %283 = vmatpush1.msra.mxu0 0.0
        %284 = vmatprep.subr.mxu0 0.0
        %285 = vmatpush1.msra.mxu0 0.0
        %286 = vmatprep.subr.mxu0 0.0
        %287 = vmatpush1.msra.mxu0 0.0
        %288 = vmatprep.subr.mxu0 0.0
        %289 = vmatpush1.msra.mxu0 0.0
        %290 = vmatprep.subr.mxu0 0.0
        %291 = vmatpush1.msra.mxu0 0.0
        %292 = vmatprep.subr.mxu0 0.0
        %293 = vmatpush1.msra.mxu0 0.0
        %294 = vmatprep.subr.mxu0 0.0
        %295 = vmatpush1.msra.mxu0 0.0
        %296 = vmatprep.subr.mxu0 0.0
        %297 = vmatpush1.msra.mxu0 0.0
        %298 = vmatprep.subr.mxu0 0.0
        %299 = vmatpush1.msra.mxu0 0.0
        %300 = vmatprep.subr.mxu0 0.0
        %301 = vmatpush1.msra.mxu0 0.0
        %302 = vmatprep.subr.mxu0 0.0
        %303 = vmatpush1.msra.mxu0 0.0
        %304 = vmatprep.subr.mxu0 0.0
        %305 = vmatpush1.msra.mxu0 0.0
        %306 = vmatprep.subr.mxu0 0.0
        %307 = vmatpush1.msra.mxu0 0.0
        %308 = vmatprep.subr.mxu0 0.0
        %309 = vmatpush1.msra.mxu0 0.0
        %310 = vmatprep.subr.mxu0 0.0
        %311 = vmatpush1.msra.mxu0 0.0
        %312 = vmatprep.subr.mxu0 0.0
        %313 = vmatpush1.msra.mxu0 0.0
        %314 = vmatprep.mubr.f32.mxu0 0.0
        %v315 = vand.u32 %v215, 4294901760
        %v316 = vsub.f32 %v215, %v315
        %v317 = vand.u32 %v316, 4294901760
        %v318 = vsub.f32 %v316, %v317
        %v319 = vand.u32 %v318, 4294901760
        %320 = vmatmul.mubr.f32.gmra.mrb[0].mxu0 %v319
        %v321 = vpop.f32.mrb[0].mxu0
        %v322 = vadd.f32 0.0, %v321
        %v323 = vpop.f32.mrb[0].mxu0
        %324 = vmatprep.mubr.f32.mxu0 0.0
        %v325 = vand.u32 %v211, 4294901760
        %v326 = vsub.f32 %v211, %v325
        %v327 = vand.u32 %v326, 4294901760
        %v328 = vsub.f32 %v326, %v327
        %v329 = vand.u32 %v328, 4294901760
        %330 = vmatmul.mubr.f32.gmra.mrb[0].mxu0 %v329
        %v331 = vpop.f32.mrb[0].mxu0
        %v332 = vadd.f32 0.0, %v331
        %v333 = vpop.f32.mrb[0].mxu0
        %334 = vdwg.mxu0
        %335 = vmatprep.subr.mxu0 0.0
        %v336 = vand.u32 %v218, 4294901760
        %v337 = vsub.f32 %v218, %v336
        %v338 = vand.u32 %v337, 4294901760
        %v339 = vsub.f32 %v337, %v338
        %v340 = vand.u32 %v339, 4294901760
        %341 = vmatpush1.msra.mxu0 %v340
        %342 = vmatprep.subr.mxu0 0.0
        %v343 = vand.u32 %v219, 4294901760
        %v344 = vsub.f32 %v219, %v343
        %v345 = vand.u32 %v344, 4294901760
        %v346 = vsub.f32 %v344, %v345
        %v347 = vand.u32 %v346, 4294901760
        %348 = vmatpush1.msra.mxu0 %v347
        %349 = vmatprep.subr.mxu0 0.0
        %v350 = vand.u32 %v220, 4294901760
        %v351 = vsub.f32 %v220, %v350
        %v352 = vand.u32 %v351, 4294901760
        %v353 = vsub.f32 %v351, %v352
        %v354 = vand.u32 %v353, 4294901760
        %355 = vmatpush1.msra.mxu0 %v354
        %356 = vmatprep.subr.mxu0 0.0
        %v357 = vand.u32 %v221, 4294901760
        %v358 = vsub.f32 %v221, %v357
        %v359 = vand.u32 %v358, 4294901760
        %v360 = vsub.f32 %v358, %v359
        %v361 = vand.u32 %v360, 4294901760
        %362 = vmatpush1.msra.mxu0 %v361
        %363 = vmatprep.subr.mxu0 0.0
        %v364 = vand.u32 %v222, 4294901760
        %v365 = vsub.f32 %v222, %v364
        %v366 = vand.u32 %v365, 4294901760
        %v367 = vsub.f32 %v365, %v366
        %v368 = vand.u32 %v367, 4294901760
        %369 = vmatpush1.msra.mxu0 %v368
        %370 = vmatprep.subr.mxu0 0.0
        %v371 = vand.u32 %v223, 4294901760
        %v372 = vsub.f32 %v223, %v371
        %v373 = vand.u32 %v372, 4294901760
        %v374 = vsub.f32 %v372, %v373
        %v375 = vand.u32 %v374, 4294901760
        %376 = vmatpush1.msra.mxu0 %v375
        %377 = vmatprep.subr.mxu0 0.0
        %v378 = vand.u32 %v224, 4294901760
        %v379 = vsub.f32 %v224, %v378
        %v380 = vand.u32 %v379, 4294901760
        %v381 = vsub.f32 %v379, %v380
        %v382 = vand.u32 %v381, 4294901760
        %383 = vmatpush1.msra.mxu0 %v382
        %384 = vmatprep.subr.mxu0 0.0
        %v385 = vand.u32 %v225, 4294901760
        %v386 = vsub.f32 %v225, %v385
        %v387 = vand.u32 %v386, 4294901760
        %v388 = vsub.f32 %v386, %v387
        %v389 = vand.u32 %v388, 4294901760
        %390 = vmatpush1.msra.mxu0 %v389
        %391 = vmatprep.subr.mxu0 0.0
        %v392 = vand.u32 %v226, 4294901760
        %v393 = vsub.f32 %v226, %v392
        %v394 = vand.u32 %v393, 4294901760
        %v395 = vsub.f32 %v393, %v394
        %v396 = vand.u32 %v395, 4294901760
        %397 = vmatpush1.msra.mxu0 %v396
        %398 = vmatprep.subr.mxu0 0.0
        %v399 = vand.u32 %v227, 4294901760
        %v400 = vsub.f32 %v227, %v399
        %v401 = vand.u32 %v400, 4294901760
        %v402 = vsub.f32 %v400, %v401
        %v403 = vand.u32 %v402, 4294901760
        %404 = vmatpush1.msra.mxu0 %v403
        %405 = vmatprep.subr.mxu0 0.0
        %v406 = vand.u32 %v228, 4294901760
        %v407 = vsub.f32 %v228, %v406
        %v408 = vand.u32 %v407, 4294901760
        %v409 = vsub.f32 %v407, %v408
        %v410 = vand.u32 %v409, 4294901760
        %411 = vmatpush1.msra.mxu0 %v410
        %412 = vmatprep.subr.mxu0 0.0
        %v413 = vand.u32 %v229, 4294901760
        %v414 = vsub.f32 %v229, %v413
        %v415 = vand.u32 %v414, 4294901760
        %v416 = vsub.f32 %v414, %v415
        %v417 = vand.u32 %v416, 4294901760
        %418 = vmatpush1.msra.mxu0 %v417
        %419 = vmatprep.subr.mxu0 0.0
        %v420 = vand.u32 %v230, 4294901760
        %v421 = vsub.f32 %v230, %v420
        %v422 = vand.u32 %v421, 4294901760
        %v423 = vsub.f32 %v421, %v422
        %v424 = vand.u32 %v423, 4294901760
        %425 = vmatpush1.msra.mxu0 %v424
        %426 = vmatprep.subr.mxu0 0.0
        %v427 = vand.u32 %v231, 4294901760
        %v428 = vsub.f32 %v231, %v427
        %v429 = vand.u32 %v428, 4294901760
        %v430 = vsub.f32 %v428, %v429
        %v431 = vand.u32 %v430, 4294901760
        %432 = vmatpush1.msra.mxu0 %v431
        %433 = vmatprep.subr.mxu0 0.0
        %v434 = vand.u32 %v232, 4294901760
        %v435 = vsub.f32 %v232, %v434
        %v436 = vand.u32 %v435, 4294901760
        %v437 = vsub.f32 %v435, %v436
        %v438 = vand.u32 %v437, 4294901760
        %439 = vmatpush1.msra.mxu0 %v438
        %440 = vmatprep.subr.mxu0 0.0
        %v441 = vand.u32 %v233, 4294901760
        %v442 = vsub.f32 %v233, %v441
        %v443 = vand.u32 %v442, 4294901760
        %v444 = vsub.f32 %v442, %v443
        %v445 = vand.u32 %v444, 4294901760
        %446 = vmatpush1.msra.mxu0 %v445
        %447 = vmatprep.subr.mxu0 0.0
        %448 = vmatpush1.msra.mxu0 0.0
        %449 = vmatprep.subr.mxu0 0.0
        %450 = vmatpush1.msra.mxu0 0.0
        %451 = vmatprep.subr.mxu0 0.0
        %452 = vmatpush1.msra.mxu0 0.0
        %453 = vmatprep.subr.mxu0 0.0
        %454 = vmatpush1.msra.mxu0 0.0
        %455 = vmatprep.subr.mxu0 0.0
        %456 = vmatpush1.msra.mxu0 0.0
        %457 = vmatprep.subr.mxu0 0.0
        %458 = vmatpush1.msra.mxu0 0.0
        %459 = vmatprep.subr.mxu0 0.0
        %460 = vmatpush1.msra.mxu0 0.0
        %461 = vmatprep.subr.mxu0 0.0
        %462 = vmatpush1.msra.mxu0 0.0
        %463 = vmatprep.subr.mxu0 0.0
        %464 = vmatpush1.msra.mxu0 0.0
        %465 = vmatprep.subr.mxu0 0.0
        %466 = vmatpush1.msra.mxu0 0.0
        %467 = vmatprep.subr.mxu0 0.0
        %468 = vmatpush1.msra.mxu0 0.0
        %469 = vmatprep.subr.mxu0 0.0
        %470 = vmatpush1.msra.mxu0 0.0
        %471 = vmatprep.subr.mxu0 0.0
        %472 = vmatpush1.msra.mxu0 0.0
        %473 = vmatprep.subr.mxu0 0.0
        %474 = vmatpush1.msra.mxu0 0.0
        %475 = vmatprep.subr.mxu0 0.0
        %476 = vmatpush1.msra.mxu0 0.0
        %477 = vmatprep.subr.mxu0 0.0
        %478 = vmatpush1.msra.mxu0 0.0
        %479 = vmatprep.mubr.f32.mxu0 0.0
        %v480 = vand.u32 %v215, 4294901760
        %481 = vmatmul.mubr.f32.gmra.mrb[0].mxu0 %v480
        %v482 = vpop.f32.mrb[0].mxu0
        %v483 = vadd.f32 %v322, %v482
        %v484 = vpop.f32.mrb[0].mxu0
        %485 = vmatprep.mubr.f32.mxu0 0.0
        %v486 = vand.u32 %v211, 4294901760
        %487 = vmatmul.mubr.f32.gmra.mrb[0].mxu0 %v486
        %v488 = vpop.f32.mrb[0].mxu0
        %v489 = vadd.f32 %v332, %v488
        %v490 = vpop.f32.mrb[0].mxu0
        %491 = vdwg.mxu0
        %492 = vmatprep.subr.mxu0 0.0
        %v493 = vand.u32 %v218, 4294901760
        %v494 = vsub.f32 %v218, %v493
        %495 = vmatpush1.msra.mxu0 %v494
        %496 = vmatprep.subr.mxu0 0.0
        %v497 = vand.u32 %v219, 4294901760
        %v498 = vsub.f32 %v219, %v497
        %499 = vmatpush1.msra.mxu0 %v498
        %500 = vmatprep.subr.mxu0 0.0
        %v501 = vand.u32 %v220, 4294901760
        %v502 = vsub.f32 %v220, %v501
        %503 = vmatpush1.msra.mxu0 %v502
        %504 = vmatprep.subr.mxu0 0.0
        %v505 = vand.u32 %v221, 4294901760
        %v506 = vsub.f32 %v221, %v505
        %507 = vmatpush1.msra.mxu0 %v506
        %508 = vmatprep.subr.mxu0 0.0
        %v509 = vand.u32 %v222, 4294901760
        %v510 = vsub.f32 %v222, %v509
        %511 = vmatpush1.msra.mxu0 %v510
        %512 = vmatprep.subr.mxu0 0.0
        %v513 = vand.u32 %v223, 4294901760
        %v514 = vsub.f32 %v223, %v513
        %515 = vmatpush1.msra.mxu0 %v514
        %516 = vmatprep.subr.mxu0 0.0
        %v517 = vand.u32 %v224, 4294901760
        %v518 = vsub.f32 %v224, %v517
        %519 = vmatpush1.msra.mxu0 %v518
        %520 = vmatprep.subr.mxu0 0.0
        %v521 = vand.u32 %v225, 4294901760
        %v522 = vsub.f32 %v225, %v521
        %523 = vmatpush1.msra.mxu0 %v522
        %524 = vmatprep.subr.mxu0 0.0
        %v525 = vand.u32 %v226, 4294901760
        %v526 = vsub.f32 %v226, %v525
        %527 = vmatpush1.msra.mxu0 %v526
        %528 = vmatprep.subr.mxu0 0.0
        %v529 = vand.u32 %v227, 4294901760
        %v530 = vsub.f32 %v227, %v529
        %531 = vmatpush1.msra.mxu0 %v530
        %532 = vmatprep.subr.mxu0 0.0
        %v533 = vand.u32 %v228, 4294901760
        %v534 = vsub.f32 %v228, %v533
        %535 = vmatpush1.msra.mxu0 %v534
        %536 = vmatprep.subr.mxu0 0.0
        %v537 = vand.u32 %v229, 4294901760
        %v538 = vsub.f32 %v229, %v537
        %539 = vmatpush1.msra.mxu0 %v538
        %540 = vmatprep.subr.mxu0 0.0
        %v541 = vand.u32 %v230, 4294901760
        %v542 = vsub.f32 %v230, %v541
        %543 = vmatpush1.msra.mxu0 %v542
        %544 = vmatprep.subr.mxu0 0.0
        %v545 = vand.u32 %v231, 4294901760
        %v546 = vsub.f32 %v231, %v545
        %547 = vmatpush1.msra.mxu0 %v546
        %548 = vmatprep.subr.mxu0 0.0
        %v549 = vand.u32 %v232, 4294901760
        %v550 = vsub.f32 %v232, %v549
        %551 = vmatpush1.msra.mxu0 %v550
        %552 = vmatprep.subr.mxu0 0.0
        %v553 = vand.u32 %v233, 4294901760
        %v554 = vsub.f32 %v233, %v553
        %555 = vmatpush1.msra.mxu0 %v554
        %556 = vmatprep.subr.mxu0 0.0
        %557 = vmatpush1.msra.mxu0 0.0
        %558 = vmatprep.subr.mxu0 0.0
        %559 = vmatpush1.msra.mxu0 0.0
        %560 = vmatprep.subr.mxu0 0.0
        %561 = vmatpush1.msra.mxu0 0.0
        %562 = vmatprep.subr.mxu0 0.0
        %563 = vmatpush1.msra.mxu0 0.0
        %564 = vmatprep.subr.mxu0 0.0
        %565 = vmatpush1.msra.mxu0 0.0
        %566 = vmatprep.subr.mxu0 0.0
        %567 = vmatpush1.msra.mxu0 0.0
        %568 = vmatprep.subr.mxu0 0.0
        %569 = vmatpush1.msra.mxu0 0.0
        %570 = vmatprep.subr.mxu0 0.0
        %571 = vmatpush1.msra.mxu0 0.0
        %572 = vmatprep.subr.mxu0 0.0
        %573 = vmatpush1.msra.mxu0 0.0
        %574 = vmatprep.subr.mxu0 0.0
        %575 = vmatpush1.msra.mxu0 0.0
        %576 = vmatprep.subr.mxu0 0.0
        %577 = vmatpush1.msra.mxu0 0.0
        %578 = vmatprep.subr.mxu0 0.0
        %579 = vmatpush1.msra.mxu0 0.0
        %580 = vmatprep.subr.mxu0 0.0
        %581 = vmatpush1.msra.mxu0 0.0
        %582 = vmatprep.subr.mxu0 0.0
        %583 = vmatpush1.msra.mxu0 0.0
        %584 = vmatprep.subr.mxu0 0.0
        %585 = vmatpush1.msra.mxu0 0.0
        %586 = vmatprep.subr.mxu0 0.0
        %587 = vmatpush1.msra.mxu0 0.0
        %588 = vmatprep.mubr.f32.mxu0 0.0
        %v589 = vand.u32 %v215, 4294901760
        %v590 = vsub.f32 %v215, %v589
        %591 = vmatmul.mubr.f32.gmra.mrb[0].mxu0 %v590
        %v592 = vpop.f32.mrb[0].mxu0
        %v593 = vadd.f32 %v483, %v592
        %v594 = vpop.f32.mrb[0].mxu0
        %595 = vmatprep.mubr.f32.mxu0 0.0
        %v596 = vand.u32 %v211, 4294901760
        %v597 = vsub.f32 %v211, %v596
        %598 = vmatmul.mubr.f32.gmra.mrb[0].mxu0 %v597
        %v599 = vpop.f32.mrb[0].mxu0
        %v600 = vadd.f32 %v489, %v599
        %v601 = vpop.f32.mrb[0].mxu0
        %602 = vdwg.mxu0
        %603 = vmatprep.subr.mxu0 0.0
        %v604 = vand.u32 %v218, 4294901760
        %605 = vmatpush1.msra.mxu0 %v604
        %606 = vmatprep.subr.mxu0 0.0
        %v607 = vand.u32 %v219, 4294901760
        %608 = vmatpush1.msra.mxu0 %v607
        %609 = vmatprep.subr.mxu0 0.0
        %v610 = vand.u32 %v220, 4294901760
        %611 = vmatpush1.msra.mxu0 %v610
        %612 = vmatprep.subr.mxu0 0.0
        %v613 = vand.u32 %v221, 4294901760
        %614 = vmatpush1.msra.mxu0 %v613
        %615 = vmatprep.subr.mxu0 0.0
        %v616 = vand.u32 %v222, 4294901760
        %617 = vmatpush1.msra.mxu0 %v616
        %618 = vmatprep.subr.mxu0 0.0
        %v619 = vand.u32 %v223, 4294901760
        %620 = vmatpush1.msra.mxu0 %v619
        %621 = vmatprep.subr.mxu0 0.0
        %v622 = vand.u32 %v224, 4294901760
        %623 = vmatpush1.msra.mxu0 %v622
        %624 = vmatprep.subr.mxu0 0.0
        %v625 = vand.u32 %v225, 4294901760
        %626 = vmatpush1.msra.mxu0 %v625
        %627 = vmatprep.subr.mxu0 0.0
        %v628 = vand.u32 %v226, 4294901760
        %629 = vmatpush1.msra.mxu0 %v628
        %630 = vmatprep.subr.mxu0 0.0
        %v631 = vand.u32 %v227, 4294901760
        %632 = vmatpush1.msra.mxu0 %v631
        %633 = vmatprep.subr.mxu0 0.0
        %v634 = vand.u32 %v228, 4294901760
        %635 = vmatpush1.msra.mxu0 %v634
        %636 = vmatprep.subr.mxu0 0.0
        %v637 = vand.u32 %v229, 4294901760
        %638 = vmatpush1.msra.mxu0 %v637
        %639 = vmatprep.subr.mxu0 0.0
        %v640 = vand.u32 %v230, 4294901760
        %641 = vmatpush1.msra.mxu0 %v640
        %642 = vmatprep.subr.mxu0 0.0
        %v643 = vand.u32 %v231, 4294901760
        %644 = vmatpush1.msra.mxu0 %v643
        %645 = vmatprep.subr.mxu0 0.0
        %v646 = vand.u32 %v232, 4294901760
        %647 = vmatpush1.msra.mxu0 %v646
        %648 = vmatprep.subr.mxu0 0.0
        %v649 = vand.u32 %v233, 4294901760
        %650 = vmatpush1.msra.mxu0 %v649
        %651 = vmatprep.subr.mxu0 0.0
        %652 = vmatpush1.msra.mxu0 0.0
        %653 = vmatprep.subr.mxu0 0.0
        %654 = vmatpush1.msra.mxu0 0.0
        %655 = vmatprep.subr.mxu0 0.0
        %656 = vmatpush1.msra.mxu0 0.0
        %657 = vmatprep.subr.mxu0 0.0
        %658 = vmatpush1.msra.mxu0 0.0
        %659 = vmatprep.subr.mxu0 0.0
        %660 = vmatpush1.msra.mxu0 0.0
        %661 = vmatprep.subr.mxu0 0.0
        %662 = vmatpush1.msra.mxu0 0.0
        %663 = vmatprep.subr.mxu0 0.0
        %664 = vmatpush1.msra.mxu0 0.0
        %665 = vmatprep.subr.mxu0 0.0
        %666 = vmatpush1.msra.mxu0 0.0
        %667 = vmatprep.subr.mxu0 0.0
        %668 = vmatpush1.msra.mxu0 0.0
        %669 = vmatprep.subr.mxu0 0.0
        %670 = vmatpush1.msra.mxu0 0.0
        %671 = vmatprep.subr.mxu0 0.0
        %672 = vmatpush1.msra.mxu0 0.0
        %673 = vmatprep.subr.mxu0 0.0
        %674 = vmatpush1.msra.mxu0 0.0
        %675 = vmatprep.subr.mxu0 0.0
        %676 = vmatpush1.msra.mxu0 0.0
        %677 = vmatprep.subr.mxu0 0.0
        %678 = vmatpush1.msra.mxu0 0.0
        %679 = vmatprep.subr.mxu0 0.0
        %680 = vmatpush1.msra.mxu0 0.0
        %681 = vmatprep.subr.mxu0 0.0
        %682 = vmatpush1.msra.mxu0 0.0
        %683 = vmatprep.mubr.f32.mxu0 0.0
        %v684 = vand.u32 %v215, 4294901760
        %v685 = vsub.f32 %v215, %v684
        %v686 = vand.u32 %v685, 4294901760
        %687 = vmatmul.mubr.f32.gmra.mrb[0].mxu0 %v686
        %v688 = vpop.f32.mrb[0].mxu0
        %v689 = vadd.f32 %v593, %v688
        %v690 = vpop.f32.mrb[0].mxu0
        %691 = vmatprep.mubr.f32.mxu0 0.0
        %v692 = vand.u32 %v211, 4294901760
        %v693 = vsub.f32 %v211, %v692
        %v694 = vand.u32 %v693, 4294901760
        %695 = vmatmul.mubr.f32.gmra.mrb[0].mxu0 %v694
        %v696 = vpop.f32.mrb[0].mxu0
        %v697 = vadd.f32 %v600, %v696
        %v698 = vpop.f32.mrb[0].mxu0
        %699 = vdwg.mxu0
        %700 = vmatprep.subr.mxu0 0.0
        %v701 = vand.u32 %v218, 4294901760
        %v702 = vsub.f32 %v218, %v701
        %v703 = vand.u32 %v702, 4294901760
        %704 = vmatpush1.msra.mxu0 %v703
        %705 = vmatprep.subr.mxu0 0.0
        %v706 = vand.u32 %v219, 4294901760
        %v707 = vsub.f32 %v219, %v706
        %v708 = vand.u32 %v707, 4294901760
        %709 = vmatpush1.msra.mxu0 %v708
        %710 = vmatprep.subr.mxu0 0.0
        %v711 = vand.u32 %v220, 4294901760
        %v712 = vsub.f32 %v220, %v711
        %v713 = vand.u32 %v712, 4294901760
        %714 = vmatpush1.msra.mxu0 %v713
        %715 = vmatprep.subr.mxu0 0.0
        %v716 = vand.u32 %v221, 4294901760
        %v717 = vsub.f32 %v221, %v716
        %v718 = vand.u32 %v717, 4294901760
        %719 = vmatpush1.msra.mxu0 %v718
        %720 = vmatprep.subr.mxu0 0.0
        %v721 = vand.u32 %v222, 4294901760
        %v722 = vsub.f32 %v222, %v721
        %v723 = vand.u32 %v722, 4294901760
        %724 = vmatpush1.msra.mxu0 %v723
        %725 = vmatprep.subr.mxu0 0.0
        %v726 = vand.u32 %v223, 4294901760
        %v727 = vsub.f32 %v223, %v726
        %v728 = vand.u32 %v727, 4294901760
        %729 = vmatpush1.msra.mxu0 %v728
        %730 = vmatprep.subr.mxu0 0.0
        %v731 = vand.u32 %v224, 4294901760
        %v732 = vsub.f32 %v224, %v731
        %v733 = vand.u32 %v732, 4294901760
        %734 = vmatpush1.msra.mxu0 %v733
        %735 = vmatprep.subr.mxu0 0.0
        %v736 = vand.u32 %v225, 4294901760
        %v737 = vsub.f32 %v225, %v736
        %v738 = vand.u32 %v737, 4294901760
        %739 = vmatpush1.msra.mxu0 %v738
        %740 = vmatprep.subr.mxu0 0.0
        %v741 = vand.u32 %v226, 4294901760
        %v742 = vsub.f32 %v226, %v741
        %v743 = vand.u32 %v742, 4294901760
        %744 = vmatpush1.msra.mxu0 %v743
        %745 = vmatprep.subr.mxu0 0.0
        %v746 = vand.u32 %v227, 4294901760
        %v747 = vsub.f32 %v227, %v746
        %v748 = vand.u32 %v747, 4294901760
        %749 = vmatpush1.msra.mxu0 %v748
        %750 = vmatprep.subr.mxu0 0.0
        %v751 = vand.u32 %v228, 4294901760
        %v752 = vsub.f32 %v228, %v751
        %v753 = vand.u32 %v752, 4294901760
        %754 = vmatpush1.msra.mxu0 %v753
        %755 = vmatprep.subr.mxu0 0.0
        %v756 = vand.u32 %v229, 4294901760
        %v757 = vsub.f32 %v229, %v756
        %v758 = vand.u32 %v757, 4294901760
        %759 = vmatpush1.msra.mxu0 %v758
        %760 = vmatprep.subr.mxu0 0.0
        %v761 = vand.u32 %v230, 4294901760
        %v762 = vsub.f32 %v230, %v761
        %v763 = vand.u32 %v762, 4294901760
        %764 = vmatpush1.msra.mxu0 %v763
        %765 = vmatprep.subr.mxu0 0.0
        %v766 = vand.u32 %v231, 4294901760
        %v767 = vsub.f32 %v231, %v766
        %v768 = vand.u32 %v767, 4294901760
        %769 = vmatpush1.msra.mxu0 %v768
        %770 = vmatprep.subr.mxu0 0.0
        %v771 = vand.u32 %v232, 4294901760
        %v772 = vsub.f32 %v232, %v771
        %v773 = vand.u32 %v772, 4294901760
        %774 = vmatpush1.msra.mxu0 %v773
        %775 = vmatprep.subr.mxu0 0.0
        %v776 = vand.u32 %v233, 4294901760
        %v777 = vsub.f32 %v233, %v776
        %v778 = vand.u32 %v777, 4294901760
        %779 = vmatpush1.msra.mxu0 %v778
        %780 = vmatprep.subr.mxu0 0.0
        %781 = vmatpush1.msra.mxu0 0.0
        %782 = vmatprep.subr.mxu0 0.0
        %783 = vmatpush1.msra.mxu0 0.0
        %784 = vmatprep.subr.mxu0 0.0
        %785 = vmatpush1.msra.mxu0 0.0
        %786 = vmatprep.subr.mxu0 0.0
        %787 = vmatpush1.msra.mxu0 0.0
        %788 = vmatprep.subr.mxu0 0.0
        %789 = vmatpush1.msra.mxu0 0.0
        %790 = vmatprep.subr.mxu0 0.0
        %791 = vmatpush1.msra.mxu0 0.0
        %792 = vmatprep.subr.mxu0 0.0
        %793 = vmatpush1.msra.mxu0 0.0
        %794 = vmatprep.subr.mxu0 0.0
        %795 = vmatpush1.msra.mxu0 0.0
        %796 = vmatprep.subr.mxu0 0.0
        %797 = vmatpush1.msra.mxu0 0.0
        %798 = vmatprep.subr.mxu0 0.0
        %799 = vmatpush1.msra.mxu0 0.0
        %800 = vmatprep.subr.mxu0 0.0
        %801 = vmatpush1.msra.mxu0 0.0
        %802 = vmatprep.subr.mxu0 0.0
        %803 = vmatpush1.msra.mxu0 0.0
        %804 = vmatprep.subr.mxu0 0.0
        %805 = vmatpush1.msra.mxu0 0.0
        %806 = vmatprep.subr.mxu0 0.0
        %807 = vmatpush1.msra.mxu0 0.0
        %808 = vmatprep.subr.mxu0 0.0
        %809 = vmatpush1.msra.mxu0 0.0
        %810 = vmatprep.subr.mxu0 0.0
        %811 = vmatpush1.msra.mxu0 0.0
        %812 = vmatprep.mubr.f32.mxu0 0.0
        %v813 = vand.u32 %v215, 4294901760
        %814 = vmatmul.mubr.f32.gmra.mrb[0].mxu0 %v813
        %v815 = vpop.f32.mrb[0].mxu0
        %v816 = vadd.f32 %v689, %v815
        %v817 = vpop.f32.mrb[0].mxu0
        %818 = vmatprep.mubr.f32.mxu0 0.0
        %v819 = vand.u32 %v211, 4294901760
        %820 = vmatmul.mubr.f32.gmra.mrb[0].mxu0 %v819
        %v821 = vpop.f32.mrb[0].mxu0
        %v822 = vadd.f32 %v697, %v821
        %v823 = vpop.f32.mrb[0].mxu0
        %824 = vdwg.mxu0
        %825 = vmatprep.subr.mxu0 0.0
        %v826 = vand.u32 %v218, 4294901760
        %827 = vmatpush1.msra.mxu0 %v826
        %828 = vmatprep.subr.mxu0 0.0
        %v829 = vand.u32 %v219, 4294901760
        %830 = vmatpush1.msra.mxu0 %v829
        %831 = vmatprep.subr.mxu0 0.0
        %v832 = vand.u32 %v220, 4294901760
        %833 = vmatpush1.msra.mxu0 %v832
        %834 = vmatprep.subr.mxu0 0.0
        %v835 = vand.u32 %v221, 4294901760
        %836 = vmatpush1.msra.mxu0 %v835
        %837 = vmatprep.subr.mxu0 0.0
        %v838 = vand.u32 %v222, 4294901760
        %839 = vmatpush1.msra.mxu0 %v838
        %840 = vmatprep.subr.mxu0 0.0
        %v841 = vand.u32 %v223, 4294901760
        %842 = vmatpush1.msra.mxu0 %v841
        %843 = vmatprep.subr.mxu0 0.0
        %v844 = vand.u32 %v224, 4294901760
        %845 = vmatpush1.msra.mxu0 %v844
        %846 = vmatprep.subr.mxu0 0.0
        %v847 = vand.u32 %v225, 4294901760
        %848 = vmatpush1.msra.mxu0 %v847
        %849 = vmatprep.subr.mxu0 0.0
        %v850 = vand.u32 %v226, 4294901760
        %851 = vmatpush1.msra.mxu0 %v850
        %852 = vmatprep.subr.mxu0 0.0
        %v853 = vand.u32 %v227, 4294901760
        %854 = vmatpush1.msra.mxu0 %v853
        %855 = vmatprep.subr.mxu0 0.0
        %v856 = vand.u32 %v228, 4294901760
        %857 = vmatpush1.msra.mxu0 %v856
        %858 = vmatprep.subr.mxu0 0.0
        %v859 = vand.u32 %v229, 4294901760
        %860 = vmatpush1.msra.mxu0 %v859
        %861 = vmatprep.subr.mxu0 0.0
        %v862 = vand.u32 %v230, 4294901760
        %863 = vmatpush1.msra.mxu0 %v862
        %864 = vmatprep.subr.mxu0 0.0
        %v865 = vand.u32 %v231, 4294901760
        %866 = vmatpush1.msra.mxu0 %v865
        %867 = vmatprep.subr.mxu0 0.0
        %v868 = vand.u32 %v232, 4294901760
        %869 = vmatpush1.msra.mxu0 %v868
        %870 = vmatprep.subr.mxu0 0.0
        %v871 = vand.u32 %v233, 4294901760
        %872 = vmatpush1.msra.mxu0 %v871
        %873 = vmatprep.subr.mxu0 0.0
        %874 = vmatpush1.msra.mxu0 0.0
        %875 = vmatprep.subr.mxu0 0.0
        %876 = vmatpush1.msra.mxu0 0.0
        %877 = vmatprep.subr.mxu0 0.0
        %878 = vmatpush1.msra.mxu0 0.0
        %879 = vmatprep.subr.mxu0 0.0
        %880 = vmatpush1.msra.mxu0 0.0
        %881 = vmatprep.subr.mxu0 0.0
        %882 = vmatpush1.msra.mxu0 0.0
        %883 = vmatprep.subr.mxu0 0.0
        %884 = vmatpush1.msra.mxu0 0.0
        %885 = vmatprep.subr.mxu0 0.0
        %886 = vmatpush1.msra.mxu0 0.0
        %887 = vmatprep.subr.mxu0 0.0
        %888 = vmatpush1.msra.mxu0 0.0
        %889 = vmatprep.subr.mxu0 0.0
        %890 = vmatpush1.msra.mxu0 0.0
        %891 = vmatprep.subr.mxu0 0.0
        %892 = vmatpush1.msra.mxu0 0.0
        %893 = vmatprep.subr.mxu0 0.0
        %894 = vmatpush1.msra.mxu0 0.0
        %895 = vmatprep.subr.mxu0 0.0
        %896 = vmatpush1.msra.mxu0 0.0
        %897 = vmatprep.subr.mxu0 0.0
        %898 = vmatpush1.msra.mxu0 0.0
        %899 = vmatprep.subr.mxu0 0.0
        %900 = vmatpush1.msra.mxu0 0.0
        %901 = vmatprep.subr.mxu0 0.0
        %902 = vmatpush1.msra.mxu0 0.0
        %903 = vmatprep.subr.mxu0 0.0
        %904 = vmatpush1.msra.mxu0 0.0
        %905 = vmatprep.mubr.f32.mxu0 0.0
        %v906 = vand.u32 %v215, 4294901760
        %907 = vmatmul.mubr.f32.gmra.mrb[0].mxu0 %v906
        %v908 = vpop.f32.mrb[0].mxu0
        %v909 = vadd.f32 %v816, %v908
        %v910 = vpop.f32.mrb[0].mxu0
        %911 = vmatprep.mubr.f32.mxu0 0.0
        %v912 = vand.u32 %v211, 4294901760
        %913 = vmatmul.mubr.f32.gmra.mrb[0].mxu0 %v912
        %v914 = vpop.f32.mrb[0].mxu0
        %v915 = vadd.f32 %v822, %v914
        %v916 = vpop.f32.mrb[0].mxu0
        %917 = vdwg.mxu0
        %v919 = vlaneseq
        %v920 = vshrl.u32 %v919, 7
        %v921 = vsub.s32 0, %v920
        %v922 = vrot.slane %v217, %v921
        %v924 = vadd.f32 %v922, %v909
        %v925 = vadd.f32 %v922, %v915
        %s926 = scalar_lea.vmem [#allocation5], 128
        %v927 = vld [vmem:[%s926] sm:$0xff]
        %v928 = vld [vmem:[%s926 + $0x8] sm:$0xff]
        %v929 = vld [vmem:[%s926 + $0x10] sm:$0xff]
        %v930 = vld [vmem:[%s926 + $0x18] sm:$0xff]
        %v931 = vld [vmem:[%s926 + $0x20] sm:$0xff]
        %v932 = vld [vmem:[%s926 + $0x28] sm:$0xff]
        %v933 = vld [vmem:[%s926 + $0x30] sm:$0xff]
        %v934 = vld [vmem:[%s926 + $0x38] sm:$0xff]
        %v935 = vld [vmem:[%s926 + $0x40] sm:$0xff]
        %v936 = vld [vmem:[%s926 + $0x48] sm:$0xff]
        %v937 = vld [vmem:[%s926 + $0x50] sm:$0xff]
        %v938 = vld [vmem:[%s926 + $0x58] sm:$0xff]
        %v939 = vld [vmem:[%s926 + $0x60] sm:$0xff]
        %v940 = vld [vmem:[%s926 + $0x68] sm:$0xff]
        %v941 = vld [vmem:[%s926 + $0x70] sm:$0xff]
        %v942 = vld [vmem:[%s926 + $0x78] sm:$0xff]
        %vm945 = vcmask 1046528
        %v946 = vrot.slane %v215, 1
        %v947 = vrot.slane %v211, 1
        %v948 = vsel %vm945, %v946, %v947
        %v949 = vrot.slane %v216, 1
        %v950 = vsel %vm945, %v947, %v949
        %953 = vmatprep.subr.mxu0 0.0
        %v954 = vand.u32 %v927, 4294901760
        %955 = vmatpush1.msra.mxu0 %v954
        %956 = vmatprep.subr.mxu0 0.0
        %v957 = vand.u32 %v928, 4294901760
        %958 = vmatpush1.msra.mxu0 %v957
        %959 = vmatprep.subr.mxu0 0.0
        %v960 = vand.u32 %v929, 4294901760
        %961 = vmatpush1.msra.mxu0 %v960
        %962 = vmatprep.subr.mxu0 0.0
        %v963 = vand.u32 %v930, 4294901760
        %964 = vmatpush1.msra.mxu0 %v963
        %965 = vmatprep.subr.mxu0 0.0
        %v966 = vand.u32 %v931, 4294901760
        %967 = vmatpush1.msra.mxu0 %v966
        %968 = vmatprep.subr.mxu0 0.0
        %v969 = vand.u32 %v932, 4294901760
        %970 = vmatpush1.msra.mxu0 %v969
        %971 = vmatprep.subr.mxu0 0.0
        %v972 = vand.u32 %v933, 4294901760
        %973 = vmatpush1.msra.mxu0 %v972
        %974 = vmatprep.subr.mxu0 0.0
        %v975 = vand.u32 %v934, 4294901760
        %976 = vmatpush1.msra.mxu0 %v975
        %977 = vmatprep.subr.mxu0 0.0
        %v978 = vand.u32 %v935, 4294901760
        %979 = vmatpush1.msra.mxu0 %v978
        %980 = vmatprep.subr.mxu0 0.0
        %v981 = vand.u32 %v936, 4294901760
        %982 = vmatpush1.msra.mxu0 %v981
        %983 = vmatprep.subr.mxu0 0.0
        %v984 = vand.u32 %v937, 4294901760
        %985 = vmatpush1.msra.mxu0 %v984
        %986 = vmatprep.subr.mxu0 0.0
        %v987 = vand.u32 %v938, 4294901760
        %988 = vmatpush1.msra.mxu0 %v987
        %989 = vmatprep.subr.mxu0 0.0
        %v990 = vand.u32 %v939, 4294901760
        %991 = vmatpush1.msra.mxu0 %v990
        %992 = vmatprep.subr.mxu0 0.0
        %v993 = vand.u32 %v940, 4294901760
        %994 = vmatpush1.msra.mxu0 %v993
        %995 = vmatprep.subr.mxu0 0.0
        %v996 = vand.u32 %v941, 4294901760
        %997 = vmatpush1.msra.mxu0 %v996
        %998 = vmatprep.subr.mxu0 0.0
        %v999 = vand.u32 %v942, 4294901760
        %1000 = vmatpush1.msra.mxu0 %v999
        %1001 = vmatprep.subr.mxu0 0.0
        %1002 = vmatpush1.msra.mxu0 0.0
        %1003 = vmatprep.subr.mxu0 0.0
        %1004 = vmatpush1.msra.mxu0 0.0
        %1005 = vmatprep.subr.mxu0 0.0
        %1006 = vmatpush1.msra.mxu0 0.0
        %1007 = vmatprep.subr.mxu0 0.0
        %1008 = vmatpush1.msra.mxu0 0.0
        %1009 = vmatprep.subr.mxu0 0.0
        %1010 = vmatpush1.msra.mxu0 0.0
        %1011 = vmatprep.subr.mxu0 0.0
        %1012 = vmatpush1.msra.mxu0 0.0
        %1013 = vmatprep.subr.mxu0 0.0
        %1014 = vmatpush1.msra.mxu0 0.0
        %1015 = vmatprep.subr.mxu0 0.0
        %1016 = vmatpush1.msra.mxu0 0.0
        %1017 = vmatprep.subr.mxu0 0.0
        %1018 = vmatpush1.msra.mxu0 0.0
        %1019 = vmatprep.subr.mxu0 0.0
        %1020 = vmatpush1.msra.mxu0 0.0
        %1021 = vmatprep.subr.mxu0 0.0
        %1022 = vmatpush1.msra.mxu0 0.0
        %1023 = vmatprep.subr.mxu0 0.0
        %1024 = vmatpush1.msra.mxu0 0.0
        %1025 = vmatprep.subr.mxu0 0.0
        %1026 = vmatpush1.msra.mxu0 0.0
        %1027 = vmatprep.subr.mxu0 0.0
        %1028 = vmatpush1.msra.mxu0 0.0
        %1029 = vmatprep.subr.mxu0 0.0
        %1030 = vmatpush1.msra.mxu0 0.0
        %1031 = vmatprep.subr.mxu0 0.0
        %1032 = vmatpush1.msra.mxu0 0.0
        %1033 = vmatprep.mubr.f32.mxu0 0.0
        %v1034 = vand.u32 %v948, 4294901760
        %v1035 = vsub.f32 %v948, %v1034
        %v1036 = vand.u32 %v1035, 4294901760
        %v1037 = vsub.f32 %v1035, %v1036
        %v1038 = vand.u32 %v1037, 4294901760
        %1039 = vmatmul.mubr.f32.gmra.mrb[0].mxu0 %v1038
        %v1040 = vpop.f32.mrb[0].mxu0
        %v1041 = vadd.f32 0.0, %v1040
        %v1042 = vpop.f32.mrb[0].mxu0
        %1043 = vmatprep.mubr.f32.mxu0 0.0
        %v1044 = vand.u32 %v950, 4294901760
        %v1045 = vsub.f32 %v950, %v1044
        %v1046 = vand.u32 %v1045, 4294901760
        %v1047 = vsub.f32 %v1045, %v1046
        %v1048 = vand.u32 %v1047, 4294901760
        %1049 = vmatmul.mubr.f32.gmra.mrb[0].mxu0 %v1048
        %v1050 = vpop.f32.mrb[0].mxu0
        %v1051 = vadd.f32 0.0, %v1050
        %v1052 = vpop.f32.mrb[0].mxu0
        %1053 = vdwg.mxu0
        %1054 = vmatprep.subr.mxu0 0.0
        %v1055 = vand.u32 %v927, 4294901760
        %v1056 = vsub.f32 %v927, %v1055
        %v1057 = vand.u32 %v1056, 4294901760
        %v1058 = vsub.f32 %v1056, %v1057
        %v1059 = vand.u32 %v1058, 4294901760
        %1060 = vmatpush1.msra.mxu0 %v1059
        %1061 = vmatprep.subr.mxu0 0.0
        %v1062 = vand.u32 %v928, 4294901760
        %v1063 = vsub.f32 %v928, %v1062
        %v1064 = vand.u32 %v1063, 4294901760
        %v1065 = vsub.f32 %v1063, %v1064
        %v1066 = vand.u32 %v1065, 4294901760
        %1067 = vmatpush1.msra.mxu0 %v1066
        %1068 = vmatprep.subr.mxu0 0.0
        %v1069 = vand.u32 %v929, 4294901760
        %v1070 = vsub.f32 %v929, %v1069
        %v1071 = vand.u32 %v1070, 4294901760
        %v1072 = vsub.f32 %v1070, %v1071
        %v1073 = vand.u32 %v1072, 4294901760
        %1074 = vmatpush1.msra.mxu0 %v1073
        %1075 = vmatprep.subr.mxu0 0.0
        %v1076 = vand.u32 %v930, 4294901760
        %v1077 = vsub.f32 %v930, %v1076
        %v1078 = vand.u32 %v1077, 4294901760
        %v1079 = vsub.f32 %v1077, %v1078
        %v1080 = vand.u32 %v1079, 4294901760
        %1081 = vmatpush1.msra.mxu0 %v1080
        %1082 = vmatprep.subr.mxu0 0.0
        %v1083 = vand.u32 %v931, 4294901760
        %v1084 = vsub.f32 %v931, %v1083
        %v1085 = vand.u32 %v1084, 4294901760
        %v1086 = vsub.f32 %v1084, %v1085
        %v1087 = vand.u32 %v1086, 4294901760
        %1088 = vmatpush1.msra.mxu0 %v1087
        %1089 = vmatprep.subr.mxu0 0.0
        %v1090 = vand.u32 %v932, 4294901760
        %v1091 = vsub.f32 %v932, %v1090
        %v1092 = vand.u32 %v1091, 4294901760
        %v1093 = vsub.f32 %v1091, %v1092
        %v1094 = vand.u32 %v1093, 4294901760
        %1095 = vmatpush1.msra.mxu0 %v1094
        %1096 = vmatprep.subr.mxu0 0.0
        %v1097 = vand.u32 %v933, 4294901760
        %v1098 = vsub.f32 %v933, %v1097
        %v1099 = vand.u32 %v1098, 4294901760
        %v1100 = vsub.f32 %v1098, %v1099
        %v1101 = vand.u32 %v1100, 4294901760
        %1102 = vmatpush1.msra.mxu0 %v1101
        %1103 = vmatprep.subr.mxu0 0.0
        %v1104 = vand.u32 %v934, 4294901760
        %v1105 = vsub.f32 %v934, %v1104
        %v1106 = vand.u32 %v1105, 4294901760
        %v1107 = vsub.f32 %v1105, %v1106
        %v1108 = vand.u32 %v1107, 4294901760
        %1109 = vmatpush1.msra.mxu0 %v1108
        %1110 = vmatprep.subr.mxu0 0.0
        %v1111 = vand.u32 %v935, 4294901760
        %v1112 = vsub.f32 %v935, %v1111
        %v1113 = vand.u32 %v1112, 4294901760
        %v1114 = vsub.f32 %v1112, %v1113
        %v1115 = vand.u32 %v1114, 4294901760
        %1116 = vmatpush1.msra.mxu0 %v1115
        %1117 = vmatprep.subr.mxu0 0.0
        %v1118 = vand.u32 %v936, 4294901760
        %v1119 = vsub.f32 %v936, %v1118
        %v1120 = vand.u32 %v1119, 4294901760
        %v1121 = vsub.f32 %v1119, %v1120
        %v1122 = vand.u32 %v1121, 4294901760
        %1123 = vmatpush1.msra.mxu0 %v1122
        %1124 = vmatprep.subr.mxu0 0.0
        %v1125 = vand.u32 %v937, 4294901760
        %v1126 = vsub.f32 %v937, %v1125
        %v1127 = vand.u32 %v1126, 4294901760
        %v1128 = vsub.f32 %v1126, %v1127
        %v1129 = vand.u32 %v1128, 4294901760
        %1130 = vmatpush1.msra.mxu0 %v1129
        %1131 = vmatprep.subr.mxu0 0.0
        %v1132 = vand.u32 %v938, 4294901760
        %v1133 = vsub.f32 %v938, %v1132
        %v1134 = vand.u32 %v1133, 4294901760
        %v1135 = vsub.f32 %v1133, %v1134
        %v1136 = vand.u32 %v1135, 4294901760
        %1137 = vmatpush1.msra.mxu0 %v1136
        %1138 = vmatprep.subr.mxu0 0.0
        %v1139 = vand.u32 %v939, 4294901760
        %v1140 = vsub.f32 %v939, %v1139
        %v1141 = vand.u32 %v1140, 4294901760
        %v1142 = vsub.f32 %v1140, %v1141
        %v1143 = vand.u32 %v1142, 4294901760
        %1144 = vmatpush1.msra.mxu0 %v1143
        %1145 = vmatprep.subr.mxu0 0.0
        %v1146 = vand.u32 %v940, 4294901760
        %v1147 = vsub.f32 %v940, %v1146
        %v1148 = vand.u32 %v1147, 4294901760
        %v1149 = vsub.f32 %v1147, %v1148
        %v1150 = vand.u32 %v1149, 4294901760
        %1151 = vmatpush1.msra.mxu0 %v1150
        %1152 = vmatprep.subr.mxu0 0.0
        %v1153 = vand.u32 %v941, 4294901760
        %v1154 = vsub.f32 %v941, %v1153
        %v1155 = vand.u32 %v1154, 4294901760
        %v1156 = vsub.f32 %v1154, %v1155
        %v1157 = vand.u32 %v1156, 4294901760
        %1158 = vmatpush1.msra.mxu0 %v1157
        %1159 = vmatprep.subr.mxu0 0.0
        %v1160 = vand.u32 %v942, 4294901760
        %v1161 = vsub.f32 %v942, %v1160
        %v1162 = vand.u32 %v1161, 4294901760
        %v1163 = vsub.f32 %v1161, %v1162
        %v1164 = vand.u32 %v1163, 4294901760
        %1165 = vmatpush1.msra.mxu0 %v1164
        %1166 = vmatprep.subr.mxu0 0.0
        %1167 = vmatpush1.msra.mxu0 0.0
        %1168 = vmatprep.subr.mxu0 0.0
        %1169 = vmatpush1.msra.mxu0 0.0
        %1170 = vmatprep.subr.mxu0 0.0
        %1171 = vmatpush1.msra.mxu0 0.0
        %1172 = vmatprep.subr.mxu0 0.0
        %1173 = vmatpush1.msra.mxu0 0.0
        %1174 = vmatprep.subr.mxu0 0.0
        %1175 = vmatpush1.msra.mxu0 0.0
        %1176 = vmatprep.subr.mxu0 0.0
        %1177 = vmatpush1.msra.mxu0 0.0
        %1178 = vmatprep.subr.mxu0 0.0
        %1179 = vmatpush1.msra.mxu0 0.0
        %1180 = vmatprep.subr.mxu0 0.0
        %1181 = vmatpush1.msra.mxu0 0.0
        %1182 = vmatprep.subr.mxu0 0.0
        %1183 = vmatpush1.msra.mxu0 0.0
        %1184 = vmatprep.subr.mxu0 0.0
        %1185 = vmatpush1.msra.mxu0 0.0
        %1186 = vmatprep.subr.mxu0 0.0
        %1187 = vmatpush1.msra.mxu0 0.0
        %1188 = vmatprep.subr.mxu0 0.0
        %1189 = vmatpush1.msra.mxu0 0.0
        %1190 = vmatprep.subr.mxu0 0.0
        %1191 = vmatpush1.msra.mxu0 0.0
        %1192 = vmatprep.subr.mxu0 0.0
        %1193 = vmatpush1.msra.mxu0 0.0
        %1194 = vmatprep.subr.mxu0 0.0
        %1195 = vmatpush1.msra.mxu0 0.0
        %1196 = vmatprep.subr.mxu0 0.0
        %1197 = vmatpush1.msra.mxu0 0.0
        %1198 = vmatprep.mubr.f32.mxu0 0.0
        %v1199 = vand.u32 %v948, 4294901760
        %1200 = vmatmul.mubr.f32.gmra.mrb[0].mxu0 %v1199
        %v1201 = vpop.f32.mrb[0].mxu0
        %v1202 = vadd.f32 %v1041, %v1201
        %v1203 = vpop.f32.mrb[0].mxu0
        %1204 = vmatprep.mubr.f32.mxu0 0.0
        %v1205 = vand.u32 %v950, 4294901760
        %1206 = vmatmul.mubr.f32.gmra.mrb[0].mxu0 %v1205
        %v1207 = vpop.f32.mrb[0].mxu0
        %v1208 = vadd.f32 %v1051, %v1207
        %v1209 = vpop.f32.mrb[0].mxu0
        %1210 = vdwg.mxu0
        %1211 = vmatprep.subr.mxu0 0.0
        %v1212 = vand.u32 %v927, 4294901760
        %v1213 = vsub.f32 %v927, %v1212
        %1214 = vmatpush1.msra.mxu0 %v1213
        %1215 = vmatprep.subr.mxu0 0.0
        %v1216 = vand.u32 %v928, 4294901760
        %v1217 = vsub.f32 %v928, %v1216
        %1218 = vmatpush1.msra.mxu0 %v1217
        %1219 = vmatprep.subr.mxu0 0.0
        %v1220 = vand.u32 %v929, 4294901760
        %v1221 = vsub.f32 %v929, %v1220
        %1222 = vmatpush1.msra.mxu0 %v1221
        %1223 = vmatprep.subr.mxu0 0.0
        %v1224 = vand.u32 %v930, 4294901760
        %v1225 = vsub.f32 %v930, %v1224
        %1226 = vmatpush1.msra.mxu0 %v1225
        %1227 = vmatprep.subr.mxu0 0.0
        %v1228 = vand.u32 %v931, 4294901760
        %v1229 = vsub.f32 %v931, %v1228
        %1230 = vmatpush1.msra.mxu0 %v1229
        %1231 = vmatprep.subr.mxu0 0.0
        %v1232 = vand.u32 %v932, 4294901760
        %v1233 = vsub.f32 %v932, %v1232
        %1234 = vmatpush1.msra.mxu0 %v1233
        %1235 = vmatprep.subr.mxu0 0.0
        %v1236 = vand.u32 %v933, 4294901760
        %v1237 = vsub.f32 %v933, %v1236
        %1238 = vmatpush1.msra.mxu0 %v1237
        %1239 = vmatprep.subr.mxu0 0.0
        %v1240 = vand.u32 %v934, 4294901760
        %v1241 = vsub.f32 %v934, %v1240
        %1242 = vmatpush1.msra.mxu0 %v1241
        %1243 = vmatprep.subr.mxu0 0.0
        %v1244 = vand.u32 %v935, 4294901760
        %v1245 = vsub.f32 %v935, %v1244
        %1246 = vmatpush1.msra.mxu0 %v1245
        %1247 = vmatprep.subr.mxu0 0.0
        %v1248 = vand.u32 %v936, 4294901760
        %v1249 = vsub.f32 %v936, %v1248
        %1250 = vmatpush1.msra.mxu0 %v1249
        %1251 = vmatprep.subr.mxu0 0.0
        %v1252 = vand.u32 %v937, 4294901760
        %v1253 = vsub.f32 %v937, %v1252
        %1254 = vmatpush1.msra.mxu0 %v1253
        %1255 = vmatprep.subr.mxu0 0.0
        %v1256 = vand.u32 %v938, 4294901760
        %v1257 = vsub.f32 %v938, %v1256
        %1258 = vmatpush1.msra.mxu0 %v1257
        %1259 = vmatprep.subr.mxu0 0.0
        %v1260 = vand.u32 %v939, 4294901760
        %v1261 = vsub.f32 %v939, %v1260
        %1262 = vmatpush1.msra.mxu0 %v1261
        %1263 = vmatprep.subr.mxu0 0.0
        %v1264 = vand.u32 %v940, 4294901760
        %v1265 = vsub.f32 %v940, %v1264
        %1266 = vmatpush1.msra.mxu0 %v1265
        %1267 = vmatprep.subr.mxu0 0.0
        %v1268 = vand.u32 %v941, 4294901760
        %v1269 = vsub.f32 %v941, %v1268
        %1270 = vmatpush1.msra.mxu0 %v1269
        %1271 = vmatprep.subr.mxu0 0.0
        %v1272 = vand.u32 %v942, 4294901760
        %v1273 = vsub.f32 %v942, %v1272
        %1274 = vmatpush1.msra.mxu0 %v1273
        %1275 = vmatprep.subr.mxu0 0.0
        %1276 = vmatpush1.msra.mxu0 0.0
        %1277 = vmatprep.subr.mxu0 0.0
        %1278 = vmatpush1.msra.mxu0 0.0
        %1279 = vmatprep.subr.mxu0 0.0
        %1280 = vmatpush1.msra.mxu0 0.0
        %1281 = vmatprep.subr.mxu0 0.0
        %1282 = vmatpush1.msra.mxu0 0.0
        %1283 = vmatprep.subr.mxu0 0.0
        %1284 = vmatpush1.msra.mxu0 0.0
        %1285 = vmatprep.subr.mxu0 0.0
        %1286 = vmatpush1.msra.mxu0 0.0
        %1287 = vmatprep.subr.mxu0 0.0
        %1288 = vmatpush1.msra.mxu0 0.0
        %1289 = vmatprep.subr.mxu0 0.0
        %1290 = vmatpush1.msra.mxu0 0.0
        %1291 = vmatprep.subr.mxu0 0.0
        %1292 = vmatpush1.msra.mxu0 0.0
        %1293 = vmatprep.subr.mxu0 0.0
        %1294 = vmatpush1.msra.mxu0 0.0
        %1295 = vmatprep.subr.mxu0 0.0
        %1296 = vmatpush1.msra.mxu0 0.0
        %1297 = vmatprep.subr.mxu0 0.0
        %1298 = vmatpush1.msra.mxu0 0.0
        %1299 = vmatprep.subr.mxu0 0.0
        %1300 = vmatpush1.msra.mxu0 0.0
        %1301 = vmatprep.subr.mxu0 0.0
        %1302 = vmatpush1.msra.mxu0 0.0
        %1303 = vmatprep.subr.mxu0 0.0
        %1304 = vmatpush1.msra.mxu0 0.0
        %1305 = vmatprep.subr.mxu0 0.0
        %1306 = vmatpush1.msra.mxu0 0.0
        %1307 = vmatprep.mubr.f32.mxu0 0.0
        %v1308 = vand.u32 %v948, 4294901760
        %v1309 = vsub.f32 %v948, %v1308
        %1310 = vmatmul.mubr.f32.gmra.mrb[0].mxu0 %v1309
        %v1311 = vpop.f32.mrb[0].mxu0
        %v1312 = vadd.f32 %v1202, %v1311
        %v1313 = vpop.f32.mrb[0].mxu0
        %1314 = vmatprep.mubr.f32.mxu0 0.0
        %v1315 = vand.u32 %v950, 4294901760
        %v1316 = vsub.f32 %v950, %v1315
        %1317 = vmatmul.mubr.f32.gmra.mrb[0].mxu0 %v1316
        %v1318 = vpop.f32.mrb[0].mxu0
        %v1319 = vadd.f32 %v1208, %v1318
        %v1320 = vpop.f32.mrb[0].mxu0
        %1321 = vdwg.mxu0
        %1322 = vmatprep.subr.mxu0 0.0
        %v1323 = vand.u32 %v927, 4294901760
        %1324 = vmatpush1.msra.mxu0 %v1323
        %1325 = vmatprep.subr.mxu0 0.0
        %v1326 = vand.u32 %v928, 4294901760
        %1327 = vmatpush1.msra.mxu0 %v1326
        %1328 = vmatprep.subr.mxu0 0.0
        %v1329 = vand.u32 %v929, 4294901760
        %1330 = vmatpush1.msra.mxu0 %v1329
        %1331 = vmatprep.subr.mxu0 0.0
        %v1332 = vand.u32 %v930, 4294901760
        %1333 = vmatpush1.msra.mxu0 %v1332
        %1334 = vmatprep.subr.mxu0 0.0
        %v1335 = vand.u32 %v931, 4294901760
        %1336 = vmatpush1.msra.mxu0 %v1335
        %1337 = vmatprep.subr.mxu0 0.0
        %v1338 = vand.u32 %v932, 4294901760
        %1339 = vmatpush1.msra.mxu0 %v1338
        %1340 = vmatprep.subr.mxu0 0.0
        %v1341 = vand.u32 %v933, 4294901760
        %1342 = vmatpush1.msra.mxu0 %v1341
        %1343 = vmatprep.subr.mxu0 0.0
        %v1344 = vand.u32 %v934, 4294901760
        %1345 = vmatpush1.msra.mxu0 %v1344
        %1346 = vmatprep.subr.mxu0 0.0
        %v1347 = vand.u32 %v935, 4294901760
        %1348 = vmatpush1.msra.mxu0 %v1347
        %1349 = vmatprep.subr.mxu0 0.0
        %v1350 = vand.u32 %v936, 4294901760
        %1351 = vmatpush1.msra.mxu0 %v1350
        %1352 = vmatprep.subr.mxu0 0.0
        %v1353 = vand.u32 %v937, 4294901760
        %1354 = vmatpush1.msra.mxu0 %v1353
        %1355 = vmatprep.subr.mxu0 0.0
        %v1356 = vand.u32 %v938, 4294901760
        %1357 = vmatpush1.msra.mxu0 %v1356
        %1358 = vmatprep.subr.mxu0 0.0
        %v1359 = vand.u32 %v939, 4294901760
        %1360 = vmatpush1.msra.mxu0 %v1359
        %1361 = vmatprep.subr.mxu0 0.0
        %v1362 = vand.u32 %v940, 4294901760
        %1363 = vmatpush1.msra.mxu0 %v1362
        %1364 = vmatprep.subr.mxu0 0.0
        %v1365 = vand.u32 %v941, 4294901760
        %1366 = vmatpush1.msra.mxu0 %v1365
        %1367 = vmatprep.subr.mxu0 0.0
        %v1368 = vand.u32 %v942, 4294901760
        %1369 = vmatpush1.msra.mxu0 %v1368
        %1370 = vmatprep.subr.mxu0 0.0
        %1371 = vmatpush1.msra.mxu0 0.0
        %1372 = vmatprep.subr.mxu0 0.0
        %1373 = vmatpush1.msra.mxu0 0.0
        %1374 = vmatprep.subr.mxu0 0.0
        %1375 = vmatpush1.msra.mxu0 0.0
        %1376 = vmatprep.subr.mxu0 0.0
        %1377 = vmatpush1.msra.mxu0 0.0
        %1378 = vmatprep.subr.mxu0 0.0
        %1379 = vmatpush1.msra.mxu0 0.0
        %1380 = vmatprep.subr.mxu0 0.0
        %1381 = vmatpush1.msra.mxu0 0.0
        %1382 = vmatprep.subr.mxu0 0.0
        %1383 = vmatpush1.msra.mxu0 0.0
        %1384 = vmatprep.subr.mxu0 0.0
        %1385 = vmatpush1.msra.mxu0 0.0
        %1386 = vmatprep.subr.mxu0 0.0
        %1387 = vmatpush1.msra.mxu0 0.0
        %1388 = vmatprep.subr.mxu0 0.0
        %1389 = vmatpush1.msra.mxu0 0.0
        %1390 = vmatprep.subr.mxu0 0.0
        %1391 = vmatpush1.msra.mxu0 0.0
        %1392 = vmatprep.subr.mxu0 0.0
        %1393 = vmatpush1.msra.mxu0 0.0
        %1394 = vmatprep.subr.mxu0 0.0
        %1395 = vmatpush1.msra.mxu0 0.0
        %1396 = vmatprep.subr.mxu0 0.0
        %1397 = vmatpush1.msra.mxu0 0.0
        %1398 = vmatprep.subr.mxu0 0.0
        %1399 = vmatpush1.msra.mxu0 0.0
        %1400 = vmatprep.subr.mxu0 0.0
        %1401 = vmatpush1.msra.mxu0 0.0
        %1402 = vmatprep.mubr.f32.mxu0 0.0
        %v1403 = vand.u32 %v948, 4294901760
        %v1404 = vsub.f32 %v948, %v1403
        %v1405 = vand.u32 %v1404, 4294901760
        %1406 = vmatmul.mubr.f32.gmra.mrb[0].mxu0 %v1405
        %v1407 = vpop.f32.mrb[0].mxu0
        %v1408 = vadd.f32 %v1312, %v1407
        %v1409 = vpop.f32.mrb[0].mxu0
        %1410 = vmatprep.mubr.f32.mxu0 0.0
        %v1411 = vand.u32 %v950, 4294901760
        %v1412 = vsub.f32 %v950, %v1411
        %v1413 = vand.u32 %v1412, 4294901760
        %1414 = vmatmul.mubr.f32.gmra.mrb[0].mxu0 %v1413
        %v1415 = vpop.f32.mrb[0].mxu0
        %v1416 = vadd.f32 %v1319, %v1415
        %v1417 = vpop.f32.mrb[0].mxu0
        %1418 = vdwg.mxu0
        %1419 = vmatprep.subr.mxu0 0.0
        %v1420 = vand.u32 %v927, 4294901760
        %v1421 = vsub.f32 %v927, %v1420
        %v1422 = vand.u32 %v1421, 4294901760
        %1423 = vmatpush1.msra.mxu0 %v1422
        %1424 = vmatprep.subr.mxu0 0.0
        %v1425 = vand.u32 %v928, 4294901760
        %v1426 = vsub.f32 %v928, %v1425
        %v1427 = vand.u32 %v1426, 4294901760
        %1428 = vmatpush1.msra.mxu0 %v1427
        %1429 = vmatprep.subr.mxu0 0.0
        %v1430 = vand.u32 %v929, 4294901760
        %v1431 = vsub.f32 %v929, %v1430
        %v1432 = vand.u32 %v1431, 4294901760
        %1433 = vmatpush1.msra.mxu0 %v1432
        %1434 = vmatprep.subr.mxu0 0.0
        %v1435 = vand.u32 %v930, 4294901760
        %v1436 = vsub.f32 %v930, %v1435
        %v1437 = vand.u32 %v1436, 4294901760
        %1438 = vmatpush1.msra.mxu0 %v1437
        %1439 = vmatprep.subr.mxu0 0.0
        %v1440 = vand.u32 %v931, 4294901760
        %v1441 = vsub.f32 %v931, %v1440
        %v1442 = vand.u32 %v1441, 4294901760
        %1443 = vmatpush1.msra.mxu0 %v1442
        %1444 = vmatprep.subr.mxu0 0.0
        %v1445 = vand.u32 %v932, 4294901760
        %v1446 = vsub.f32 %v932, %v1445
        %v1447 = vand.u32 %v1446, 4294901760
        %1448 = vmatpush1.msra.mxu0 %v1447
        %1449 = vmatprep.subr.mxu0 0.0
        %v1450 = vand.u32 %v933, 4294901760
        %v1451 = vsub.f32 %v933, %v1450
        %v1452 = vand.u32 %v1451, 4294901760
        %1453 = vmatpush1.msra.mxu0 %v1452
        %1454 = vmatprep.subr.mxu0 0.0
        %v1455 = vand.u32 %v934, 4294901760
        %v1456 = vsub.f32 %v934, %v1455
        %v1457 = vand.u32 %v1456, 4294901760
        %1458 = vmatpush1.msra.mxu0 %v1457
        %1459 = vmatprep.subr.mxu0 0.0
        %v1460 = vand.u32 %v935, 4294901760
        %v1461 = vsub.f32 %v935, %v1460
        %v1462 = vand.u32 %v1461, 4294901760
        %1463 = vmatpush1.msra.mxu0 %v1462
        %1464 = vmatprep.subr.mxu0 0.0
        %v1465 = vand.u32 %v936, 4294901760
        %v1466 = vsub.f32 %v936, %v1465
        %v1467 = vand.u32 %v1466, 4294901760
        %1468 = vmatpush1.msra.mxu0 %v1467
        %1469 = vmatprep.subr.mxu0 0.0
        %v1470 = vand.u32 %v937, 4294901760
        %v1471 = vsub.f32 %v937, %v1470
        %v1472 = vand.u32 %v1471, 4294901760
        %1473 = vmatpush1.msra.mxu0 %v1472
        %1474 = vmatprep.subr.mxu0 0.0
        %v1475 = vand.u32 %v938, 4294901760
        %v1476 = vsub.f32 %v938, %v1475
        %v1477 = vand.u32 %v1476, 4294901760
        %1478 = vmatpush1.msra.mxu0 %v1477
        %1479 = vmatprep.subr.mxu0 0.0
        %v1480 = vand.u32 %v939, 4294901760
        %v1481 = vsub.f32 %v939, %v1480
        %v1482 = vand.u32 %v1481, 4294901760
        %1483 = vmatpush1.msra.mxu0 %v1482
        %1484 = vmatprep.subr.mxu0 0.0
        %v1485 = vand.u32 %v940, 4294901760
        %v1486 = vsub.f32 %v940, %v1485
        %v1487 = vand.u32 %v1486, 4294901760
        %1488 = vmatpush1.msra.mxu0 %v1487
        %1489 = vmatprep.subr.mxu0 0.0
        %v1490 = vand.u32 %v941, 4294901760
        %v1491 = vsub.f32 %v941, %v1490
        %v1492 = vand.u32 %v1491, 4294901760
        %1493 = vmatpush1.msra.mxu0 %v1492
        %1494 = vmatprep.subr.mxu0 0.0
        %v1495 = vand.u32 %v942, 4294901760
        %v1496 = vsub.f32 %v942, %v1495
        %v1497 = vand.u32 %v1496, 4294901760
        %1498 = vmatpush1.msra.mxu0 %v1497
        %1499 = vmatprep.subr.mxu0 0.0
        %1500 = vmatpush1.msra.mxu0 0.0
        %1501 = vmatprep.subr.mxu0 0.0
        %1502 = vmatpush1.msra.mxu0 0.0
        %1503 = vmatprep.subr.mxu0 0.0
        %1504 = vmatpush1.msra.mxu0 0.0
        %1505 = vmatprep.subr.mxu0 0.0
        %1506 = vmatpush1.msra.mxu0 0.0
        %1507 = vmatprep.subr.mxu0 0.0
        %1508 = vmatpush1.msra.mxu0 0.0
        %1509 = vmatprep.subr.mxu0 0.0
        %1510 = vmatpush1.msra.mxu0 0.0
        %1511 = vmatprep.subr.mxu0 0.0
        %1512 = vmatpush1.msra.mxu0 0.0
        %1513 = vmatprep.subr.mxu0 0.0
        %1514 = vmatpush1.msra.mxu0 0.0
        %1515 = vmatprep.subr.mxu0 0.0
        %1516 = vmatpush1.msra.mxu0 0.0
        %1517 = vmatprep.subr.mxu0 0.0
        %1518 = vmatpush1.msra.mxu0 0.0
        %1519 = vmatprep.subr.mxu0 0.0
        %1520 = vmatpush1.msra.mxu0 0.0
        %1521 = vmatprep.subr.mxu0 0.0
        %1522 = vmatpush1.msra.mxu0 0.0
        %1523 = vmatprep.subr.mxu0 0.0
        %1524 = vmatpush1.msra.mxu0 0.0
        %1525 = vmatprep.subr.mxu0 0.0
        %1526 = vmatpush1.msra.mxu0 0.0
        %1527 = vmatprep.subr.mxu0 0.0
        %1528 = vmatpush1.msra.mxu0 0.0
        %1529 = vmatprep.subr.mxu0 0.0
        %1530 = vmatpush1.msra.mxu0 0.0
        %1531 = vmatprep.mubr.f32.mxu0 0.0
        %v1532 = vand.u32 %v948, 4294901760
        %1533 = vmatmul.mubr.f32.gmra.mrb[0].mxu0 %v1532
        %v1534 = vpop.f32.mrb[0].mxu0
        %v1535 = vadd.f32 %v1408, %v1534
        %v1536 = vpop.f32.mrb[0].mxu0
        %1537 = vmatprep.mubr.f32.mxu0 0.0
        %v1538 = vand.u32 %v950, 4294901760
        %1539 = vmatmul.mubr.f32.gmra.mrb[0].mxu0 %v1538
        %v1540 = vpop.f32.mrb[0].mxu0
        %v1541 = vadd.f32 %v1416, %v1540
        %v1542 = vpop.f32.mrb[0].mxu0
        %1543 = vdwg.mxu0
        %1544 = vmatprep.subr.mxu0 0.0
        %v1545 = vand.u32 %v927, 4294901760
        %1546 = vmatpush1.msra.mxu0 %v1545
        %1547 = vmatprep.subr.mxu0 0.0
        %v1548 = vand.u32 %v928, 4294901760
        %1549 = vmatpush1.msra.mxu0 %v1548
        %1550 = vmatprep.subr.mxu0 0.0
        %v1551 = vand.u32 %v929, 4294901760
        %1552 = vmatpush1.msra.mxu0 %v1551
        %1553 = vmatprep.subr.mxu0 0.0
        %v1554 = vand.u32 %v930, 4294901760
        %1555 = vmatpush1.msra.mxu0 %v1554
        %1556 = vmatprep.subr.mxu0 0.0
        %v1557 = vand.u32 %v931, 4294901760
        %1558 = vmatpush1.msra.mxu0 %v1557
        %1559 = vmatprep.subr.mxu0 0.0
        %v1560 = vand.u32 %v932, 4294901760
        %1561 = vmatpush1.msra.mxu0 %v1560
        %1562 = vmatprep.subr.mxu0 0.0
        %v1563 = vand.u32 %v933, 4294901760
        %1564 = vmatpush1.msra.mxu0 %v1563
        %1565 = vmatprep.subr.mxu0 0.0
        %v1566 = vand.u32 %v934, 4294901760
        %1567 = vmatpush1.msra.mxu0 %v1566
        %1568 = vmatprep.subr.mxu0 0.0
        %v1569 = vand.u32 %v935, 4294901760
        %1570 = vmatpush1.msra.mxu0 %v1569
        %1571 = vmatprep.subr.mxu0 0.0
        %v1572 = vand.u32 %v936, 4294901760
        %1573 = vmatpush1.msra.mxu0 %v1572
        %1574 = vmatprep.subr.mxu0 0.0
        %v1575 = vand.u32 %v937, 4294901760
        %1576 = vmatpush1.msra.mxu0 %v1575
        %1577 = vmatprep.subr.mxu0 0.0
        %v1578 = vand.u32 %v938, 4294901760
        %1579 = vmatpush1.msra.mxu0 %v1578
        %1580 = vmatprep.subr.mxu0 0.0
        %v1581 = vand.u32 %v939, 4294901760
        %1582 = vmatpush1.msra.mxu0 %v1581
        %1583 = vmatprep.subr.mxu0 0.0
        %v1584 = vand.u32 %v940, 4294901760
        %1585 = vmatpush1.msra.mxu0 %v1584
        %1586 = vmatprep.subr.mxu0 0.0
        %v1587 = vand.u32 %v941, 4294901760
        %1588 = vmatpush1.msra.mxu0 %v1587
        %1589 = vmatprep.subr.mxu0 0.0
        %v1590 = vand.u32 %v942, 4294901760
        %1591 = vmatpush1.msra.mxu0 %v1590
        %1592 = vmatprep.subr.mxu0 0.0
        %1593 = vmatpush1.msra.mxu0 0.0
        %1594 = vmatprep.subr.mxu0 0.0
        %1595 = vmatpush1.msra.mxu0 0.0
        %1596 = vmatprep.subr.mxu0 0.0
        %1597 = vmatpush1.msra.mxu0 0.0
        %1598 = vmatprep.subr.mxu0 0.0
        %1599 = vmatpush1.msra.mxu0 0.0
        %1600 = vmatprep.subr.mxu0 0.0
        %1601 = vmatpush1.msra.mxu0 0.0
        %1602 = vmatprep.subr.mxu0 0.0
        %1603 = vmatpush1.msra.mxu0 0.0
        %1604 = vmatprep.subr.mxu0 0.0
        %1605 = vmatpush1.msra.mxu0 0.0
        %1606 = vmatprep.subr.mxu0 0.0
        %1607 = vmatpush1.msra.mxu0 0.0
        %1608 = vmatprep.subr.mxu0 0.0
        %1609 = vmatpush1.msra.mxu0 0.0
        %1610 = vmatprep.subr.mxu0 0.0
        %1611 = vmatpush1.msra.mxu0 0.0
        %1612 = vmatprep.subr.mxu0 0.0
        %1613 = vmatpush1.msra.mxu0 0.0
        %1614 = vmatprep.subr.mxu0 0.0
        %1615 = vmatpush1.msra.mxu0 0.0
        %1616 = vmatprep.subr.mxu0 0.0
        %1617 = vmatpush1.msra.mxu0 0.0
        %1618 = vmatprep.subr.mxu0 0.0
        %1619 = vmatpush1.msra.mxu0 0.0
        %1620 = vmatprep.subr.mxu0 0.0
        %1621 = vmatpush1.msra.mxu0 0.0
        %1622 = vmatprep.subr.mxu0 0.0
        %1623 = vmatpush1.msra.mxu0 0.0
        %1624 = vmatprep.mubr.f32.mxu0 0.0
        %v1625 = vand.u32 %v948, 4294901760
        %1626 = vmatmul.mubr.f32.gmra.mrb[0].mxu0 %v1625
        %v1627 = vpop.f32.mrb[0].mxu0
        %v1628 = vadd.f32 %v1535, %v1627
        %v1629 = vpop.f32.mrb[0].mxu0
        %1630 = vmatprep.mubr.f32.mxu0 0.0
        %v1631 = vand.u32 %v950, 4294901760
        %1632 = vmatmul.mubr.f32.gmra.mrb[0].mxu0 %v1631
        %v1633 = vpop.f32.mrb[0].mxu0
        %v1634 = vadd.f32 %v1541, %v1633
        %v1635 = vpop.f32.mrb[0].mxu0
        %1636 = vdwg.mxu0
        %v1637 = vadd.f32 %v924, %v1628
        %v1638 = vadd.f32 %v925, %v1634
        %s1639 = scalar_lea.vmem [#allocation5], 256
        %v1640 = vld [vmem:[%s1639] sm:$0xff]
        %v1641 = vld [vmem:[%s1639 + $0x8] sm:$0xff]
        %v1642 = vld [vmem:[%s1639 + $0x10] sm:$0xff]
        %v1643 = vld [vmem:[%s1639 + $0x18] sm:$0xff]
        %v1644 = vld [vmem:[%s1639 + $0x20] sm:$0xff]
        %v1645 = vld [vmem:[%s1639 + $0x28] sm:$0xff]
        %v1646 = vld [vmem:[%s1639 + $0x30] sm:$0xff]
        %v1647 = vld [vmem:[%s1639 + $0x38] sm:$0xff]
        %v1648 = vld [vmem:[%s1639 + $0x40] sm:$0xff]
        %v1649 = vld [vmem:[%s1639 + $0x48] sm:$0xff]
        %v1650 = vld [vmem:[%s1639 + $0x50] sm:$0xff]
        %v1651 = vld [vmem:[%s1639 + $0x58] sm:$0xff]
        %v1652 = vld [vmem:[%s1639 + $0x60] sm:$0xff]
        %v1653 = vld [vmem:[%s1639 + $0x68] sm:$0xff]
        %v1654 = vld [vmem:[%s1639 + $0x70] sm:$0xff]
        %v1655 = vld [vmem:[%s1639 + $0x78] sm:$0xff]
        %vm1656 = vcmask 1045504
        %v1657 = vrot.slane %v215, 2
        %v1658 = vrot.slane %v211, 2
        %v1659 = vsel %vm1656, %v1657, %v1658
        %v1660 = vrot.slane %v216, 2
        %v1661 = vsel %vm1656, %v1658, %v1660
        %1664 = vmatprep.subr.mxu0 0.0
        %v1665 = vand.u32 %v1640, 4294901760
        %1666 = vmatpush1.msra.mxu0 %v1665
        %1667 = vmatprep.subr.mxu0 0.0
        %v1668 = vand.u32 %v1641, 4294901760
        %1669 = vmatpush1.msra.mxu0 %v1668
        %1670 = vmatprep.subr.mxu0 0.0
        %v1671 = vand.u32 %v1642, 4294901760
        %1672 = vmatpush1.msra.mxu0 %v1671
        %1673 = vmatprep.subr.mxu0 0.0
        %v1674 = vand.u32 %v1643, 4294901760
        %1675 = vmatpush1.msra.mxu0 %v1674
        %1676 = vmatprep.subr.mxu0 0.0
        %v1677 = vand.u32 %v1644, 4294901760
        %1678 = vmatpush1.msra.mxu0 %v1677
        %1679 = vmatprep.subr.mxu0 0.0
        %v1680 = vand.u32 %v1645, 4294901760
        %1681 = vmatpush1.msra.mxu0 %v1680
        %1682 = vmatprep.subr.mxu0 0.0
        %v1683 = vand.u32 %v1646, 4294901760
        %1684 = vmatpush1.msra.mxu0 %v1683
        %1685 = vmatprep.subr.mxu0 0.0
        %v1686 = vand.u32 %v1647, 4294901760
        %1687 = vmatpush1.msra.mxu0 %v1686
        %1688 = vmatprep.subr.mxu0 0.0
        %v1689 = vand.u32 %v1648, 4294901760
        %1690 = vmatpush1.msra.mxu0 %v1689
        %1691 = vmatprep.subr.mxu0 0.0
        %v1692 = vand.u32 %v1649, 4294901760
        %1693 = vmatpush1.msra.mxu0 %v1692
        %1694 = vmatprep.subr.mxu0 0.0
        %v1695 = vand.u32 %v1650, 4294901760
        %1696 = vmatpush1.msra.mxu0 %v1695
        %1697 = vmatprep.subr.mxu0 0.0
        %v1698 = vand.u32 %v1651, 4294901760
        %1699 = vmatpush1.msra.mxu0 %v1698
        %1700 = vmatprep.subr.mxu0 0.0
        %v1701 = vand.u32 %v1652, 4294901760
        %1702 = vmatpush1.msra.mxu0 %v1701
        %1703 = vmatprep.subr.mxu0 0.0
        %v1704 = vand.u32 %v1653, 4294901760
        %1705 = vmatpush1.msra.mxu0 %v1704
        %1706 = vmatprep.subr.mxu0 0.0
        %v1707 = vand.u32 %v1654, 4294901760
        %1708 = vmatpush1.msra.mxu0 %v1707
        %1709 = vmatprep.subr.mxu0 0.0
        %v1710 = vand.u32 %v1655, 4294901760
        %1711 = vmatpush1.msra.mxu0 %v1710
        %1712 = vmatprep.subr.mxu0 0.0
        %1713 = vmatpush1.msra.mxu0 0.0
        %1714 = vmatprep.subr.mxu0 0.0
        %1715 = vmatpush1.msra.mxu0 0.0
        %1716 = vmatprep.subr.mxu0 0.0
        %1717 = vmatpush1.msra.mxu0 0.0
        %1718 = vmatprep.subr.mxu0 0.0
        %1719 = vmatpush1.msra.mxu0 0.0
        %1720 = vmatprep.subr.mxu0 0.0
        %1721 = vmatpush1.msra.mxu0 0.0
        %1722 = vmatprep.subr.mxu0 0.0
        %1723 = vmatpush1.msra.mxu0 0.0
        %1724 = vmatprep.subr.mxu0 0.0
        %1725 = vmatpush1.msra.mxu0 0.0
        %1726 = vmatprep.subr.mxu0 0.0
        %1727 = vmatpush1.msra.mxu0 0.0
        %1728 = vmatprep.subr.mxu0 0.0
        %1729 = vmatpush1.msra.mxu0 0.0
        %1730 = vmatprep.subr.mxu0 0.0
        %1731 = vmatpush1.msra.mxu0 0.0
        %1732 = vmatprep.subr.mxu0 0.0
        %1733 = vmatpush1.msra.mxu0 0.0
        %1734 = vmatprep.subr.mxu0 0.0
        %1735 = vmatpush1.msra.mxu0 0.0
        %1736 = vmatprep.subr.mxu0 0.0
        %1737 = vmatpush1.msra.mxu0 0.0
        %1738 = vmatprep.subr.mxu0 0.0
        %1739 = vmatpush1.msra.mxu0 0.0
        %1740 = vmatprep.subr.mxu0 0.0
        %1741 = vmatpush1.msra.mxu0 0.0
        %1742 = vmatprep.subr.mxu0 0.0
        %1743 = vmatpush1.msra.mxu0 0.0
        %1744 = vmatprep.mubr.f32.mxu0 0.0
        %v1745 = vand.u32 %v1659, 4294901760
        %v1746 = vsub.f32 %v1659, %v1745
        %v1747 = vand.u32 %v1746, 4294901760
        %v1748 = vsub.f32 %v1746, %v1747
        %v1749 = vand.u32 %v1748, 4294901760
        %1750 = vmatmul.mubr.f32.gmra.mrb[0].mxu0 %v1749
        %v1751 = vpop.f32.mrb[0].mxu0
        %v1752 = vadd.f32 0.0, %v1751
        %v1753 = vpop.f32.mrb[0].mxu0
        %1754 = vmatprep.mubr.f32.mxu0 0.0
        %v1755 = vand.u32 %v1661, 4294901760
        %v1756 = vsub.f32 %v1661, %v1755
        %v1757 = vand.u32 %v1756, 4294901760
        %v1758 = vsub.f32 %v1756, %v1757
        %v1759 = vand.u32 %v1758, 4294901760
        %1760 = vmatmul.mubr.f32.gmra.mrb[0].mxu0 %v1759
        %v1761 = vpop.f32.mrb[0].mxu0
        %v1762 = vadd.f32 0.0, %v1761
        %v1763 = vpop.f32.mrb[0].mxu0
        %1764 = vdwg.mxu0
        %1765 = vmatprep.subr.mxu0 0.0
        %v1766 = vand.u32 %v1640, 4294901760
        %v1767 = vsub.f32 %v1640, %v1766
        %v1768 = vand.u32 %v1767, 4294901760
        %v1769 = vsub.f32 %v1767, %v1768
        %v1770 = vand.u32 %v1769, 4294901760
        %1771 = vmatpush1.msra.mxu0 %v1770
        %1772 = vmatprep.subr.mxu0 0.0
        %v1773 = vand.u32 %v1641, 4294901760
        %v1774 = vsub.f32 %v1641, %v1773
        %v1775 = vand.u32 %v1774, 4294901760
        %v1776 = vsub.f32 %v1774, %v1775
        %v1777 = vand.u32 %v1776, 4294901760
        %1778 = vmatpush1.msra.mxu0 %v1777
        %1779 = vmatprep.subr.mxu0 0.0
        %v1780 = vand.u32 %v1642, 4294901760
        %v1781 = vsub.f32 %v1642, %v1780
        %v1782 = vand.u32 %v1781, 4294901760
        %v1783 = vsub.f32 %v1781, %v1782
        %v1784 = vand.u32 %v1783, 4294901760
        %1785 = vmatpush1.msra.mxu0 %v1784
        %1786 = vmatprep.subr.mxu0 0.0
        %v1787 = vand.u32 %v1643, 4294901760
        %v1788 = vsub.f32 %v1643, %v1787
        %v1789 = vand.u32 %v1788, 4294901760
        %v1790 = vsub.f32 %v1788, %v1789
        %v1791 = vand.u32 %v1790, 4294901760
        %1792 = vmatpush1.msra.mxu0 %v1791
        %1793 = vmatprep.subr.mxu0 0.0
        %v1794 = vand.u32 %v1644, 4294901760
        %v1795 = vsub.f32 %v1644, %v1794
        %v1796 = vand.u32 %v1795, 4294901760
        %v1797 = vsub.f32 %v1795, %v1796
        %v1798 = vand.u32 %v1797, 4294901760
        %1799 = vmatpush1.msra.mxu0 %v1798
        %1800 = vmatprep.subr.mxu0 0.0
        %v1801 = vand.u32 %v1645, 4294901760
        %v1802 = vsub.f32 %v1645, %v1801
        %v1803 = vand.u32 %v1802, 4294901760
        %v1804 = vsub.f32 %v1802, %v1803
        %v1805 = vand.u32 %v1804, 4294901760
        %1806 = vmatpush1.msra.mxu0 %v1805
        %1807 = vmatprep.subr.mxu0 0.0
        %v1808 = vand.u32 %v1646, 4294901760
        %v1809 = vsub.f32 %v1646, %v1808
        %v1810 = vand.u32 %v1809, 4294901760
        %v1811 = vsub.f32 %v1809, %v1810
        %v1812 = vand.u32 %v1811, 4294901760
        %1813 = vmatpush1.msra.mxu0 %v1812
        %1814 = vmatprep.subr.mxu0 0.0
        %v1815 = vand.u32 %v1647, 4294901760
        %v1816 = vsub.f32 %v1647, %v1815
        %v1817 = vand.u32 %v1816, 4294901760
        %v1818 = vsub.f32 %v1816, %v1817
        %v1819 = vand.u32 %v1818, 4294901760
        %1820 = vmatpush1.msra.mxu0 %v1819
        %1821 = vmatprep.subr.mxu0 0.0
        %v1822 = vand.u32 %v1648, 4294901760
        %v1823 = vsub.f32 %v1648, %v1822
        %v1824 = vand.u32 %v1823, 4294901760
        %v1825 = vsub.f32 %v1823, %v1824
        %v1826 = vand.u32 %v1825, 4294901760
        %1827 = vmatpush1.msra.mxu0 %v1826
        %1828 = vmatprep.subr.mxu0 0.0
        %v1829 = vand.u32 %v1649, 4294901760
        %v1830 = vsub.f32 %v1649, %v1829
        %v1831 = vand.u32 %v1830, 4294901760
        %v1832 = vsub.f32 %v1830, %v1831
        %v1833 = vand.u32 %v1832, 4294901760
        %1834 = vmatpush1.msra.mxu0 %v1833
        %1835 = vmatprep.subr.mxu0 0.0
        %v1836 = vand.u32 %v1650, 4294901760
        %v1837 = vsub.f32 %v1650, %v1836
        %v1838 = vand.u32 %v1837, 4294901760
        %v1839 = vsub.f32 %v1837, %v1838
        %v1840 = vand.u32 %v1839, 4294901760
        %1841 = vmatpush1.msra.mxu0 %v1840
        %1842 = vmatprep.subr.mxu0 0.0
        %v1843 = vand.u32 %v1651, 4294901760
        %v1844 = vsub.f32 %v1651, %v1843
        %v1845 = vand.u32 %v1844, 4294901760
        %v1846 = vsub.f32 %v1844, %v1845
        %v1847 = vand.u32 %v1846, 4294901760
        %1848 = vmatpush1.msra.mxu0 %v1847
        %1849 = vmatprep.subr.mxu0 0.0
        %v1850 = vand.u32 %v1652, 4294901760
        %v1851 = vsub.f32 %v1652, %v1850
        %v1852 = vand.u32 %v1851, 4294901760
        %v1853 = vsub.f32 %v1851, %v1852
        %v1854 = vand.u32 %v1853, 4294901760
        %1855 = vmatpush1.msra.mxu0 %v1854
        %1856 = vmatprep.subr.mxu0 0.0
        %v1857 = vand.u32 %v1653, 4294901760
        %v1858 = vsub.f32 %v1653, %v1857
        %v1859 = vand.u32 %v1858, 4294901760
        %v1860 = vsub.f32 %v1858, %v1859
        %v1861 = vand.u32 %v1860, 4294901760
        %1862 = vmatpush1.msra.mxu0 %v1861
        %1863 = vmatprep.subr.mxu0 0.0
        %v1864 = vand.u32 %v1654, 4294901760
        %v1865 = vsub.f32 %v1654, %v1864
        %v1866 = vand.u32 %v1865, 4294901760
        %v1867 = vsub.f32 %v1865, %v1866
        %v1868 = vand.u32 %v1867, 4294901760
        %1869 = vmatpush1.msra.mxu0 %v1868
        %1870 = vmatprep.subr.mxu0 0.0
        %v1871 = vand.u32 %v1655, 4294901760
        %v1872 = vsub.f32 %v1655, %v1871
        %v1873 = vand.u32 %v1872, 4294901760
        %v1874 = vsub.f32 %v1872, %v1873
        %v1875 = vand.u32 %v1874, 4294901760
        %1876 = vmatpush1.msra.mxu0 %v1875
        %1877 = vmatprep.subr.mxu0 0.0
        %1878 = vmatpush1.msra.mxu0 0.0
        %1879 = vmatprep.subr.mxu0 0.0
        %1880 = vmatpush1.msra.mxu0 0.0
        %1881 = vmatprep.subr.mxu0 0.0
        %1882 = vmatpush1.msra.mxu0 0.0
        %1883 = vmatprep.subr.mxu0 0.0
        %1884 = vmatpush1.msra.mxu0 0.0
        %1885 = vmatprep.subr.mxu0 0.0
        %1886 = vmatpush1.msra.mxu0 0.0
        %1887 = vmatprep.subr.mxu0 0.0
        %1888 = vmatpush1.msra.mxu0 0.0
        %1889 = vmatprep.subr.mxu0 0.0
        %1890 = vmatpush1.msra.mxu0 0.0
        %1891 = vmatprep.subr.mxu0 0.0
        %1892 = vmatpush1.msra.mxu0 0.0
        %1893 = vmatprep.subr.mxu0 0.0
        %1894 = vmatpush1.msra.mxu0 0.0
        %1895 = vmatprep.subr.mxu0 0.0
        %1896 = vmatpush1.msra.mxu0 0.0
        %1897 = vmatprep.subr.mxu0 0.0
        %1898 = vmatpush1.msra.mxu0 0.0
        %1899 = vmatprep.subr.mxu0 0.0
        %1900 = vmatpush1.msra.mxu0 0.0
        %1901 = vmatprep.subr.mxu0 0.0
        %1902 = vmatpush1.msra.mxu0 0.0
        %1903 = vmatprep.subr.mxu0 0.0
        %1904 = vmatpush1.msra.mxu0 0.0
        %1905 = vmatprep.subr.mxu0 0.0
        %1906 = vmatpush1.msra.mxu0 0.0
        %1907 = vmatprep.subr.mxu0 0.0
        %1908 = vmatpush1.msra.mxu0 0.0
        %1909 = vmatprep.mubr.f32.mxu0 0.0
        %v1910 = vand.u32 %v1659, 4294901760
        %1911 = vmatmul.mubr.f32.gmra.mrb[0].mxu0 %v1910
        %v1912 = vpop.f32.mrb[0].mxu0
        %v1913 = vadd.f32 %v1752, %v1912
        %v1914 = vpop.f32.mrb[0].mxu0
        %1915 = vmatprep.mubr.f32.mxu0 0.0
        %v1916 = vand.u32 %v1661, 4294901760
        %1917 = vmatmul.mubr.f32.gmra.mrb[0].mxu0 %v1916
        %v1918 = vpop.f32.mrb[0].mxu0
        %v1919 = vadd.f32 %v1762, %v1918
        %v1920 = vpop.f32.mrb[0].mxu0
        %1921 = vdwg.mxu0
        %1922 = vmatprep.subr.mxu0 0.0
        %v1923 = vand.u32 %v1640, 4294901760
        %v1924 = vsub.f32 %v1640, %v1923
        %1925 = vmatpush1.msra.mxu0 %v1924
        %1926 = vmatprep.subr.mxu0 0.0
        %v1927 = vand.u32 %v1641, 4294901760
        %v1928 = vsub.f32 %v1641, %v1927
        %1929 = vmatpush1.msra.mxu0 %v1928
        %1930 = vmatprep.subr.mxu0 0.0
        %v1931 = vand.u32 %v1642, 4294901760
        %v1932 = vsub.f32 %v1642, %v1931
        %1933 = vmatpush1.msra.mxu0 %v1932
        %1934 = vmatprep.subr.mxu0 0.0
        %v1935 = vand.u32 %v1643, 4294901760
        %v1936 = vsub.f32 %v1643, %v1935
        %1937 = vmatpush1.msra.mxu0 %v1936
        %1938 = vmatprep.subr.mxu0 0.0
        %v1939 = vand.u32 %v1644, 4294901760
        %v1940 = vsub.f32 %v1644, %v1939
        %1941 = vmatpush1.msra.mxu0 %v1940
        %1942 = vmatprep.subr.mxu0 0.0
        %v1943 = vand.u32 %v1645, 4294901760
        %v1944 = vsub.f32 %v1645, %v1943
        %1945 = vmatpush1.msra.mxu0 %v1944
        %1946 = vmatprep.subr.mxu0 0.0
        %v1947 = vand.u32 %v1646, 4294901760
        %v1948 = vsub.f32 %v1646, %v1947
        %1949 = vmatpush1.msra.mxu0 %v1948
        %1950 = vmatprep.subr.mxu0 0.0
        %v1951 = vand.u32 %v1647, 4294901760
        %v1952 = vsub.f32 %v1647, %v1951
        %1953 = vmatpush1.msra.mxu0 %v1952
        %1954 = vmatprep.subr.mxu0 0.0
        %v1955 = vand.u32 %v1648, 4294901760
        %v1956 = vsub.f32 %v1648, %v1955
        %1957 = vmatpush1.msra.mxu0 %v1956
        %1958 = vmatprep.subr.mxu0 0.0
        %v1959 = vand.u32 %v1649, 4294901760
        %v1960 = vsub.f32 %v1649, %v1959
        %1961 = vmatpush1.msra.mxu0 %v1960
        %1962 = vmatprep.subr.mxu0 0.0
        %v1963 = vand.u32 %v1650, 4294901760
        %v1964 = vsub.f32 %v1650, %v1963
        %1965 = vmatpush1.msra.mxu0 %v1964
        %1966 = vmatprep.subr.mxu0 0.0
        %v1967 = vand.u32 %v1651, 4294901760
        %v1968 = vsub.f32 %v1651, %v1967
        %1969 = vmatpush1.msra.mxu0 %v1968
        %1970 = vmatprep.subr.mxu0 0.0
        %v1971 = vand.u32 %v1652, 4294901760
        %v1972 = vsub.f32 %v1652, %v1971
        %1973 = vmatpush1.msra.mxu0 %v1972
        %1974 = vmatprep.subr.mxu0 0.0
        %v1975 = vand.u32 %v1653, 4294901760
        %v1976 = vsub.f32 %v1653, %v1975
        %1977 = vmatpush1.msra.mxu0 %v1976
        %1978 = vmatprep.subr.mxu0 0.0
        %v1979 = vand.u32 %v1654, 4294901760
        %v1980 = vsub.f32 %v1654, %v1979
        %1981 = vmatpush1.msra.mxu0 %v1980
        %1982 = vmatprep.subr.mxu0 0.0
        %v1983 = vand.u32 %v1655, 4294901760
        %v1984 = vsub.f32 %v1655, %v1983
        %1985 = vmatpush1.msra.mxu0 %v1984
        %1986 = vmatprep.subr.mxu0 0.0
        %1987 = vmatpush1.msra.mxu0 0.0
        %1988 = vmatprep.subr.mxu0 0.0
        %1989 = vmatpush1.msra.mxu0 0.0
        %1990 = vmatprep.subr.mxu0 0.0
        %1991 = vmatpush1.msra.mxu0 0.0
        %1992 = vmatprep.subr.mxu0 0.0
        %1993 = vmatpush1.msra.mxu0 0.0
        %1994 = vmatprep.subr.mxu0 0.0
        %1995 = vmatpush1.msra.mxu0 0.0
        %1996 = vmatprep.subr.mxu0 0.0
        %1997 = vmatpush1.msra.mxu0 0.0
        %1998 = vmatprep.subr.mxu0 0.0
        %1999 = vmatpush1.msra.mxu0 0.0
        %2000 = vmatprep.subr.mxu0 0.0
        %2001 = vmatpush1.msra.mxu0 0.0
        %2002 = vmatprep.subr.mxu0 0.0
        %2003 = vmatpush1.msra.mxu0 0.0
        %2004 = vmatprep.subr.mxu0 0.0
        %2005 = vmatpush1.msra.mxu0 0.0
        %2006 = vmatprep.subr.mxu0 0.0
        %2007 = vmatpush1.msra.mxu0 0.0
        %2008 = vmatprep.subr.mxu0 0.0
        %2009 = vmatpush1.msra.mxu0 0.0
        %2010 = vmatprep.subr.mxu0 0.0
        %2011 = vmatpush1.msra.mxu0 0.0
        %2012 = vmatprep.subr.mxu0 0.0
        %2013 = vmatpush1.msra.mxu0 0.0
        %2014 = vmatprep.subr.mxu0 0.0
        %2015 = vmatpush1.msra.mxu0 0.0
        %2016 = vmatprep.subr.mxu0 0.0
        %2017 = vmatpush1.msra.mxu0 0.0
        %2018 = vmatprep.mubr.f32.mxu0 0.0
        %v2019 = vand.u32 %v1659, 4294901760
        %v2020 = vsub.f32 %v1659, %v2019
        %2021 = vmatmul.mubr.f32.gmra.mrb[0].mxu0 %v2020
        %v2022 = vpop.f32.mrb[0].mxu0
        %v2023 = vadd.f32 %v1913, %v2022
        %v2024 = vpop.f32.mrb[0].mxu0
        %2025 = vmatprep.mubr.f32.mxu0 0.0
        %v2026 = vand.u32 %v1661, 4294901760
        %v2027 = vsub.f32 %v1661, %v2026
        %2028 = vmatmul.mubr.f32.gmra.mrb[0].mxu0 %v2027
        %v2029 = vpop.f32.mrb[0].mxu0
        %v2030 = vadd.f32 %v1919, %v2029
        %v2031 = vpop.f32.mrb[0].mxu0
        %2032 = vdwg.mxu0
        %2033 = vmatprep.subr.mxu0 0.0
        %v2034 = vand.u32 %v1640, 4294901760
        %2035 = vmatpush1.msra.mxu0 %v2034
        %2036 = vmatprep.subr.mxu0 0.0
        %v2037 = vand.u32 %v1641, 4294901760
        %2038 = vmatpush1.msra.mxu0 %v2037
        %2039 = vmatprep.subr.mxu0 0.0
        %v2040 = vand.u32 %v1642, 4294901760
        %2041 = vmatpush1.msra.mxu0 %v2040
        %2042 = vmatprep.subr.mxu0 0.0
        %v2043 = vand.u32 %v1643, 4294901760
        %2044 = vmatpush1.msra.mxu0 %v2043
        %2045 = vmatprep.subr.mxu0 0.0
        %v2046 = vand.u32 %v1644, 4294901760
        %2047 = vmatpush1.msra.mxu0 %v2046
        %2048 = vmatprep.subr.mxu0 0.0
        %v2049 = vand.u32 %v1645, 4294901760
        %2050 = vmatpush1.msra.mxu0 %v2049
        %2051 = vmatprep.subr.mxu0 0.0
        %v2052 = vand.u32 %v1646, 4294901760
        %2053 = vmatpush1.msra.mxu0 %v2052
        %2054 = vmatprep.subr.mxu0 0.0
        %v2055 = vand.u32 %v1647, 4294901760
        %2056 = vmatpush1.msra.mxu0 %v2055
        %2057 = vmatprep.subr.mxu0 0.0
        %v2058 = vand.u32 %v1648, 4294901760
        %2059 = vmatpush1.msra.mxu0 %v2058
        %2060 = vmatprep.subr.mxu0 0.0
        %v2061 = vand.u32 %v1649, 4294901760
        %2062 = vmatpush1.msra.mxu0 %v2061
        %2063 = vmatprep.subr.mxu0 0.0
        %v2064 = vand.u32 %v1650, 4294901760
        %2065 = vmatpush1.msra.mxu0 %v2064
        %2066 = vmatprep.subr.mxu0 0.0
        %v2067 = vand.u32 %v1651, 4294901760
        %2068 = vmatpush1.msra.mxu0 %v2067
        %2069 = vmatprep.subr.mxu0 0.0
        %v2070 = vand.u32 %v1652, 4294901760
        %2071 = vmatpush1.msra.mxu0 %v2070
        %2072 = vmatprep.subr.mxu0 0.0
        %v2073 = vand.u32 %v1653, 4294901760
        %2074 = vmatpush1.msra.mxu0 %v2073
        %2075 = vmatprep.subr.mxu0 0.0
        %v2076 = vand.u32 %v1654, 4294901760
        %2077 = vmatpush1.msra.mxu0 %v2076
        %2078 = vmatprep.subr.mxu0 0.0
        %v2079 = vand.u32 %v1655, 4294901760
        %2080 = vmatpush1.msra.mxu0 %v2079
        %2081 = vmatprep.subr.mxu0 0.0
        %2082 = vmatpush1.msra.mxu0 0.0
        %2083 = vmatprep.subr.mxu0 0.0
        %2084 = vmatpush1.msra.mxu0 0.0
        %2085 = vmatprep.subr.mxu0 0.0
        %2086 = vmatpush1.msra.mxu0 0.0
        %2087 = vmatprep.subr.mxu0 0.0
        %2088 = vmatpush1.msra.mxu0 0.0
        %2089 = vmatprep.subr.mxu0 0.0
        %2090 = vmatpush1.msra.mxu0 0.0
        %2091 = vmatprep.subr.mxu0 0.0
        %2092 = vmatpush1.msra.mxu0 0.0
        %2093 = vmatprep.subr.mxu0 0.0
        %2094 = vmatpush1.msra.mxu0 0.0
        %2095 = vmatprep.subr.mxu0 0.0
        %2096 = vmatpush1.msra.mxu0 0.0
        %2097 = vmatprep.subr.mxu0 0.0
        %2098 = vmatpush1.msra.mxu0 0.0
        %2099 = vmatprep.subr.mxu0 0.0
        %2100 = vmatpush1.msra.mxu0 0.0
        %2101 = vmatprep.subr.mxu0 0.0
        %2102 = vmatpush1.msra.mxu0 0.0
        %2103 = vmatprep.subr.mxu0 0.0
        %2104 = vmatpush1.msra.mxu0 0.0
        %2105 = vmatprep.subr.mxu0 0.0
        %2106 = vmatpush1.msra.mxu0 0.0
        %2107 = vmatprep.subr.mxu0 0.0
        %2108 = vmatpush1.msra.mxu0 0.0
        %2109 = vmatprep.subr.mxu0 0.0
        %2110 = vmatpush1.msra.mxu0 0.0
        %2111 = vmatprep.subr.mxu0 0.0
        %2112 = vmatpush1.msra.mxu0 0.0
        %2113 = vmatprep.mubr.f32.mxu0 0.0
        %v2114 = vand.u32 %v1659, 4294901760
        %v2115 = vsub.f32 %v1659, %v2114
        %v2116 = vand.u32 %v2115, 4294901760
        %2117 = vmatmul.mubr.f32.gmra.mrb[0].mxu0 %v2116
        %v2118 = vpop.f32.mrb[0].mxu0
        %v2119 = vadd.f32 %v2023, %v2118
        %v2120 = vpop.f32.mrb[0].mxu0
        %2121 = vmatprep.mubr.f32.mxu0 0.0
        %v2122 = vand.u32 %v1661, 4294901760
        %v2123 = vsub.f32 %v1661, %v2122
        %v2124 = vand.u32 %v2123, 4294901760
        %2125 = vmatmul.mubr.f32.gmra.mrb[0].mxu0 %v2124
        %v2126 = vpop.f32.mrb[0].mxu0
        %v2127 = vadd.f32 %v2030, %v2126
        %v2128 = vpop.f32.mrb[0].mxu0
        %2129 = vdwg.mxu0
        %2130 = vmatprep.subr.mxu0 0.0
        %v2131 = vand.u32 %v1640, 4294901760
        %v2132 = vsub.f32 %v1640, %v2131
        %v2133 = vand.u32 %v2132, 4294901760
        %2134 = vmatpush1.msra.mxu0 %v2133
        %2135 = vmatprep.subr.mxu0 0.0
        %v2136 = vand.u32 %v1641, 4294901760
        %v2137 = vsub.f32 %v1641, %v2136
        %v2138 = vand.u32 %v2137, 4294901760
        %2139 = vmatpush1.msra.mxu0 %v2138
        %2140 = vmatprep.subr.mxu0 0.0
        %v2141 = vand.u32 %v1642, 4294901760
        %v2142 = vsub.f32 %v1642, %v2141
        %v2143 = vand.u32 %v2142, 4294901760
        %2144 = vmatpush1.msra.mxu0 %v2143
        %2145 = vmatprep.subr.mxu0 0.0
        %v2146 = vand.u32 %v1643, 4294901760
        %v2147 = vsub.f32 %v1643, %v2146
        %v2148 = vand.u32 %v2147, 4294901760
        %2149 = vmatpush1.msra.mxu0 %v2148
        %2150 = vmatprep.subr.mxu0 0.0
        %v2151 = vand.u32 %v1644, 4294901760
        %v2152 = vsub.f32 %v1644, %v2151
        %v2153 = vand.u32 %v2152, 4294901760
        %2154 = vmatpush1.msra.mxu0 %v2153
        %2155 = vmatprep.subr.mxu0 0.0
        %v2156 = vand.u32 %v1645, 4294901760
        %v2157 = vsub.f32 %v1645, %v2156
        %v2158 = vand.u32 %v2157, 4294901760
        %2159 = vmatpush1.msra.mxu0 %v2158
        %2160 = vmatprep.subr.mxu0 0.0
        %v2161 = vand.u32 %v1646, 4294901760
        %v2162 = vsub.f32 %v1646, %v2161
        %v2163 = vand.u32 %v2162, 4294901760
        %2164 = vmatpush1.msra.mxu0 %v2163
        %2165 = vmatprep.subr.mxu0 0.0
        %v2166 = vand.u32 %v1647, 4294901760
        %v2167 = vsub.f32 %v1647, %v2166
        %v2168 = vand.u32 %v2167, 4294901760
        %2169 = vmatpush1.msra.mxu0 %v2168
        %2170 = vmatprep.subr.mxu0 0.0
        %v2171 = vand.u32 %v1648, 4294901760
        %v2172 = vsub.f32 %v1648, %v2171
        %v2173 = vand.u32 %v2172, 4294901760
        %2174 = vmatpush1.msra.mxu0 %v2173
        %2175 = vmatprep.subr.mxu0 0.0
        %v2176 = vand.u32 %v1649, 4294901760
        %v2177 = vsub.f32 %v1649, %v2176
        %v2178 = vand.u32 %v2177, 4294901760
        %2179 = vmatpush1.msra.mxu0 %v2178
        %2180 = vmatprep.subr.mxu0 0.0
        %v2181 = vand.u32 %v1650, 4294901760
        %v2182 = vsub.f32 %v1650, %v2181
        %v2183 = vand.u32 %v2182, 4294901760
        %2184 = vmatpush1.msra.mxu0 %v2183
        %2185 = vmatprep.subr.mxu0 0.0
        %v2186 = vand.u32 %v1651, 4294901760
        %v2187 = vsub.f32 %v1651, %v2186
        %v2188 = vand.u32 %v2187, 4294901760
        %2189 = vmatpush1.msra.mxu0 %v2188
        %2190 = vmatprep.subr.mxu0 0.0
        %v2191 = vand.u32 %v1652, 4294901760
        %v2192 = vsub.f32 %v1652, %v2191
        %v2193 = vand.u32 %v2192, 4294901760
        %2194 = vmatpush1.msra.mxu0 %v2193
        %2195 = vmatprep.subr.mxu0 0.0
        %v2196 = vand.u32 %v1653, 4294901760
        %v2197 = vsub.f32 %v1653, %v2196
        %v2198 = vand.u32 %v2197, 4294901760
        %2199 = vmatpush1.msra.mxu0 %v2198
        %2200 = vmatprep.subr.mxu0 0.0
        %v2201 = vand.u32 %v1654, 4294901760
        %v2202 = vsub.f32 %v1654, %v2201
        %v2203 = vand.u32 %v2202, 4294901760
        %2204 = vmatpush1.msra.mxu0 %v2203
        %2205 = vmatprep.subr.mxu0 0.0
        %v2206 = vand.u32 %v1655, 4294901760
        %v2207 = vsub.f32 %v1655, %v2206
        %v2208 = vand.u32 %v2207, 4294901760
        %2209 = vmatpush1.msra.mxu0 %v2208
        %2210 = vmatprep.subr.mxu0 0.0
        %2211 = vmatpush1.msra.mxu0 0.0
        %2212 = vmatprep.subr.mxu0 0.0
        %2213 = vmatpush1.msra.mxu0 0.0
        %2214 = vmatprep.subr.mxu0 0.0
        %2215 = vmatpush1.msra.mxu0 0.0
        %2216 = vmatprep.subr.mxu0 0.0
        %2217 = vmatpush1.msra.mxu0 0.0
        %2218 = vmatprep.subr.mxu0 0.0
        %2219 = vmatpush1.msra.mxu0 0.0
        %2220 = vmatprep.subr.mxu0 0.0
        %2221 = vmatpush1.msra.mxu0 0.0
        %2222 = vmatprep.subr.mxu0 0.0
        %2223 = vmatpush1.msra.mxu0 0.0
        %2224 = vmatprep.subr.mxu0 0.0
        %2225 = vmatpush1.msra.mxu0 0.0
        %2226 = vmatprep.subr.mxu0 0.0
        %2227 = vmatpush1.msra.mxu0 0.0
        %2228 = vmatprep.subr.mxu0 0.0
        %2229 = vmatpush1.msra.mxu0 0.0
        %2230 = vmatprep.subr.mxu0 0.0
        %2231 = vmatpush1.msra.mxu0 0.0
        %2232 = vmatprep.subr.mxu0 0.0
        %2233 = vmatpush1.msra.mxu0 0.0
        %2234 = vmatprep.subr.mxu0 0.0
        %2235 = vmatpush1.msra.mxu0 0.0
        %2236 = vmatprep.subr.mxu0 0.0
        %2237 = vmatpush1.msra.mxu0 0.0
        %2238 = vmatprep.subr.mxu0 0.0
        %2239 = vmatpush1.msra.mxu0 0.0
        %2240 = vmatprep.subr.mxu0 0.0
        %2241 = vmatpush1.msra.mxu0 0.0
        %2242 = vmatprep.mubr.f32.mxu0 0.0
        %v2243 = vand.u32 %v1659, 4294901760
        %2244 = vmatmul.mubr.f32.gmra.mrb[0].mxu0 %v2243
        %v2245 = vpop.f32.mrb[0].mxu0
        %v2246 = vadd.f32 %v2119, %v2245
        %v2247 = vpop.f32.mrb[0].mxu0
        %2248 = vmatprep.mubr.f32.mxu0 0.0
        %v2249 = vand.u32 %v1661, 4294901760
        %2250 = vmatmul.mubr.f32.gmra.mrb[0].mxu0 %v2249
        %v2251 = vpop.f32.mrb[0].mxu0
        %v2252 = vadd.f32 %v2127, %v2251
        %v2253 = vpop.f32.mrb[0].mxu0
        %2254 = vdwg.mxu0
        %2255 = vmatprep.subr.mxu0 0.0
        %v2256 = vand.u32 %v1640, 4294901760
        %2257 = vmatpush1.msra.mxu0 %v2256
        %2258 = vmatprep.subr.mxu0 0.0
        %v2259 = vand.u32 %v1641, 4294901760
        %2260 = vmatpush1.msra.mxu0 %v2259
        %2261 = vmatprep.subr.mxu0 0.0
        %v2262 = vand.u32 %v1642, 4294901760
        %2263 = vmatpush1.msra.mxu0 %v2262
        %2264 = vmatprep.subr.mxu0 0.0
        %v2265 = vand.u32 %v1643, 4294901760
        %2266 = vmatpush1.msra.mxu0 %v2265
        %2267 = vmatprep.subr.mxu0 0.0
        %v2268 = vand.u32 %v1644, 4294901760
        %2269 = vmatpush1.msra.mxu0 %v2268
        %2270 = vmatprep.subr.mxu0 0.0
        %v2271 = vand.u32 %v1645, 4294901760
        %2272 = vmatpush1.msra.mxu0 %v2271
        %2273 = vmatprep.subr.mxu0 0.0
        %v2274 = vand.u32 %v1646, 4294901760
        %2275 = vmatpush1.msra.mxu0 %v2274
        %2276 = vmatprep.subr.mxu0 0.0
        %v2277 = vand.u32 %v1647, 4294901760
        %2278 = vmatpush1.msra.mxu0 %v2277
        %2279 = vmatprep.subr.mxu0 0.0
        %v2280 = vand.u32 %v1648, 4294901760
        %2281 = vmatpush1.msra.mxu0 %v2280
        %2282 = vmatprep.subr.mxu0 0.0
        %v2283 = vand.u32 %v1649, 4294901760
        %2284 = vmatpush1.msra.mxu0 %v2283
        %2285 = vmatprep.subr.mxu0 0.0
        %v2286 = vand.u32 %v1650, 4294901760
        %2287 = vmatpush1.msra.mxu0 %v2286
        %2288 = vmatprep.subr.mxu0 0.0
        %v2289 = vand.u32 %v1651, 4294901760
        %2290 = vmatpush1.msra.mxu0 %v2289
        %2291 = vmatprep.subr.mxu0 0.0
        %v2292 = vand.u32 %v1652, 4294901760
        %2293 = vmatpush1.msra.mxu0 %v2292
        %2294 = vmatprep.subr.mxu0 0.0
        %v2295 = vand.u32 %v1653, 4294901760
        %2296 = vmatpush1.msra.mxu0 %v2295
        %2297 = vmatprep.subr.mxu0 0.0
        %v2298 = vand.u32 %v1654, 4294901760
        %2299 = vmatpush1.msra.mxu0 %v2298
        %2300 = vmatprep.subr.mxu0 0.0
        %v2301 = vand.u32 %v1655, 4294901760
        %2302 = vmatpush1.msra.mxu0 %v2301
        %2303 = vmatprep.subr.mxu0 0.0
        %2304 = vmatpush1.msra.mxu0 0.0
        %2305 = vmatprep.subr.mxu0 0.0
        %2306 = vmatpush1.msra.mxu0 0.0
        %2307 = vmatprep.subr.mxu0 0.0
        %2308 = vmatpush1.msra.mxu0 0.0
        %2309 = vmatprep.subr.mxu0 0.0
        %2310 = vmatpush1.msra.mxu0 0.0
        %2311 = vmatprep.subr.mxu0 0.0
        %2312 = vmatpush1.msra.mxu0 0.0
        %2313 = vmatprep.subr.mxu0 0.0
        %2314 = vmatpush1.msra.mxu0 0.0
        %2315 = vmatprep.subr.mxu0 0.0
        %2316 = vmatpush1.msra.mxu0 0.0
        %2317 = vmatprep.subr.mxu0 0.0
        %2318 = vmatpush1.msra.mxu0 0.0
        %2319 = vmatprep.subr.mxu0 0.0
        %2320 = vmatpush1.msra.mxu0 0.0
        %2321 = vmatprep.subr.mxu0 0.0
        %2322 = vmatpush1.msra.mxu0 0.0
        %2323 = vmatprep.subr.mxu0 0.0
        %2324 = vmatpush1.msra.mxu0 0.0
        %2325 = vmatprep.subr.mxu0 0.0
        %2326 = vmatpush1.msra.mxu0 0.0
        %2327 = vmatprep.subr.mxu0 0.0
        %2328 = vmatpush1.msra.mxu0 0.0
        %2329 = vmatprep.subr.mxu0 0.0
        %2330 = vmatpush1.msra.mxu0 0.0
        %2331 = vmatprep.subr.mxu0 0.0
        %2332 = vmatpush1.msra.mxu0 0.0
        %2333 = vmatprep.subr.mxu0 0.0
        %2334 = vmatpush1.msra.mxu0 0.0
        %2335 = vmatprep.mubr.f32.mxu0 0.0
        %v2336 = vand.u32 %v1659, 4294901760
        %2337 = vmatmul.mubr.f32.gmra.mrb[0].mxu0 %v2336
        %v2338 = vpop.f32.mrb[0].mxu0
        %v2339 = vadd.f32 %v2246, %v2338
        %v2340 = vpop.f32.mrb[0].mxu0
        %2341 = vmatprep.mubr.f32.mxu0 0.0
        %v2342 = vand.u32 %v1661, 4294901760
        %2343 = vmatmul.mubr.f32.gmra.mrb[0].mxu0 %v2342
        %v2344 = vpop.f32.mrb[0].mxu0
        %v2345 = vadd.f32 %v2252, %v2344
        %v2346 = vpop.f32.mrb[0].mxu0
        %2347 = vdwg.mxu0
        %v2348 = vadd.f32 %v1637, %v2339
        %v2349 = vadd.f32 %v1638, %v2345
        %v2350 = vadd.f32 %v2348, %v2349
        %v2351 = vrot.slane %v2350, 4
        %v2352 = vadd.f32 %v2350, %v2351
        %v2353 = vrot.slane %v2352, 2
        %v2354 = vadd.f32 %v2352, %v2353
        %v2355 = vrot.slane %v2354, 1
        %v2356 = vadd.f32 %v2354, %v2355
        %2357 = vrot.lane.b32.xlu0 %v2356, 8
        %v2358 = vpop.permute.xlu0 %2357
        %v2359 = vadd.f32 %v2356, %v2358
        %2360 = vrot.lane.b32.xlu0 %v2359, 16
        %v2361 = vpop.permute.xlu0 %2360
        %v2362 = vadd.f32 %v2359, %v2361
        %2363 = vrot.lane.b32.xlu0 %v2362, 32
        %v2364 = vpop.permute.xlu0 %2363
        %v2365 = vadd.f32 %v2362, %v2364
        %2366 = vrot.lane.b32.xlu0 %v2365, 64
        %v2367 = vpop.permute.xlu0 %2366
        %v2368 = vadd.f32 %v2365, %v2367
        %v2369 = vmul.f32 %v2348, %v2348
        %v2370 = vmul.f32 %v2349, %v2349
        %v2371 = vadd.f32 %v2369, %v2370
        %v2372 = vrot.slane %v2371, 4
        %v2373 = vadd.f32 %v2371, %v2372
        %v2374 = vrot.slane %v2373, 2
        %v2375 = vadd.f32 %v2373, %v2374
        %v2376 = vrot.slane %v2375, 1
        %v2377 = vadd.f32 %v2375, %v2376
        %2378 = vrot.lane.b32.xlu0 %v2377, 8
        %v2379 = vpop.permute.xlu0 %2378
        %v2380 = vadd.f32 %v2377, %v2379
        %2381 = vrot.lane.b32.xlu0 %v2380, 16
        %v2382 = vpop.permute.xlu0 %2381
        %v2383 = vadd.f32 %v2380, %v2382
        %2384 = vrot.lane.b32.xlu0 %v2383, 32
        %v2385 = vpop.permute.xlu0 %2384
        %v2386 = vadd.f32 %v2383, %v2385
        %2387 = vrot.lane.b32.xlu0 %v2386, 64
        %v2388 = vpop.permute.xlu0 %2387
        %v2389 = vadd.f32 %v2386, %v2388
        %v2390 = vmul.f32 %v2368, 0.00390625
        %v2391 = vmul.f32 %v2389, 0.00390625
        %v2392 = vmul.f32 %v2390, %v2390
        %v2393 = vsub.f32 %v2391, %v2392
        %v2394 = vlaneseq
        %v2395 = vshrl.u32 %v2394, 7
        %v2396 = vsub.s32 0, %v2395
        %v2397 = vrot.slane %v2390, %v2396
        %v2398 = vsub.f32 %v2348, %v2397
        %v2399 = vsub.f32 %v2349, %v2397
        %v2400 = vadd.f32 %v2393, 1e-05
        %v2401 = vrsqrt.pop %v2400
        %v2402 = vlaneseq
        %v2403 = vshrl.u32 %v2402, 7
        %v2404 = vsub.s32 0, %v2403
        %v2405 = vrot.slane %v2401, %v2404
        %v2406 = vmul.f32 %v2398, %v2405
        %v2407 = vmul.f32 %v2399, %v2405
        %vm2408 = vcmp.ge.f32.partialorder %v2406, 0.0
        %vm2409 = vcmp.ge.f32.partialorder %v2407, 0.0
        %v2410 = vmul.f32 %v2406, 0.2
        %v2411 = vmul.f32 %v2407, 0.2
        %v2412 = vsel %vm2408, %v2406, %v2410
        %v2413 = vsel %vm2409, %v2407, %v2411
        %v2416 = vrot.slane %v2412, 7
        %v2417 = vrot.slane %v2413, 7
        %v2418 = vsel %vm208, %v2416, %v2417
        %v2422 = vsel %vm208, 0.0, %v2416
        %v2423 = vsel %vm208, %v2417, 0.0
        %s2424 = scalar_lea.vmem %s2, 1
        %v2425 = vld [vmem:[%s2424] sm:$0x1]
        %s2426 = scalar_lea.vmem [#allocation5], 384
        %v2427 = vld [vmem:[%s2426] sm:$0xff]
        %v2428 = vld [vmem:[%s2426 + $0x8] sm:$0xff]
        %v2429 = vld [vmem:[%s2426 + $0x10] sm:$0xff]
        %v2430 = vld [vmem:[%s2426 + $0x18] sm:$0xff]
        %v2431 = vld [vmem:[%s2426 + $0x20] sm:$0xff]
        %v2432 = vld [vmem:[%s2426 + $0x28] sm:$0xff]
        %v2433 = vld [vmem:[%s2426 + $0x30] sm:$0xff]
        %v2434 = vld [vmem:[%s2426 + $0x38] sm:$0xff]
        %v2435 = vld [vmem:[%s2426 + $0x40] sm:$0xff]
        %v2436 = vld [vmem:[%s2426 + $0x48] sm:$0xff]
        %v2437 = vld [vmem:[%s2426 + $0x50] sm:$0xff]
        %v2438 = vld [vmem:[%s2426 + $0x58] sm:$0xff]
        %v2439 = vld [vmem:[%s2426 + $0x60] sm:$0xff]
        %v2440 = vld [vmem:[%s2426 + $0x68] sm:$0xff]
        %v2441 = vld [vmem:[%s2426 + $0x70] sm:$0xff]
        %v2442 = vld [vmem:[%s2426 + $0x78] sm:$0xff]
        %2443 = vmatprep.subr.mxu0 0.0
        %v2444 = vand.u32 %v2427, 4294901760
        %2445 = vmatpush1.msra.mxu0 %v2444
        %2446 = vmatprep.subr.mxu0 0.0
        %v2447 = vand.u32 %v2428, 4294901760
        %2448 = vmatpush1.msra.mxu0 %v2447
        %2449 = vmatprep.subr.mxu0 0.0
        %v2450 = vand.u32 %v2429, 4294901760
        %2451 = vmatpush1.msra.mxu0 %v2450
        %2452 = vmatprep.subr.mxu0 0.0
        %v2453 = vand.u32 %v2430, 4294901760
        %2454 = vmatpush1.msra.mxu0 %v2453
        %2455 = vmatprep.subr.mxu0 0.0
        %v2456 = vand.u32 %v2431, 4294901760
        %2457 = vmatpush1.msra.mxu0 %v2456
        %2458 = vmatprep.subr.mxu0 0.0
        %v2459 = vand.u32 %v2432, 4294901760
        %2460 = vmatpush1.msra.mxu0 %v2459
        %2461 = vmatprep.subr.mxu0 0.0
        %v2462 = vand.u32 %v2433, 4294901760
        %2463 = vmatpush1.msra.mxu0 %v2462
        %2464 = vmatprep.subr.mxu0 0.0
        %v2465 = vand.u32 %v2434, 4294901760
        %2466 = vmatpush1.msra.mxu0 %v2465
        %2467 = vmatprep.subr.mxu0 0.0
        %v2468 = vand.u32 %v2435, 4294901760
        %2469 = vmatpush1.msra.mxu0 %v2468
        %2470 = vmatprep.subr.mxu0 0.0
        %v2471 = vand.u32 %v2436, 4294901760
        %2472 = vmatpush1.msra.mxu0 %v2471
        %2473 = vmatprep.subr.mxu0 0.0
        %v2474 = vand.u32 %v2437, 4294901760
        %2475 = vmatpush1.msra.mxu0 %v2474
        %2476 = vmatprep.subr.mxu0 0.0
        %v2477 = vand.u32 %v2438, 4294901760
        %2478 = vmatpush1.msra.mxu0 %v2477
        %2479 = vmatprep.subr.mxu0 0.0
        %v2480 = vand.u32 %v2439, 4294901760
        %2481 = vmatpush1.msra.mxu0 %v2480
        %2482 = vmatprep.subr.mxu0 0.0
        %v2483 = vand.u32 %v2440, 4294901760
        %2484 = vmatpush1.msra.mxu0 %v2483
        %2485 = vmatprep.subr.mxu0 0.0
        %v2486 = vand.u32 %v2441, 4294901760
        %2487 = vmatpush1.msra.mxu0 %v2486
        %2488 = vmatprep.subr.mxu0 0.0
        %v2489 = vand.u32 %v2442, 4294901760
        %2490 = vmatpush1.msra.mxu0 %v2489
        %2491 = vmatprep.subr.mxu0 0.0
        %2492 = vmatpush1.msra.mxu0 0.0
        %2493 = vmatprep.subr.mxu0 0.0
        %2494 = vmatpush1.msra.mxu0 0.0
        %2495 = vmatprep.subr.mxu0 0.0
        %2496 = vmatpush1.msra.mxu0 0.0
        %2497 = vmatprep.subr.mxu0 0.0
        %2498 = vmatpush1.msra.mxu0 0.0
        %2499 = vmatprep.subr.mxu0 0.0
        %2500 = vmatpush1.msra.mxu0 0.0
        %2501 = vmatprep.subr.mxu0 0.0
        %2502 = vmatpush1.msra.mxu0 0.0
        %2503 = vmatprep.subr.mxu0 0.0
        %2504 = vmatpush1.msra.mxu0 0.0
        %2505 = vmatprep.subr.mxu0 0.0
        %2506 = vmatpush1.msra.mxu0 0.0
        %2507 = vmatprep.subr.mxu0 0.0
        %2508 = vmatpush1.msra.mxu0 0.0
        %2509 = vmatprep.subr.mxu0 0.0
        %2510 = vmatpush1.msra.mxu0 0.0
        %2511 = vmatprep.subr.mxu0 0.0
        %2512 = vmatpush1.msra.mxu0 0.0
        %2513 = vmatprep.subr.mxu0 0.0
        %2514 = vmatpush1.msra.mxu0 0.0
        %2515 = vmatprep.subr.mxu0 0.0
        %2516 = vmatpush1.msra.mxu0 0.0
        %2517 = vmatprep.subr.mxu0 0.0
        %2518 = vmatpush1.msra.mxu0 0.0
        %2519 = vmatprep.subr.mxu0 0.0
        %2520 = vmatpush1.msra.mxu0 0.0
        %2521 = vmatprep.subr.mxu0 0.0
        %2522 = vmatpush1.msra.mxu0 0.0
        %2523 = vmatprep.mubr.f32.mxu0 0.0
        %v2524 = vand.u32 %v2422, 4294901760
        %v2525 = vsub.f32 %v2422, %v2524
        %v2526 = vand.u32 %v2525, 4294901760
        %v2527 = vsub.f32 %v2525, %v2526
        %v2528 = vand.u32 %v2527, 4294901760
        %2529 = vmatmul.mubr.f32.gmra.mrb[0].mxu0 %v2528
        %v2530 = vpop.f32.mrb[0].mxu0
        %v2531 = vadd.f32 0.0, %v2530
        %v2532 = vpop.f32.mrb[0].mxu0
        %2533 = vmatprep.mubr.f32.mxu0 0.0
        %v2534 = vand.u32 %v2418, 4294901760
        %v2535 = vsub.f32 %v2418, %v2534
        %v2536 = vand.u32 %v2535, 4294901760
        %v2537 = vsub.f32 %v2535, %v2536
        %v2538 = vand.u32 %v2537, 4294901760
        %2539 = vmatmul.mubr.f32.gmra.mrb[0].mxu0 %v2538
        %v2540 = vpop.f32.mrb[0].mxu0
        %v2541 = vadd.f32 0.0, %v2540
        %v2542 = vpop.f32.mrb[0].mxu0
        %2543 = vdwg.mxu0
        %2544 = vmatprep.subr.mxu0 0.0
        %v2545 = vand.u32 %v2427, 4294901760
        %v2546 = vsub.f32 %v2427, %v2545
        %v2547 = vand.u32 %v2546, 4294901760
        %v2548 = vsub.f32 %v2546, %v2547
        %v2549 = vand.u32 %v2548, 4294901760
        %2550 = vmatpush1.msra.mxu0 %v2549
        %2551 = vmatprep.subr.mxu0 0.0
        %v2552 = vand.u32 %v2428, 4294901760
        %v2553 = vsub.f32 %v2428, %v2552
        %v2554 = vand.u32 %v2553, 4294901760
        %v2555 = vsub.f32 %v2553, %v2554
        %v2556 = vand.u32 %v2555, 4294901760
        %2557 = vmatpush1.msra.mxu0 %v2556
        %2558 = vmatprep.subr.mxu0 0.0
        %v2559 = vand.u32 %v2429, 4294901760
        %v2560 = vsub.f32 %v2429, %v2559
        %v2561 = vand.u32 %v2560, 4294901760
        %v2562 = vsub.f32 %v2560, %v2561
        %v2563 = vand.u32 %v2562, 4294901760
        %2564 = vmatpush1.msra.mxu0 %v2563
        %2565 = vmatprep.subr.mxu0 0.0
        %v2566 = vand.u32 %v2430, 4294901760
        %v2567 = vsub.f32 %v2430, %v2566
        %v2568 = vand.u32 %v2567, 4294901760
        %v2569 = vsub.f32 %v2567, %v2568
        %v2570 = vand.u32 %v2569, 4294901760
        %2571 = vmatpush1.msra.mxu0 %v2570
        %2572 = vmatprep.subr.mxu0 0.0
        %v2573 = vand.u32 %v2431, 4294901760
        %v2574 = vsub.f32 %v2431, %v2573
        %v2575 = vand.u32 %v2574, 4294901760
        %v2576 = vsub.f32 %v2574, %v2575
        %v2577 = vand.u32 %v2576, 4294901760
        %2578 = vmatpush1.msra.mxu0 %v2577
        %2579 = vmatprep.subr.mxu0 0.0
        %v2580 = vand.u32 %v2432, 4294901760
        %v2581 = vsub.f32 %v2432, %v2580
        %v2582 = vand.u32 %v2581, 4294901760
        %v2583 = vsub.f32 %v2581, %v2582
        %v2584 = vand.u32 %v2583, 4294901760
        %2585 = vmatpush1.msra.mxu0 %v2584
        %2586 = vmatprep.subr.mxu0 0.0
        %v2587 = vand.u32 %v2433, 4294901760
        %v2588 = vsub.f32 %v2433, %v2587
        %v2589 = vand.u32 %v2588, 4294901760
        %v2590 = vsub.f32 %v2588, %v2589
        %v2591 = vand.u32 %v2590, 4294901760
        %2592 = vmatpush1.msra.mxu0 %v2591
        %2593 = vmatprep.subr.mxu0 0.0
        %v2594 = vand.u32 %v2434, 4294901760
        %v2595 = vsub.f32 %v2434, %v2594
        %v2596 = vand.u32 %v2595, 4294901760
        %v2597 = vsub.f32 %v2595, %v2596
        %v2598 = vand.u32 %v2597, 4294901760
        %2599 = vmatpush1.msra.mxu0 %v2598
        %2600 = vmatprep.subr.mxu0 0.0
        %v2601 = vand.u32 %v2435, 4294901760
        %v2602 = vsub.f32 %v2435, %v2601
        %v2603 = vand.u32 %v2602, 4294901760
        %v2604 = vsub.f32 %v2602, %v2603
        %v2605 = vand.u32 %v2604, 4294901760
        %2606 = vmatpush1.msra.mxu0 %v2605
        %2607 = vmatprep.subr.mxu0 0.0
        %v2608 = vand.u32 %v2436, 4294901760
        %v2609 = vsub.f32 %v2436, %v2608
        %v2610 = vand.u32 %v2609, 4294901760
        %v2611 = vsub.f32 %v2609, %v2610
        %v2612 = vand.u32 %v2611, 4294901760
        %2613 = vmatpush1.msra.mxu0 %v2612
        %2614 = vmatprep.subr.mxu0 0.0
        %v2615 = vand.u32 %v2437, 4294901760
        %v2616 = vsub.f32 %v2437, %v2615
        %v2617 = vand.u32 %v2616, 4294901760
        %v2618 = vsub.f32 %v2616, %v2617
        %v2619 = vand.u32 %v2618, 4294901760
        %2620 = vmatpush1.msra.mxu0 %v2619
        %2621 = vmatprep.subr.mxu0 0.0
        %v2622 = vand.u32 %v2438, 4294901760
        %v2623 = vsub.f32 %v2438, %v2622
        %v2624 = vand.u32 %v2623, 4294901760
        %v2625 = vsub.f32 %v2623, %v2624
        %v2626 = vand.u32 %v2625, 4294901760
        %2627 = vmatpush1.msra.mxu0 %v2626
        %2628 = vmatprep.subr.mxu0 0.0
        %v2629 = vand.u32 %v2439, 4294901760
        %v2630 = vsub.f32 %v2439, %v2629
        %v2631 = vand.u32 %v2630, 4294901760
        %v2632 = vsub.f32 %v2630, %v2631
        %v2633 = vand.u32 %v2632, 4294901760
        %2634 = vmatpush1.msra.mxu0 %v2633
        %2635 = vmatprep.subr.mxu0 0.0
        %v2636 = vand.u32 %v2440, 4294901760
        %v2637 = vsub.f32 %v2440, %v2636
        %v2638 = vand.u32 %v2637, 4294901760
        %v2639 = vsub.f32 %v2637, %v2638
        %v2640 = vand.u32 %v2639, 4294901760
        %2641 = vmatpush1.msra.mxu0 %v2640
        %2642 = vmatprep.subr.mxu0 0.0
        %v2643 = vand.u32 %v2441, 4294901760
        %v2644 = vsub.f32 %v2441, %v2643
        %v2645 = vand.u32 %v2644, 4294901760
        %v2646 = vsub.f32 %v2644, %v2645
        %v2647 = vand.u32 %v2646, 4294901760
        %2648 = vmatpush1.msra.mxu0 %v2647
        %2649 = vmatprep.subr.mxu0 0.0
        %v2650 = vand.u32 %v2442, 4294901760
        %v2651 = vsub.f32 %v2442, %v2650
        %v2652 = vand.u32 %v2651, 4294901760
        %v2653 = vsub.f32 %v2651, %v2652
        %v2654 = vand.u32 %v2653, 4294901760
        %2655 = vmatpush1.msra.mxu0 %v2654
        %2656 = vmatprep.subr.mxu0 0.0
        %2657 = vmatpush1.msra.mxu0 0.0
        %2658 = vmatprep.subr.mxu0 0.0
        %2659 = vmatpush1.msra.mxu0 0.0
        %2660 = vmatprep.subr.mxu0 0.0
        %2661 = vmatpush1.msra.mxu0 0.0
        %2662 = vmatprep.subr.mxu0 0.0
        %2663 = vmatpush1.msra.mxu0 0.0
        %2664 = vmatprep.subr.mxu0 0.0
        %2665 = vmatpush1.msra.mxu0 0.0
        %2666 = vmatprep.subr.mxu0 0.0
        %2667 = vmatpush1.msra.mxu0 0.0
        %2668 = vmatprep.subr.mxu0 0.0
        %2669 = vmatpush1.msra.mxu0 0.0
        %2670 = vmatprep.subr.mxu0 0.0
        %2671 = vmatpush1.msra.mxu0 0.0
        %2672 = vmatprep.subr.mxu0 0.0
        %2673 = vmatpush1.msra.mxu0 0.0
        %2674 = vmatprep.subr.mxu0 0.0
        %2675 = vmatpush1.msra.mxu0 0.0
        %2676 = vmatprep.subr.mxu0 0.0
        %2677 = vmatpush1.msra.mxu0 0.0
        %2678 = vmatprep.subr.mxu0 0.0
        %2679 = vmatpush1.msra.mxu0 0.0
        %2680 = vmatprep.subr.mxu0 0.0
        %2681 = vmatpush1.msra.mxu0 0.0
        %2682 = vmatprep.subr.mxu0 0.0
        %2683 = vmatpush1.msra.mxu0 0.0
        %2684 = vmatprep.subr.mxu0 0.0
        %2685 = vmatpush1.msra.mxu0 0.0
        %2686 = vmatprep.subr.mxu0 0.0
        %2687 = vmatpush1.msra.mxu0 0.0
        %2688 = vmatprep.mubr.f32.mxu0 0.0
        %v2689 = vand.u32 %v2422, 4294901760
        %2690 = vmatmul.mubr.f32.gmra.mrb[0].mxu0 %v2689
        %v2691 = vpop.f32.mrb[0].mxu0
        %v2692 = vadd.f32 %v2531, %v2691
        %v2693 = vpop.f32.mrb[0].mxu0
        %2694 = vmatprep.mubr.f32.mxu0 0.0
        %v2695 = vand.u32 %v2418, 4294901760
        %2696 = vmatmul.mubr.f32.gmra.mrb[0].mxu0 %v2695
        %v2697 = vpop.f32.mrb[0].mxu0
        %v2698 = vadd.f32 %v2541, %v2697
        %v2699 = vpop.f32.mrb[0].mxu0
        %2700 = vdwg.mxu0
        %2701 = vmatprep.subr.mxu0 0.0
        %v2702 = vand.u32 %v2427, 4294901760
        %v2703 = vsub.f32 %v2427, %v2702
        %2704 = vmatpush1.msra.mxu0 %v2703
        %2705 = vmatprep.subr.mxu0 0.0
        %v2706 = vand.u32 %v2428, 4294901760
        %v2707 = vsub.f32 %v2428, %v2706
        %2708 = vmatpush1.msra.mxu0 %v2707
        %2709 = vmatprep.subr.mxu0 0.0
        %v2710 = vand.u32 %v2429, 4294901760
        %v2711 = vsub.f32 %v2429, %v2710
        %2712 = vmatpush1.msra.mxu0 %v2711
        %2713 = vmatprep.subr.mxu0 0.0
        %v2714 = vand.u32 %v2430, 4294901760
        %v2715 = vsub.f32 %v2430, %v2714
        %2716 = vmatpush1.msra.mxu0 %v2715
        %2717 = vmatprep.subr.mxu0 0.0
        %v2718 = vand.u32 %v2431, 4294901760
        %v2719 = vsub.f32 %v2431, %v2718
        %2720 = vmatpush1.msra.mxu0 %v2719
        %2721 = vmatprep.subr.mxu0 0.0
        %v2722 = vand.u32 %v2432, 4294901760
        %v2723 = vsub.f32 %v2432, %v2722
        %2724 = vmatpush1.msra.mxu0 %v2723
        %2725 = vmatprep.subr.mxu0 0.0
        %v2726 = vand.u32 %v2433, 4294901760
        %v2727 = vsub.f32 %v2433, %v2726
        %2728 = vmatpush1.msra.mxu0 %v2727
        %2729 = vmatprep.subr.mxu0 0.0
        %v2730 = vand.u32 %v2434, 4294901760
        %v2731 = vsub.f32 %v2434, %v2730
        %2732 = vmatpush1.msra.mxu0 %v2731
        %2733 = vmatprep.subr.mxu0 0.0
        %v2734 = vand.u32 %v2435, 4294901760
        %v2735 = vsub.f32 %v2435, %v2734
        %2736 = vmatpush1.msra.mxu0 %v2735
        %2737 = vmatprep.subr.mxu0 0.0
        %v2738 = vand.u32 %v2436, 4294901760
        %v2739 = vsub.f32 %v2436, %v2738
        %2740 = vmatpush1.msra.mxu0 %v2739
        %2741 = vmatprep.subr.mxu0 0.0
        %v2742 = vand.u32 %v2437, 4294901760
        %v2743 = vsub.f32 %v2437, %v2742
        %2744 = vmatpush1.msra.mxu0 %v2743
        %2745 = vmatprep.subr.mxu0 0.0
        %v2746 = vand.u32 %v2438, 4294901760
        %v2747 = vsub.f32 %v2438, %v2746
        %2748 = vmatpush1.msra.mxu0 %v2747
        %2749 = vmatprep.subr.mxu0 0.0
        %v2750 = vand.u32 %v2439, 4294901760
        %v2751 = vsub.f32 %v2439, %v2750
        %2752 = vmatpush1.msra.mxu0 %v2751
        %2753 = vmatprep.subr.mxu0 0.0
        %v2754 = vand.u32 %v2440, 4294901760
        %v2755 = vsub.f32 %v2440, %v2754
        %2756 = vmatpush1.msra.mxu0 %v2755
        %2757 = vmatprep.subr.mxu0 0.0
        %v2758 = vand.u32 %v2441, 4294901760
        %v2759 = vsub.f32 %v2441, %v2758
        %2760 = vmatpush1.msra.mxu0 %v2759
        %2761 = vmatprep.subr.mxu0 0.0
        %v2762 = vand.u32 %v2442, 4294901760
        %v2763 = vsub.f32 %v2442, %v2762
        %2764 = vmatpush1.msra.mxu0 %v2763
        %2765 = vmatprep.subr.mxu0 0.0
        %2766 = vmatpush1.msra.mxu0 0.0
        %2767 = vmatprep.subr.mxu0 0.0
        %2768 = vmatpush1.msra.mxu0 0.0
        %2769 = vmatprep.subr.mxu0 0.0
        %2770 = vmatpush1.msra.mxu0 0.0
        %2771 = vmatprep.subr.mxu0 0.0
        %2772 = vmatpush1.msra.mxu0 0.0
        %2773 = vmatprep.subr.mxu0 0.0
        %2774 = vmatpush1.msra.mxu0 0.0
        %2775 = vmatprep.subr.mxu0 0.0
        %2776 = vmatpush1.msra.mxu0 0.0
        %2777 = vmatprep.subr.mxu0 0.0
        %2778 = vmatpush1.msra.mxu0 0.0
        %2779 = vmatprep.subr.mxu0 0.0
        %2780 = vmatpush1.msra.mxu0 0.0
        %2781 = vmatprep.subr.mxu0 0.0
        %2782 = vmatpush1.msra.mxu0 0.0
        %2783 = vmatprep.subr.mxu0 0.0
        %2784 = vmatpush1.msra.mxu0 0.0
        %2785 = vmatprep.subr.mxu0 0.0
        %2786 = vmatpush1.msra.mxu0 0.0
        %2787 = vmatprep.subr.mxu0 0.0
        %2788 = vmatpush1.msra.mxu0 0.0
        %2789 = vmatprep.subr.mxu0 0.0
        %2790 = vmatpush1.msra.mxu0 0.0
        %2791 = vmatprep.subr.mxu0 0.0
        %2792 = vmatpush1.msra.mxu0 0.0
        %2793 = vmatprep.subr.mxu0 0.0
        %2794 = vmatpush1.msra.mxu0 0.0
        %2795 = vmatprep.subr.mxu0 0.0
        %2796 = vmatpush1.msra.mxu0 0.0
        %2797 = vmatprep.mubr.f32.mxu0 0.0
        %v2798 = vand.u32 %v2422, 4294901760
        %v2799 = vsub.f32 %v2422, %v2798
        %2800 = vmatmul.mubr.f32.gmra.mrb[0].mxu0 %v2799
        %v2801 = vpop.f32.mrb[0].mxu0
        %v2802 = vadd.f32 %v2692, %v2801
        %v2803 = vpop.f32.mrb[0].mxu0
        %2804 = vmatprep.mubr.f32.mxu0 0.0
        %v2805 = vand.u32 %v2418, 4294901760
        %v2806 = vsub.f32 %v2418, %v2805
        %2807 = vmatmul.mubr.f32.gmra.mrb[0].mxu0 %v2806
        %v2808 = vpop.f32.mrb[0].mxu0
        %v2809 = vadd.f32 %v2698, %v2808
        %v2810 = vpop.f32.mrb[0].mxu0
        %2811 = vdwg.mxu0
        %2812 = vmatprep.subr.mxu0 0.0
        %v2813 = vand.u32 %v2427, 4294901760
        %2814 = vmatpush1.msra.mxu0 %v2813
        %2815 = vmatprep.subr.mxu0 0.0
        %v2816 = vand.u32 %v2428, 4294901760
        %2817 = vmatpush1.msra.mxu0 %v2816
        %2818 = vmatprep.subr.mxu0 0.0
        %v2819 = vand.u32 %v2429, 4294901760
        %2820 = vmatpush1.msra.mxu0 %v2819
        %2821 = vmatprep.subr.mxu0 0.0
        %v2822 = vand.u32 %v2430, 4294901760
        %2823 = vmatpush1.msra.mxu0 %v2822
        %2824 = vmatprep.subr.mxu0 0.0
        %v2825 = vand.u32 %v2431, 4294901760
        %2826 = vmatpush1.msra.mxu0 %v2825
        %2827 = vmatprep.subr.mxu0 0.0
        %v2828 = vand.u32 %v2432, 4294901760
        %2829 = vmatpush1.msra.mxu0 %v2828
        %2830 = vmatprep.subr.mxu0 0.0
        %v2831 = vand.u32 %v2433, 4294901760
        %2832 = vmatpush1.msra.mxu0 %v2831
        %2833 = vmatprep.subr.mxu0 0.0
        %v2834 = vand.u32 %v2434, 4294901760
        %2835 = vmatpush1.msra.mxu0 %v2834
        %2836 = vmatprep.subr.mxu0 0.0
        %v2837 = vand.u32 %v2435, 4294901760
        %2838 = vmatpush1.msra.mxu0 %v2837
        %2839 = vmatprep.subr.mxu0 0.0
        %v2840 = vand.u32 %v2436, 4294901760
        %2841 = vmatpush1.msra.mxu0 %v2840
        %2842 = vmatprep.subr.mxu0 0.0
        %v2843 = vand.u32 %v2437, 4294901760
        %2844 = vmatpush1.msra.mxu0 %v2843
        %2845 = vmatprep.subr.mxu0 0.0
        %v2846 = vand.u32 %v2438, 4294901760
        %2847 = vmatpush1.msra.mxu0 %v2846
        %2848 = vmatprep.subr.mxu0 0.0
        %v2849 = vand.u32 %v2439, 4294901760
        %2850 = vmatpush1.msra.mxu0 %v2849
        %2851 = vmatprep.subr.mxu0 0.0
        %v2852 = vand.u32 %v2440, 4294901760
        %2853 = vmatpush1.msra.mxu0 %v2852
        %2854 = vmatprep.subr.mxu0 0.0
        %v2855 = vand.u32 %v2441, 4294901760
        %2856 = vmatpush1.msra.mxu0 %v2855
        %2857 = vmatprep.subr.mxu0 0.0
        %v2858 = vand.u32 %v2442, 4294901760
        %2859 = vmatpush1.msra.mxu0 %v2858
        %2860 = vmatprep.subr.mxu0 0.0
        %2861 = vmatpush1.msra.mxu0 0.0
        %2862 = vmatprep.subr.mxu0 0.0
        %2863 = vmatpush1.msra.mxu0 0.0
        %2864 = vmatprep.subr.mxu0 0.0
        %2865 = vmatpush1.msra.mxu0 0.0
        %2866 = vmatprep.subr.mxu0 0.0
        %2867 = vmatpush1.msra.mxu0 0.0
        %2868 = vmatprep.subr.mxu0 0.0
        %2869 = vmatpush1.msra.mxu0 0.0
        %2870 = vmatprep.subr.mxu0 0.0
        %2871 = vmatpush1.msra.mxu0 0.0
        %2872 = vmatprep.subr.mxu0 0.0
        %2873 = vmatpush1.msra.mxu0 0.0
        %2874 = vmatprep.subr.mxu0 0.0
        %2875 = vmatpush1.msra.mxu0 0.0
        %2876 = vmatprep.subr.mxu0 0.0
        %2877 = vmatpush1.msra.mxu0 0.0
        %2878 = vmatprep.subr.mxu0 0.0
        %2879 = vmatpush1.msra.mxu0 0.0
        %2880 = vmatprep.subr.mxu0 0.0
        %2881 = vmatpush1.msra.mxu0 0.0
        %2882 = vmatprep.subr.mxu0 0.0
        %2883 = vmatpush1.msra.mxu0 0.0
        %2884 = vmatprep.subr.mxu0 0.0
        %2885 = vmatpush1.msra.mxu0 0.0
        %2886 = vmatprep.subr.mxu0 0.0
        %2887 = vmatpush1.msra.mxu0 0.0
        %2888 = vmatprep.subr.mxu0 0.0
        %2889 = vmatpush1.msra.mxu0 0.0
        %2890 = vmatprep.subr.mxu0 0.0
        %2891 = vmatpush1.msra.mxu0 0.0
        %2892 = vmatprep.mubr.f32.mxu0 0.0
        %v2893 = vand.u32 %v2422, 4294901760
        %v2894 = vsub.f32 %v2422, %v2893
        %v2895 = vand.u32 %v2894, 4294901760
        %2896 = vmatmul.mubr.f32.gmra.mrb[0].mxu0 %v2895
        %v2897 = vpop.f32.mrb[0].mxu0
        %v2898 = vadd.f32 %v2802, %v2897
        %v2899 = vpop.f32.mrb[0].mxu0
        %2900 = vmatprep.mubr.f32.mxu0 0.0
        %v2901 = vand.u32 %v2418, 4294901760
        %v2902 = vsub.f32 %v2418, %v2901
        %v2903 = vand.u32 %v2902, 4294901760
        %2904 = vmatmul.mubr.f32.gmra.mrb[0].mxu0 %v2903
        %v2905 = vpop.f32.mrb[0].mxu0
        %v2906 = vadd.f32 %v2809, %v2905
        %v2907 = vpop.f32.mrb[0].mxu0
        %2908 = vdwg.mxu0
        %2909 = vmatprep.subr.mxu0 0.0
        %v2910 = vand.u32 %v2427, 4294901760
        %v2911 = vsub.f32 %v2427, %v2910
        %v2912 = vand.u32 %v2911, 4294901760
        %2913 = vmatpush1.msra.mxu0 %v2912
        %2914 = vmatprep.subr.mxu0 0.0
        %v2915 = vand.u32 %v2428, 4294901760
        %v2916 = vsub.f32 %v2428, %v2915
        %v2917 = vand.u32 %v2916, 4294901760
        %2918 = vmatpush1.msra.mxu0 %v2917
        %2919 = vmatprep.subr.mxu0 0.0
        %v2920 = vand.u32 %v2429, 4294901760
        %v2921 = vsub.f32 %v2429, %v2920
        %v2922 = vand.u32 %v2921, 4294901760
        %2923 = vmatpush1.msra.mxu0 %v2922
        %2924 = vmatprep.subr.mxu0 0.0
        %v2925 = vand.u32 %v2430, 4294901760
        %v2926 = vsub.f32 %v2430, %v2925
        %v2927 = vand.u32 %v2926, 4294901760
        %2928 = vmatpush1.msra.mxu0 %v2927
        %2929 = vmatprep.subr.mxu0 0.0
        %v2930 = vand.u32 %v2431, 4294901760
        %v2931 = vsub.f32 %v2431, %v2930
        %v2932 = vand.u32 %v2931, 4294901760
        %2933 = vmatpush1.msra.mxu0 %v2932
        %2934 = vmatprep.subr.mxu0 0.0
        %v2935 = vand.u32 %v2432, 4294901760
        %v2936 = vsub.f32 %v2432, %v2935
        %v2937 = vand.u32 %v2936, 4294901760
        %2938 = vmatpush1.msra.mxu0 %v2937
        %2939 = vmatprep.subr.mxu0 0.0
        %v2940 = vand.u32 %v2433, 4294901760
        %v2941 = vsub.f32 %v2433, %v2940
        %v2942 = vand.u32 %v2941, 4294901760
        %2943 = vmatpush1.msra.mxu0 %v2942
        %2944 = vmatprep.subr.mxu0 0.0
        %v2945 = vand.u32 %v2434, 4294901760
        %v2946 = vsub.f32 %v2434, %v2945
        %v2947 = vand.u32 %v2946, 4294901760
        %2948 = vmatpush1.msra.mxu0 %v2947
        %2949 = vmatprep.subr.mxu0 0.0
        %v2950 = vand.u32 %v2435, 4294901760
        %v2951 = vsub.f32 %v2435, %v2950
        %v2952 = vand.u32 %v2951, 4294901760
        %2953 = vmatpush1.msra.mxu0 %v2952
        %2954 = vmatprep.subr.mxu0 0.0
        %v2955 = vand.u32 %v2436, 4294901760
        %v2956 = vsub.f32 %v2436, %v2955
        %v2957 = vand.u32 %v2956, 4294901760
        %2958 = vmatpush1.msra.mxu0 %v2957
        %2959 = vmatprep.subr.mxu0 0.0
        %v2960 = vand.u32 %v2437, 4294901760
        %v2961 = vsub.f32 %v2437, %v2960
        %v2962 = vand.u32 %v2961, 4294901760
        %2963 = vmatpush1.msra.mxu0 %v2962
        %2964 = vmatprep.subr.mxu0 0.0
        %v2965 = vand.u32 %v2438, 4294901760
        %v2966 = vsub.f32 %v2438, %v2965
        %v2967 = vand.u32 %v2966, 4294901760
        %2968 = vmatpush1.msra.mxu0 %v2967
        %2969 = vmatprep.subr.mxu0 0.0
        %v2970 = vand.u32 %v2439, 4294901760
        %v2971 = vsub.f32 %v2439, %v2970
        %v2972 = vand.u32 %v2971, 4294901760
        %2973 = vmatpush1.msra.mxu0 %v2972
        %2974 = vmatprep.subr.mxu0 0.0
        %v2975 = vand.u32 %v2440, 4294901760
        %v2976 = vsub.f32 %v2440, %v2975
        %v2977 = vand.u32 %v2976, 4294901760
        %2978 = vmatpush1.msra.mxu0 %v2977
        %2979 = vmatprep.subr.mxu0 0.0
        %v2980 = vand.u32 %v2441, 4294901760
        %v2981 = vsub.f32 %v2441, %v2980
        %v2982 = vand.u32 %v2981, 4294901760
        %2983 = vmatpush1.msra.mxu0 %v2982
        %2984 = vmatprep.subr.mxu0 0.0
        %v2985 = vand.u32 %v2442, 4294901760
        %v2986 = vsub.f32 %v2442, %v2985
        %v2987 = vand.u32 %v2986, 4294901760
        %2988 = vmatpush1.msra.mxu0 %v2987
        %2989 = vmatprep.subr.mxu0 0.0
        %2990 = vmatpush1.msra.mxu0 0.0
        %2991 = vmatprep.subr.mxu0 0.0
        %2992 = vmatpush1.msra.mxu0 0.0
        %2993 = vmatprep.subr.mxu0 0.0
        %2994 = vmatpush1.msra.mxu0 0.0
        %2995 = vmatprep.subr.mxu0 0.0
        %2996 = vmatpush1.msra.mxu0 0.0
        %2997 = vmatprep.subr.mxu0 0.0
        %2998 = vmatpush1.msra.mxu0 0.0
        %2999 = vmatprep.subr.mxu0 0.0
        %3000 = vmatpush1.msra.mxu0 0.0
        %3001 = vmatprep.subr.mxu0 0.0
        %3002 = vmatpush1.msra.mxu0 0.0
        %3003 = vmatprep.subr.mxu0 0.0
        %3004 = vmatpush1.msra.mxu0 0.0
        %3005 = vmatprep.subr.mxu0 0.0
        %3006 = vmatpush1.msra.mxu0 0.0
        %3007 = vmatprep.subr.mxu0 0.0
        %3008 = vmatpush1.msra.mxu0 0.0
        %3009 = vmatprep.subr.mxu0 0.0
        %3010 = vmatpush1.msra.mxu0 0.0
        %3011 = vmatprep.subr.mxu0 0.0
        %3012 = vmatpush1.msra.mxu0 0.0
        %3013 = vmatprep.subr.mxu0 0.0
        %3014 = vmatpush1.msra.mxu0 0.0
        %3015 = vmatprep.subr.mxu0 0.0
        %3016 = vmatpush1.msra.mxu0 0.0
        %3017 = vmatprep.subr.mxu0 0.0
        %3018 = vmatpush1.msra.mxu0 0.0
        %3019 = vmatprep.subr.mxu0 0.0
        %3020 = vmatpush1.msra.mxu0 0.0
        %3021 = vmatprep.mubr.f32.mxu0 0.0
        %v3022 = vand.u32 %v2422, 4294901760
        %3023 = vmatmul.mubr.f32.gmra.mrb[0].mxu0 %v3022
        %v3024 = vpop.f32.mrb[0].mxu0
        %v3025 = vadd.f32 %v2898, %v3024
        %v3026 = vpop.f32.mrb[0].mxu0
        %3027 = vmatprep.mubr.f32.mxu0 0.0
        %v3028 = vand.u32 %v2418, 4294901760
        %3029 = vmatmul.mubr.f32.gmra.mrb[0].mxu0 %v3028
        %v3030 = vpop.f32.mrb[0].mxu0
        %v3031 = vadd.f32 %v2906, %v3030
        %v3032 = vpop.f32.mrb[0].mxu0
        %3033 = vdwg.mxu0
        %3034 = vmatprep.subr.mxu0 0.0
        %v3035 = vand.u32 %v2427, 4294901760
        %3036 = vmatpush1.msra.mxu0 %v3035
        %3037 = vmatprep.subr.mxu0 0.0
        %v3038 = vand.u32 %v2428, 4294901760
        %3039 = vmatpush1.msra.mxu0 %v3038
        %3040 = vmatprep.subr.mxu0 0.0
        %v3041 = vand.u32 %v2429, 4294901760
        %3042 = vmatpush1.msra.mxu0 %v3041
        %3043 = vmatprep.subr.mxu0 0.0
        %v3044 = vand.u32 %v2430, 4294901760
        %3045 = vmatpush1.msra.mxu0 %v3044
        %3046 = vmatprep.subr.mxu0 0.0
        %v3047 = vand.u32 %v2431, 4294901760
        %3048 = vmatpush1.msra.mxu0 %v3047
        %3049 = vmatprep.subr.mxu0 0.0
        %v3050 = vand.u32 %v2432, 4294901760
        %3051 = vmatpush1.msra.mxu0 %v3050
        %3052 = vmatprep.subr.mxu0 0.0
        %v3053 = vand.u32 %v2433, 4294901760
        %3054 = vmatpush1.msra.mxu0 %v3053
        %3055 = vmatprep.subr.mxu0 0.0
        %v3056 = vand.u32 %v2434, 4294901760
        %3057 = vmatpush1.msra.mxu0 %v3056
        %3058 = vmatprep.subr.mxu0 0.0
        %v3059 = vand.u32 %v2435, 4294901760
        %3060 = vmatpush1.msra.mxu0 %v3059
        %3061 = vmatprep.subr.mxu0 0.0
        %v3062 = vand.u32 %v2436, 4294901760
        %3063 = vmatpush1.msra.mxu0 %v3062
        %3064 = vmatprep.subr.mxu0 0.0
        %v3065 = vand.u32 %v2437, 4294901760
        %3066 = vmatpush1.msra.mxu0 %v3065
        %3067 = vmatprep.subr.mxu0 0.0
        %v3068 = vand.u32 %v2438, 4294901760
        %3069 = vmatpush1.msra.mxu0 %v3068
        %3070 = vmatprep.subr.mxu0 0.0
        %v3071 = vand.u32 %v2439, 4294901760
        %3072 = vmatpush1.msra.mxu0 %v3071
        %3073 = vmatprep.subr.mxu0 0.0
        %v3074 = vand.u32 %v2440, 4294901760
        %3075 = vmatpush1.msra.mxu0 %v3074
        %3076 = vmatprep.subr.mxu0 0.0
        %v3077 = vand.u32 %v2441, 4294901760
        %3078 = vmatpush1.msra.mxu0 %v3077
        %3079 = vmatprep.subr.mxu0 0.0
        %v3080 = vand.u32 %v2442, 4294901760
        %3081 = vmatpush1.msra.mxu0 %v3080
        %3082 = vmatprep.subr.mxu0 0.0
        %3083 = vmatpush1.msra.mxu0 0.0
        %3084 = vmatprep.subr.mxu0 0.0
        %3085 = vmatpush1.msra.mxu0 0.0
        %3086 = vmatprep.subr.mxu0 0.0
        %3087 = vmatpush1.msra.mxu0 0.0
        %3088 = vmatprep.subr.mxu0 0.0
        %3089 = vmatpush1.msra.mxu0 0.0
        %3090 = vmatprep.subr.mxu0 0.0
        %3091 = vmatpush1.msra.mxu0 0.0
        %3092 = vmatprep.subr.mxu0 0.0
        %3093 = vmatpush1.msra.mxu0 0.0
        %3094 = vmatprep.subr.mxu0 0.0
        %3095 = vmatpush1.msra.mxu0 0.0
        %3096 = vmatprep.subr.mxu0 0.0
        %3097 = vmatpush1.msra.mxu0 0.0
        %3098 = vmatprep.subr.mxu0 0.0
        %3099 = vmatpush1.msra.mxu0 0.0
        %3100 = vmatprep.subr.mxu0 0.0
        %3101 = vmatpush1.msra.mxu0 0.0
        %3102 = vmatprep.subr.mxu0 0.0
        %3103 = vmatpush1.msra.mxu0 0.0
        %3104 = vmatprep.subr.mxu0 0.0
        %3105 = vmatpush1.msra.mxu0 0.0
        %3106 = vmatprep.subr.mxu0 0.0
        %3107 = vmatpush1.msra.mxu0 0.0
        %3108 = vmatprep.subr.mxu0 0.0
        %3109 = vmatpush1.msra.mxu0 0.0
        %3110 = vmatprep.subr.mxu0 0.0
        %3111 = vmatpush1.msra.mxu0 0.0
        %3112 = vmatprep.subr.mxu0 0.0
        %3113 = vmatpush1.msra.mxu0 0.0
        %3114 = vmatprep.mubr.f32.mxu0 0.0
        %v3115 = vand.u32 %v2422, 4294901760
        %3116 = vmatmul.mubr.f32.gmra.mrb[0].mxu0 %v3115
        %v3117 = vpop.f32.mrb[0].mxu0
        %v3118 = vadd.f32 %v3025, %v3117
        %v3119 = vpop.f32.mrb[0].mxu0
        %3120 = vmatprep.mubr.f32.mxu0 0.0
        %v3121 = vand.u32 %v2418, 4294901760
        %3122 = vmatmul.mubr.f32.gmra.mrb[0].mxu0 %v3121
        %v3123 = vpop.f32.mrb[0].mxu0
        %v3124 = vadd.f32 %v3031, %v3123
        %v3125 = vpop.f32.mrb[0].mxu0
        %3126 = vdwg.mxu0
        %v3128 = vlaneseq
        %v3129 = vshrl.u32 %v3128, 7
        %v3130 = vsub.s32 0, %v3129
        %v3131 = vrot.slane %v2425, %v3130
        %v3133 = vadd.f32 %v3131, %v3118
        %v3134 = vadd.f32 %v3131, %v3124
        %s3135 = scalar_lea.vmem [#allocation5], 512
        %v3136 = vld [vmem:[%s3135] sm:$0xff]
        %v3137 = vld [vmem:[%s3135 + $0x8] sm:$0xff]
        %v3138 = vld [vmem:[%s3135 + $0x10] sm:$0xff]
        %v3139 = vld [vmem:[%s3135 + $0x18] sm:$0xff]
        %v3140 = vld [vmem:[%s3135 + $0x20] sm:$0xff]
        %v3141 = vld [vmem:[%s3135 + $0x28] sm:$0xff]
        %v3142 = vld [vmem:[%s3135 + $0x30] sm:$0xff]
        %v3143 = vld [vmem:[%s3135 + $0x38] sm:$0xff]
        %v3144 = vld [vmem:[%s3135 + $0x40] sm:$0xff]
        %v3145 = vld [vmem:[%s3135 + $0x48] sm:$0xff]
        %v3146 = vld [vmem:[%s3135 + $0x50] sm:$0xff]
        %v3147 = vld [vmem:[%s3135 + $0x58] sm:$0xff]
        %v3148 = vld [vmem:[%s3135 + $0x60] sm:$0xff]
        %v3149 = vld [vmem:[%s3135 + $0x68] sm:$0xff]
        %v3150 = vld [vmem:[%s3135 + $0x70] sm:$0xff]
        %v3151 = vld [vmem:[%s3135 + $0x78] sm:$0xff]
        %v3154 = vrot.slane %v2422, 1
        %v3155 = vrot.slane %v2418, 1
        %v3156 = vsel %vm945, %v3154, %v3155
        %v3157 = vrot.slane %v2423, 1
        %v3158 = vsel %vm945, %v3155, %v3157
        %3161 = vmatprep.subr.mxu0 0.0
        %v3162 = vand.u32 %v3136, 4294901760
        %3163 = vmatpush1.msra.mxu0 %v3162
        %3164 = vmatprep.subr.mxu0 0.0
        %v3165 = vand.u32 %v3137, 4294901760
        %3166 = vmatpush1.msra.mxu0 %v3165
        %3167 = vmatprep.subr.mxu0 0.0
        %v3168 = vand.u32 %v3138, 4294901760
        %3169 = vmatpush1.msra.mxu0 %v3168
        %3170 = vmatprep.subr.mxu0 0.0
        %v3171 = vand.u32 %v3139, 4294901760
        %3172 = vmatpush1.msra.mxu0 %v3171
        %3173 = vmatprep.subr.mxu0 0.0
        %v3174 = vand.u32 %v3140, 4294901760
        %3175 = vmatpush1.msra.mxu0 %v3174
        %3176 = vmatprep.subr.mxu0 0.0
        %v3177 = vand.u32 %v3141, 4294901760
        %3178 = vmatpush1.msra.mxu0 %v3177
        %3179 = vmatprep.subr.mxu0 0.0
        %v3180 = vand.u32 %v3142, 4294901760
        %3181 = vmatpush1.msra.mxu0 %v3180
        %3182 = vmatprep.subr.mxu0 0.0
        %v3183 = vand.u32 %v3143, 4294901760
        %3184 = vmatpush1.msra.mxu0 %v3183
        %3185 = vmatprep.subr.mxu0 0.0
        %v3186 = vand.u32 %v3144, 4294901760
        %3187 = vmatpush1.msra.mxu0 %v3186
        %3188 = vmatprep.subr.mxu0 0.0
        %v3189 = vand.u32 %v3145, 4294901760
        %3190 = vmatpush1.msra.mxu0 %v3189
        %3191 = vmatprep.subr.mxu0 0.0
        %v3192 = vand.u32 %v3146, 4294901760
        %3193 = vmatpush1.msra.mxu0 %v3192
        %3194 = vmatprep.subr.mxu0 0.0
        %v3195 = vand.u32 %v3147, 4294901760
        %3196 = vmatpush1.msra.mxu0 %v3195
        %3197 = vmatprep.subr.mxu0 0.0
        %v3198 = vand.u32 %v3148, 4294901760
        %3199 = vmatpush1.msra.mxu0 %v3198
        %3200 = vmatprep.subr.mxu0 0.0
        %v3201 = vand.u32 %v3149, 4294901760
        %3202 = vmatpush1.msra.mxu0 %v3201
        %3203 = vmatprep.subr.mxu0 0.0
        %v3204 = vand.u32 %v3150, 4294901760
        %3205 = vmatpush1.msra.mxu0 %v3204
        %3206 = vmatprep.subr.mxu0 0.0
        %v3207 = vand.u32 %v3151, 4294901760
        %3208 = vmatpush1.msra.mxu0 %v3207
        %3209 = vmatprep.subr.mxu0 0.0
        %3210 = vmatpush1.msra.mxu0 0.0
        %3211 = vmatprep.subr.mxu0 0.0
        %3212 = vmatpush1.msra.mxu0 0.0
        %3213 = vmatprep.subr.mxu0 0.0
        %3214 = vmatpush1.msra.mxu0 0.0
        %3215 = vmatprep.subr.mxu0 0.0
        %3216 = vmatpush1.msra.mxu0 0.0
        %3217 = vmatprep.subr.mxu0 0.0
        %3218 = vmatpush1.msra.mxu0 0.0
        %3219 = vmatprep.subr.mxu0 0.0
        %3220 = vmatpush1.msra.mxu0 0.0
        %3221 = vmatprep.subr.mxu0 0.0
        %3222 = vmatpush1.msra.mxu0 0.0
        %3223 = vmatprep.subr.mxu0 0.0
        %3224 = vmatpush1.msra.mxu0 0.0
        %3225 = vmatprep.subr.mxu0 0.0
        %3226 = vmatpush1.msra.mxu0 0.0
        %3227 = vmatprep.subr.mxu0 0.0
        %3228 = vmatpush1.msra.mxu0 0.0
        %3229 = vmatprep.subr.mxu0 0.0
        %3230 = vmatpush1.msra.mxu0 0.0
        %3231 = vmatprep.subr.mxu0 0.0
        %3232 = vmatpush1.msra.mxu0 0.0
        %3233 = vmatprep.subr.mxu0 0.0
        %3234 = vmatpush1.msra.mxu0 0.0
        %3235 = vmatprep.subr.mxu0 0.0
        %3236 = vmatpush1.msra.mxu0 0.0
        %3237 = vmatprep.subr.mxu0 0.0
        %3238 = vmatpush1.msra.mxu0 0.0
        %3239 = vmatprep.subr.mxu0 0.0
        %3240 = vmatpush1.msra.mxu0 0.0
        %3241 = vmatprep.mubr.f32.mxu0 0.0
        %v3242 = vand.u32 %v3156, 4294901760
        %v3243 = vsub.f32 %v3156, %v3242
        %v3244 = vand.u32 %v3243, 4294901760
        %v3245 = vsub.f32 %v3243, %v3244
        %v3246 = vand.u32 %v3245, 4294901760
        %3247 = vmatmul.mubr.f32.gmra.mrb[0].mxu0 %v3246
        %v3248 = vpop.f32.mrb[0].mxu0
        %v3249 = vadd.f32 0.0, %v3248
        %v3250 = vpop.f32.mrb[0].mxu0
        %3251 = vmatprep.mubr.f32.mxu0 0.0
        %v3252 = vand.u32 %v3158, 4294901760
        %v3253 = vsub.f32 %v3158, %v3252
        %v3254 = vand.u32 %v3253, 4294901760
        %v3255 = vsub.f32 %v3253, %v3254
        %v3256 = vand.u32 %v3255, 4294901760
        %3257 = vmatmul.mubr.f32.gmra.mrb[0].mxu0 %v3256
        %v3258 = vpop.f32.mrb[0].mxu0
        %v3259 = vadd.f32 0.0, %v3258
        %v3260 = vpop.f32.mrb[0].mxu0
        %3261 = vdwg.mxu0
        %3262 = vmatprep.subr.mxu0 0.0
        %v3263 = vand.u32 %v3136, 4294901760
        %v3264 = vsub.f32 %v3136, %v3263
        %v3265 = vand.u32 %v3264, 4294901760
        %v3266 = vsub.f32 %v3264, %v3265
        %v3267 = vand.u32 %v3266, 4294901760
        %3268 = vmatpush1.msra.mxu0 %v3267
        %3269 = vmatprep.subr.mxu0 0.0
        %v3270 = vand.u32 %v3137, 4294901760
        %v3271 = vsub.f32 %v3137, %v3270
        %v3272 = vand.u32 %v3271, 4294901760
        %v3273 = vsub.f32 %v3271, %v3272
        %v3274 = vand.u32 %v3273, 4294901760
        %3275 = vmatpush1.msra.mxu0 %v3274
        %3276 = vmatprep.subr.mxu0 0.0
        %v3277 = vand.u32 %v3138, 4294901760
        %v3278 = vsub.f32 %v3138, %v3277
        %v3279 = vand.u32 %v3278, 4294901760
        %v3280 = vsub.f32 %v3278, %v3279
        %v3281 = vand.u32 %v3280, 4294901760
        %3282 = vmatpush1.msra.mxu0 %v3281
        %3283 = vmatprep.subr.mxu0 0.0
        %v3284 = vand.u32 %v3139, 4294901760
        %v3285 = vsub.f32 %v3139, %v3284
        %v3286 = vand.u32 %v3285, 4294901760
        %v3287 = vsub.f32 %v3285, %v3286
        %v3288 = vand.u32 %v3287, 4294901760
        %3289 = vmatpush1.msra.mxu0 %v3288
        %3290 = vmatprep.subr.mxu0 0.0
        %v3291 = vand.u32 %v3140, 4294901760
        %v3292 = vsub.f32 %v3140, %v3291
        %v3293 = vand.u32 %v3292, 4294901760
        %v3294 = vsub.f32 %v3292, %v3293
        %v3295 = vand.u32 %v3294, 4294901760
        %3296 = vmatpush1.msra.mxu0 %v3295
        %3297 = vmatprep.subr.mxu0 0.0
        %v3298 = vand.u32 %v3141, 4294901760
        %v3299 = vsub.f32 %v3141, %v3298
        %v3300 = vand.u32 %v3299, 4294901760
        %v3301 = vsub.f32 %v3299, %v3300
        %v3302 = vand.u32 %v3301, 4294901760
        %3303 = vmatpush1.msra.mxu0 %v3302
        %3304 = vmatprep.subr.mxu0 0.0
        %v3305 = vand.u32 %v3142, 4294901760
        %v3306 = vsub.f32 %v3142, %v3305
        %v3307 = vand.u32 %v3306, 4294901760
        %v3308 = vsub.f32 %v3306, %v3307
        %v3309 = vand.u32 %v3308, 4294901760
        %3310 = vmatpush1.msra.mxu0 %v3309
        %3311 = vmatprep.subr.mxu0 0.0
        %v3312 = vand.u32 %v3143, 4294901760
        %v3313 = vsub.f32 %v3143, %v3312
        %v3314 = vand.u32 %v3313, 4294901760
        %v3315 = vsub.f32 %v3313, %v3314
        %v3316 = vand.u32 %v3315, 4294901760
        %3317 = vmatpush1.msra.mxu0 %v3316
        %3318 = vmatprep.subr.mxu0 0.0
        %v3319 = vand.u32 %v3144, 4294901760
        %v3320 = vsub.f32 %v3144, %v3319
        %v3321 = vand.u32 %v3320, 4294901760
        %v3322 = vsub.f32 %v3320, %v3321
        %v3323 = vand.u32 %v3322, 4294901760
        %3324 = vmatpush1.msra.mxu0 %v3323
        %3325 = vmatprep.subr.mxu0 0.0
        %v3326 = vand.u32 %v3145, 4294901760
        %v3327 = vsub.f32 %v3145, %v3326
        %v3328 = vand.u32 %v3327, 4294901760
        %v3329 = vsub.f32 %v3327, %v3328
        %v3330 = vand.u32 %v3329, 4294901760
        %3331 = vmatpush1.msra.mxu0 %v3330
        %3332 = vmatprep.subr.mxu0 0.0
        %v3333 = vand.u32 %v3146, 4294901760
        %v3334 = vsub.f32 %v3146, %v3333
        %v3335 = vand.u32 %v3334, 4294901760
        %v3336 = vsub.f32 %v3334, %v3335
        %v3337 = vand.u32 %v3336, 4294901760
        %3338 = vmatpush1.msra.mxu0 %v3337
        %3339 = vmatprep.subr.mxu0 0.0
        %v3340 = vand.u32 %v3147, 4294901760
        %v3341 = vsub.f32 %v3147, %v3340
        %v3342 = vand.u32 %v3341, 4294901760
        %v3343 = vsub.f32 %v3341, %v3342
        %v3344 = vand.u32 %v3343, 4294901760
        %3345 = vmatpush1.msra.mxu0 %v3344
        %3346 = vmatprep.subr.mxu0 0.0
        %v3347 = vand.u32 %v3148, 4294901760
        %v3348 = vsub.f32 %v3148, %v3347
        %v3349 = vand.u32 %v3348, 4294901760
        %v3350 = vsub.f32 %v3348, %v3349
        %v3351 = vand.u32 %v3350, 4294901760
        %3352 = vmatpush1.msra.mxu0 %v3351
        %3353 = vmatprep.subr.mxu0 0.0
        %v3354 = vand.u32 %v3149, 4294901760
        %v3355 = vsub.f32 %v3149, %v3354
        %v3356 = vand.u32 %v3355, 4294901760
        %v3357 = vsub.f32 %v3355, %v3356
        %v3358 = vand.u32 %v3357, 4294901760
        %3359 = vmatpush1.msra.mxu0 %v3358
        %3360 = vmatprep.subr.mxu0 0.0
        %v3361 = vand.u32 %v3150, 4294901760
        %v3362 = vsub.f32 %v3150, %v3361
        %v3363 = vand.u32 %v3362, 4294901760
        %v3364 = vsub.f32 %v3362, %v3363
        %v3365 = vand.u32 %v3364, 4294901760
        %3366 = vmatpush1.msra.mxu0 %v3365
        %3367 = vmatprep.subr.mxu0 0.0
        %v3368 = vand.u32 %v3151, 4294901760
        %v3369 = vsub.f32 %v3151, %v3368
        %v3370 = vand.u32 %v3369, 4294901760
        %v3371 = vsub.f32 %v3369, %v3370
        %v3372 = vand.u32 %v3371, 4294901760
        %3373 = vmatpush1.msra.mxu0 %v3372
        %3374 = vmatprep.subr.mxu0 0.0
        %3375 = vmatpush1.msra.mxu0 0.0
        %3376 = vmatprep.subr.mxu0 0.0
        %3377 = vmatpush1.msra.mxu0 0.0
        %3378 = vmatprep.subr.mxu0 0.0
        %3379 = vmatpush1.msra.mxu0 0.0
        %3380 = vmatprep.subr.mxu0 0.0
        %3381 = vmatpush1.msra.mxu0 0.0
        %3382 = vmatprep.subr.mxu0 0.0
        %3383 = vmatpush1.msra.mxu0 0.0
        %3384 = vmatprep.subr.mxu0 0.0
        %3385 = vmatpush1.msra.mxu0 0.0
        %3386 = vmatprep.subr.mxu0 0.0
        %3387 = vmatpush1.msra.mxu0 0.0
        %3388 = vmatprep.subr.mxu0 0.0
        %3389 = vmatpush1.msra.mxu0 0.0
        %3390 = vmatprep.subr.mxu0 0.0
        %3391 = vmatpush1.msra.mxu0 0.0
        %3392 = vmatprep.subr.mxu0 0.0
        %3393 = vmatpush1.msra.mxu0 0.0
        %3394 = vmatprep.subr.mxu0 0.0
        %3395 = vmatpush1.msra.mxu0 0.0
        %3396 = vmatprep.subr.mxu0 0.0
        %3397 = vmatpush1.msra.mxu0 0.0
        %3398 = vmatprep.subr.mxu0 0.0
        %3399 = vmatpush1.msra.mxu0 0.0
        %3400 = vmatprep.subr.mxu0 0.0
        %3401 = vmatpush1.msra.mxu0 0.0
        %3402 = vmatprep.subr.mxu0 0.0
        %3403 = vmatpush1.msra.mxu0 0.0
        %3404 = vmatprep.subr.mxu0 0.0
        %3405 = vmatpush1.msra.mxu0 0.0
        %3406 = vmatprep.mubr.f32.mxu0 0.0
        %v3407 = vand.u32 %v3156, 4294901760
        %3408 = vmatmul.mubr.f32.gmra.mrb[0].mxu0 %v3407
        %v3409 = vpop.f32.mrb[0].mxu0
        %v3410 = vadd.f32 %v3249, %v3409
        %v3411 = vpop.f32.mrb[0].mxu0
        %3412 = vmatprep.mubr.f32.mxu0 0.0
        %v3413 = vand.u32 %v3158, 4294901760
        %3414 = vmatmul.mubr.f32.gmra.mrb[0].mxu0 %v3413
        %v3415 = vpop.f32.mrb[0].mxu0
        %v3416 = vadd.f32 %v3259, %v3415
        %v3417 = vpop.f32.mrb[0].mxu0
        %3418 = vdwg.mxu0
        %3419 = vmatprep.subr.mxu0 0.0
        %v3420 = vand.u32 %v3136, 4294901760
        %v3421 = vsub.f32 %v3136, %v3420
        %3422 = vmatpush1.msra.mxu0 %v3421
        %3423 = vmatprep.subr.mxu0 0.0
        %v3424 = vand.u32 %v3137, 4294901760
        %v3425 = vsub.f32 %v3137, %v3424
        %3426 = vmatpush1.msra.mxu0 %v3425
        %3427 = vmatprep.subr.mxu0 0.0
        %v3428 = vand.u32 %v3138, 4294901760
        %v3429 = vsub.f32 %v3138, %v3428
        %3430 = vmatpush1.msra.mxu0 %v3429
        %3431 = vmatprep.subr.mxu0 0.0
        %v3432 = vand.u32 %v3139, 4294901760
        %v3433 = vsub.f32 %v3139, %v3432
        %3434 = vmatpush1.msra.mxu0 %v3433
        %3435 = vmatprep.subr.mxu0 0.0
        %v3436 = vand.u32 %v3140, 4294901760
        %v3437 = vsub.f32 %v3140, %v3436
        %3438 = vmatpush1.msra.mxu0 %v3437
        %3439 = vmatprep.subr.mxu0 0.0
        %v3440 = vand.u32 %v3141, 4294901760
        %v3441 = vsub.f32 %v3141, %v3440
        %3442 = vmatpush1.msra.mxu0 %v3441
        %3443 = vmatprep.subr.mxu0 0.0
        %v3444 = vand.u32 %v3142, 4294901760
        %v3445 = vsub.f32 %v3142, %v3444
        %3446 = vmatpush1.msra.mxu0 %v3445
        %3447 = vmatprep.subr.mxu0 0.0
        %v3448 = vand.u32 %v3143, 4294901760
        %v3449 = vsub.f32 %v3143, %v3448
        %3450 = vmatpush1.msra.mxu0 %v3449
        %3451 = vmatprep.subr.mxu0 0.0
        %v3452 = vand.u32 %v3144, 4294901760
        %v3453 = vsub.f32 %v3144, %v3452
        %3454 = vmatpush1.msra.mxu0 %v3453
        %3455 = vmatprep.subr.mxu0 0.0
        %v3456 = vand.u32 %v3145, 4294901760
        %v3457 = vsub.f32 %v3145, %v3456
        %3458 = vmatpush1.msra.mxu0 %v3457
        %3459 = vmatprep.subr.mxu0 0.0
        %v3460 = vand.u32 %v3146, 4294901760
        %v3461 = vsub.f32 %v3146, %v3460
        %3462 = vmatpush1.msra.mxu0 %v3461
        %3463 = vmatprep.subr.mxu0 0.0
        %v3464 = vand.u32 %v3147, 4294901760
        %v3465 = vsub.f32 %v3147, %v3464
        %3466 = vmatpush1.msra.mxu0 %v3465
        %3467 = vmatprep.subr.mxu0 0.0
        %v3468 = vand.u32 %v3148, 4294901760
        %v3469 = vsub.f32 %v3148, %v3468
        %3470 = vmatpush1.msra.mxu0 %v3469
        %3471 = vmatprep.subr.mxu0 0.0
        %v3472 = vand.u32 %v3149, 4294901760
        %v3473 = vsub.f32 %v3149, %v3472
        %3474 = vmatpush1.msra.mxu0 %v3473
        %3475 = vmatprep.subr.mxu0 0.0
        %v3476 = vand.u32 %v3150, 4294901760
        %v3477 = vsub.f32 %v3150, %v3476
        %3478 = vmatpush1.msra.mxu0 %v3477
        %3479 = vmatprep.subr.mxu0 0.0
        %v3480 = vand.u32 %v3151, 4294901760
        %v3481 = vsub.f32 %v3151, %v3480
        %3482 = vmatpush1.msra.mxu0 %v3481
        %3483 = vmatprep.subr.mxu0 0.0
        %3484 = vmatpush1.msra.mxu0 0.0
        %3485 = vmatprep.subr.mxu0 0.0
        %3486 = vmatpush1.msra.mxu0 0.0
        %3487 = vmatprep.subr.mxu0 0.0
        %3488 = vmatpush1.msra.mxu0 0.0
        %3489 = vmatprep.subr.mxu0 0.0
        %3490 = vmatpush1.msra.mxu0 0.0
        %3491 = vmatprep.subr.mxu0 0.0
        %3492 = vmatpush1.msra.mxu0 0.0
        %3493 = vmatprep.subr.mxu0 0.0
        %3494 = vmatpush1.msra.mxu0 0.0
        %3495 = vmatprep.subr.mxu0 0.0
        %3496 = vmatpush1.msra.mxu0 0.0
        %3497 = vmatprep.subr.mxu0 0.0
        %3498 = vmatpush1.msra.mxu0 0.0
        %3499 = vmatprep.subr.mxu0 0.0
        %3500 = vmatpush1.msra.mxu0 0.0
        %3501 = vmatprep.subr.mxu0 0.0
        %3502 = vmatpush1.msra.mxu0 0.0
        %3503 = vmatprep.subr.mxu0 0.0
        %3504 = vmatpush1.msra.mxu0 0.0
        %3505 = vmatprep.subr.mxu0 0.0
        %3506 = vmatpush1.msra.mxu0 0.0
        %3507 = vmatprep.subr.mxu0 0.0
        %3508 = vmatpush1.msra.mxu0 0.0
        %3509 = vmatprep.subr.mxu0 0.0
        %3510 = vmatpush1.msra.mxu0 0.0
        %3511 = vmatprep.subr.mxu0 0.0
        %3512 = vmatpush1.msra.mxu0 0.0
        %3513 = vmatprep.subr.mxu0 0.0
        %3514 = vmatpush1.msra.mxu0 0.0
        %3515 = vmatprep.mubr.f32.mxu0 0.0
        %v3516 = vand.u32 %v3156, 4294901760
        %v3517 = vsub.f32 %v3156, %v3516
        %3518 = vmatmul.mubr.f32.gmra.mrb[0].mxu0 %v3517
        %v3519 = vpop.f32.mrb[0].mxu0
        %v3520 = vadd.f32 %v3410, %v3519
        %v3521 = vpop.f32.mrb[0].mxu0
        %3522 = vmatprep.mubr.f32.mxu0 0.0
        %v3523 = vand.u32 %v3158, 4294901760
        %v3524 = vsub.f32 %v3158, %v3523
        %3525 = vmatmul.mubr.f32.gmra.mrb[0].mxu0 %v3524
        %v3526 = vpop.f32.mrb[0].mxu0
        %v3527 = vadd.f32 %v3416, %v3526
        %v3528 = vpop.f32.mrb[0].mxu0
        %3529 = vdwg.mxu0
        %3530 = vmatprep.subr.mxu0 0.0
        %v3531 = vand.u32 %v3136, 4294901760
        %3532 = vmatpush1.msra.mxu0 %v3531
        %3533 = vmatprep.subr.mxu0 0.0
        %v3534 = vand.u32 %v3137, 4294901760
        %3535 = vmatpush1.msra.mxu0 %v3534
        %3536 = vmatprep.subr.mxu0 0.0
        %v3537 = vand.u32 %v3138, 4294901760
        %3538 = vmatpush1.msra.mxu0 %v3537
        %3539 = vmatprep.subr.mxu0 0.0
        %v3540 = vand.u32 %v3139, 4294901760
        %3541 = vmatpush1.msra.mxu0 %v3540
        %3542 = vmatprep.subr.mxu0 0.0
        %v3543 = vand.u32 %v3140, 4294901760
        %3544 = vmatpush1.msra.mxu0 %v3543
        %3545 = vmatprep.subr.mxu0 0.0
        %v3546 = vand.u32 %v3141, 4294901760
        %3547 = vmatpush1.msra.mxu0 %v3546
        %3548 = vmatprep.subr.mxu0 0.0
        %v3549 = vand.u32 %v3142, 4294901760
        %3550 = vmatpush1.msra.mxu0 %v3549
        %3551 = vmatprep.subr.mxu0 0.0
        %v3552 = vand.u32 %v3143, 4294901760
        %3553 = vmatpush1.msra.mxu0 %v3552
        %3554 = vmatprep.subr.mxu0 0.0
        %v3555 = vand.u32 %v3144, 4294901760
        %3556 = vmatpush1.msra.mxu0 %v3555
        %3557 = vmatprep.subr.mxu0 0.0
        %v3558 = vand.u32 %v3145, 4294901760
        %3559 = vmatpush1.msra.mxu0 %v3558
        %3560 = vmatprep.subr.mxu0 0.0
        %v3561 = vand.u32 %v3146, 4294901760
        %3562 = vmatpush1.msra.mxu0 %v3561
        %3563 = vmatprep.subr.mxu0 0.0
        %v3564 = vand.u32 %v3147, 4294901760
        %3565 = vmatpush1.msra.mxu0 %v3564
        %3566 = vmatprep.subr.mxu0 0.0
        %v3567 = vand.u32 %v3148, 4294901760
        %3568 = vmatpush1.msra.mxu0 %v3567
        %3569 = vmatprep.subr.mxu0 0.0
        %v3570 = vand.u32 %v3149, 4294901760
        %3571 = vmatpush1.msra.mxu0 %v3570
        %3572 = vmatprep.subr.mxu0 0.0
        %v3573 = vand.u32 %v3150, 4294901760
        %3574 = vmatpush1.msra.mxu0 %v3573
        %3575 = vmatprep.subr.mxu0 0.0
        %v3576 = vand.u32 %v3151, 4294901760
        %3577 = vmatpush1.msra.mxu0 %v3576
        %3578 = vmatprep.subr.mxu0 0.0
        %3579 = vmatpush1.msra.mxu0 0.0
        %3580 = vmatprep.subr.mxu0 0.0
        %3581 = vmatpush1.msra.mxu0 0.0
        %3582 = vmatprep.subr.mxu0 0.0
        %3583 = vmatpush1.msra.mxu0 0.0
        %3584 = vmatprep.subr.mxu0 0.0
        %3585 = vmatpush1.msra.mxu0 0.0
        %3586 = vmatprep.subr.mxu0 0.0
        %3587 = vmatpush1.msra.mxu0 0.0
        %3588 = vmatprep.subr.mxu0 0.0
        %3589 = vmatpush1.msra.mxu0 0.0
        %3590 = vmatprep.subr.mxu0 0.0
        %3591 = vmatpush1.msra.mxu0 0.0
        %3592 = vmatprep.subr.mxu0 0.0
        %3593 = vmatpush1.msra.mxu0 0.0
        %3594 = vmatprep.subr.mxu0 0.0
        %3595 = vmatpush1.msra.mxu0 0.0
        %3596 = vmatprep.subr.mxu0 0.0
        %3597 = vmatpush1.msra.mxu0 0.0
        %3598 = vmatprep.subr.mxu0 0.0
        %3599 = vmatpush1.msra.mxu0 0.0
        %3600 = vmatprep.subr.mxu0 0.0
        %3601 = vmatpush1.msra.mxu0 0.0
        %3602 = vmatprep.subr.mxu0 0.0
        %3603 = vmatpush1.msra.mxu0 0.0
        %3604 = vmatprep.subr.mxu0 0.0
        %3605 = vmatpush1.msra.mxu0 0.0
        %3606 = vmatprep.subr.mxu0 0.0
        %3607 = vmatpush1.msra.mxu0 0.0
        %3608 = vmatprep.subr.mxu0 0.0
        %3609 = vmatpush1.msra.mxu0 0.0
        %3610 = vmatprep.mubr.f32.mxu0 0.0
        %v3611 = vand.u32 %v3156, 4294901760
        %v3612 = vsub.f32 %v3156, %v3611
        %v3613 = vand.u32 %v3612, 4294901760
        %3614 = vmatmul.mubr.f32.gmra.mrb[0].mxu0 %v3613
        %v3615 = vpop.f32.mrb[0].mxu0
        %v3616 = vadd.f32 %v3520, %v3615
        %v3617 = vpop.f32.mrb[0].mxu0
        %3618 = vmatprep.mubr.f32.mxu0 0.0
        %v3619 = vand.u32 %v3158, 4294901760
        %v3620 = vsub.f32 %v3158, %v3619
        %v3621 = vand.u32 %v3620, 4294901760
        %3622 = vmatmul.mubr.f32.gmra.mrb[0].mxu0 %v3621
        %v3623 = vpop.f32.mrb[0].mxu0
        %v3624 = vadd.f32 %v3527, %v3623
        %v3625 = vpop.f32.mrb[0].mxu0
        %3626 = vdwg.mxu0
        %3627 = vmatprep.subr.mxu0 0.0
        %v3628 = vand.u32 %v3136, 4294901760
        %v3629 = vsub.f32 %v3136, %v3628
        %v3630 = vand.u32 %v3629, 4294901760
        %3631 = vmatpush1.msra.mxu0 %v3630
        %3632 = vmatprep.subr.mxu0 0.0
        %v3633 = vand.u32 %v3137, 4294901760
        %v3634 = vsub.f32 %v3137, %v3633
        %v3635 = vand.u32 %v3634, 4294901760
        %3636 = vmatpush1.msra.mxu0 %v3635
        %3637 = vmatprep.subr.mxu0 0.0
        %v3638 = vand.u32 %v3138, 4294901760
        %v3639 = vsub.f32 %v3138, %v3638
        %v3640 = vand.u32 %v3639, 4294901760
        %3641 = vmatpush1.msra.mxu0 %v3640
        %3642 = vmatprep.subr.mxu0 0.0
        %v3643 = vand.u32 %v3139, 4294901760
        %v3644 = vsub.f32 %v3139, %v3643
        %v3645 = vand.u32 %v3644, 4294901760
        %3646 = vmatpush1.msra.mxu0 %v3645
        %3647 = vmatprep.subr.mxu0 0.0
        %v3648 = vand.u32 %v3140, 4294901760
        %v3649 = vsub.f32 %v3140, %v3648
        %v3650 = vand.u32 %v3649, 4294901760
        %3651 = vmatpush1.msra.mxu0 %v3650
        %3652 = vmatprep.subr.mxu0 0.0
        %v3653 = vand.u32 %v3141, 4294901760
        %v3654 = vsub.f32 %v3141, %v3653
        %v3655 = vand.u32 %v3654, 4294901760
        %3656 = vmatpush1.msra.mxu0 %v3655
        %3657 = vmatprep.subr.mxu0 0.0
        %v3658 = vand.u32 %v3142, 4294901760
        %v3659 = vsub.f32 %v3142, %v3658
        %v3660 = vand.u32 %v3659, 4294901760
        %3661 = vmatpush1.msra.mxu0 %v3660
        %3662 = vmatprep.subr.mxu0 0.0
        %v3663 = vand.u32 %v3143, 4294901760
        %v3664 = vsub.f32 %v3143, %v3663
        %v3665 = vand.u32 %v3664, 4294901760
        %3666 = vmatpush1.msra.mxu0 %v3665
        %3667 = vmatprep.subr.mxu0 0.0
        %v3668 = vand.u32 %v3144, 4294901760
        %v3669 = vsub.f32 %v3144, %v3668
        %v3670 = vand.u32 %v3669, 4294901760
        %3671 = vmatpush1.msra.mxu0 %v3670
        %3672 = vmatprep.subr.mxu0 0.0
        %v3673 = vand.u32 %v3145, 4294901760
        %v3674 = vsub.f32 %v3145, %v3673
        %v3675 = vand.u32 %v3674, 4294901760
        %3676 = vmatpush1.msra.mxu0 %v3675
        %3677 = vmatprep.subr.mxu0 0.0
        %v3678 = vand.u32 %v3146, 4294901760
        %v3679 = vsub.f32 %v3146, %v3678
        %v3680 = vand.u32 %v3679, 4294901760
        %3681 = vmatpush1.msra.mxu0 %v3680
        %3682 = vmatprep.subr.mxu0 0.0
        %v3683 = vand.u32 %v3147, 4294901760
        %v3684 = vsub.f32 %v3147, %v3683
        %v3685 = vand.u32 %v3684, 4294901760
        %3686 = vmatpush1.msra.mxu0 %v3685
        %3687 = vmatprep.subr.mxu0 0.0
        %v3688 = vand.u32 %v3148, 4294901760
        %v3689 = vsub.f32 %v3148, %v3688
        %v3690 = vand.u32 %v3689, 4294901760
        %3691 = vmatpush1.msra.mxu0 %v3690
        %3692 = vmatprep.subr.mxu0 0.0
        %v3693 = vand.u32 %v3149, 4294901760
        %v3694 = vsub.f32 %v3149, %v3693
        %v3695 = vand.u32 %v3694, 4294901760
        %3696 = vmatpush1.msra.mxu0 %v3695
        %3697 = vmatprep.subr.mxu0 0.0
        %v3698 = vand.u32 %v3150, 4294901760
        %v3699 = vsub.f32 %v3150, %v3698
        %v3700 = vand.u32 %v3699, 4294901760
        %3701 = vmatpush1.msra.mxu0 %v3700
        %3702 = vmatprep.subr.mxu0 0.0
        %v3703 = vand.u32 %v3151, 4294901760
        %v3704 = vsub.f32 %v3151, %v3703
        %v3705 = vand.u32 %v3704, 4294901760
        %3706 = vmatpush1.msra.mxu0 %v3705
        %3707 = vmatprep.subr.mxu0 0.0
        %3708 = vmatpush1.msra.mxu0 0.0
        %3709 = vmatprep.subr.mxu0 0.0
        %3710 = vmatpush1.msra.mxu0 0.0
        %3711 = vmatprep.subr.mxu0 0.0
        %3712 = vmatpush1.msra.mxu0 0.0
        %3713 = vmatprep.subr.mxu0 0.0
        %3714 = vmatpush1.msra.mxu0 0.0
        %3715 = vmatprep.subr.mxu0 0.0
        %3716 = vmatpush1.msra.mxu0 0.0
        %3717 = vmatprep.subr.mxu0 0.0
        %3718 = vmatpush1.msra.mxu0 0.0
        %3719 = vmatprep.subr.mxu0 0.0
        %3720 = vmatpush1.msra.mxu0 0.0
        %3721 = vmatprep.subr.mxu0 0.0
        %3722 = vmatpush1.msra.mxu0 0.0
        %3723 = vmatprep.subr.mxu0 0.0
        %3724 = vmatpush1.msra.mxu0 0.0
        %3725 = vmatprep.subr.mxu0 0.0
        %3726 = vmatpush1.msra.mxu0 0.0
        %3727 = vmatprep.subr.mxu0 0.0
        %3728 = vmatpush1.msra.mxu0 0.0
        %3729 = vmatprep.subr.mxu0 0.0
        %3730 = vmatpush1.msra.mxu0 0.0
        %3731 = vmatprep.subr.mxu0 0.0
        %3732 = vmatpush1.msra.mxu0 0.0
        %3733 = vmatprep.subr.mxu0 0.0
        %3734 = vmatpush1.msra.mxu0 0.0
        %3735 = vmatprep.subr.mxu0 0.0
        %3736 = vmatpush1.msra.mxu0 0.0
        %3737 = vmatprep.subr.mxu0 0.0
        %3738 = vmatpush1.msra.mxu0 0.0
        %3739 = vmatprep.mubr.f32.mxu0 0.0
        %v3740 = vand.u32 %v3156, 4294901760
        %3741 = vmatmul.mubr.f32.gmra.mrb[0].mxu0 %v3740
        %v3742 = vpop.f32.mrb[0].mxu0
        %v3743 = vadd.f32 %v3616, %v3742
        %v3744 = vpop.f32.mrb[0].mxu0
        %3745 = vmatprep.mubr.f32.mxu0 0.0
        %v3746 = vand.u32 %v3158, 4294901760
        %3747 = vmatmul.mubr.f32.gmra.mrb[0].mxu0 %v3746
        %v3748 = vpop.f32.mrb[0].mxu0
        %v3749 = vadd.f32 %v3624, %v3748
        %v3750 = vpop.f32.mrb[0].mxu0
        %3751 = vdwg.mxu0
        %3752 = vmatprep.subr.mxu0 0.0
        %v3753 = vand.u32 %v3136, 4294901760
        %3754 = vmatpush1.msra.mxu0 %v3753
        %3755 = vmatprep.subr.mxu0 0.0
        %v3756 = vand.u32 %v3137, 4294901760
        %3757 = vmatpush1.msra.mxu0 %v3756
        %3758 = vmatprep.subr.mxu0 0.0
        %v3759 = vand.u32 %v3138, 4294901760
        %3760 = vmatpush1.msra.mxu0 %v3759
        %3761 = vmatprep.subr.mxu0 0.0
        %v3762 = vand.u32 %v3139, 4294901760
        %3763 = vmatpush1.msra.mxu0 %v3762
        %3764 = vmatprep.subr.mxu0 0.0
        %v3765 = vand.u32 %v3140, 4294901760
        %3766 = vmatpush1.msra.mxu0 %v3765
        %3767 = vmatprep.subr.mxu0 0.0
        %v3768 = vand.u32 %v3141, 4294901760
        %3769 = vmatpush1.msra.mxu0 %v3768
        %3770 = vmatprep.subr.mxu0 0.0
        %v3771 = vand.u32 %v3142, 4294901760
        %3772 = vmatpush1.msra.mxu0 %v3771
        %3773 = vmatprep.subr.mxu0 0.0
        %v3774 = vand.u32 %v3143, 4294901760
        %3775 = vmatpush1.msra.mxu0 %v3774
        %3776 = vmatprep.subr.mxu0 0.0
        %v3777 = vand.u32 %v3144, 4294901760
        %3778 = vmatpush1.msra.mxu0 %v3777
        %3779 = vmatprep.subr.mxu0 0.0
        %v3780 = vand.u32 %v3145, 4294901760
        %3781 = vmatpush1.msra.mxu0 %v3780
        %3782 = vmatprep.subr.mxu0 0.0
        %v3783 = vand.u32 %v3146, 4294901760
        %3784 = vmatpush1.msra.mxu0 %v3783
        %3785 = vmatprep.subr.mxu0 0.0
        %v3786 = vand.u32 %v3147, 4294901760
        %3787 = vmatpush1.msra.mxu0 %v3786
        %3788 = vmatprep.subr.mxu0 0.0
        %v3789 = vand.u32 %v3148, 4294901760
        %3790 = vmatpush1.msra.mxu0 %v3789
        %3791 = vmatprep.subr.mxu0 0.0
        %v3792 = vand.u32 %v3149, 4294901760
        %3793 = vmatpush1.msra.mxu0 %v3792
        %3794 = vmatprep.subr.mxu0 0.0
        %v3795 = vand.u32 %v3150, 4294901760
        %3796 = vmatpush1.msra.mxu0 %v3795
        %3797 = vmatprep.subr.mxu0 0.0
        %v3798 = vand.u32 %v3151, 4294901760
        %3799 = vmatpush1.msra.mxu0 %v3798
        %3800 = vmatprep.subr.mxu0 0.0
        %3801 = vmatpush1.msra.mxu0 0.0
        %3802 = vmatprep.subr.mxu0 0.0
        %3803 = vmatpush1.msra.mxu0 0.0
        %3804 = vmatprep.subr.mxu0 0.0
        %3805 = vmatpush1.msra.mxu0 0.0
        %3806 = vmatprep.subr.mxu0 0.0
        %3807 = vmatpush1.msra.mxu0 0.0
        %3808 = vmatprep.subr.mxu0 0.0
        %3809 = vmatpush1.msra.mxu0 0.0
        %3810 = vmatprep.subr.mxu0 0.0
        %3811 = vmatpush1.msra.mxu0 0.0
        %3812 = vmatprep.subr.mxu0 0.0
        %3813 = vmatpush1.msra.mxu0 0.0
        %3814 = vmatprep.subr.mxu0 0.0
        %3815 = vmatpush1.msra.mxu0 0.0
        %3816 = vmatprep.subr.mxu0 0.0
        %3817 = vmatpush1.msra.mxu0 0.0
        %3818 = vmatprep.subr.mxu0 0.0
        %3819 = vmatpush1.msra.mxu0 0.0
        %3820 = vmatprep.subr.mxu0 0.0
        %3821 = vmatpush1.msra.mxu0 0.0
        %3822 = vmatprep.subr.mxu0 0.0
        %3823 = vmatpush1.msra.mxu0 0.0
        %3824 = vmatprep.subr.mxu0 0.0
        %3825 = vmatpush1.msra.mxu0 0.0
        %3826 = vmatprep.subr.mxu0 0.0
        %3827 = vmatpush1.msra.mxu0 0.0
        %3828 = vmatprep.subr.mxu0 0.0
        %3829 = vmatpush1.msra.mxu0 0.0
        %3830 = vmatprep.subr.mxu0 0.0
        %3831 = vmatpush1.msra.mxu0 0.0
        %3832 = vmatprep.mubr.f32.mxu0 0.0
        %v3833 = vand.u32 %v3156, 4294901760
        %3834 = vmatmul.mubr.f32.gmra.mrb[0].mxu0 %v3833
        %v3835 = vpop.f32.mrb[0].mxu0
        %v3836 = vadd.f32 %v3743, %v3835
        %v3837 = vpop.f32.mrb[0].mxu0
        %3838 = vmatprep.mubr.f32.mxu0 0.0
        %v3839 = vand.u32 %v3158, 4294901760
        %3840 = vmatmul.mubr.f32.gmra.mrb[0].mxu0 %v3839
        %v3841 = vpop.f32.mrb[0].mxu0
        %v3842 = vadd.f32 %v3749, %v3841
        %v3843 = vpop.f32.mrb[0].mxu0
        %3844 = vdwg.mxu0
        %v3845 = vadd.f32 %v3133, %v3836
        %v3846 = vadd.f32 %v3134, %v3842
        %s3847 = scalar_lea.vmem [#allocation5], 640
        %v3848 = vld [vmem:[%s3847] sm:$0xff]
        %v3849 = vld [vmem:[%s3847 + $0x8] sm:$0xff]
        %v3850 = vld [vmem:[%s3847 + $0x10] sm:$0xff]
        %v3851 = vld [vmem:[%s3847 + $0x18] sm:$0xff]
        %v3852 = vld [vmem:[%s3847 + $0x20] sm:$0xff]
        %v3853 = vld [vmem:[%s3847 + $0x28] sm:$0xff]
        %v3854 = vld [vmem:[%s3847 + $0x30] sm:$0xff]
        %v3855 = vld [vmem:[%s3847 + $0x38] sm:$0xff]
        %v3856 = vld [vmem:[%s3847 + $0x40] sm:$0xff]
        %v3857 = vld [vmem:[%s3847 + $0x48] sm:$0xff]
        %v3858 = vld [vmem:[%s3847 + $0x50] sm:$0xff]
        %v3859 = vld [vmem:[%s3847 + $0x58] sm:$0xff]
        %v3860 = vld [vmem:[%s3847 + $0x60] sm:$0xff]
        %v3861 = vld [vmem:[%s3847 + $0x68] sm:$0xff]
        %v3862 = vld [vmem:[%s3847 + $0x70] sm:$0xff]
        %v3863 = vld [vmem:[%s3847 + $0x78] sm:$0xff]
        %v3864 = vrot.slane %v2422, 2
        %v3865 = vrot.slane %v2418, 2
        %v3866 = vsel %vm1656, %v3864, %v3865
        %v3867 = vrot.slane %v2423, 2
        %v3868 = vsel %vm1656, %v3865, %v3867
        %3871 = vmatprep.subr.mxu0 0.0
        %v3872 = vand.u32 %v3848, 4294901760
        %3873 = vmatpush1.msra.mxu0 %v3872
        %3874 = vmatprep.subr.mxu0 0.0
        %v3875 = vand.u32 %v3849, 4294901760
        %3876 = vmatpush1.msra.mxu0 %v3875
        %3877 = vmatprep.subr.mxu0 0.0
        %v3878 = vand.u32 %v3850, 4294901760
        %3879 = vmatpush1.msra.mxu0 %v3878
        %3880 = vmatprep.subr.mxu0 0.0
        %v3881 = vand.u32 %v3851, 4294901760
        %3882 = vmatpush1.msra.mxu0 %v3881
        %3883 = vmatprep.subr.mxu0 0.0
        %v3884 = vand.u32 %v3852, 4294901760
        %3885 = vmatpush1.msra.mxu0 %v3884
        %3886 = vmatprep.subr.mxu0 0.0
        %v3887 = vand.u32 %v3853, 4294901760
        %3888 = vmatpush1.msra.mxu0 %v3887
        %3889 = vmatprep.subr.mxu0 0.0
        %v3890 = vand.u32 %v3854, 4294901760
        %3891 = vmatpush1.msra.mxu0 %v3890
        %3892 = vmatprep.subr.mxu0 0.0
        %v3893 = vand.u32 %v3855, 4294901760
        %3894 = vmatpush1.msra.mxu0 %v3893
        %3895 = vmatprep.subr.mxu0 0.0
        %v3896 = vand.u32 %v3856, 4294901760
        %3897 = vmatpush1.msra.mxu0 %v3896
        %3898 = vmatprep.subr.mxu0 0.0
        %v3899 = vand.u32 %v3857, 4294901760
        %3900 = vmatpush1.msra.mxu0 %v3899
        %3901 = vmatprep.subr.mxu0 0.0
        %v3902 = vand.u32 %v3858, 4294901760
        %3903 = vmatpush1.msra.mxu0 %v3902
        %3904 = vmatprep.subr.mxu0 0.0
        %v3905 = vand.u32 %v3859, 4294901760
        %3906 = vmatpush1.msra.mxu0 %v3905
        %3907 = vmatprep.subr.mxu0 0.0
        %v3908 = vand.u32 %v3860, 4294901760
        %3909 = vmatpush1.msra.mxu0 %v3908
        %3910 = vmatprep.subr.mxu0 0.0
        %v3911 = vand.u32 %v3861, 4294901760
        %3912 = vmatpush1.msra.mxu0 %v3911
        %3913 = vmatprep.subr.mxu0 0.0
        %v3914 = vand.u32 %v3862, 4294901760
        %3915 = vmatpush1.msra.mxu0 %v3914
        %3916 = vmatprep.subr.mxu0 0.0
        %v3917 = vand.u32 %v3863, 4294901760
        %3918 = vmatpush1.msra.mxu0 %v3917
        %3919 = vmatprep.subr.mxu0 0.0
        %3920 = vmatpush1.msra.mxu0 0.0
        %3921 = vmatprep.subr.mxu0 0.0
        %3922 = vmatpush1.msra.mxu0 0.0
        %3923 = vmatprep.subr.mxu0 0.0
        %3924 = vmatpush1.msra.mxu0 0.0
        %3925 = vmatprep.subr.mxu0 0.0
        %3926 = vmatpush1.msra.mxu0 0.0
        %3927 = vmatprep.subr.mxu0 0.0
        %3928 = vmatpush1.msra.mxu0 0.0
        %3929 = vmatprep.subr.mxu0 0.0
        %3930 = vmatpush1.msra.mxu0 0.0
        %3931 = vmatprep.subr.mxu0 0.0
        %3932 = vmatpush1.msra.mxu0 0.0
        %3933 = vmatprep.subr.mxu0 0.0
        %3934 = vmatpush1.msra.mxu0 0.0
        %3935 = vmatprep.subr.mxu0 0.0
        %3936 = vmatpush1.msra.mxu0 0.0
        %3937 = vmatprep.subr.mxu0 0.0
        %3938 = vmatpush1.msra.mxu0 0.0
        %3939 = vmatprep.subr.mxu0 0.0
        %3940 = vmatpush1.msra.mxu0 0.0
        %3941 = vmatprep.subr.mxu0 0.0
        %3942 = vmatpush1.msra.mxu0 0.0
        %3943 = vmatprep.subr.mxu0 0.0
        %3944 = vmatpush1.msra.mxu0 0.0
        %3945 = vmatprep.subr.mxu0 0.0
        %3946 = vmatpush1.msra.mxu0 0.0
        %3947 = vmatprep.subr.mxu0 0.0
        %3948 = vmatpush1.msra.mxu0 0.0
        %3949 = vmatprep.subr.mxu0 0.0
        %3950 = vmatpush1.msra.mxu0 0.0
        %3951 = vmatprep.mubr.f32.mxu0 0.0
        %v3952 = vand.u32 %v3866, 4294901760
        %v3953 = vsub.f32 %v3866, %v3952
        %v3954 = vand.u32 %v3953, 4294901760
        %v3955 = vsub.f32 %v3953, %v3954
        %v3956 = vand.u32 %v3955, 4294901760
        %3957 = vmatmul.mubr.f32.gmra.mrb[0].mxu0 %v3956
        %v3958 = vpop.f32.mrb[0].mxu0
        %v3959 = vadd.f32 0.0, %v3958
        %v3960 = vpop.f32.mrb[0].mxu0
        %3961 = vmatprep.mubr.f32.mxu0 0.0
        %v3962 = vand.u32 %v3868, 4294901760
        %v3963 = vsub.f32 %v3868, %v3962
        %v3964 = vand.u32 %v3963, 4294901760
        %v3965 = vsub.f32 %v3963, %v3964
        %v3966 = vand.u32 %v3965, 4294901760
        %3967 = vmatmul.mubr.f32.gmra.mrb[0].mxu0 %v3966
        %v3968 = vpop.f32.mrb[0].mxu0
        %v3969 = vadd.f32 0.0, %v3968
        %v3970 = vpop.f32.mrb[0].mxu0
        %3971 = vdwg.mxu0
        %3972 = vmatprep.subr.mxu0 0.0
        %v3973 = vand.u32 %v3848, 4294901760
        %v3974 = vsub.f32 %v3848, %v3973
        %v3975 = vand.u32 %v3974, 4294901760
        %v3976 = vsub.f32 %v3974, %v3975
        %v3977 = vand.u32 %v3976, 4294901760
        %3978 = vmatpush1.msra.mxu0 %v3977
        %3979 = vmatprep.subr.mxu0 0.0
        %v3980 = vand.u32 %v3849, 4294901760
        %v3981 = vsub.f32 %v3849, %v3980
        %v3982 = vand.u32 %v3981, 4294901760
        %v3983 = vsub.f32 %v3981, %v3982
        %v3984 = vand.u32 %v3983, 4294901760
        %3985 = vmatpush1.msra.mxu0 %v3984
        %3986 = vmatprep.subr.mxu0 0.0
        %v3987 = vand.u32 %v3850, 4294901760
        %v3988 = vsub.f32 %v3850, %v3987
        %v3989 = vand.u32 %v3988, 4294901760
        %v3990 = vsub.f32 %v3988, %v3989
        %v3991 = vand.u32 %v3990, 4294901760
        %3992 = vmatpush1.msra.mxu0 %v3991
        %3993 = vmatprep.subr.mxu0 0.0
        %v3994 = vand.u32 %v3851, 4294901760
        %v3995 = vsub.f32 %v3851, %v3994
        %v3996 = vand.u32 %v3995, 4294901760
        %v3997 = vsub.f32 %v3995, %v3996
        %v3998 = vand.u32 %v3997, 4294901760
        %3999 = vmatpush1.msra.mxu0 %v3998
        %4000 = vmatprep.subr.mxu0 0.0
        %v4001 = vand.u32 %v3852, 4294901760
        %v4002 = vsub.f32 %v3852, %v4001
        %v4003 = vand.u32 %v4002, 4294901760
        %v4004 = vsub.f32 %v4002, %v4003
        %v4005 = vand.u32 %v4004, 4294901760
        %4006 = vmatpush1.msra.mxu0 %v4005
        %4007 = vmatprep.subr.mxu0 0.0
        %v4008 = vand.u32 %v3853, 4294901760
        %v4009 = vsub.f32 %v3853, %v4008
        %v4010 = vand.u32 %v4009, 4294901760
        %v4011 = vsub.f32 %v4009, %v4010
        %v4012 = vand.u32 %v4011, 4294901760
        %4013 = vmatpush1.msra.mxu0 %v4012
        %4014 = vmatprep.subr.mxu0 0.0
        %v4015 = vand.u32 %v3854, 4294901760
        %v4016 = vsub.f32 %v3854, %v4015
        %v4017 = vand.u32 %v4016, 4294901760
        %v4018 = vsub.f32 %v4016, %v4017
        %v4019 = vand.u32 %v4018, 4294901760
        %4020 = vmatpush1.msra.mxu0 %v4019
        %4021 = vmatprep.subr.mxu0 0.0
        %v4022 = vand.u32 %v3855, 4294901760
        %v4023 = vsub.f32 %v3855, %v4022
        %v4024 = vand.u32 %v4023, 4294901760
        %v4025 = vsub.f32 %v4023, %v4024
        %v4026 = vand.u32 %v4025, 4294901760
        %4027 = vmatpush1.msra.mxu0 %v4026
        %4028 = vmatprep.subr.mxu0 0.0
        %v4029 = vand.u32 %v3856, 4294901760
        %v4030 = vsub.f32 %v3856, %v4029
        %v4031 = vand.u32 %v4030, 4294901760
        %v4032 = vsub.f32 %v4030, %v4031
        %v4033 = vand.u32 %v4032, 4294901760
        %4034 = vmatpush1.msra.mxu0 %v4033
        %4035 = vmatprep.subr.mxu0 0.0
        %v4036 = vand.u32 %v3857, 4294901760
        %v4037 = vsub.f32 %v3857, %v4036
        %v4038 = vand.u32 %v4037, 4294901760
        %v4039 = vsub.f32 %v4037, %v4038
        %v4040 = vand.u32 %v4039, 4294901760
        %4041 = vmatpush1.msra.mxu0 %v4040
        %4042 = vmatprep.subr.mxu0 0.0
        %v4043 = vand.u32 %v3858, 4294901760
        %v4044 = vsub.f32 %v3858, %v4043
        %v4045 = vand.u32 %v4044, 4294901760
        %v4046 = vsub.f32 %v4044, %v4045
        %v4047 = vand.u32 %v4046, 4294901760
        %4048 = vmatpush1.msra.mxu0 %v4047
        %4049 = vmatprep.subr.mxu0 0.0
        %v4050 = vand.u32 %v3859, 4294901760
        %v4051 = vsub.f32 %v3859, %v4050
        %v4052 = vand.u32 %v4051, 4294901760
        %v4053 = vsub.f32 %v4051, %v4052
        %v4054 = vand.u32 %v4053, 4294901760
        %4055 = vmatpush1.msra.mxu0 %v4054
        %4056 = vmatprep.subr.mxu0 0.0
        %v4057 = vand.u32 %v3860, 4294901760
        %v4058 = vsub.f32 %v3860, %v4057
        %v4059 = vand.u32 %v4058, 4294901760
        %v4060 = vsub.f32 %v4058, %v4059
        %v4061 = vand.u32 %v4060, 4294901760
        %4062 = vmatpush1.msra.mxu0 %v4061
        %4063 = vmatprep.subr.mxu0 0.0
        %v4064 = vand.u32 %v3861, 4294901760
        %v4065 = vsub.f32 %v3861, %v4064
        %v4066 = vand.u32 %v4065, 4294901760
        %v4067 = vsub.f32 %v4065, %v4066
        %v4068 = vand.u32 %v4067, 4294901760
        %4069 = vmatpush1.msra.mxu0 %v4068
        %4070 = vmatprep.subr.mxu0 0.0
        %v4071 = vand.u32 %v3862, 4294901760
        %v4072 = vsub.f32 %v3862, %v4071
        %v4073 = vand.u32 %v4072, 4294901760
        %v4074 = vsub.f32 %v4072, %v4073
        %v4075 = vand.u32 %v4074, 4294901760
        %4076 = vmatpush1.msra.mxu0 %v4075
        %4077 = vmatprep.subr.mxu0 0.0
        %v4078 = vand.u32 %v3863, 4294901760
        %v4079 = vsub.f32 %v3863, %v4078
        %v4080 = vand.u32 %v4079, 4294901760
        %v4081 = vsub.f32 %v4079, %v4080
        %v4082 = vand.u32 %v4081, 4294901760
        %4083 = vmatpush1.msra.mxu0 %v4082
        %4084 = vmatprep.subr.mxu0 0.0
        %4085 = vmatpush1.msra.mxu0 0.0
        %4086 = vmatprep.subr.mxu0 0.0
        %4087 = vmatpush1.msra.mxu0 0.0
        %4088 = vmatprep.subr.mxu0 0.0
        %4089 = vmatpush1.msra.mxu0 0.0
        %4090 = vmatprep.subr.mxu0 0.0
        %4091 = vmatpush1.msra.mxu0 0.0
        %4092 = vmatprep.subr.mxu0 0.0
        %4093 = vmatpush1.msra.mxu0 0.0
        %4094 = vmatprep.subr.mxu0 0.0
        %4095 = vmatpush1.msra.mxu0 0.0
        %4096 = vmatprep.subr.mxu0 0.0
        %4097 = vmatpush1.msra.mxu0 0.0
        %4098 = vmatprep.subr.mxu0 0.0
        %4099 = vmatpush1.msra.mxu0 0.0
        %4100 = vmatprep.subr.mxu0 0.0
        %4101 = vmatpush1.msra.mxu0 0.0
        %4102 = vmatprep.subr.mxu0 0.0
        %4103 = vmatpush1.msra.mxu0 0.0
        %4104 = vmatprep.subr.mxu0 0.0
        %4105 = vmatpush1.msra.mxu0 0.0
        %4106 = vmatprep.subr.mxu0 0.0
        %4107 = vmatpush1.msra.mxu0 0.0
        %4108 = vmatprep.subr.mxu0 0.0
        %4109 = vmatpush1.msra.mxu0 0.0
        %4110 = vmatprep.subr.mxu0 0.0
        %4111 = vmatpush1.msra.mxu0 0.0
        %4112 = vmatprep.subr.mxu0 0.0
        %4113 = vmatpush1.msra.mxu0 0.0
        %4114 = vmatprep.subr.mxu0 0.0
        %4115 = vmatpush1.msra.mxu0 0.0
        %4116 = vmatprep.mubr.f32.mxu0 0.0
        %v4117 = vand.u32 %v3866, 4294901760
        %4118 = vmatmul.mubr.f32.gmra.mrb[0].mxu0 %v4117
        %v4119 = vpop.f32.mrb[0].mxu0
        %v4120 = vadd.f32 %v3959, %v4119
        %v4121 = vpop.f32.mrb[0].mxu0
        %4122 = vmatprep.mubr.f32.mxu0 0.0
        %v4123 = vand.u32 %v3868, 4294901760
        %4124 = vmatmul.mubr.f32.gmra.mrb[0].mxu0 %v4123
        %v4125 = vpop.f32.mrb[0].mxu0
        %v4126 = vadd.f32 %v3969, %v4125
        %v4127 = vpop.f32.mrb[0].mxu0
        %4128 = vdwg.mxu0
        %4129 = vmatprep.subr.mxu0 0.0
        %v4130 = vand.u32 %v3848, 4294901760
        %v4131 = vsub.f32 %v3848, %v4130
        %4132 = vmatpush1.msra.mxu0 %v4131
        %4133 = vmatprep.subr.mxu0 0.0
        %v4134 = vand.u32 %v3849, 4294901760
        %v4135 = vsub.f32 %v3849, %v4134
        %4136 = vmatpush1.msra.mxu0 %v4135
        %4137 = vmatprep.subr.mxu0 0.0
        %v4138 = vand.u32 %v3850, 4294901760
        %v4139 = vsub.f32 %v3850, %v4138
        %4140 = vmatpush1.msra.mxu0 %v4139
        %4141 = vmatprep.subr.mxu0 0.0
        %v4142 = vand.u32 %v3851, 4294901760
        %v4143 = vsub.f32 %v3851, %v4142
        %4144 = vmatpush1.msra.mxu0 %v4143
        %4145 = vmatprep.subr.mxu0 0.0
        %v4146 = vand.u32 %v3852, 4294901760
        %v4147 = vsub.f32 %v3852, %v4146
        %4148 = vmatpush1.msra.mxu0 %v4147
        %4149 = vmatprep.subr.mxu0 0.0
        %v4150 = vand.u32 %v3853, 4294901760
        %v4151 = vsub.f32 %v3853, %v4150
        %4152 = vmatpush1.msra.mxu0 %v4151
        %4153 = vmatprep.subr.mxu0 0.0
        %v4154 = vand.u32 %v3854, 4294901760
        %v4155 = vsub.f32 %v3854, %v4154
        %4156 = vmatpush1.msra.mxu0 %v4155
        %4157 = vmatprep.subr.mxu0 0.0
        %v4158 = vand.u32 %v3855, 4294901760
        %v4159 = vsub.f32 %v3855, %v4158
        %4160 = vmatpush1.msra.mxu0 %v4159
        %4161 = vmatprep.subr.mxu0 0.0
        %v4162 = vand.u32 %v3856, 4294901760
        %v4163 = vsub.f32 %v3856, %v4162
        %4164 = vmatpush1.msra.mxu0 %v4163
        %4165 = vmatprep.subr.mxu0 0.0
        %v4166 = vand.u32 %v3857, 4294901760
        %v4167 = vsub.f32 %v3857, %v4166
        %4168 = vmatpush1.msra.mxu0 %v4167
        %4169 = vmatprep.subr.mxu0 0.0
        %v4170 = vand.u32 %v3858, 4294901760
        %v4171 = vsub.f32 %v3858, %v4170
        %4172 = vmatpush1.msra.mxu0 %v4171
        %4173 = vmatprep.subr.mxu0 0.0
        %v4174 = vand.u32 %v3859, 4294901760
        %v4175 = vsub.f32 %v3859, %v4174
        %4176 = vmatpush1.msra.mxu0 %v4175
        %4177 = vmatprep.subr.mxu0 0.0
        %v4178 = vand.u32 %v3860, 4294901760
        %v4179 = vsub.f32 %v3860, %v4178
        %4180 = vmatpush1.msra.mxu0 %v4179
        %4181 = vmatprep.subr.mxu0 0.0
        %v4182 = vand.u32 %v3861, 4294901760
        %v4183 = vsub.f32 %v3861, %v4182
        %4184 = vmatpush1.msra.mxu0 %v4183
        %4185 = vmatprep.subr.mxu0 0.0
        %v4186 = vand.u32 %v3862, 4294901760
        %v4187 = vsub.f32 %v3862, %v4186
        %4188 = vmatpush1.msra.mxu0 %v4187
        %4189 = vmatprep.subr.mxu0 0.0
        %v4190 = vand.u32 %v3863, 4294901760
        %v4191 = vsub.f32 %v3863, %v4190
        %4192 = vmatpush1.msra.mxu0 %v4191
        %4193 = vmatprep.subr.mxu0 0.0
        %4194 = vmatpush1.msra.mxu0 0.0
        %4195 = vmatprep.subr.mxu0 0.0
        %4196 = vmatpush1.msra.mxu0 0.0
        %4197 = vmatprep.subr.mxu0 0.0
        %4198 = vmatpush1.msra.mxu0 0.0
        %4199 = vmatprep.subr.mxu0 0.0
        %4200 = vmatpush1.msra.mxu0 0.0
        %4201 = vmatprep.subr.mxu0 0.0
        %4202 = vmatpush1.msra.mxu0 0.0
        %4203 = vmatprep.subr.mxu0 0.0
        %4204 = vmatpush1.msra.mxu0 0.0
        %4205 = vmatprep.subr.mxu0 0.0
        %4206 = vmatpush1.msra.mxu0 0.0
        %4207 = vmatprep.subr.mxu0 0.0
        %4208 = vmatpush1.msra.mxu0 0.0
        %4209 = vmatprep.subr.mxu0 0.0
        %4210 = vmatpush1.msra.mxu0 0.0
        %4211 = vmatprep.subr.mxu0 0.0
        %4212 = vmatpush1.msra.mxu0 0.0
        %4213 = vmatprep.subr.mxu0 0.0
        %4214 = vmatpush1.msra.mxu0 0.0
        %4215 = vmatprep.subr.mxu0 0.0
        %4216 = vmatpush1.msra.mxu0 0.0
        %4217 = vmatprep.subr.mxu0 0.0
        %4218 = vmatpush1.msra.mxu0 0.0
        %4219 = vmatprep.subr.mxu0 0.0
        %4220 = vmatpush1.msra.mxu0 0.0
        %4221 = vmatprep.subr.mxu0 0.0
        %4222 = vmatpush1.msra.mxu0 0.0
        %4223 = vmatprep.subr.mxu0 0.0
        %4224 = vmatpush1.msra.mxu0 0.0
        %4225 = vmatprep.mubr.f32.mxu0 0.0
        %v4226 = vand.u32 %v3866, 4294901760
        %v4227 = vsub.f32 %v3866, %v4226
        %4228 = vmatmul.mubr.f32.gmra.mrb[0].mxu0 %v4227
        %v4229 = vpop.f32.mrb[0].mxu0
        %v4230 = vadd.f32 %v4120, %v4229
        %v4231 = vpop.f32.mrb[0].mxu0
        %4232 = vmatprep.mubr.f32.mxu0 0.0
        %v4233 = vand.u32 %v3868, 4294901760
        %v4234 = vsub.f32 %v3868, %v4233
        %4235 = vmatmul.mubr.f32.gmra.mrb[0].mxu0 %v4234
        %v4236 = vpop.f32.mrb[0].mxu0
        %v4237 = vadd.f32 %v4126, %v4236
        %v4238 = vpop.f32.mrb[0].mxu0
        %4239 = vdwg.mxu0
        %4240 = vmatprep.subr.mxu0 0.0
        %v4241 = vand.u32 %v3848, 4294901760
        %4242 = vmatpush1.msra.mxu0 %v4241
        %4243 = vmatprep.subr.mxu0 0.0
        %v4244 = vand.u32 %v3849, 4294901760
        %4245 = vmatpush1.msra.mxu0 %v4244
        %4246 = vmatprep.subr.mxu0 0.0
        %v4247 = vand.u32 %v3850, 4294901760
        %4248 = vmatpush1.msra.mxu0 %v4247
        %4249 = vmatprep.subr.mxu0 0.0
        %v4250 = vand.u32 %v3851, 4294901760
        %4251 = vmatpush1.msra.mxu0 %v4250
        %4252 = vmatprep.subr.mxu0 0.0
        %v4253 = vand.u32 %v3852, 4294901760
        %4254 = vmatpush1.msra.mxu0 %v4253
        %4255 = vmatprep.subr.mxu0 0.0
        %v4256 = vand.u32 %v3853, 4294901760
        %4257 = vmatpush1.msra.mxu0 %v4256
        %4258 = vmatprep.subr.mxu0 0.0
        %v4259 = vand.u32 %v3854, 4294901760
        %4260 = vmatpush1.msra.mxu0 %v4259
        %4261 = vmatprep.subr.mxu0 0.0
        %v4262 = vand.u32 %v3855, 4294901760
        %4263 = vmatpush1.msra.mxu0 %v4262
        %4264 = vmatprep.subr.mxu0 0.0
        %v4265 = vand.u32 %v3856, 4294901760
        %4266 = vmatpush1.msra.mxu0 %v4265
        %4267 = vmatprep.subr.mxu0 0.0
        %v4268 = vand.u32 %v3857, 4294901760
        %4269 = vmatpush1.msra.mxu0 %v4268
        %4270 = vmatprep.subr.mxu0 0.0
        %v4271 = vand.u32 %v3858, 4294901760
        %4272 = vmatpush1.msra.mxu0 %v4271
        %4273 = vmatprep.subr.mxu0 0.0
        %v4274 = vand.u32 %v3859, 4294901760
        %4275 = vmatpush1.msra.mxu0 %v4274
        %4276 = vmatprep.subr.mxu0 0.0
        %v4277 = vand.u32 %v3860, 4294901760
        %4278 = vmatpush1.msra.mxu0 %v4277
        %4279 = vmatprep.subr.mxu0 0.0
        %v4280 = vand.u32 %v3861, 4294901760
        %4281 = vmatpush1.msra.mxu0 %v4280
        %4282 = vmatprep.subr.mxu0 0.0
        %v4283 = vand.u32 %v3862, 4294901760
        %4284 = vmatpush1.msra.mxu0 %v4283
        %4285 = vmatprep.subr.mxu0 0.0
        %v4286 = vand.u32 %v3863, 4294901760
        %4287 = vmatpush1.msra.mxu0 %v4286
        %4288 = vmatprep.subr.mxu0 0.0
        %4289 = vmatpush1.msra.mxu0 0.0
        %4290 = vmatprep.subr.mxu0 0.0
        %4291 = vmatpush1.msra.mxu0 0.0
        %4292 = vmatprep.subr.mxu0 0.0
        %4293 = vmatpush1.msra.mxu0 0.0
        %4294 = vmatprep.subr.mxu0 0.0
        %4295 = vmatpush1.msra.mxu0 0.0
        %4296 = vmatprep.subr.mxu0 0.0
        %4297 = vmatpush1.msra.mxu0 0.0
        %4298 = vmatprep.subr.mxu0 0.0
        %4299 = vmatpush1.msra.mxu0 0.0
        %4300 = vmatprep.subr.mxu0 0.0
        %4301 = vmatpush1.msra.mxu0 0.0
        %4302 = vmatprep.subr.mxu0 0.0
        %4303 = vmatpush1.msra.mxu0 0.0
        %4304 = vmatprep.subr.mxu0 0.0
        %4305 = vmatpush1.msra.mxu0 0.0
        %4306 = vmatprep.subr.mxu0 0.0
        %4307 = vmatpush1.msra.mxu0 0.0
        %4308 = vmatprep.subr.mxu0 0.0
        %4309 = vmatpush1.msra.mxu0 0.0
        %4310 = vmatprep.subr.mxu0 0.0
        %4311 = vmatpush1.msra.mxu0 0.0
        %4312 = vmatprep.subr.mxu0 0.0
        %4313 = vmatpush1.msra.mxu0 0.0
        %4314 = vmatprep.subr.mxu0 0.0
        %4315 = vmatpush1.msra.mxu0 0.0
        %4316 = vmatprep.subr.mxu0 0.0
        %4317 = vmatpush1.msra.mxu0 0.0
        %4318 = vmatprep.subr.mxu0 0.0
        %4319 = vmatpush1.msra.mxu0 0.0
        %4320 = vmatprep.mubr.f32.mxu0 0.0
        %v4321 = vand.u32 %v3866, 4294901760
        %v4322 = vsub.f32 %v3866, %v4321
        %v4323 = vand.u32 %v4322, 4294901760
        %4324 = vmatmul.mubr.f32.gmra.mrb[0].mxu0 %v4323
        %v4325 = vpop.f32.mrb[0].mxu0
        %v4326 = vadd.f32 %v4230, %v4325
        %v4327 = vpop.f32.mrb[0].mxu0
        %4328 = vmatprep.mubr.f32.mxu0 0.0
        %v4329 = vand.u32 %v3868, 4294901760
        %v4330 = vsub.f32 %v3868, %v4329
        %v4331 = vand.u32 %v4330, 4294901760
        %4332 = vmatmul.mubr.f32.gmra.mrb[0].mxu0 %v4331
        %v4333 = vpop.f32.mrb[0].mxu0
        %v4334 = vadd.f32 %v4237, %v4333
        %v4335 = vpop.f32.mrb[0].mxu0
        %4336 = vdwg.mxu0
        %4337 = vmatprep.subr.mxu0 0.0
        %v4338 = vand.u32 %v3848, 4294901760
        %v4339 = vsub.f32 %v3848, %v4338
        %v4340 = vand.u32 %v4339, 4294901760
        %4341 = vmatpush1.msra.mxu0 %v4340
        %4342 = vmatprep.subr.mxu0 0.0
        %v4343 = vand.u32 %v3849, 4294901760
        %v4344 = vsub.f32 %v3849, %v4343
        %v4345 = vand.u32 %v4344, 4294901760
        %4346 = vmatpush1.msra.mxu0 %v4345
        %4347 = vmatprep.subr.mxu0 0.0
        %v4348 = vand.u32 %v3850, 4294901760
        %v4349 = vsub.f32 %v3850, %v4348
        %v4350 = vand.u32 %v4349, 4294901760
        %4351 = vmatpush1.msra.mxu0 %v4350
        %4352 = vmatprep.subr.mxu0 0.0
        %v4353 = vand.u32 %v3851, 4294901760
        %v4354 = vsub.f32 %v3851, %v4353
        %v4355 = vand.u32 %v4354, 4294901760
        %4356 = vmatpush1.msra.mxu0 %v4355
        %4357 = vmatprep.subr.mxu0 0.0
        %v4358 = vand.u32 %v3852, 4294901760
        %v4359 = vsub.f32 %v3852, %v4358
        %v4360 = vand.u32 %v4359, 4294901760
        %4361 = vmatpush1.msra.mxu0 %v4360
        %4362 = vmatprep.subr.mxu0 0.0
        %v4363 = vand.u32 %v3853, 4294901760
        %v4364 = vsub.f32 %v3853, %v4363
        %v4365 = vand.u32 %v4364, 4294901760
        %4366 = vmatpush1.msra.mxu0 %v4365
        %4367 = vmatprep.subr.mxu0 0.0
        %v4368 = vand.u32 %v3854, 4294901760
        %v4369 = vsub.f32 %v3854, %v4368
        %v4370 = vand.u32 %v4369, 4294901760
        %4371 = vmatpush1.msra.mxu0 %v4370
        %4372 = vmatprep.subr.mxu0 0.0
        %v4373 = vand.u32 %v3855, 4294901760
        %v4374 = vsub.f32 %v3855, %v4373
        %v4375 = vand.u32 %v4374, 4294901760
        %4376 = vmatpush1.msra.mxu0 %v4375
        %4377 = vmatprep.subr.mxu0 0.0
        %v4378 = vand.u32 %v3856, 4294901760
        %v4379 = vsub.f32 %v3856, %v4378
        %v4380 = vand.u32 %v4379, 4294901760
        %4381 = vmatpush1.msra.mxu0 %v4380
        %4382 = vmatprep.subr.mxu0 0.0
        %v4383 = vand.u32 %v3857, 4294901760
        %v4384 = vsub.f32 %v3857, %v4383
        %v4385 = vand.u32 %v4384, 4294901760
        %4386 = vmatpush1.msra.mxu0 %v4385
        %4387 = vmatprep.subr.mxu0 0.0
        %v4388 = vand.u32 %v3858, 4294901760
        %v4389 = vsub.f32 %v3858, %v4388
        %v4390 = vand.u32 %v4389, 4294901760
        %4391 = vmatpush1.msra.mxu0 %v4390
        %4392 = vmatprep.subr.mxu0 0.0
        %v4393 = vand.u32 %v3859, 4294901760
        %v4394 = vsub.f32 %v3859, %v4393
        %v4395 = vand.u32 %v4394, 4294901760
        %4396 = vmatpush1.msra.mxu0 %v4395
        %4397 = vmatprep.subr.mxu0 0.0
        %v4398 = vand.u32 %v3860, 4294901760
        %v4399 = vsub.f32 %v3860, %v4398
        %v4400 = vand.u32 %v4399, 4294901760
        %4401 = vmatpush1.msra.mxu0 %v4400
        %4402 = vmatprep.subr.mxu0 0.0
        %v4403 = vand.u32 %v3861, 4294901760
        %v4404 = vsub.f32 %v3861, %v4403
        %v4405 = vand.u32 %v4404, 4294901760
        %4406 = vmatpush1.msra.mxu0 %v4405
        %4407 = vmatprep.subr.mxu0 0.0
        %v4408 = vand.u32 %v3862, 4294901760
        %v4409 = vsub.f32 %v3862, %v4408
        %v4410 = vand.u32 %v4409, 4294901760
        %4411 = vmatpush1.msra.mxu0 %v4410
        %4412 = vmatprep.subr.mxu0 0.0
        %v4413 = vand.u32 %v3863, 4294901760
        %v4414 = vsub.f32 %v3863, %v4413
        %v4415 = vand.u32 %v4414, 4294901760
        %4416 = vmatpush1.msra.mxu0 %v4415
        %4417 = vmatprep.subr.mxu0 0.0
        %4418 = vmatpush1.msra.mxu0 0.0
        %4419 = vmatprep.subr.mxu0 0.0
        %4420 = vmatpush1.msra.mxu0 0.0
        %4421 = vmatprep.subr.mxu0 0.0
        %4422 = vmatpush1.msra.mxu0 0.0
        %4423 = vmatprep.subr.mxu0 0.0
        %4424 = vmatpush1.msra.mxu0 0.0
        %4425 = vmatprep.subr.mxu0 0.0
        %4426 = vmatpush1.msra.mxu0 0.0
        %4427 = vmatprep.subr.mxu0 0.0
        %4428 = vmatpush1.msra.mxu0 0.0
        %4429 = vmatprep.subr.mxu0 0.0
        %4430 = vmatpush1.msra.mxu0 0.0
        %4431 = vmatprep.subr.mxu0 0.0
        %4432 = vmatpush1.msra.mxu0 0.0
        %4433 = vmatprep.subr.mxu0 0.0
        %4434 = vmatpush1.msra.mxu0 0.0
        %4435 = vmatprep.subr.mxu0 0.0
        %4436 = vmatpush1.msra.mxu0 0.0
        %4437 = vmatprep.subr.mxu0 0.0
        %4438 = vmatpush1.msra.mxu0 0.0
        %4439 = vmatprep.subr.mxu0 0.0
        %4440 = vmatpush1.msra.mxu0 0.0
        %4441 = vmatprep.subr.mxu0 0.0
        %4442 = vmatpush1.msra.mxu0 0.0
        %4443 = vmatprep.subr.mxu0 0.0
        %4444 = vmatpush1.msra.mxu0 0.0
        %4445 = vmatprep.subr.mxu0 0.0
        %4446 = vmatpush1.msra.mxu0 0.0
        %4447 = vmatprep.subr.mxu0 0.0
        %4448 = vmatpush1.msra.mxu0 0.0
        %4449 = vmatprep.mubr.f32.mxu0 0.0
        %v4450 = vand.u32 %v3866, 4294901760
        %4451 = vmatmul.mubr.f32.gmra.mrb[0].mxu0 %v4450
        %v4452 = vpop.f32.mrb[0].mxu0
        %v4453 = vadd.f32 %v4326, %v4452
        %v4454 = vpop.f32.mrb[0].mxu0
        %4455 = vmatprep.mubr.f32.mxu0 0.0
        %v4456 = vand.u32 %v3868, 4294901760
        %4457 = vmatmul.mubr.f32.gmra.mrb[0].mxu0 %v4456
        %v4458 = vpop.f32.mrb[0].mxu0
        %v4459 = vadd.f32 %v4334, %v4458
        %v4460 = vpop.f32.mrb[0].mxu0
        %4461 = vdwg.mxu0
        %4462 = vmatprep.subr.mxu0 0.0
        %v4463 = vand.u32 %v3848, 4294901760
        %4464 = vmatpush1.msra.mxu0 %v4463
        %4465 = vmatprep.subr.mxu0 0.0
        %v4466 = vand.u32 %v3849, 4294901760
        %4467 = vmatpush1.msra.mxu0 %v4466
        %4468 = vmatprep.subr.mxu0 0.0
        %v4469 = vand.u32 %v3850, 4294901760
        %4470 = vmatpush1.msra.mxu0 %v4469
        %4471 = vmatprep.subr.mxu0 0.0
        %v4472 = vand.u32 %v3851, 4294901760
        %4473 = vmatpush1.msra.mxu0 %v4472
        %4474 = vmatprep.subr.mxu0 0.0
        %v4475 = vand.u32 %v3852, 4294901760
        %4476 = vmatpush1.msra.mxu0 %v4475
        %4477 = vmatprep.subr.mxu0 0.0
        %v4478 = vand.u32 %v3853, 4294901760
        %4479 = vmatpush1.msra.mxu0 %v4478
        %4480 = vmatprep.subr.mxu0 0.0
        %v4481 = vand.u32 %v3854, 4294901760
        %4482 = vmatpush1.msra.mxu0 %v4481
        %4483 = vmatprep.subr.mxu0 0.0
        %v4484 = vand.u32 %v3855, 4294901760
        %4485 = vmatpush1.msra.mxu0 %v4484
        %4486 = vmatprep.subr.mxu0 0.0
        %v4487 = vand.u32 %v3856, 4294901760
        %4488 = vmatpush1.msra.mxu0 %v4487
        %4489 = vmatprep.subr.mxu0 0.0
        %v4490 = vand.u32 %v3857, 4294901760
        %4491 = vmatpush1.msra.mxu0 %v4490
        %4492 = vmatprep.subr.mxu0 0.0
        %v4493 = vand.u32 %v3858, 4294901760
        %4494 = vmatpush1.msra.mxu0 %v4493
        %4495 = vmatprep.subr.mxu0 0.0
        %v4496 = vand.u32 %v3859, 4294901760
        %4497 = vmatpush1.msra.mxu0 %v4496
        %4498 = vmatprep.subr.mxu0 0.0
        %v4499 = vand.u32 %v3860, 4294901760
        %4500 = vmatpush1.msra.mxu0 %v4499
        %4501 = vmatprep.subr.mxu0 0.0
        %v4502 = vand.u32 %v3861, 4294901760
        %4503 = vmatpush1.msra.mxu0 %v4502
        %4504 = vmatprep.subr.mxu0 0.0
        %v4505 = vand.u32 %v3862, 4294901760
        %4506 = vmatpush1.msra.mxu0 %v4505
        %4507 = vmatprep.subr.mxu0 0.0
        %v4508 = vand.u32 %v3863, 4294901760
        %4509 = vmatpush1.msra.mxu0 %v4508
        %4510 = vmatprep.subr.mxu0 0.0
        %4511 = vmatpush1.msra.mxu0 0.0
        %4512 = vmatprep.subr.mxu0 0.0
        %4513 = vmatpush1.msra.mxu0 0.0
        %4514 = vmatprep.subr.mxu0 0.0
        %4515 = vmatpush1.msra.mxu0 0.0
        %4516 = vmatprep.subr.mxu0 0.0
        %4517 = vmatpush1.msra.mxu0 0.0
        %4518 = vmatprep.subr.mxu0 0.0
        %4519 = vmatpush1.msra.mxu0 0.0
        %4520 = vmatprep.subr.mxu0 0.0
        %4521 = vmatpush1.msra.mxu0 0.0
        %4522 = vmatprep.subr.mxu0 0.0
        %4523 = vmatpush1.msra.mxu0 0.0
        %4524 = vmatprep.subr.mxu0 0.0
        %4525 = vmatpush1.msra.mxu0 0.0
        %4526 = vmatprep.subr.mxu0 0.0
        %4527 = vmatpush1.msra.mxu0 0.0
        %4528 = vmatprep.subr.mxu0 0.0
        %4529 = vmatpush1.msra.mxu0 0.0
        %4530 = vmatprep.subr.mxu0 0.0
        %4531 = vmatpush1.msra.mxu0 0.0
        %4532 = vmatprep.subr.mxu0 0.0
        %4533 = vmatpush1.msra.mxu0 0.0
        %4534 = vmatprep.subr.mxu0 0.0
        %4535 = vmatpush1.msra.mxu0 0.0
        %4536 = vmatprep.subr.mxu0 0.0
        %4537 = vmatpush1.msra.mxu0 0.0
        %4538 = vmatprep.subr.mxu0 0.0
        %4539 = vmatpush1.msra.mxu0 0.0
        %4540 = vmatprep.subr.mxu0 0.0
        %4541 = vmatpush1.msra.mxu0 0.0
        %4542 = vmatprep.mubr.f32.mxu0 0.0
        %v4543 = vand.u32 %v3866, 4294901760
        %4544 = vmatmul.mubr.f32.gmra.mrb[0].mxu0 %v4543
        %v4545 = vpop.f32.mrb[0].mxu0
        %v4546 = vadd.f32 %v4453, %v4545
        %v4547 = vpop.f32.mrb[0].mxu0
        %4548 = vmatprep.mubr.f32.mxu0 0.0
        %v4549 = vand.u32 %v3868, 4294901760
        %4550 = vmatmul.mubr.f32.gmra.mrb[0].mxu0 %v4549
        %v4551 = vpop.f32.mrb[0].mxu0
        %v4552 = vadd.f32 %v4459, %v4551
        %v4553 = vpop.f32.mrb[0].mxu0
        %4554 = vdwg.mxu0
        %v4555 = vadd.f32 %v3845, %v4546
        %v4556 = vadd.f32 %v3846, %v4552
        %v4557 = vadd.f32 %v4555, %v4556
        %v4558 = vrot.slane %v4557, 4
        %v4559 = vadd.f32 %v4557, %v4558
        %v4560 = vrot.slane %v4559, 2
        %v4561 = vadd.f32 %v4559, %v4560
        %v4562 = vrot.slane %v4561, 1
        %v4563 = vadd.f32 %v4561, %v4562
        %4564 = vrot.lane.b32.xlu0 %v4563, 8
        %v4565 = vpop.permute.xlu0 %4564
        %v4566 = vadd.f32 %v4563, %v4565
        %4567 = vrot.lane.b32.xlu0 %v4566, 16
        %v4568 = vpop.permute.xlu0 %4567
        %v4569 = vadd.f32 %v4566, %v4568
        %4570 = vrot.lane.b32.xlu0 %v4569, 32
        %v4571 = vpop.permute.xlu0 %4570
        %v4572 = vadd.f32 %v4569, %v4571
        %4573 = vrot.lane.b32.xlu0 %v4572, 64
        %v4574 = vpop.permute.xlu0 %4573
        %v4575 = vadd.f32 %v4572, %v4574
        %v4576 = vmul.f32 %v4555, %v4555
        %v4577 = vmul.f32 %v4556, %v4556
        %v4578 = vadd.f32 %v4576, %v4577
        %v4579 = vrot.slane %v4578, 4
        %v4580 = vadd.f32 %v4578, %v4579
        %v4581 = vrot.slane %v4580, 2
        %v4582 = vadd.f32 %v4580, %v4581
        %v4583 = vrot.slane %v4582, 1
        %v4584 = vadd.f32 %v4582, %v4583
        %4585 = vrot.lane.b32.xlu0 %v4584, 8
        %v4586 = vpop.permute.xlu0 %4585
        %v4587 = vadd.f32 %v4584, %v4586
        %4588 = vrot.lane.b32.xlu0 %v4587, 16
        %v4589 = vpop.permute.xlu0 %4588
        %v4590 = vadd.f32 %v4587, %v4589
        %4591 = vrot.lane.b32.xlu0 %v4590, 32
        %v4592 = vpop.permute.xlu0 %4591
        %v4593 = vadd.f32 %v4590, %v4592
        %4594 = vrot.lane.b32.xlu0 %v4593, 64
        %v4595 = vpop.permute.xlu0 %4594
        %v4596 = vadd.f32 %v4593, %v4595
        %v4597 = vmul.f32 %v4575, 0.00390625
        %v4598 = vmul.f32 %v4596, 0.00390625
        %v4599 = vmul.f32 %v4597, %v4597
        %v4600 = vsub.f32 %v4598, %v4599
        %v4601 = vlaneseq
        %v4602 = vshrl.u32 %v4601, 7
        %v4603 = vsub.s32 0, %v4602
        %v4604 = vrot.slane %v4597, %v4603
        %v4605 = vsub.f32 %v4555, %v4604
        %v4606 = vsub.f32 %v4556, %v4604
        %v4607 = vadd.f32 %v4600, 1e-05
        %v4608 = vrsqrt.pop %v4607
        %v4609 = vlaneseq
        %v4610 = vshrl.u32 %v4609, 7
        %v4611 = vsub.s32 0, %v4610
        %v4612 = vrot.slane %v4608, %v4611
        %v4613 = vmul.f32 %v4605, %v4612
        %v4614 = vmul.f32 %v4606, %v4612
        %vm4615 = vcmp.ge.f32.partialorder %v4613, 0.0
        %vm4616 = vcmp.ge.f32.partialorder %v4614, 0.0
        %v4617 = vmul.f32 %v4613, 0.2
        %v4618 = vmul.f32 %v4614, 0.2
        %v4619 = vsel %vm4615, %v4613, %v4617
        %v4620 = vsel %vm4616, %v4614, %v4618
        %v4623 = vrot.slane %v4619, 7
        %v4624 = vrot.slane %v4620, 7
        %v4625 = vsel %vm208, %v4623, %v4624
        %v4629 = vsel %vm208, 0.0, %v4623
        %v4630 = vsel %vm208, %v4624, 0.0
        %s4631 = scalar_lea.vmem %s2, 2
        %v4632 = vld [vmem:[%s4631] sm:$0x1]
        %s4633 = scalar_lea.vmem [#allocation5], 768
        %v4634 = vld [vmem:[%s4633] sm:$0xff]
        %v4635 = vld [vmem:[%s4633 + $0x8] sm:$0xff]
        %v4636 = vld [vmem:[%s4633 + $0x10] sm:$0xff]
        %v4637 = vld [vmem:[%s4633 + $0x18] sm:$0xff]
        %v4638 = vld [vmem:[%s4633 + $0x20] sm:$0xff]
        %v4639 = vld [vmem:[%s4633 + $0x28] sm:$0xff]
        %v4640 = vld [vmem:[%s4633 + $0x30] sm:$0xff]
        %v4641 = vld [vmem:[%s4633 + $0x38] sm:$0xff]
        %v4642 = vld [vmem:[%s4633 + $0x40] sm:$0xff]
        %v4643 = vld [vmem:[%s4633 + $0x48] sm:$0xff]
        %v4644 = vld [vmem:[%s4633 + $0x50] sm:$0xff]
        %v4645 = vld [vmem:[%s4633 + $0x58] sm:$0xff]
        %v4646 = vld [vmem:[%s4633 + $0x60] sm:$0xff]
        %v4647 = vld [vmem:[%s4633 + $0x68] sm:$0xff]
        %v4648 = vld [vmem:[%s4633 + $0x70] sm:$0xff]
        %v4649 = vld [vmem:[%s4633 + $0x78] sm:$0xff]
        %4650 = vmatprep.subr.mxu0 0.0
        %v4651 = vand.u32 %v4634, 4294901760
        %4652 = vmatpush1.msra.mxu0 %v4651
        %4653 = vmatprep.subr.mxu0 0.0
        %v4654 = vand.u32 %v4635, 4294901760
        %4655 = vmatpush1.msra.mxu0 %v4654
        %4656 = vmatprep.subr.mxu0 0.0
        %v4657 = vand.u32 %v4636, 4294901760
        %4658 = vmatpush1.msra.mxu0 %v4657
        %4659 = vmatprep.subr.mxu0 0.0
        %v4660 = vand.u32 %v4637, 4294901760
        %4661 = vmatpush1.msra.mxu0 %v4660
        %4662 = vmatprep.subr.mxu0 0.0
        %v4663 = vand.u32 %v4638, 4294901760
        %4664 = vmatpush1.msra.mxu0 %v4663
        %4665 = vmatprep.subr.mxu0 0.0
        %v4666 = vand.u32 %v4639, 4294901760
        %4667 = vmatpush1.msra.mxu0 %v4666
        %4668 = vmatprep.subr.mxu0 0.0
        %v4669 = vand.u32 %v4640, 4294901760
        %4670 = vmatpush1.msra.mxu0 %v4669
        %4671 = vmatprep.subr.mxu0 0.0
        %v4672 = vand.u32 %v4641, 4294901760
        %4673 = vmatpush1.msra.mxu0 %v4672
        %4674 = vmatprep.subr.mxu0 0.0
        %v4675 = vand.u32 %v4642, 4294901760
        %4676 = vmatpush1.msra.mxu0 %v4675
        %4677 = vmatprep.subr.mxu0 0.0
        %v4678 = vand.u32 %v4643, 4294901760
        %4679 = vmatpush1.msra.mxu0 %v4678
        %4680 = vmatprep.subr.mxu0 0.0
        %v4681 = vand.u32 %v4644, 4294901760
        %4682 = vmatpush1.msra.mxu0 %v4681
        %4683 = vmatprep.subr.mxu0 0.0
        %v4684 = vand.u32 %v4645, 4294901760
        %4685 = vmatpush1.msra.mxu0 %v4684
        %4686 = vmatprep.subr.mxu0 0.0
        %v4687 = vand.u32 %v4646, 4294901760
        %4688 = vmatpush1.msra.mxu0 %v4687
        %4689 = vmatprep.subr.mxu0 0.0
        %v4690 = vand.u32 %v4647, 4294901760
        %4691 = vmatpush1.msra.mxu0 %v4690
        %4692 = vmatprep.subr.mxu0 0.0
        %v4693 = vand.u32 %v4648, 4294901760
        %4694 = vmatpush1.msra.mxu0 %v4693
        %4695 = vmatprep.subr.mxu0 0.0
        %v4696 = vand.u32 %v4649, 4294901760
        %4697 = vmatpush1.msra.mxu0 %v4696
        %4698 = vmatprep.subr.mxu0 0.0
        %4699 = vmatpush1.msra.mxu0 0.0
        %4700 = vmatprep.subr.mxu0 0.0
        %4701 = vmatpush1.msra.mxu0 0.0
        %4702 = vmatprep.subr.mxu0 0.0
        %4703 = vmatpush1.msra.mxu0 0.0
        %4704 = vmatprep.subr.mxu0 0.0
        %4705 = vmatpush1.msra.mxu0 0.0
        %4706 = vmatprep.subr.mxu0 0.0
        %4707 = vmatpush1.msra.mxu0 0.0
        %4708 = vmatprep.subr.mxu0 0.0
        %4709 = vmatpush1.msra.mxu0 0.0
        %4710 = vmatprep.subr.mxu0 0.0
        %4711 = vmatpush1.msra.mxu0 0.0
        %4712 = vmatprep.subr.mxu0 0.0
        %4713 = vmatpush1.msra.mxu0 0.0
        %4714 = vmatprep.subr.mxu0 0.0
        %4715 = vmatpush1.msra.mxu0 0.0
        %4716 = vmatprep.subr.mxu0 0.0
        %4717 = vmatpush1.msra.mxu0 0.0
        %4718 = vmatprep.subr.mxu0 0.0
        %4719 = vmatpush1.msra.mxu0 0.0
        %4720 = vmatprep.subr.mxu0 0.0
        %4721 = vmatpush1.msra.mxu0 0.0
        %4722 = vmatprep.subr.mxu0 0.0
        %4723 = vmatpush1.msra.mxu0 0.0
        %4724 = vmatprep.subr.mxu0 0.0
        %4725 = vmatpush1.msra.mxu0 0.0
        %4726 = vmatprep.subr.mxu0 0.0
        %4727 = vmatpush1.msra.mxu0 0.0
        %4728 = vmatprep.subr.mxu0 0.0
        %4729 = vmatpush1.msra.mxu0 0.0
        %4730 = vmatprep.mubr.f32.mxu0 0.0
        %v4731 = vand.u32 %v4629, 4294901760
        %v4732 = vsub.f32 %v4629, %v4731
        %v4733 = vand.u32 %v4732, 4294901760
        %v4734 = vsub.f32 %v4732, %v4733
        %v4735 = vand.u32 %v4734, 4294901760
        %4736 = vmatmul.mubr.f32.gmra.mrb[0].mxu0 %v4735
        %v4737 = vpop.f32.mrb[0].mxu0
        %v4738 = vadd.f32 0.0, %v4737
        %v4739 = vpop.f32.mrb[0].mxu0
        %4740 = vmatprep.mubr.f32.mxu0 0.0
        %v4741 = vand.u32 %v4625, 4294901760
        %v4742 = vsub.f32 %v4625, %v4741
        %v4743 = vand.u32 %v4742, 4294901760
        %v4744 = vsub.f32 %v4742, %v4743
        %v4745 = vand.u32 %v4744, 4294901760
        %4746 = vmatmul.mubr.f32.gmra.mrb[0].mxu0 %v4745
        %v4747 = vpop.f32.mrb[0].mxu0
        %v4748 = vadd.f32 0.0, %v4747
        %v4749 = vpop.f32.mrb[0].mxu0
        %4750 = vdwg.mxu0
        %4751 = vmatprep.subr.mxu0 0.0
        %v4752 = vand.u32 %v4634, 4294901760
        %v4753 = vsub.f32 %v4634, %v4752
        %v4754 = vand.u32 %v4753, 4294901760
        %v4755 = vsub.f32 %v4753, %v4754
        %v4756 = vand.u32 %v4755, 4294901760
        %4757 = vmatpush1.msra.mxu0 %v4756
        %4758 = vmatprep.subr.mxu0 0.0
        %v4759 = vand.u32 %v4635, 4294901760
        %v4760 = vsub.f32 %v4635, %v4759
        %v4761 = vand.u32 %v4760, 4294901760
        %v4762 = vsub.f32 %v4760, %v4761
        %v4763 = vand.u32 %v4762, 4294901760
        %4764 = vmatpush1.msra.mxu0 %v4763
        %4765 = vmatprep.subr.mxu0 0.0
        %v4766 = vand.u32 %v4636, 4294901760
        %v4767 = vsub.f32 %v4636, %v4766
        %v4768 = vand.u32 %v4767, 4294901760
        %v4769 = vsub.f32 %v4767, %v4768
        %v4770 = vand.u32 %v4769, 4294901760
        %4771 = vmatpush1.msra.mxu0 %v4770
        %4772 = vmatprep.subr.mxu0 0.0
        %v4773 = vand.u32 %v4637, 4294901760
        %v4774 = vsub.f32 %v4637, %v4773
        %v4775 = vand.u32 %v4774, 4294901760
        %v4776 = vsub.f32 %v4774, %v4775
        %v4777 = vand.u32 %v4776, 4294901760
        %4778 = vmatpush1.msra.mxu0 %v4777
        %4779 = vmatprep.subr.mxu0 0.0
        %v4780 = vand.u32 %v4638, 4294901760
        %v4781 = vsub.f32 %v4638, %v4780
        %v4782 = vand.u32 %v4781, 4294901760
        %v4783 = vsub.f32 %v4781, %v4782
        %v4784 = vand.u32 %v4783, 4294901760
        %4785 = vmatpush1.msra.mxu0 %v4784
        %4786 = vmatprep.subr.mxu0 0.0
        %v4787 = vand.u32 %v4639, 4294901760
        %v4788 = vsub.f32 %v4639, %v4787
        %v4789 = vand.u32 %v4788, 4294901760
        %v4790 = vsub.f32 %v4788, %v4789
        %v4791 = vand.u32 %v4790, 4294901760
        %4792 = vmatpush1.msra.mxu0 %v4791
        %4793 = vmatprep.subr.mxu0 0.0
        %v4794 = vand.u32 %v4640, 4294901760
        %v4795 = vsub.f32 %v4640, %v4794
        %v4796 = vand.u32 %v4795, 4294901760
        %v4797 = vsub.f32 %v4795, %v4796
        %v4798 = vand.u32 %v4797, 4294901760
        %4799 = vmatpush1.msra.mxu0 %v4798
        %4800 = vmatprep.subr.mxu0 0.0
        %v4801 = vand.u32 %v4641, 4294901760
        %v4802 = vsub.f32 %v4641, %v4801
        %v4803 = vand.u32 %v4802, 4294901760
        %v4804 = vsub.f32 %v4802, %v4803
        %v4805 = vand.u32 %v4804, 4294901760
        %4806 = vmatpush1.msra.mxu0 %v4805
        %4807 = vmatprep.subr.mxu0 0.0
        %v4808 = vand.u32 %v4642, 4294901760
        %v4809 = vsub.f32 %v4642, %v4808
        %v4810 = vand.u32 %v4809, 4294901760
        %v4811 = vsub.f32 %v4809, %v4810
        %v4812 = vand.u32 %v4811, 4294901760
        %4813 = vmatpush1.msra.mxu0 %v4812
        %4814 = vmatprep.subr.mxu0 0.0
        %v4815 = vand.u32 %v4643, 4294901760
        %v4816 = vsub.f32 %v4643, %v4815
        %v4817 = vand.u32 %v4816, 4294901760
        %v4818 = vsub.f32 %v4816, %v4817
        %v4819 = vand.u32 %v4818, 4294901760
        %4820 = vmatpush1.msra.mxu0 %v4819
        %4821 = vmatprep.subr.mxu0 0.0
        %v4822 = vand.u32 %v4644, 4294901760
        %v4823 = vsub.f32 %v4644, %v4822
        %v4824 = vand.u32 %v4823, 4294901760
        %v4825 = vsub.f32 %v4823, %v4824
        %v4826 = vand.u32 %v4825, 4294901760
        %4827 = vmatpush1.msra.mxu0 %v4826
        %4828 = vmatprep.subr.mxu0 0.0
        %v4829 = vand.u32 %v4645, 4294901760
        %v4830 = vsub.f32 %v4645, %v4829
        %v4831 = vand.u32 %v4830, 4294901760
        %v4832 = vsub.f32 %v4830, %v4831
        %v4833 = vand.u32 %v4832, 4294901760
        %4834 = vmatpush1.msra.mxu0 %v4833
        %4835 = vmatprep.subr.mxu0 0.0
        %v4836 = vand.u32 %v4646, 4294901760
        %v4837 = vsub.f32 %v4646, %v4836
        %v4838 = vand.u32 %v4837, 4294901760
        %v4839 = vsub.f32 %v4837, %v4838
        %v4840 = vand.u32 %v4839, 4294901760
        %4841 = vmatpush1.msra.mxu0 %v4840
        %4842 = vmatprep.subr.mxu0 0.0
        %v4843 = vand.u32 %v4647, 4294901760
        %v4844 = vsub.f32 %v4647, %v4843
        %v4845 = vand.u32 %v4844, 4294901760
        %v4846 = vsub.f32 %v4844, %v4845
        %v4847 = vand.u32 %v4846, 4294901760
        %4848 = vmatpush1.msra.mxu0 %v4847
        %4849 = vmatprep.subr.mxu0 0.0
        %v4850 = vand.u32 %v4648, 4294901760
        %v4851 = vsub.f32 %v4648, %v4850
        %v4852 = vand.u32 %v4851, 4294901760
        %v4853 = vsub.f32 %v4851, %v4852
        %v4854 = vand.u32 %v4853, 4294901760
        %4855 = vmatpush1.msra.mxu0 %v4854
        %4856 = vmatprep.subr.mxu0 0.0
        %v4857 = vand.u32 %v4649, 4294901760
        %v4858 = vsub.f32 %v4649, %v4857
        %v4859 = vand.u32 %v4858, 4294901760
        %v4860 = vsub.f32 %v4858, %v4859
        %v4861 = vand.u32 %v4860, 4294901760
        %4862 = vmatpush1.msra.mxu0 %v4861
        %4863 = vmatprep.subr.mxu0 0.0
        %4864 = vmatpush1.msra.mxu0 0.0
        %4865 = vmatprep.subr.mxu0 0.0
        %4866 = vmatpush1.msra.mxu0 0.0
        %4867 = vmatprep.subr.mxu0 0.0
        %4868 = vmatpush1.msra.mxu0 0.0
        %4869 = vmatprep.subr.mxu0 0.0
        %4870 = vmatpush1.msra.mxu0 0.0
        %4871 = vmatprep.subr.mxu0 0.0
        %4872 = vmatpush1.msra.mxu0 0.0
        %4873 = vmatprep.subr.mxu0 0.0
        %4874 = vmatpush1.msra.mxu0 0.0
        %4875 = vmatprep.subr.mxu0 0.0
        %4876 = vmatpush1.msra.mxu0 0.0
        %4877 = vmatprep.subr.mxu0 0.0
        %4878 = vmatpush1.msra.mxu0 0.0
        %4879 = vmatprep.subr.mxu0 0.0
        %4880 = vmatpush1.msra.mxu0 0.0
        %4881 = vmatprep.subr.mxu0 0.0
        %4882 = vmatpush1.msra.mxu0 0.0
        %4883 = vmatprep.subr.mxu0 0.0
        %4884 = vmatpush1.msra.mxu0 0.0
        %4885 = vmatprep.subr.mxu0 0.0
        %4886 = vmatpush1.msra.mxu0 0.0
        %4887 = vmatprep.subr.mxu0 0.0
        %4888 = vmatpush1.msra.mxu0 0.0
        %4889 = vmatprep.subr.mxu0 0.0
        %4890 = vmatpush1.msra.mxu0 0.0
        %4891 = vmatprep.subr.mxu0 0.0
        %4892 = vmatpush1.msra.mxu0 0.0
        %4893 = vmatprep.subr.mxu0 0.0
        %4894 = vmatpush1.msra.mxu0 0.0
        %4895 = vmatprep.mubr.f32.mxu0 0.0
        %v4896 = vand.u32 %v4629, 4294901760
        %4897 = vmatmul.mubr.f32.gmra.mrb[0].mxu0 %v4896
        %v4898 = vpop.f32.mrb[0].mxu0
        %v4899 = vadd.f32 %v4738, %v4898
        %v4900 = vpop.f32.mrb[0].mxu0
        %4901 = vmatprep.mubr.f32.mxu0 0.0
        %v4902 = vand.u32 %v4625, 4294901760
        %4903 = vmatmul.mubr.f32.gmra.mrb[0].mxu0 %v4902
        %v4904 = vpop.f32.mrb[0].mxu0
        %v4905 = vadd.f32 %v4748, %v4904
        %v4906 = vpop.f32.mrb[0].mxu0
        %4907 = vdwg.mxu0
        %4908 = vmatprep.subr.mxu0 0.0
        %v4909 = vand.u32 %v4634, 4294901760
        %v4910 = vsub.f32 %v4634, %v4909
        %4911 = vmatpush1.msra.mxu0 %v4910
        %4912 = vmatprep.subr.mxu0 0.0
        %v4913 = vand.u32 %v4635, 4294901760
        %v4914 = vsub.f32 %v4635, %v4913
        %4915 = vmatpush1.msra.mxu0 %v4914
        %4916 = vmatprep.subr.mxu0 0.0
        %v4917 = vand.u32 %v4636, 4294901760
        %v4918 = vsub.f32 %v4636, %v4917
        %4919 = vmatpush1.msra.mxu0 %v4918
        %4920 = vmatprep.subr.mxu0 0.0
        %v4921 = vand.u32 %v4637, 4294901760
        %v4922 = vsub.f32 %v4637, %v4921
        %4923 = vmatpush1.msra.mxu0 %v4922
        %4924 = vmatprep.subr.mxu0 0.0
        %v4925 = vand.u32 %v4638, 4294901760
        %v4926 = vsub.f32 %v4638, %v4925
        %4927 = vmatpush1.msra.mxu0 %v4926
        %4928 = vmatprep.subr.mxu0 0.0
        %v4929 = vand.u32 %v4639, 4294901760
        %v4930 = vsub.f32 %v4639, %v4929
        %4931 = vmatpush1.msra.mxu0 %v4930
        %4932 = vmatprep.subr.mxu0 0.0
        %v4933 = vand.u32 %v4640, 4294901760
        %v4934 = vsub.f32 %v4640, %v4933
        %4935 = vmatpush1.msra.mxu0 %v4934
        %4936 = vmatprep.subr.mxu0 0.0
        %v4937 = vand.u32 %v4641, 4294901760
        %v4938 = vsub.f32 %v4641, %v4937
        %4939 = vmatpush1.msra.mxu0 %v4938
        %4940 = vmatprep.subr.mxu0 0.0
        %v4941 = vand.u32 %v4642, 4294901760
        %v4942 = vsub.f32 %v4642, %v4941
        %4943 = vmatpush1.msra.mxu0 %v4942
        %4944 = vmatprep.subr.mxu0 0.0
        %v4945 = vand.u32 %v4643, 4294901760
        %v4946 = vsub.f32 %v4643, %v4945
        %4947 = vmatpush1.msra.mxu0 %v4946
        %4948 = vmatprep.subr.mxu0 0.0
        %v4949 = vand.u32 %v4644, 4294901760
        %v4950 = vsub.f32 %v4644, %v4949
        %4951 = vmatpush1.msra.mxu0 %v4950
        %4952 = vmatprep.subr.mxu0 0.0
        %v4953 = vand.u32 %v4645, 4294901760
        %v4954 = vsub.f32 %v4645, %v4953
        %4955 = vmatpush1.msra.mxu0 %v4954
        %4956 = vmatprep.subr.mxu0 0.0
        %v4957 = vand.u32 %v4646, 4294901760
        %v4958 = vsub.f32 %v4646, %v4957
        %4959 = vmatpush1.msra.mxu0 %v4958
        %4960 = vmatprep.subr.mxu0 0.0
        %v4961 = vand.u32 %v4647, 4294901760
        %v4962 = vsub.f32 %v4647, %v4961
        %4963 = vmatpush1.msra.mxu0 %v4962
        %4964 = vmatprep.subr.mxu0 0.0
        %v4965 = vand.u32 %v4648, 4294901760
        %v4966 = vsub.f32 %v4648, %v4965
        %4967 = vmatpush1.msra.mxu0 %v4966
        %4968 = vmatprep.subr.mxu0 0.0
        %v4969 = vand.u32 %v4649, 4294901760
        %v4970 = vsub.f32 %v4649, %v4969
        %4971 = vmatpush1.msra.mxu0 %v4970
        %4972 = vmatprep.subr.mxu0 0.0
        %4973 = vmatpush1.msra.mxu0 0.0
        %4974 = vmatprep.subr.mxu0 0.0
        %4975 = vmatpush1.msra.mxu0 0.0
        %4976 = vmatprep.subr.mxu0 0.0
        %4977 = vmatpush1.msra.mxu0 0.0
        %4978 = vmatprep.subr.mxu0 0.0
        %4979 = vmatpush1.msra.mxu0 0.0
        %4980 = vmatprep.subr.mxu0 0.0
        %4981 = vmatpush1.msra.mxu0 0.0
        %4982 = vmatprep.subr.mxu0 0.0
        %4983 = vmatpush1.msra.mxu0 0.0
        %4984 = vmatprep.subr.mxu0 0.0
        %4985 = vmatpush1.msra.mxu0 0.0
        %4986 = vmatprep.subr.mxu0 0.0
        %4987 = vmatpush1.msra.mxu0 0.0
        %4988 = vmatprep.subr.mxu0 0.0
        %4989 = vmatpush1.msra.mxu0 0.0
        %4990 = vmatprep.subr.mxu0 0.0
        %4991 = vmatpush1.msra.mxu0 0.0
        %4992 = vmatprep.subr.mxu0 0.0
        %4993 = vmatpush1.msra.mxu0 0.0
        %4994 = vmatprep.subr.mxu0 0.0
        %4995 = vmatpush1.msra.mxu0 0.0
        %4996 = vmatprep.subr.mxu0 0.0
        %4997 = vmatpush1.msra.mxu0 0.0
        %4998 = vmatprep.subr.mxu0 0.0
        %4999 = vmatpush1.msra.mxu0 0.0
        %5000 = vmatprep.subr.mxu0 0.0
        %5001 = vmatpush1.msra.mxu0 0.0
        %5002 = vmatprep.subr.mxu0 0.0
        %5003 = vmatpush1.msra.mxu0 0.0
        %5004 = vmatprep.mubr.f32.mxu0 0.0
        %v5005 = vand.u32 %v4629, 4294901760
        %v5006 = vsub.f32 %v4629, %v5005
        %5007 = vmatmul.mubr.f32.gmra.mrb[0].mxu0 %v5006
        %v5008 = vpop.f32.mrb[0].mxu0
        %v5009 = vadd.f32 %v4899, %v5008
        %v5010 = vpop.f32.mrb[0].mxu0
        %5011 = vmatprep.mubr.f32.mxu0 0.0
        %v5012 = vand.u32 %v4625, 4294901760
        %v5013 = vsub.f32 %v4625, %v5012
        %5014 = vmatmul.mubr.f32.gmra.mrb[0].mxu0 %v5013
        %v5015 = vpop.f32.mrb[0].mxu0
        %v5016 = vadd.f32 %v4905, %v5015
        %v5017 = vpop.f32.mrb[0].mxu0
        %5018 = vdwg.mxu0
        %5019 = vmatprep.subr.mxu0 0.0
        %v5020 = vand.u32 %v4634, 4294901760
        %5021 = vmatpush1.msra.mxu0 %v5020
        %5022 = vmatprep.subr.mxu0 0.0
        %v5023 = vand.u32 %v4635, 4294901760
        %5024 = vmatpush1.msra.mxu0 %v5023
        %5025 = vmatprep.subr.mxu0 0.0
        %v5026 = vand.u32 %v4636, 4294901760
        %5027 = vmatpush1.msra.mxu0 %v5026
        %5028 = vmatprep.subr.mxu0 0.0
        %v5029 = vand.u32 %v4637, 4294901760
        %5030 = vmatpush1.msra.mxu0 %v5029
        %5031 = vmatprep.subr.mxu0 0.0
        %v5032 = vand.u32 %v4638, 4294901760
        %5033 = vmatpush1.msra.mxu0 %v5032
        %5034 = vmatprep.subr.mxu0 0.0
        %v5035 = vand.u32 %v4639, 4294901760
        %5036 = vmatpush1.msra.mxu0 %v5035
        %5037 = vmatprep.subr.mxu0 0.0
        %v5038 = vand.u32 %v4640, 4294901760
        %5039 = vmatpush1.msra.mxu0 %v5038
        %5040 = vmatprep.subr.mxu0 0.0
        %v5041 = vand.u32 %v4641, 4294901760
        %5042 = vmatpush1.msra.mxu0 %v5041
        %5043 = vmatprep.subr.mxu0 0.0
        %v5044 = vand.u32 %v4642, 4294901760
        %5045 = vmatpush1.msra.mxu0 %v5044
        %5046 = vmatprep.subr.mxu0 0.0
        %v5047 = vand.u32 %v4643, 4294901760
        %5048 = vmatpush1.msra.mxu0 %v5047
        %5049 = vmatprep.subr.mxu0 0.0
        %v5050 = vand.u32 %v4644, 4294901760
        %5051 = vmatpush1.msra.mxu0 %v5050
        %5052 = vmatprep.subr.mxu0 0.0
        %v5053 = vand.u32 %v4645, 4294901760
        %5054 = vmatpush1.msra.mxu0 %v5053
        %5055 = vmatprep.subr.mxu0 0.0
        %v5056 = vand.u32 %v4646, 4294901760
        %5057 = vmatpush1.msra.mxu0 %v5056
        %5058 = vmatprep.subr.mxu0 0.0
        %v5059 = vand.u32 %v4647, 4294901760
        %5060 = vmatpush1.msra.mxu0 %v5059
        %5061 = vmatprep.subr.mxu0 0.0
        %v5062 = vand.u32 %v4648, 4294901760
        %5063 = vmatpush1.msra.mxu0 %v5062
        %5064 = vmatprep.subr.mxu0 0.0
        %v5065 = vand.u32 %v4649, 4294901760
        %5066 = vmatpush1.msra.mxu0 %v5065
        %5067 = vmatprep.subr.mxu0 0.0
        %5068 = vmatpush1.msra.mxu0 0.0
        %5069 = vmatprep.subr.mxu0 0.0
        %5070 = vmatpush1.msra.mxu0 0.0
        %5071 = vmatprep.subr.mxu0 0.0
        %5072 = vmatpush1.msra.mxu0 0.0
        %5073 = vmatprep.subr.mxu0 0.0
        %5074 = vmatpush1.msra.mxu0 0.0
        %5075 = vmatprep.subr.mxu0 0.0
        %5076 = vmatpush1.msra.mxu0 0.0
        %5077 = vmatprep.subr.mxu0 0.0
        %5078 = vmatpush1.msra.mxu0 0.0
        %5079 = vmatprep.subr.mxu0 0.0
        %5080 = vmatpush1.msra.mxu0 0.0
        %5081 = vmatprep.subr.mxu0 0.0
        %5082 = vmatpush1.msra.mxu0 0.0
        %5083 = vmatprep.subr.mxu0 0.0
        %5084 = vmatpush1.msra.mxu0 0.0
        %5085 = vmatprep.subr.mxu0 0.0
        %5086 = vmatpush1.msra.mxu0 0.0
        %5087 = vmatprep.subr.mxu0 0.0
        %5088 = vmatpush1.msra.mxu0 0.0
        %5089 = vmatprep.subr.mxu0 0.0
        %5090 = vmatpush1.msra.mxu0 0.0
        %5091 = vmatprep.subr.mxu0 0.0
        %5092 = vmatpush1.msra.mxu0 0.0
        %5093 = vmatprep.subr.mxu0 0.0
        %5094 = vmatpush1.msra.mxu0 0.0
        %5095 = vmatprep.subr.mxu0 0.0
        %5096 = vmatpush1.msra.mxu0 0.0
        %5097 = vmatprep.subr.mxu0 0.0
        %5098 = vmatpush1.msra.mxu0 0.0
        %5099 = vmatprep.mubr.f32.mxu0 0.0
        %v5100 = vand.u32 %v4629, 4294901760
        %v5101 = vsub.f32 %v4629, %v5100
        %v5102 = vand.u32 %v5101, 4294901760
        %5103 = vmatmul.mubr.f32.gmra.mrb[0].mxu0 %v5102
        %v5104 = vpop.f32.mrb[0].mxu0
        %v5105 = vadd.f32 %v5009, %v5104
        %v5106 = vpop.f32.mrb[0].mxu0
        %5107 = vmatprep.mubr.f32.mxu0 0.0
        %v5108 = vand.u32 %v4625, 4294901760
        %v5109 = vsub.f32 %v4625, %v5108
        %v5110 = vand.u32 %v5109, 4294901760
        %5111 = vmatmul.mubr.f32.gmra.mrb[0].mxu0 %v5110
        %v5112 = vpop.f32.mrb[0].mxu0
        %v5113 = vadd.f32 %v5016, %v5112
        %v5114 = vpop.f32.mrb[0].mxu0
        %5115 = vdwg.mxu0
        %5116 = vmatprep.subr.mxu0 0.0
        %v5117 = vand.u32 %v4634, 4294901760
        %v5118 = vsub.f32 %v4634, %v5117
        %v5119 = vand.u32 %v5118, 4294901760
        %5120 = vmatpush1.msra.mxu0 %v5119
        %5121 = vmatprep.subr.mxu0 0.0
        %v5122 = vand.u32 %v4635, 4294901760
        %v5123 = vsub.f32 %v4635, %v5122
        %v5124 = vand.u32 %v5123, 4294901760
        %5125 = vmatpush1.msra.mxu0 %v5124
        %5126 = vmatprep.subr.mxu0 0.0
        %v5127 = vand.u32 %v4636, 4294901760
        %v5128 = vsub.f32 %v4636, %v5127
        %v5129 = vand.u32 %v5128, 4294901760
        %5130 = vmatpush1.msra.mxu0 %v5129
        %5131 = vmatprep.subr.mxu0 0.0
        %v5132 = vand.u32 %v4637, 4294901760
        %v5133 = vsub.f32 %v4637, %v5132
        %v5134 = vand.u32 %v5133, 4294901760
        %5135 = vmatpush1.msra.mxu0 %v5134
        %5136 = vmatprep.subr.mxu0 0.0
        %v5137 = vand.u32 %v4638, 4294901760
        %v5138 = vsub.f32 %v4638, %v5137
        %v5139 = vand.u32 %v5138, 4294901760
        %5140 = vmatpush1.msra.mxu0 %v5139
        %5141 = vmatprep.subr.mxu0 0.0
        %v5142 = vand.u32 %v4639, 4294901760
        %v5143 = vsub.f32 %v4639, %v5142
        %v5144 = vand.u32 %v5143, 4294901760
        %5145 = vmatpush1.msra.mxu0 %v5144
        %5146 = vmatprep.subr.mxu0 0.0
        %v5147 = vand.u32 %v4640, 4294901760
        %v5148 = vsub.f32 %v4640, %v5147
        %v5149 = vand.u32 %v5148, 4294901760
        %5150 = vmatpush1.msra.mxu0 %v5149
        %5151 = vmatprep.subr.mxu0 0.0
        %v5152 = vand.u32 %v4641, 4294901760
        %v5153 = vsub.f32 %v4641, %v5152
        %v5154 = vand.u32 %v5153, 4294901760
        %5155 = vmatpush1.msra.mxu0 %v5154
        %5156 = vmatprep.subr.mxu0 0.0
        %v5157 = vand.u32 %v4642, 4294901760
        %v5158 = vsub.f32 %v4642, %v5157
        %v5159 = vand.u32 %v5158, 4294901760
        %5160 = vmatpush1.msra.mxu0 %v5159
        %5161 = vmatprep.subr.mxu0 0.0
        %v5162 = vand.u32 %v4643, 4294901760
        %v5163 = vsub.f32 %v4643, %v5162
        %v5164 = vand.u32 %v5163, 4294901760
        %5165 = vmatpush1.msra.mxu0 %v5164
        %5166 = vmatprep.subr.mxu0 0.0
        %v5167 = vand.u32 %v4644, 4294901760
        %v5168 = vsub.f32 %v4644, %v5167
        %v5169 = vand.u32 %v5168, 4294901760
        %5170 = vmatpush1.msra.mxu0 %v5169
        %5171 = vmatprep.subr.mxu0 0.0
        %v5172 = vand.u32 %v4645, 4294901760
        %v5173 = vsub.f32 %v4645, %v5172
        %v5174 = vand.u32 %v5173, 4294901760
        %5175 = vmatpush1.msra.mxu0 %v5174
        %5176 = vmatprep.subr.mxu0 0.0
        %v5177 = vand.u32 %v4646, 4294901760
        %v5178 = vsub.f32 %v4646, %v5177
        %v5179 = vand.u32 %v5178, 4294901760
        %5180 = vmatpush1.msra.mxu0 %v5179
        %5181 = vmatprep.subr.mxu0 0.0
        %v5182 = vand.u32 %v4647, 4294901760
        %v5183 = vsub.f32 %v4647, %v5182
        %v5184 = vand.u32 %v5183, 4294901760
        %5185 = vmatpush1.msra.mxu0 %v5184
        %5186 = vmatprep.subr.mxu0 0.0
        %v5187 = vand.u32 %v4648, 4294901760
        %v5188 = vsub.f32 %v4648, %v5187
        %v5189 = vand.u32 %v5188, 4294901760
        %5190 = vmatpush1.msra.mxu0 %v5189
        %5191 = vmatprep.subr.mxu0 0.0
        %v5192 = vand.u32 %v4649, 4294901760
        %v5193 = vsub.f32 %v4649, %v5192
        %v5194 = vand.u32 %v5193, 4294901760
        %5195 = vmatpush1.msra.mxu0 %v5194
        %5196 = vmatprep.subr.mxu0 0.0
        %5197 = vmatpush1.msra.mxu0 0.0
        %5198 = vmatprep.subr.mxu0 0.0
        %5199 = vmatpush1.msra.mxu0 0.0
        %5200 = vmatprep.subr.mxu0 0.0
        %5201 = vmatpush1.msra.mxu0 0.0
        %5202 = vmatprep.subr.mxu0 0.0
        %5203 = vmatpush1.msra.mxu0 0.0
        %5204 = vmatprep.subr.mxu0 0.0
        %5205 = vmatpush1.msra.mxu0 0.0
        %5206 = vmatprep.subr.mxu0 0.0
        %5207 = vmatpush1.msra.mxu0 0.0
        %5208 = vmatprep.subr.mxu0 0.0
        %5209 = vmatpush1.msra.mxu0 0.0
        %5210 = vmatprep.subr.mxu0 0.0
        %5211 = vmatpush1.msra.mxu0 0.0
        %5212 = vmatprep.subr.mxu0 0.0
        %5213 = vmatpush1.msra.mxu0 0.0
        %5214 = vmatprep.subr.mxu0 0.0
        %5215 = vmatpush1.msra.mxu0 0.0
        %5216 = vmatprep.subr.mxu0 0.0
        %5217 = vmatpush1.msra.mxu0 0.0
        %5218 = vmatprep.subr.mxu0 0.0
        %5219 = vmatpush1.msra.mxu0 0.0
        %5220 = vmatprep.subr.mxu0 0.0
        %5221 = vmatpush1.msra.mxu0 0.0
        %5222 = vmatprep.subr.mxu0 0.0
        %5223 = vmatpush1.msra.mxu0 0.0
        %5224 = vmatprep.subr.mxu0 0.0
        %5225 = vmatpush1.msra.mxu0 0.0
        %5226 = vmatprep.subr.mxu0 0.0
        %5227 = vmatpush1.msra.mxu0 0.0
        %5228 = vmatprep.mubr.f32.mxu0 0.0
        %v5229 = vand.u32 %v4629, 4294901760
        %5230 = vmatmul.mubr.f32.gmra.mrb[0].mxu0 %v5229
        %v5231 = vpop.f32.mrb[0].mxu0
        %v5232 = vadd.f32 %v5105, %v5231
        %v5233 = vpop.f32.mrb[0].mxu0
        %5234 = vmatprep.mubr.f32.mxu0 0.0
        %v5235 = vand.u32 %v4625, 4294901760
        %5236 = vmatmul.mubr.f32.gmra.mrb[0].mxu0 %v5235
        %v5237 = vpop.f32.mrb[0].mxu0
        %v5238 = vadd.f32 %v5113, %v5237
        %v5239 = vpop.f32.mrb[0].mxu0
        %5240 = vdwg.mxu0
        %5241 = vmatprep.subr.mxu0 0.0
        %v5242 = vand.u32 %v4634, 4294901760
        %5243 = vmatpush1.msra.mxu0 %v5242
        %5244 = vmatprep.subr.mxu0 0.0
        %v5245 = vand.u32 %v4635, 4294901760
        %5246 = vmatpush1.msra.mxu0 %v5245
        %5247 = vmatprep.subr.mxu0 0.0
        %v5248 = vand.u32 %v4636, 4294901760
        %5249 = vmatpush1.msra.mxu0 %v5248
        %5250 = vmatprep.subr.mxu0 0.0
        %v5251 = vand.u32 %v4637, 4294901760
        %5252 = vmatpush1.msra.mxu0 %v5251
        %5253 = vmatprep.subr.mxu0 0.0
        %v5254 = vand.u32 %v4638, 4294901760
        %5255 = vmatpush1.msra.mxu0 %v5254
        %5256 = vmatprep.subr.mxu0 0.0
        %v5257 = vand.u32 %v4639, 4294901760
        %5258 = vmatpush1.msra.mxu0 %v5257
        %5259 = vmatprep.subr.mxu0 0.0
        %v5260 = vand.u32 %v4640, 4294901760
        %5261 = vmatpush1.msra.mxu0 %v5260
        %5262 = vmatprep.subr.mxu0 0.0
        %v5263 = vand.u32 %v4641, 4294901760
        %5264 = vmatpush1.msra.mxu0 %v5263
        %5265 = vmatprep.subr.mxu0 0.0
        %v5266 = vand.u32 %v4642, 4294901760
        %5267 = vmatpush1.msra.mxu0 %v5266
        %5268 = vmatprep.subr.mxu0 0.0
        %v5269 = vand.u32 %v4643, 4294901760
        %5270 = vmatpush1.msra.mxu0 %v5269
        %5271 = vmatprep.subr.mxu0 0.0
        %v5272 = vand.u32 %v4644, 4294901760
        %5273 = vmatpush1.msra.mxu0 %v5272
        %5274 = vmatprep.subr.mxu0 0.0
        %v5275 = vand.u32 %v4645, 4294901760
        %5276 = vmatpush1.msra.mxu0 %v5275
        %5277 = vmatprep.subr.mxu0 0.0
        %v5278 = vand.u32 %v4646, 4294901760
        %5279 = vmatpush1.msra.mxu0 %v5278
        %5280 = vmatprep.subr.mxu0 0.0
        %v5281 = vand.u32 %v4647, 4294901760
        %5282 = vmatpush1.msra.mxu0 %v5281
        %5283 = vmatprep.subr.mxu0 0.0
        %v5284 = vand.u32 %v4648, 4294901760
        %5285 = vmatpush1.msra.mxu0 %v5284
        %5286 = vmatprep.subr.mxu0 0.0
        %v5287 = vand.u32 %v4649, 4294901760
        %5288 = vmatpush1.msra.mxu0 %v5287
        %5289 = vmatprep.subr.mxu0 0.0
        %5290 = vmatpush1.msra.mxu0 0.0
        %5291 = vmatprep.subr.mxu0 0.0
        %5292 = vmatpush1.msra.mxu0 0.0
        %5293 = vmatprep.subr.mxu0 0.0
        %5294 = vmatpush1.msra.mxu0 0.0
        %5295 = vmatprep.subr.mxu0 0.0
        %5296 = vmatpush1.msra.mxu0 0.0
        %5297 = vmatprep.subr.mxu0 0.0
        %5298 = vmatpush1.msra.mxu0 0.0
        %5299 = vmatprep.subr.mxu0 0.0
        %5300 = vmatpush1.msra.mxu0 0.0
        %5301 = vmatprep.subr.mxu0 0.0
        %5302 = vmatpush1.msra.mxu0 0.0
        %5303 = vmatprep.subr.mxu0 0.0
        %5304 = vmatpush1.msra.mxu0 0.0
        %5305 = vmatprep.subr.mxu0 0.0
        %5306 = vmatpush1.msra.mxu0 0.0
        %5307 = vmatprep.subr.mxu0 0.0
        %5308 = vmatpush1.msra.mxu0 0.0
        %5309 = vmatprep.subr.mxu0 0.0
        %5310 = vmatpush1.msra.mxu0 0.0
        %5311 = vmatprep.subr.mxu0 0.0
        %5312 = vmatpush1.msra.mxu0 0.0
        %5313 = vmatprep.subr.mxu0 0.0
        %5314 = vmatpush1.msra.mxu0 0.0
        %5315 = vmatprep.subr.mxu0 0.0
        %5316 = vmatpush1.msra.mxu0 0.0
        %5317 = vmatprep.subr.mxu0 0.0
        %5318 = vmatpush1.msra.mxu0 0.0
        %5319 = vmatprep.subr.mxu0 0.0
        %5320 = vmatpush1.msra.mxu0 0.0
        %5321 = vmatprep.mubr.f32.mxu0 0.0
        %v5322 = vand.u32 %v4629, 4294901760
        %5323 = vmatmul.mubr.f32.gmra.mrb[0].mxu0 %v5322
        %v5324 = vpop.f32.mrb[0].mxu0
        %v5325 = vadd.f32 %v5232, %v5324
        %v5326 = vpop.f32.mrb[0].mxu0
        %5327 = vmatprep.mubr.f32.mxu0 0.0
        %v5328 = vand.u32 %v4625, 4294901760
        %5329 = vmatmul.mubr.f32.gmra.mrb[0].mxu0 %v5328
        %v5330 = vpop.f32.mrb[0].mxu0
        %v5331 = vadd.f32 %v5238, %v5330
        %v5332 = vpop.f32.mrb[0].mxu0
        %5333 = vdwg.mxu0
        %v5335 = vlaneseq
        %v5336 = vshrl.u32 %v5335, 7
        %v5337 = vsub.s32 0, %v5336
        %v5338 = vrot.slane %v4632, %v5337
        %v5340 = vadd.f32 %v5338, %v5325
        %v5341 = vadd.f32 %v5338, %v5331
        %s5342 = scalar_lea.vmem [#allocation5], 896
        %v5343 = vld [vmem:[%s5342] sm:$0xff]
        %v5344 = vld [vmem:[%s5342 + $0x8] sm:$0xff]
        %v5345 = vld [vmem:[%s5342 + $0x10] sm:$0xff]
        %v5346 = vld [vmem:[%s5342 + $0x18] sm:$0xff]
        %v5347 = vld [vmem:[%s5342 + $0x20] sm:$0xff]
        %v5348 = vld [vmem:[%s5342 + $0x28] sm:$0xff]
        %v5349 = vld [vmem:[%s5342 + $0x30] sm:$0xff]
        %v5350 = vld [vmem:[%s5342 + $0x38] sm:$0xff]
        %v5351 = vld [vmem:[%s5342 + $0x40] sm:$0xff]
        %v5352 = vld [vmem:[%s5342 + $0x48] sm:$0xff]
        %v5353 = vld [vmem:[%s5342 + $0x50] sm:$0xff]
        %v5354 = vld [vmem:[%s5342 + $0x58] sm:$0xff]
        %v5355 = vld [vmem:[%s5342 + $0x60] sm:$0xff]
        %v5356 = vld [vmem:[%s5342 + $0x68] sm:$0xff]
        %v5357 = vld [vmem:[%s5342 + $0x70] sm:$0xff]
        %v5358 = vld [vmem:[%s5342 + $0x78] sm:$0xff]
        %v5361 = vrot.slane %v4629, 1
        %v5362 = vrot.slane %v4625, 1
        %v5363 = vsel %vm945, %v5361, %v5362
        %v5364 = vrot.slane %v4630, 1
        %v5365 = vsel %vm945, %v5362, %v5364
        %5368 = vmatprep.subr.mxu0 0.0
        %v5369 = vand.u32 %v5343, 4294901760
        %5370 = vmatpush1.msra.mxu0 %v5369
        %5371 = vmatprep.subr.mxu0 0.0
        %v5372 = vand.u32 %v5344, 4294901760
        %5373 = vmatpush1.msra.mxu0 %v5372
        %5374 = vmatprep.subr.mxu0 0.0
        %v5375 = vand.u32 %v5345, 4294901760
        %5376 = vmatpush1.msra.mxu0 %v5375
        %5377 = vmatprep.subr.mxu0 0.0
        %v5378 = vand.u32 %v5346, 4294901760
        %5379 = vmatpush1.msra.mxu0 %v5378
        %5380 = vmatprep.subr.mxu0 0.0
        %v5381 = vand.u32 %v5347, 4294901760
        %5382 = vmatpush1.msra.mxu0 %v5381
        %5383 = vmatprep.subr.mxu0 0.0
        %v5384 = vand.u32 %v5348, 4294901760
        %5385 = vmatpush1.msra.mxu0 %v5384
        %5386 = vmatprep.subr.mxu0 0.0
        %v5387 = vand.u32 %v5349, 4294901760
        %5388 = vmatpush1.msra.mxu0 %v5387
        %5389 = vmatprep.subr.mxu0 0.0
        %v5390 = vand.u32 %v5350, 4294901760
        %5391 = vmatpush1.msra.mxu0 %v5390
        %5392 = vmatprep.subr.mxu0 0.0
        %v5393 = vand.u32 %v5351, 4294901760
        %5394 = vmatpush1.msra.mxu0 %v5393
        %5395 = vmatprep.subr.mxu0 0.0
        %v5396 = vand.u32 %v5352, 4294901760
        %5397 = vmatpush1.msra.mxu0 %v5396
        %5398 = vmatprep.subr.mxu0 0.0
        %v5399 = vand.u32 %v5353, 4294901760
        %5400 = vmatpush1.msra.mxu0 %v5399
        %5401 = vmatprep.subr.mxu0 0.0
        %v5402 = vand.u32 %v5354, 4294901760
        %5403 = vmatpush1.msra.mxu0 %v5402
        %5404 = vmatprep.subr.mxu0 0.0
        %v5405 = vand.u32 %v5355, 4294901760
        %5406 = vmatpush1.msra.mxu0 %v5405
        %5407 = vmatprep.subr.mxu0 0.0
        %v5408 = vand.u32 %v5356, 4294901760
        %5409 = vmatpush1.msra.mxu0 %v5408
        %5410 = vmatprep.subr.mxu0 0.0
        %v5411 = vand.u32 %v5357, 4294901760
        %5412 = vmatpush1.msra.mxu0 %v5411
        %5413 = vmatprep.subr.mxu0 0.0
        %v5414 = vand.u32 %v5358, 4294901760
        %5415 = vmatpush1.msra.mxu0 %v5414
        %5416 = vmatprep.subr.mxu0 0.0
        %5417 = vmatpush1.msra.mxu0 0.0
        %5418 = vmatprep.subr.mxu0 0.0
        %5419 = vmatpush1.msra.mxu0 0.0
        %5420 = vmatprep.subr.mxu0 0.0
        %5421 = vmatpush1.msra.mxu0 0.0
        %5422 = vmatprep.subr.mxu0 0.0
        %5423 = vmatpush1.msra.mxu0 0.0
        %5424 = vmatprep.subr.mxu0 0.0
        %5425 = vmatpush1.msra.mxu0 0.0
        %5426 = vmatprep.subr.mxu0 0.0
        %5427 = vmatpush1.msra.mxu0 0.0
        %5428 = vmatprep.subr.mxu0 0.0
        %5429 = vmatpush1.msra.mxu0 0.0
        %5430 = vmatprep.subr.mxu0 0.0
        %5431 = vmatpush1.msra.mxu0 0.0
        %5432 = vmatprep.subr.mxu0 0.0
        %5433 = vmatpush1.msra.mxu0 0.0
        %5434 = vmatprep.subr.mxu0 0.0
        %5435 = vmatpush1.msra.mxu0 0.0
        %5436 = vmatprep.subr.mxu0 0.0
        %5437 = vmatpush1.msra.mxu0 0.0
        %5438 = vmatprep.subr.mxu0 0.0
        %5439 = vmatpush1.msra.mxu0 0.0
        %5440 = vmatprep.subr.mxu0 0.0
        %5441 = vmatpush1.msra.mxu0 0.0
        %5442 = vmatprep.subr.mxu0 0.0
        %5443 = vmatpush1.msra.mxu0 0.0
        %5444 = vmatprep.subr.mxu0 0.0
        %5445 = vmatpush1.msra.mxu0 0.0
        %5446 = vmatprep.subr.mxu0 0.0
        %5447 = vmatpush1.msra.mxu0 0.0
        %5448 = vmatprep.mubr.f32.mxu0 0.0
        %v5449 = vand.u32 %v5363, 4294901760
        %v5450 = vsub.f32 %v5363, %v5449
        %v5451 = vand.u32 %v5450, 4294901760
        %v5452 = vsub.f32 %v5450, %v5451
        %v5453 = vand.u32 %v5452, 4294901760
        %5454 = vmatmul.mubr.f32.gmra.mrb[0].mxu0 %v5453
        %v5455 = vpop.f32.mrb[0].mxu0
        %v5456 = vadd.f32 0.0, %v5455
        %v5457 = vpop.f32.mrb[0].mxu0
        %5458 = vmatprep.mubr.f32.mxu0 0.0
        %v5459 = vand.u32 %v5365, 4294901760
        %v5460 = vsub.f32 %v5365, %v5459
        %v5461 = vand.u32 %v5460, 4294901760
        %v5462 = vsub.f32 %v5460, %v5461
        %v5463 = vand.u32 %v5462, 4294901760
        %5464 = vmatmul.mubr.f32.gmra.mrb[0].mxu0 %v5463
        %v5465 = vpop.f32.mrb[0].mxu0
        %v5466 = vadd.f32 0.0, %v5465
        %v5467 = vpop.f32.mrb[0].mxu0
        %5468 = vdwg.mxu0
        %5469 = vmatprep.subr.mxu0 0.0
        %v5470 = vand.u32 %v5343, 4294901760
        %v5471 = vsub.f32 %v5343, %v5470
        %v5472 = vand.u32 %v5471, 4294901760
        %v5473 = vsub.f32 %v5471, %v5472
        %v5474 = vand.u32 %v5473, 4294901760
        %5475 = vmatpush1.msra.mxu0 %v5474
        %5476 = vmatprep.subr.mxu0 0.0
        %v5477 = vand.u32 %v5344, 4294901760
        %v5478 = vsub.f32 %v5344, %v5477
        %v5479 = vand.u32 %v5478, 4294901760
        %v5480 = vsub.f32 %v5478, %v5479
        %v5481 = vand.u32 %v5480, 4294901760
        %5482 = vmatpush1.msra.mxu0 %v5481
        %5483 = vmatprep.subr.mxu0 0.0
        %v5484 = vand.u32 %v5345, 4294901760
        %v5485 = vsub.f32 %v5345, %v5484
        %v5486 = vand.u32 %v5485, 4294901760
        %v5487 = vsub.f32 %v5485, %v5486
        %v5488 = vand.u32 %v5487, 4294901760
        %5489 = vmatpush1.msra.mxu0 %v5488
        %5490 = vmatprep.subr.mxu0 0.0
        %v5491 = vand.u32 %v5346, 4294901760
        %v5492 = vsub.f32 %v5346, %v5491
        %v5493 = vand.u32 %v5492, 4294901760
        %v5494 = vsub.f32 %v5492, %v5493
        %v5495 = vand.u32 %v5494, 4294901760
        %5496 = vmatpush1.msra.mxu0 %v5495
        %5497 = vmatprep.subr.mxu0 0.0
        %v5498 = vand.u32 %v5347, 4294901760
        %v5499 = vsub.f32 %v5347, %v5498
        %v5500 = vand.u32 %v5499, 4294901760
        %v5501 = vsub.f32 %v5499, %v5500
        %v5502 = vand.u32 %v5501, 4294901760
        %5503 = vmatpush1.msra.mxu0 %v5502
        %5504 = vmatprep.subr.mxu0 0.0
        %v5505 = vand.u32 %v5348, 4294901760
        %v5506 = vsub.f32 %v5348, %v5505
        %v5507 = vand.u32 %v5506, 4294901760
        %v5508 = vsub.f32 %v5506, %v5507
        %v5509 = vand.u32 %v5508, 4294901760
        %5510 = vmatpush1.msra.mxu0 %v5509
        %5511 = vmatprep.subr.mxu0 0.0
        %v5512 = vand.u32 %v5349, 4294901760
        %v5513 = vsub.f32 %v5349, %v5512
        %v5514 = vand.u32 %v5513, 4294901760
        %v5515 = vsub.f32 %v5513, %v5514
        %v5516 = vand.u32 %v5515, 4294901760
        %5517 = vmatpush1.msra.mxu0 %v5516
        %5518 = vmatprep.subr.mxu0 0.0
        %v5519 = vand.u32 %v5350, 4294901760
        %v5520 = vsub.f32 %v5350, %v5519
        %v5521 = vand.u32 %v5520, 4294901760
        %v5522 = vsub.f32 %v5520, %v5521
        %v5523 = vand.u32 %v5522, 4294901760
        %5524 = vmatpush1.msra.mxu0 %v5523
        %5525 = vmatprep.subr.mxu0 0.0
        %v5526 = vand.u32 %v5351, 4294901760
        %v5527 = vsub.f32 %v5351, %v5526
        %v5528 = vand.u32 %v5527, 4294901760
        %v5529 = vsub.f32 %v5527, %v5528
        %v5530 = vand.u32 %v5529, 4294901760
        %5531 = vmatpush1.msra.mxu0 %v5530
        %5532 = vmatprep.subr.mxu0 0.0
        %v5533 = vand.u32 %v5352, 4294901760
        %v5534 = vsub.f32 %v5352, %v5533
        %v5535 = vand.u32 %v5534, 4294901760
        %v5536 = vsub.f32 %v5534, %v5535
        %v5537 = vand.u32 %v5536, 4294901760
        %5538 = vmatpush1.msra.mxu0 %v5537
        %5539 = vmatprep.subr.mxu0 0.0
        %v5540 = vand.u32 %v5353, 4294901760
        %v5541 = vsub.f32 %v5353, %v5540
        %v5542 = vand.u32 %v5541, 4294901760
        %v5543 = vsub.f32 %v5541, %v5542
        %v5544 = vand.u32 %v5543, 4294901760
        %5545 = vmatpush1.msra.mxu0 %v5544
        %5546 = vmatprep.subr.mxu0 0.0
        %v5547 = vand.u32 %v5354, 4294901760
        %v5548 = vsub.f32 %v5354, %v5547
        %v5549 = vand.u32 %v5548, 4294901760
        %v5550 = vsub.f32 %v5548, %v5549
        %v5551 = vand.u32 %v5550, 4294901760
        %5552 = vmatpush1.msra.mxu0 %v5551
        %5553 = vmatprep.subr.mxu0 0.0
        %v5554 = vand.u32 %v5355, 4294901760
        %v5555 = vsub.f32 %v5355, %v5554
        %v5556 = vand.u32 %v5555, 4294901760
        %v5557 = vsub.f32 %v5555, %v5556
        %v5558 = vand.u32 %v5557, 4294901760
        %5559 = vmatpush1.msra.mxu0 %v5558
        %5560 = vmatprep.subr.mxu0 0.0
        %v5561 = vand.u32 %v5356, 4294901760
        %v5562 = vsub.f32 %v5356, %v5561
        %v5563 = vand.u32 %v5562, 4294901760
        %v5564 = vsub.f32 %v5562, %v5563
        %v5565 = vand.u32 %v5564, 4294901760
        %5566 = vmatpush1.msra.mxu0 %v5565
        %5567 = vmatprep.subr.mxu0 0.0
        %v5568 = vand.u32 %v5357, 4294901760
        %v5569 = vsub.f32 %v5357, %v5568
        %v5570 = vand.u32 %v5569, 4294901760
        %v5571 = vsub.f32 %v5569, %v5570
        %v5572 = vand.u32 %v5571, 4294901760
        %5573 = vmatpush1.msra.mxu0 %v5572
        %5574 = vmatprep.subr.mxu0 0.0
        %v5575 = vand.u32 %v5358, 4294901760
        %v5576 = vsub.f32 %v5358, %v5575
        %v5577 = vand.u32 %v5576, 4294901760
        %v5578 = vsub.f32 %v5576, %v5577
        %v5579 = vand.u32 %v5578, 4294901760
        %5580 = vmatpush1.msra.mxu0 %v5579
        %5581 = vmatprep.subr.mxu0 0.0
        %5582 = vmatpush1.msra.mxu0 0.0
        %5583 = vmatprep.subr.mxu0 0.0
        %5584 = vmatpush1.msra.mxu0 0.0
        %5585 = vmatprep.subr.mxu0 0.0
        %5586 = vmatpush1.msra.mxu0 0.0
        %5587 = vmatprep.subr.mxu0 0.0
        %5588 = vmatpush1.msra.mxu0 0.0
        %5589 = vmatprep.subr.mxu0 0.0
        %5590 = vmatpush1.msra.mxu0 0.0
        %5591 = vmatprep.subr.mxu0 0.0
        %5592 = vmatpush1.msra.mxu0 0.0
        %5593 = vmatprep.subr.mxu0 0.0
        %5594 = vmatpush1.msra.mxu0 0.0
        %5595 = vmatprep.subr.mxu0 0.0
        %5596 = vmatpush1.msra.mxu0 0.0
        %5597 = vmatprep.subr.mxu0 0.0
        %5598 = vmatpush1.msra.mxu0 0.0
        %5599 = vmatprep.subr.mxu0 0.0
        %5600 = vmatpush1.msra.mxu0 0.0
        %5601 = vmatprep.subr.mxu0 0.0
        %5602 = vmatpush1.msra.mxu0 0.0
        %5603 = vmatprep.subr.mxu0 0.0
        %5604 = vmatpush1.msra.mxu0 0.0
        %5605 = vmatprep.subr.mxu0 0.0
        %5606 = vmatpush1.msra.mxu0 0.0
        %5607 = vmatprep.subr.mxu0 0.0
        %5608 = vmatpush1.msra.mxu0 0.0
        %5609 = vmatprep.subr.mxu0 0.0
        %5610 = vmatpush1.msra.mxu0 0.0
        %5611 = vmatprep.subr.mxu0 0.0
        %5612 = vmatpush1.msra.mxu0 0.0
        %5613 = vmatprep.mubr.f32.mxu0 0.0
        %v5614 = vand.u32 %v5363, 4294901760
        %5615 = vmatmul.mubr.f32.gmra.mrb[0].mxu0 %v5614
        %v5616 = vpop.f32.mrb[0].mxu0
        %v5617 = vadd.f32 %v5456, %v5616
        %v5618 = vpop.f32.mrb[0].mxu0
        %5619 = vmatprep.mubr.f32.mxu0 0.0
        %v5620 = vand.u32 %v5365, 4294901760
        %5621 = vmatmul.mubr.f32.gmra.mrb[0].mxu0 %v5620
        %v5622 = vpop.f32.mrb[0].mxu0
        %v5623 = vadd.f32 %v5466, %v5622
        %v5624 = vpop.f32.mrb[0].mxu0
        %5625 = vdwg.mxu0
        %5626 = vmatprep.subr.mxu0 0.0
        %v5627 = vand.u32 %v5343, 4294901760
        %v5628 = vsub.f32 %v5343, %v5627
        %5629 = vmatpush1.msra.mxu0 %v5628
        %5630 = vmatprep.subr.mxu0 0.0
        %v5631 = vand.u32 %v5344, 4294901760
        %v5632 = vsub.f32 %v5344, %v5631
        %5633 = vmatpush1.msra.mxu0 %v5632
        %5634 = vmatprep.subr.mxu0 0.0
        %v5635 = vand.u32 %v5345, 4294901760
        %v5636 = vsub.f32 %v5345, %v5635
        %5637 = vmatpush1.msra.mxu0 %v5636
        %5638 = vmatprep.subr.mxu0 0.0
        %v5639 = vand.u32 %v5346, 4294901760
        %v5640 = vsub.f32 %v5346, %v5639
        %5641 = vmatpush1.msra.mxu0 %v5640
        %5642 = vmatprep.subr.mxu0 0.0
        %v5643 = vand.u32 %v5347, 4294901760
        %v5644 = vsub.f32 %v5347, %v5643
        %5645 = vmatpush1.msra.mxu0 %v5644
        %5646 = vmatprep.subr.mxu0 0.0
        %v5647 = vand.u32 %v5348, 4294901760
        %v5648 = vsub.f32 %v5348, %v5647
        %5649 = vmatpush1.msra.mxu0 %v5648
        %5650 = vmatprep.subr.mxu0 0.0
        %v5651 = vand.u32 %v5349, 4294901760
        %v5652 = vsub.f32 %v5349, %v5651
        %5653 = vmatpush1.msra.mxu0 %v5652
        %5654 = vmatprep.subr.mxu0 0.0
        %v5655 = vand.u32 %v5350, 4294901760
        %v5656 = vsub.f32 %v5350, %v5655
        %5657 = vmatpush1.msra.mxu0 %v5656
        %5658 = vmatprep.subr.mxu0 0.0
        %v5659 = vand.u32 %v5351, 4294901760
        %v5660 = vsub.f32 %v5351, %v5659
        %5661 = vmatpush1.msra.mxu0 %v5660
        %5662 = vmatprep.subr.mxu0 0.0
        %v5663 = vand.u32 %v5352, 4294901760
        %v5664 = vsub.f32 %v5352, %v5663
        %5665 = vmatpush1.msra.mxu0 %v5664
        %5666 = vmatprep.subr.mxu0 0.0
        %v5667 = vand.u32 %v5353, 4294901760
        %v5668 = vsub.f32 %v5353, %v5667
        %5669 = vmatpush1.msra.mxu0 %v5668
        %5670 = vmatprep.subr.mxu0 0.0
        %v5671 = vand.u32 %v5354, 4294901760
        %v5672 = vsub.f32 %v5354, %v5671
        %5673 = vmatpush1.msra.mxu0 %v5672
        %5674 = vmatprep.subr.mxu0 0.0
        %v5675 = vand.u32 %v5355, 4294901760
        %v5676 = vsub.f32 %v5355, %v5675
        %5677 = vmatpush1.msra.mxu0 %v5676
        %5678 = vmatprep.subr.mxu0 0.0
        %v5679 = vand.u32 %v5356, 4294901760
        %v5680 = vsub.f32 %v5356, %v5679
        %5681 = vmatpush1.msra.mxu0 %v5680
        %5682 = vmatprep.subr.mxu0 0.0
        %v5683 = vand.u32 %v5357, 4294901760
        %v5684 = vsub.f32 %v5357, %v5683
        %5685 = vmatpush1.msra.mxu0 %v5684
        %5686 = vmatprep.subr.mxu0 0.0
        %v5687 = vand.u32 %v5358, 4294901760
        %v5688 = vsub.f32 %v5358, %v5687
        %5689 = vmatpush1.msra.mxu0 %v5688
        %5690 = vmatprep.subr.mxu0 0.0
        %5691 = vmatpush1.msra.mxu0 0.0
        %5692 = vmatprep.subr.mxu0 0.0
        %5693 = vmatpush1.msra.mxu0 0.0
        %5694 = vmatprep.subr.mxu0 0.0
        %5695 = vmatpush1.msra.mxu0 0.0
        %5696 = vmatprep.subr.mxu0 0.0
        %5697 = vmatpush1.msra.mxu0 0.0
        %5698 = vmatprep.subr.mxu0 0.0
        %5699 = vmatpush1.msra.mxu0 0.0
        %5700 = vmatprep.subr.mxu0 0.0
        %5701 = vmatpush1.msra.mxu0 0.0
        %5702 = vmatprep.subr.mxu0 0.0
        %5703 = vmatpush1.msra.mxu0 0.0
        %5704 = vmatprep.subr.mxu0 0.0
        %5705 = vmatpush1.msra.mxu0 0.0
        %5706 = vmatprep.subr.mxu0 0.0
        %5707 = vmatpush1.msra.mxu0 0.0
        %5708 = vmatprep.subr.mxu0 0.0
        %5709 = vmatpush1.msra.mxu0 0.0
        %5710 = vmatprep.subr.mxu0 0.0
        %5711 = vmatpush1.msra.mxu0 0.0
        %5712 = vmatprep.subr.mxu0 0.0
        %5713 = vmatpush1.msra.mxu0 0.0
        %5714 = vmatprep.subr.mxu0 0.0
        %5715 = vmatpush1.msra.mxu0 0.0
        %5716 = vmatprep.subr.mxu0 0.0
        %5717 = vmatpush1.msra.mxu0 0.0
        %5718 = vmatprep.subr.mxu0 0.0
        %5719 = vmatpush1.msra.mxu0 0.0
        %5720 = vmatprep.subr.mxu0 0.0
        %5721 = vmatpush1.msra.mxu0 0.0
        %5722 = vmatprep.mubr.f32.mxu0 0.0
        %v5723 = vand.u32 %v5363, 4294901760
        %v5724 = vsub.f32 %v5363, %v5723
        %5725 = vmatmul.mubr.f32.gmra.mrb[0].mxu0 %v5724
        %v5726 = vpop.f32.mrb[0].mxu0
        %v5727 = vadd.f32 %v5617, %v5726
        %v5728 = vpop.f32.mrb[0].mxu0
        %5729 = vmatprep.mubr.f32.mxu0 0.0
        %v5730 = vand.u32 %v5365, 4294901760
        %v5731 = vsub.f32 %v5365, %v5730
        %5732 = vmatmul.mubr.f32.gmra.mrb[0].mxu0 %v5731
        %v5733 = vpop.f32.mrb[0].mxu0
        %v5734 = vadd.f32 %v5623, %v5733
        %v5735 = vpop.f32.mrb[0].mxu0
        %5736 = vdwg.mxu0
        %5737 = vmatprep.subr.mxu0 0.0
        %v5738 = vand.u32 %v5343, 4294901760
        %5739 = vmatpush1.msra.mxu0 %v5738
        %5740 = vmatprep.subr.mxu0 0.0
        %v5741 = vand.u32 %v5344, 4294901760
        %5742 = vmatpush1.msra.mxu0 %v5741
        %5743 = vmatprep.subr.mxu0 0.0
        %v5744 = vand.u32 %v5345, 4294901760
        %5745 = vmatpush1.msra.mxu0 %v5744
        %5746 = vmatprep.subr.mxu0 0.0
        %v5747 = vand.u32 %v5346, 4294901760
        %5748 = vmatpush1.msra.mxu0 %v5747
        %5749 = vmatprep.subr.mxu0 0.0
        %v5750 = vand.u32 %v5347, 4294901760
        %5751 = vmatpush1.msra.mxu0 %v5750
        %5752 = vmatprep.subr.mxu0 0.0
        %v5753 = vand.u32 %v5348, 4294901760
        %5754 = vmatpush1.msra.mxu0 %v5753
        %5755 = vmatprep.subr.mxu0 0.0
        %v5756 = vand.u32 %v5349, 4294901760
        %5757 = vmatpush1.msra.mxu0 %v5756
        %5758 = vmatprep.subr.mxu0 0.0
        %v5759 = vand.u32 %v5350, 4294901760
        %5760 = vmatpush1.msra.mxu0 %v5759
        %5761 = vmatprep.subr.mxu0 0.0
        %v5762 = vand.u32 %v5351, 4294901760
        %5763 = vmatpush1.msra.mxu0 %v5762
        %5764 = vmatprep.subr.mxu0 0.0
        %v5765 = vand.u32 %v5352, 4294901760
        %5766 = vmatpush1.msra.mxu0 %v5765
        %5767 = vmatprep.subr.mxu0 0.0
        %v5768 = vand.u32 %v5353, 4294901760
        %5769 = vmatpush1.msra.mxu0 %v5768
        %5770 = vmatprep.subr.mxu0 0.0
        %v5771 = vand.u32 %v5354, 4294901760
        %5772 = vmatpush1.msra.mxu0 %v5771
        %5773 = vmatprep.subr.mxu0 0.0
        %v5774 = vand.u32 %v5355, 4294901760
        %5775 = vmatpush1.msra.mxu0 %v5774
        %5776 = vmatprep.subr.mxu0 0.0
        %v5777 = vand.u32 %v5356, 4294901760
        %5778 = vmatpush1.msra.mxu0 %v5777
        %5779 = vmatprep.subr.mxu0 0.0
        %v5780 = vand.u32 %v5357, 4294901760
        %5781 = vmatpush1.msra.mxu0 %v5780
        %5782 = vmatprep.subr.mxu0 0.0
        %v5783 = vand.u32 %v5358, 4294901760
        %5784 = vmatpush1.msra.mxu0 %v5783
        %5785 = vmatprep.subr.mxu0 0.0
        %5786 = vmatpush1.msra.mxu0 0.0
        %5787 = vmatprep.subr.mxu0 0.0
        %5788 = vmatpush1.msra.mxu0 0.0
        %5789 = vmatprep.subr.mxu0 0.0
        %5790 = vmatpush1.msra.mxu0 0.0
        %5791 = vmatprep.subr.mxu0 0.0
        %5792 = vmatpush1.msra.mxu0 0.0
        %5793 = vmatprep.subr.mxu0 0.0
        %5794 = vmatpush1.msra.mxu0 0.0
        %5795 = vmatprep.subr.mxu0 0.0
        %5796 = vmatpush1.msra.mxu0 0.0
        %5797 = vmatprep.subr.mxu0 0.0
        %5798 = vmatpush1.msra.mxu0 0.0
        %5799 = vmatprep.subr.mxu0 0.0
        %5800 = vmatpush1.msra.mxu0 0.0
        %5801 = vmatprep.subr.mxu0 0.0
        %5802 = vmatpush1.msra.mxu0 0.0
        %5803 = vmatprep.subr.mxu0 0.0
        %5804 = vmatpush1.msra.mxu0 0.0
        %5805 = vmatprep.subr.mxu0 0.0
        %5806 = vmatpush1.msra.mxu0 0.0
        %5807 = vmatprep.subr.mxu0 0.0
        %5808 = vmatpush1.msra.mxu0 0.0
        %5809 = vmatprep.subr.mxu0 0.0
        %5810 = vmatpush1.msra.mxu0 0.0
        %5811 = vmatprep.subr.mxu0 0.0
        %5812 = vmatpush1.msra.mxu0 0.0
        %5813 = vmatprep.subr.mxu0 0.0
        %5814 = vmatpush1.msra.mxu0 0.0
        %5815 = vmatprep.subr.mxu0 0.0
        %5816 = vmatpush1.msra.mxu0 0.0
        %5817 = vmatprep.mubr.f32.mxu0 0.0
        %v5818 = vand.u32 %v5363, 4294901760
        %v5819 = vsub.f32 %v5363, %v5818
        %v5820 = vand.u32 %v5819, 4294901760
        %5821 = vmatmul.mubr.f32.gmra.mrb[0].mxu0 %v5820
        %v5822 = vpop.f32.mrb[0].mxu0
        %v5823 = vadd.f32 %v5727, %v5822
        %v5824 = vpop.f32.mrb[0].mxu0
        %5825 = vmatprep.mubr.f32.mxu0 0.0
        %v5826 = vand.u32 %v5365, 4294901760
        %v5827 = vsub.f32 %v5365, %v5826
        %v5828 = vand.u32 %v5827, 4294901760
        %5829 = vmatmul.mubr.f32.gmra.mrb[0].mxu0 %v5828
        %v5830 = vpop.f32.mrb[0].mxu0
        %v5831 = vadd.f32 %v5734, %v5830
        %v5832 = vpop.f32.mrb[0].mxu0
        %5833 = vdwg.mxu0
        %5834 = vmatprep.subr.mxu0 0.0
        %v5835 = vand.u32 %v5343, 4294901760
        %v5836 = vsub.f32 %v5343, %v5835
        %v5837 = vand.u32 %v5836, 4294901760
        %5838 = vmatpush1.msra.mxu0 %v5837
        %5839 = vmatprep.subr.mxu0 0.0
        %v5840 = vand.u32 %v5344, 4294901760
        %v5841 = vsub.f32 %v5344, %v5840
        %v5842 = vand.u32 %v5841, 4294901760
        %5843 = vmatpush1.msra.mxu0 %v5842
        %5844 = vmatprep.subr.mxu0 0.0
        %v5845 = vand.u32 %v5345, 4294901760
        %v5846 = vsub.f32 %v5345, %v5845
        %v5847 = vand.u32 %v5846, 4294901760
        %5848 = vmatpush1.msra.mxu0 %v5847
        %5849 = vmatprep.subr.mxu0 0.0
        %v5850 = vand.u32 %v5346, 4294901760
        %v5851 = vsub.f32 %v5346, %v5850
        %v5852 = vand.u32 %v5851, 4294901760
        %5853 = vmatpush1.msra.mxu0 %v5852
        %5854 = vmatprep.subr.mxu0 0.0
        %v5855 = vand.u32 %v5347, 4294901760
        %v5856 = vsub.f32 %v5347, %v5855
        %v5857 = vand.u32 %v5856, 4294901760
        %5858 = vmatpush1.msra.mxu0 %v5857
        %5859 = vmatprep.subr.mxu0 0.0
        %v5860 = vand.u32 %v5348, 4294901760
        %v5861 = vsub.f32 %v5348, %v5860
        %v5862 = vand.u32 %v5861, 4294901760
        %5863 = vmatpush1.msra.mxu0 %v5862
        %5864 = vmatprep.subr.mxu0 0.0
        %v5865 = vand.u32 %v5349, 4294901760
        %v5866 = vsub.f32 %v5349, %v5865
        %v5867 = vand.u32 %v5866, 4294901760
        %5868 = vmatpush1.msra.mxu0 %v5867
        %5869 = vmatprep.subr.mxu0 0.0
        %v5870 = vand.u32 %v5350, 4294901760
        %v5871 = vsub.f32 %v5350, %v5870
        %v5872 = vand.u32 %v5871, 4294901760
        %5873 = vmatpush1.msra.mxu0 %v5872
        %5874 = vmatprep.subr.mxu0 0.0
        %v5875 = vand.u32 %v5351, 4294901760
        %v5876 = vsub.f32 %v5351, %v5875
        %v5877 = vand.u32 %v5876, 4294901760
        %5878 = vmatpush1.msra.mxu0 %v5877
        %5879 = vmatprep.subr.mxu0 0.0
        %v5880 = vand.u32 %v5352, 4294901760
        %v5881 = vsub.f32 %v5352, %v5880
        %v5882 = vand.u32 %v5881, 4294901760
        %5883 = vmatpush1.msra.mxu0 %v5882
        %5884 = vmatprep.subr.mxu0 0.0
        %v5885 = vand.u32 %v5353, 4294901760
        %v5886 = vsub.f32 %v5353, %v5885
        %v5887 = vand.u32 %v5886, 4294901760
        %5888 = vmatpush1.msra.mxu0 %v5887
        %5889 = vmatprep.subr.mxu0 0.0
        %v5890 = vand.u32 %v5354, 4294901760
        %v5891 = vsub.f32 %v5354, %v5890
        %v5892 = vand.u32 %v5891, 4294901760
        %5893 = vmatpush1.msra.mxu0 %v5892
        %5894 = vmatprep.subr.mxu0 0.0
        %v5895 = vand.u32 %v5355, 4294901760
        %v5896 = vsub.f32 %v5355, %v5895
        %v5897 = vand.u32 %v5896, 4294901760
        %5898 = vmatpush1.msra.mxu0 %v5897
        %5899 = vmatprep.subr.mxu0 0.0
        %v5900 = vand.u32 %v5356, 4294901760
        %v5901 = vsub.f32 %v5356, %v5900
        %v5902 = vand.u32 %v5901, 4294901760
        %5903 = vmatpush1.msra.mxu0 %v5902
        %5904 = vmatprep.subr.mxu0 0.0
        %v5905 = vand.u32 %v5357, 4294901760
        %v5906 = vsub.f32 %v5357, %v5905
        %v5907 = vand.u32 %v5906, 4294901760
        %5908 = vmatpush1.msra.mxu0 %v5907
        %5909 = vmatprep.subr.mxu0 0.0
        %v5910 = vand.u32 %v5358, 4294901760
        %v5911 = vsub.f32 %v5358, %v5910
        %v5912 = vand.u32 %v5911, 4294901760
        %5913 = vmatpush1.msra.mxu0 %v5912
        %5914 = vmatprep.subr.mxu0 0.0
        %5915 = vmatpush1.msra.mxu0 0.0
        %5916 = vmatprep.subr.mxu0 0.0
        %5917 = vmatpush1.msra.mxu0 0.0
        %5918 = vmatprep.subr.mxu0 0.0
        %5919 = vmatpush1.msra.mxu0 0.0
        %5920 = vmatprep.subr.mxu0 0.0
        %5921 = vmatpush1.msra.mxu0 0.0
        %5922 = vmatprep.subr.mxu0 0.0
        %5923 = vmatpush1.msra.mxu0 0.0
        %5924 = vmatprep.subr.mxu0 0.0
        %5925 = vmatpush1.msra.mxu0 0.0
        %5926 = vmatprep.subr.mxu0 0.0
        %5927 = vmatpush1.msra.mxu0 0.0
        %5928 = vmatprep.subr.mxu0 0.0
        %5929 = vmatpush1.msra.mxu0 0.0
        %5930 = vmatprep.subr.mxu0 0.0
        %5931 = vmatpush1.msra.mxu0 0.0
        %5932 = vmatprep.subr.mxu0 0.0
        %5933 = vmatpush1.msra.mxu0 0.0
        %5934 = vmatprep.subr.mxu0 0.0
        %5935 = vmatpush1.msra.mxu0 0.0
        %5936 = vmatprep.subr.mxu0 0.0
        %5937 = vmatpush1.msra.mxu0 0.0
        %5938 = vmatprep.subr.mxu0 0.0
        %5939 = vmatpush1.msra.mxu0 0.0
        %5940 = vmatprep.subr.mxu0 0.0
        %5941 = vmatpush1.msra.mxu0 0.0
        %5942 = vmatprep.subr.mxu0 0.0
        %5943 = vmatpush1.msra.mxu0 0.0
        %5944 = vmatprep.subr.mxu0 0.0
        %5945 = vmatpush1.msra.mxu0 0.0
        %5946 = vmatprep.mubr.f32.mxu0 0.0
        %v5947 = vand.u32 %v5363, 4294901760
        %5948 = vmatmul.mubr.f32.gmra.mrb[0].mxu0 %v5947
        %v5949 = vpop.f32.mrb[0].mxu0
        %v5950 = vadd.f32 %v5823, %v5949
        %v5951 = vpop.f32.mrb[0].mxu0
        %5952 = vmatprep.mubr.f32.mxu0 0.0
        %v5953 = vand.u32 %v5365, 4294901760
        %5954 = vmatmul.mubr.f32.gmra.mrb[0].mxu0 %v5953
        %v5955 = vpop.f32.mrb[0].mxu0
        %v5956 = vadd.f32 %v5831, %v5955
        %v5957 = vpop.f32.mrb[0].mxu0
        %5958 = vdwg.mxu0
        %5959 = vmatprep.subr.mxu0 0.0
        %v5960 = vand.u32 %v5343, 4294901760
        %5961 = vmatpush1.msra.mxu0 %v5960
        %5962 = vmatprep.subr.mxu0 0.0
        %v5963 = vand.u32 %v5344, 4294901760
        %5964 = vmatpush1.msra.mxu0 %v5963
        %5965 = vmatprep.subr.mxu0 0.0
        %v5966 = vand.u32 %v5345, 4294901760
        %5967 = vmatpush1.msra.mxu0 %v5966
        %5968 = vmatprep.subr.mxu0 0.0
        %v5969 = vand.u32 %v5346, 4294901760
        %5970 = vmatpush1.msra.mxu0 %v5969
        %5971 = vmatprep.subr.mxu0 0.0
        %v5972 = vand.u32 %v5347, 4294901760
        %5973 = vmatpush1.msra.mxu0 %v5972
        %5974 = vmatprep.subr.mxu0 0.0
        %v5975 = vand.u32 %v5348, 4294901760
        %5976 = vmatpush1.msra.mxu0 %v5975
        %5977 = vmatprep.subr.mxu0 0.0
        %v5978 = vand.u32 %v5349, 4294901760
        %5979 = vmatpush1.msra.mxu0 %v5978
        %5980 = vmatprep.subr.mxu0 0.0
        %v5981 = vand.u32 %v5350, 4294901760
        %5982 = vmatpush1.msra.mxu0 %v5981
        %5983 = vmatprep.subr.mxu0 0.0
        %v5984 = vand.u32 %v5351, 4294901760
        %5985 = vmatpush1.msra.mxu0 %v5984
        %5986 = vmatprep.subr.mxu0 0.0
        %v5987 = vand.u32 %v5352, 4294901760
        %5988 = vmatpush1.msra.mxu0 %v5987
        %5989 = vmatprep.subr.mxu0 0.0
        %v5990 = vand.u32 %v5353, 4294901760
        %5991 = vmatpush1.msra.mxu0 %v5990
        %5992 = vmatprep.subr.mxu0 0.0
        %v5993 = vand.u32 %v5354, 4294901760
        %5994 = vmatpush1.msra.mxu0 %v5993
        %5995 = vmatprep.subr.mxu0 0.0
        %v5996 = vand.u32 %v5355, 4294901760
        %5997 = vmatpush1.msra.mxu0 %v5996
        %5998 = vmatprep.subr.mxu0 0.0
        %v5999 = vand.u32 %v5356, 4294901760
        %6000 = vmatpush1.msra.mxu0 %v5999
        %6001 = vmatprep.subr.mxu0 0.0
        %v6002 = vand.u32 %v5357, 4294901760
        %6003 = vmatpush1.msra.mxu0 %v6002
        %6004 = vmatprep.subr.mxu0 0.0
        %v6005 = vand.u32 %v5358, 4294901760
        %6006 = vmatpush1.msra.mxu0 %v6005
        %6007 = vmatprep.subr.mxu0 0.0
        %6008 = vmatpush1.msra.mxu0 0.0
        %6009 = vmatprep.subr.mxu0 0.0
        %6010 = vmatpush1.msra.mxu0 0.0
        %6011 = vmatprep.subr.mxu0 0.0
        %6012 = vmatpush1.msra.mxu0 0.0
        %6013 = vmatprep.subr.mxu0 0.0
        %6014 = vmatpush1.msra.mxu0 0.0
        %6015 = vmatprep.subr.mxu0 0.0
        %6016 = vmatpush1.msra.mxu0 0.0
        %6017 = vmatprep.subr.mxu0 0.0
        %6018 = vmatpush1.msra.mxu0 0.0
        %6019 = vmatprep.subr.mxu0 0.0
        %6020 = vmatpush1.msra.mxu0 0.0
        %6021 = vmatprep.subr.mxu0 0.0
        %6022 = vmatpush1.msra.mxu0 0.0
        %6023 = vmatprep.subr.mxu0 0.0
        %6024 = vmatpush1.msra.mxu0 0.0
        %6025 = vmatprep.subr.mxu0 0.0
        %6026 = vmatpush1.msra.mxu0 0.0
        %6027 = vmatprep.subr.mxu0 0.0
        %6028 = vmatpush1.msra.mxu0 0.0
        %6029 = vmatprep.subr.mxu0 0.0
        %6030 = vmatpush1.msra.mxu0 0.0
        %6031 = vmatprep.subr.mxu0 0.0
        %6032 = vmatpush1.msra.mxu0 0.0
        %6033 = vmatprep.subr.mxu0 0.0
        %6034 = vmatpush1.msra.mxu0 0.0
        %6035 = vmatprep.subr.mxu0 0.0
        %6036 = vmatpush1.msra.mxu0 0.0
        %6037 = vmatprep.subr.mxu0 0.0
        %6038 = vmatpush1.msra.mxu0 0.0
        %6039 = vmatprep.mubr.f32.mxu0 0.0
        %v6040 = vand.u32 %v5363, 4294901760
        %6041 = vmatmul.mubr.f32.gmra.mrb[0].mxu0 %v6040
        %v6042 = vpop.f32.mrb[0].mxu0
        %v6043 = vadd.f32 %v5950, %v6042
        %v6044 = vpop.f32.mrb[0].mxu0
        %6045 = vmatprep.mubr.f32.mxu0 0.0
        %v6046 = vand.u32 %v5365, 4294901760
        %6047 = vmatmul.mubr.f32.gmra.mrb[0].mxu0 %v6046
        %v6048 = vpop.f32.mrb[0].mxu0
        %v6049 = vadd.f32 %v5956, %v6048
        %v6050 = vpop.f32.mrb[0].mxu0
        %6051 = vdwg.mxu0
        %v6052 = vadd.f32 %v5340, %v6043
        %v6053 = vadd.f32 %v5341, %v6049
        %s6054 = scalar_lea.vmem [#allocation5], 1024
        %v6055 = vld [vmem:[%s6054] sm:$0xff]
        %v6056 = vld [vmem:[%s6054 + $0x8] sm:$0xff]
        %v6057 = vld [vmem:[%s6054 + $0x10] sm:$0xff]
        %v6058 = vld [vmem:[%s6054 + $0x18] sm:$0xff]
        %v6059 = vld [vmem:[%s6054 + $0x20] sm:$0xff]
        %v6060 = vld [vmem:[%s6054 + $0x28] sm:$0xff]
        %v6061 = vld [vmem:[%s6054 + $0x30] sm:$0xff]
        %v6062 = vld [vmem:[%s6054 + $0x38] sm:$0xff]
        %v6063 = vld [vmem:[%s6054 + $0x40] sm:$0xff]
        %v6064 = vld [vmem:[%s6054 + $0x48] sm:$0xff]
        %v6065 = vld [vmem:[%s6054 + $0x50] sm:$0xff]
        %v6066 = vld [vmem:[%s6054 + $0x58] sm:$0xff]
        %v6067 = vld [vmem:[%s6054 + $0x60] sm:$0xff]
        %v6068 = vld [vmem:[%s6054 + $0x68] sm:$0xff]
        %v6069 = vld [vmem:[%s6054 + $0x70] sm:$0xff]
        %v6070 = vld [vmem:[%s6054 + $0x78] sm:$0xff]
        %v6071 = vrot.slane %v4629, 2
        %v6072 = vrot.slane %v4625, 2
        %v6073 = vsel %vm1656, %v6071, %v6072
        %v6074 = vrot.slane %v4630, 2
        %v6075 = vsel %vm1656, %v6072, %v6074
        %6078 = vmatprep.subr.mxu0 0.0
        %v6079 = vand.u32 %v6055, 4294901760
        %6080 = vmatpush1.msra.mxu0 %v6079
        %6081 = vmatprep.subr.mxu0 0.0
        %v6082 = vand.u32 %v6056, 4294901760
        %6083 = vmatpush1.msra.mxu0 %v6082
        %6084 = vmatprep.subr.mxu0 0.0
        %v6085 = vand.u32 %v6057, 4294901760
        %6086 = vmatpush1.msra.mxu0 %v6085
        %6087 = vmatprep.subr.mxu0 0.0
        %v6088 = vand.u32 %v6058, 4294901760
        %6089 = vmatpush1.msra.mxu0 %v6088
        %6090 = vmatprep.subr.mxu0 0.0
        %v6091 = vand.u32 %v6059, 4294901760
        %6092 = vmatpush1.msra.mxu0 %v6091
        %6093 = vmatprep.subr.mxu0 0.0
        %v6094 = vand.u32 %v6060, 4294901760
        %6095 = vmatpush1.msra.mxu0 %v6094
        %6096 = vmatprep.subr.mxu0 0.0
        %v6097 = vand.u32 %v6061, 4294901760
        %6098 = vmatpush1.msra.mxu0 %v6097
        %6099 = vmatprep.subr.mxu0 0.0
        %v6100 = vand.u32 %v6062, 4294901760
        %6101 = vmatpush1.msra.mxu0 %v6100
        %6102 = vmatprep.subr.mxu0 0.0
        %v6103 = vand.u32 %v6063, 4294901760
        %6104 = vmatpush1.msra.mxu0 %v6103
        %6105 = vmatprep.subr.mxu0 0.0
        %v6106 = vand.u32 %v6064, 4294901760
        %6107 = vmatpush1.msra.mxu0 %v6106
        %6108 = vmatprep.subr.mxu0 0.0
        %v6109 = vand.u32 %v6065, 4294901760
        %6110 = vmatpush1.msra.mxu0 %v6109
        %6111 = vmatprep.subr.mxu0 0.0
        %v6112 = vand.u32 %v6066, 4294901760
        %6113 = vmatpush1.msra.mxu0 %v6112
        %6114 = vmatprep.subr.mxu0 0.0
        %v6115 = vand.u32 %v6067, 4294901760
        %6116 = vmatpush1.msra.mxu0 %v6115
        %6117 = vmatprep.subr.mxu0 0.0
        %v6118 = vand.u32 %v6068, 4294901760
        %6119 = vmatpush1.msra.mxu0 %v6118
        %6120 = vmatprep.subr.mxu0 0.0
        %v6121 = vand.u32 %v6069, 4294901760
        %6122 = vmatpush1.msra.mxu0 %v6121
        %6123 = vmatprep.subr.mxu0 0.0
        %v6124 = vand.u32 %v6070, 4294901760
        %6125 = vmatpush1.msra.mxu0 %v6124
        %6126 = vmatprep.subr.mxu0 0.0
        %6127 = vmatpush1.msra.mxu0 0.0
        %6128 = vmatprep.subr.mxu0 0.0
        %6129 = vmatpush1.msra.mxu0 0.0
        %6130 = vmatprep.subr.mxu0 0.0
        %6131 = vmatpush1.msra.mxu0 0.0
        %6132 = vmatprep.subr.mxu0 0.0
        %6133 = vmatpush1.msra.mxu0 0.0
        %6134 = vmatprep.subr.mxu0 0.0
        %6135 = vmatpush1.msra.mxu0 0.0
        %6136 = vmatprep.subr.mxu0 0.0
        %6137 = vmatpush1.msra.mxu0 0.0
        %6138 = vmatprep.subr.mxu0 0.0
        %6139 = vmatpush1.msra.mxu0 0.0
        %6140 = vmatprep.subr.mxu0 0.0
        %6141 = vmatpush1.msra.mxu0 0.0
        %6142 = vmatprep.subr.mxu0 0.0
        %6143 = vmatpush1.msra.mxu0 0.0
        %6144 = vmatprep.subr.mxu0 0.0
        %6145 = vmatpush1.msra.mxu0 0.0
        %6146 = vmatprep.subr.mxu0 0.0
        %6147 = vmatpush1.msra.mxu0 0.0
        %6148 = vmatprep.subr.mxu0 0.0
        %6149 = vmatpush1.msra.mxu0 0.0
        %6150 = vmatprep.subr.mxu0 0.0
        %6151 = vmatpush1.msra.mxu0 0.0
        %6152 = vmatprep.subr.mxu0 0.0
        %6153 = vmatpush1.msra.mxu0 0.0
        %6154 = vmatprep.subr.mxu0 0.0
        %6155 = vmatpush1.msra.mxu0 0.0
        %6156 = vmatprep.subr.mxu0 0.0
        %6157 = vmatpush1.msra.mxu0 0.0
        %6158 = vmatprep.mubr.f32.mxu0 0.0
        %v6159 = vand.u32 %v6073, 4294901760
        %v6160 = vsub.f32 %v6073, %v6159
        %v6161 = vand.u32 %v6160, 4294901760
        %v6162 = vsub.f32 %v6160, %v6161
        %v6163 = vand.u32 %v6162, 4294901760
        %6164 = vmatmul.mubr.f32.gmra.mrb[0].mxu0 %v6163
        %v6165 = vpop.f32.mrb[0].mxu0
        %v6166 = vadd.f32 0.0, %v6165
        %v6167 = vpop.f32.mrb[0].mxu0
        %6168 = vmatprep.mubr.f32.mxu0 0.0
        %v6169 = vand.u32 %v6075, 4294901760
        %v6170 = vsub.f32 %v6075, %v6169
        %v6171 = vand.u32 %v6170, 4294901760
        %v6172 = vsub.f32 %v6170, %v6171
        %v6173 = vand.u32 %v6172, 4294901760
        %6174 = vmatmul.mubr.f32.gmra.mrb[0].mxu0 %v6173
        %v6175 = vpop.f32.mrb[0].mxu0
        %v6176 = vadd.f32 0.0, %v6175
        %v6177 = vpop.f32.mrb[0].mxu0
        %6178 = vdwg.mxu0
        %6179 = vmatprep.subr.mxu0 0.0
        %v6180 = vand.u32 %v6055, 4294901760
        %v6181 = vsub.f32 %v6055, %v6180
        %v6182 = vand.u32 %v6181, 4294901760
        %v6183 = vsub.f32 %v6181, %v6182
        %v6184 = vand.u32 %v6183, 4294901760
        %6185 = vmatpush1.msra.mxu0 %v6184
        %6186 = vmatprep.subr.mxu0 0.0
        %v6187 = vand.u32 %v6056, 4294901760
        %v6188 = vsub.f32 %v6056, %v6187
        %v6189 = vand.u32 %v6188, 4294901760
        %v6190 = vsub.f32 %v6188, %v6189
        %v6191 = vand.u32 %v6190, 4294901760
        %6192 = vmatpush1.msra.mxu0 %v6191
        %6193 = vmatprep.subr.mxu0 0.0
        %v6194 = vand.u32 %v6057, 4294901760
        %v6195 = vsub.f32 %v6057, %v6194
        %v6196 = vand.u32 %v6195, 4294901760
        %v6197 = vsub.f32 %v6195, %v6196
        %v6198 = vand.u32 %v6197, 4294901760
        %6199 = vmatpush1.msra.mxu0 %v6198
        %6200 = vmatprep.subr.mxu0 0.0
        %v6201 = vand.u32 %v6058, 4294901760
        %v6202 = vsub.f32 %v6058, %v6201
        %v6203 = vand.u32 %v6202, 4294901760
        %v6204 = vsub.f32 %v6202, %v6203
        %v6205 = vand.u32 %v6204, 4294901760
        %6206 = vmatpush1.msra.mxu0 %v6205
        %6207 = vmatprep.subr.mxu0 0.0
        %v6208 = vand.u32 %v6059, 4294901760
        %v6209 = vsub.f32 %v6059, %v6208
        %v6210 = vand.u32 %v6209, 4294901760
        %v6211 = vsub.f32 %v6209, %v6210
        %v6212 = vand.u32 %v6211, 4294901760
        %6213 = vmatpush1.msra.mxu0 %v6212
        %6214 = vmatprep.subr.mxu0 0.0
        %v6215 = vand.u32 %v6060, 4294901760
        %v6216 = vsub.f32 %v6060, %v6215
        %v6217 = vand.u32 %v6216, 4294901760
        %v6218 = vsub.f32 %v6216, %v6217
        %v6219 = vand.u32 %v6218, 4294901760
        %6220 = vmatpush1.msra.mxu0 %v6219
        %6221 = vmatprep.subr.mxu0 0.0
        %v6222 = vand.u32 %v6061, 4294901760
        %v6223 = vsub.f32 %v6061, %v6222
        %v6224 = vand.u32 %v6223, 4294901760
        %v6225 = vsub.f32 %v6223, %v6224
        %v6226 = vand.u32 %v6225, 4294901760
        %6227 = vmatpush1.msra.mxu0 %v6226
        %6228 = vmatprep.subr.mxu0 0.0
        %v6229 = vand.u32 %v6062, 4294901760
        %v6230 = vsub.f32 %v6062, %v6229
        %v6231 = vand.u32 %v6230, 4294901760
        %v6232 = vsub.f32 %v6230, %v6231
        %v6233 = vand.u32 %v6232, 4294901760
        %6234 = vmatpush1.msra.mxu0 %v6233
        %6235 = vmatprep.subr.mxu0 0.0
        %v6236 = vand.u32 %v6063, 4294901760
        %v6237 = vsub.f32 %v6063, %v6236
        %v6238 = vand.u32 %v6237, 4294901760
        %v6239 = vsub.f32 %v6237, %v6238
        %v6240 = vand.u32 %v6239, 4294901760
        %6241 = vmatpush1.msra.mxu0 %v6240
        %6242 = vmatprep.subr.mxu0 0.0
        %v6243 = vand.u32 %v6064, 4294901760
        %v6244 = vsub.f32 %v6064, %v6243
        %v6245 = vand.u32 %v6244, 4294901760
        %v6246 = vsub.f32 %v6244, %v6245
        %v6247 = vand.u32 %v6246, 4294901760
        %6248 = vmatpush1.msra.mxu0 %v6247
        %6249 = vmatprep.subr.mxu0 0.0
        %v6250 = vand.u32 %v6065, 4294901760
        %v6251 = vsub.f32 %v6065, %v6250
        %v6252 = vand.u32 %v6251, 4294901760
        %v6253 = vsub.f32 %v6251, %v6252
        %v6254 = vand.u32 %v6253, 4294901760
        %6255 = vmatpush1.msra.mxu0 %v6254
        %6256 = vmatprep.subr.mxu0 0.0
        %v6257 = vand.u32 %v6066, 4294901760
        %v6258 = vsub.f32 %v6066, %v6257
        %v6259 = vand.u32 %v6258, 4294901760
        %v6260 = vsub.f32 %v6258, %v6259
        %v6261 = vand.u32 %v6260, 4294901760
        %6262 = vmatpush1.msra.mxu0 %v6261
        %6263 = vmatprep.subr.mxu0 0.0
        %v6264 = vand.u32 %v6067, 4294901760
        %v6265 = vsub.f32 %v6067, %v6264
        %v6266 = vand.u32 %v6265, 4294901760
        %v6267 = vsub.f32 %v6265, %v6266
        %v6268 = vand.u32 %v6267, 4294901760
        %6269 = vmatpush1.msra.mxu0 %v6268
        %6270 = vmatprep.subr.mxu0 0.0
        %v6271 = vand.u32 %v6068, 4294901760
        %v6272 = vsub.f32 %v6068, %v6271
        %v6273 = vand.u32 %v6272, 4294901760
        %v6274 = vsub.f32 %v6272, %v6273
        %v6275 = vand.u32 %v6274, 4294901760
        %6276 = vmatpush1.msra.mxu0 %v6275
        %6277 = vmatprep.subr.mxu0 0.0
        %v6278 = vand.u32 %v6069, 4294901760
        %v6279 = vsub.f32 %v6069, %v6278
        %v6280 = vand.u32 %v6279, 4294901760
        %v6281 = vsub.f32 %v6279, %v6280
        %v6282 = vand.u32 %v6281, 4294901760
        %6283 = vmatpush1.msra.mxu0 %v6282
        %6284 = vmatprep.subr.mxu0 0.0
        %v6285 = vand.u32 %v6070, 4294901760
        %v6286 = vsub.f32 %v6070, %v6285
        %v6287 = vand.u32 %v6286, 4294901760
        %v6288 = vsub.f32 %v6286, %v6287
        %v6289 = vand.u32 %v6288, 4294901760
        %6290 = vmatpush1.msra.mxu0 %v6289
        %6291 = vmatprep.subr.mxu0 0.0
        %6292 = vmatpush1.msra.mxu0 0.0
        %6293 = vmatprep.subr.mxu0 0.0
        %6294 = vmatpush1.msra.mxu0 0.0
        %6295 = vmatprep.subr.mxu0 0.0
        %6296 = vmatpush1.msra.mxu0 0.0
        %6297 = vmatprep.subr.mxu0 0.0
        %6298 = vmatpush1.msra.mxu0 0.0
        %6299 = vmatprep.subr.mxu0 0.0
        %6300 = vmatpush1.msra.mxu0 0.0
        %6301 = vmatprep.subr.mxu0 0.0
        %6302 = vmatpush1.msra.mxu0 0.0
        %6303 = vmatprep.subr.mxu0 0.0
        %6304 = vmatpush1.msra.mxu0 0.0
        %6305 = vmatprep.subr.mxu0 0.0
        %6306 = vmatpush1.msra.mxu0 0.0
        %6307 = vmatprep.subr.mxu0 0.0
        %6308 = vmatpush1.msra.mxu0 0.0
        %6309 = vmatprep.subr.mxu0 0.0
        %6310 = vmatpush1.msra.mxu0 0.0
        %6311 = vmatprep.subr.mxu0 0.0
        %6312 = vmatpush1.msra.mxu0 0.0
        %6313 = vmatprep.subr.mxu0 0.0
        %6314 = vmatpush1.msra.mxu0 0.0
        %6315 = vmatprep.subr.mxu0 0.0
        %6316 = vmatpush1.msra.mxu0 0.0
        %6317 = vmatprep.subr.mxu0 0.0
        %6318 = vmatpush1.msra.mxu0 0.0
        %6319 = vmatprep.subr.mxu0 0.0
        %6320 = vmatpush1.msra.mxu0 0.0
        %6321 = vmatprep.subr.mxu0 0.0
        %6322 = vmatpush1.msra.mxu0 0.0
        %6323 = vmatprep.mubr.f32.mxu0 0.0
        %v6324 = vand.u32 %v6073, 4294901760
        %6325 = vmatmul.mubr.f32.gmra.mrb[0].mxu0 %v6324
        %v6326 = vpop.f32.mrb[0].mxu0
        %v6327 = vadd.f32 %v6166, %v6326
        %v6328 = vpop.f32.mrb[0].mxu0
        %6329 = vmatprep.mubr.f32.mxu0 0.0
        %v6330 = vand.u32 %v6075, 4294901760
        %6331 = vmatmul.mubr.f32.gmra.mrb[0].mxu0 %v6330
        %v6332 = vpop.f32.mrb[0].mxu0
        %v6333 = vadd.f32 %v6176, %v6332
        %v6334 = vpop.f32.mrb[0].mxu0
        %6335 = vdwg.mxu0
        %6336 = vmatprep.subr.mxu0 0.0
        %v6337 = vand.u32 %v6055, 4294901760
        %v6338 = vsub.f32 %v6055, %v6337
        %6339 = vmatpush1.msra.mxu0 %v6338
        %6340 = vmatprep.subr.mxu0 0.0
        %v6341 = vand.u32 %v6056, 4294901760
        %v6342 = vsub.f32 %v6056, %v6341
        %6343 = vmatpush1.msra.mxu0 %v6342
        %6344 = vmatprep.subr.mxu0 0.0
        %v6345 = vand.u32 %v6057, 4294901760
        %v6346 = vsub.f32 %v6057, %v6345
        %6347 = vmatpush1.msra.mxu0 %v6346
        %6348 = vmatprep.subr.mxu0 0.0
        %v6349 = vand.u32 %v6058, 4294901760
        %v6350 = vsub.f32 %v6058, %v6349
        %6351 = vmatpush1.msra.mxu0 %v6350
        %6352 = vmatprep.subr.mxu0 0.0
        %v6353 = vand.u32 %v6059, 4294901760
        %v6354 = vsub.f32 %v6059, %v6353
        %6355 = vmatpush1.msra.mxu0 %v6354
        %6356 = vmatprep.subr.mxu0 0.0
        %v6357 = vand.u32 %v6060, 4294901760
        %v6358 = vsub.f32 %v6060, %v6357
        %6359 = vmatpush1.msra.mxu0 %v6358
        %6360 = vmatprep.subr.mxu0 0.0
        %v6361 = vand.u32 %v6061, 4294901760
        %v6362 = vsub.f32 %v6061, %v6361
        %6363 = vmatpush1.msra.mxu0 %v6362
        %6364 = vmatprep.subr.mxu0 0.0
        %v6365 = vand.u32 %v6062, 4294901760
        %v6366 = vsub.f32 %v6062, %v6365
        %6367 = vmatpush1.msra.mxu0 %v6366
        %6368 = vmatprep.subr.mxu0 0.0
        %v6369 = vand.u32 %v6063, 4294901760
        %v6370 = vsub.f32 %v6063, %v6369
        %6371 = vmatpush1.msra.mxu0 %v6370
        %6372 = vmatprep.subr.mxu0 0.0
        %v6373 = vand.u32 %v6064, 4294901760
        %v6374 = vsub.f32 %v6064, %v6373
        %6375 = vmatpush1.msra.mxu0 %v6374
        %6376 = vmatprep.subr.mxu0 0.0
        %v6377 = vand.u32 %v6065, 4294901760
        %v6378 = vsub.f32 %v6065, %v6377
        %6379 = vmatpush1.msra.mxu0 %v6378
        %6380 = vmatprep.subr.mxu0 0.0
        %v6381 = vand.u32 %v6066, 4294901760
        %v6382 = vsub.f32 %v6066, %v6381
        %6383 = vmatpush1.msra.mxu0 %v6382
        %6384 = vmatprep.subr.mxu0 0.0
        %v6385 = vand.u32 %v6067, 4294901760
        %v6386 = vsub.f32 %v6067, %v6385
        %6387 = vmatpush1.msra.mxu0 %v6386
        %6388 = vmatprep.subr.mxu0 0.0
        %v6389 = vand.u32 %v6068, 4294901760
        %v6390 = vsub.f32 %v6068, %v6389
        %6391 = vmatpush1.msra.mxu0 %v6390
        %6392 = vmatprep.subr.mxu0 0.0
        %v6393 = vand.u32 %v6069, 4294901760
        %v6394 = vsub.f32 %v6069, %v6393
        %6395 = vmatpush1.msra.mxu0 %v6394
        %6396 = vmatprep.subr.mxu0 0.0
        %v6397 = vand.u32 %v6070, 4294901760
        %v6398 = vsub.f32 %v6070, %v6397
        %6399 = vmatpush1.msra.mxu0 %v6398
        %6400 = vmatprep.subr.mxu0 0.0
        %6401 = vmatpush1.msra.mxu0 0.0
        %6402 = vmatprep.subr.mxu0 0.0
        %6403 = vmatpush1.msra.mxu0 0.0
        %6404 = vmatprep.subr.mxu0 0.0
        %6405 = vmatpush1.msra.mxu0 0.0
        %6406 = vmatprep.subr.mxu0 0.0
        %6407 = vmatpush1.msra.mxu0 0.0
        %6408 = vmatprep.subr.mxu0 0.0
        %6409 = vmatpush1.msra.mxu0 0.0
        %6410 = vmatprep.subr.mxu0 0.0
        %6411 = vmatpush1.msra.mxu0 0.0
        %6412 = vmatprep.subr.mxu0 0.0
        %6413 = vmatpush1.msra.mxu0 0.0
        %6414 = vmatprep.subr.mxu0 0.0
        %6415 = vmatpush1.msra.mxu0 0.0
        %6416 = vmatprep.subr.mxu0 0.0
        %6417 = vmatpush1.msra.mxu0 0.0
        %6418 = vmatprep.subr.mxu0 0.0
        %6419 = vmatpush1.msra.mxu0 0.0
        %6420 = vmatprep.subr.mxu0 0.0
        %6421 = vmatpush1.msra.mxu0 0.0
        %6422 = vmatprep.subr.mxu0 0.0
        %6423 = vmatpush1.msra.mxu0 0.0
        %6424 = vmatprep.subr.mxu0 0.0
        %6425 = vmatpush1.msra.mxu0 0.0
        %6426 = vmatprep.subr.mxu0 0.0
        %6427 = vmatpush1.msra.mxu0 0.0
        %6428 = vmatprep.subr.mxu0 0.0
        %6429 = vmatpush1.msra.mxu0 0.0
        %6430 = vmatprep.subr.mxu0 0.0
        %6431 = vmatpush1.msra.mxu0 0.0
        %6432 = vmatprep.mubr.f32.mxu0 0.0
        %v6433 = vand.u32 %v6073, 4294901760
        %v6434 = vsub.f32 %v6073, %v6433
        %6435 = vmatmul.mubr.f32.gmra.mrb[0].mxu0 %v6434
        %v6436 = vpop.f32.mrb[0].mxu0
        %v6437 = vadd.f32 %v6327, %v6436
        %v6438 = vpop.f32.mrb[0].mxu0
        %6439 = vmatprep.mubr.f32.mxu0 0.0
        %v6440 = vand.u32 %v6075, 4294901760
        %v6441 = vsub.f32 %v6075, %v6440
        %6442 = vmatmul.mubr.f32.gmra.mrb[0].mxu0 %v6441
        %v6443 = vpop.f32.mrb[0].mxu0
        %v6444 = vadd.f32 %v6333, %v6443
        %v6445 = vpop.f32.mrb[0].mxu0
        %6446 = vdwg.mxu0
        %6447 = vmatprep.subr.mxu0 0.0
        %v6448 = vand.u32 %v6055, 4294901760
        %6449 = vmatpush1.msra.mxu0 %v6448
        %6450 = vmatprep.subr.mxu0 0.0
        %v6451 = vand.u32 %v6056, 4294901760
        %6452 = vmatpush1.msra.mxu0 %v6451
        %6453 = vmatprep.subr.mxu0 0.0
        %v6454 = vand.u32 %v6057, 4294901760
        %6455 = vmatpush1.msra.mxu0 %v6454
        %6456 = vmatprep.subr.mxu0 0.0
        %v6457 = vand.u32 %v6058, 4294901760
        %6458 = vmatpush1.msra.mxu0 %v6457
        %6459 = vmatprep.subr.mxu0 0.0
        %v6460 = vand.u32 %v6059, 4294901760
        %6461 = vmatpush1.msra.mxu0 %v6460
        %6462 = vmatprep.subr.mxu0 0.0
        %v6463 = vand.u32 %v6060, 4294901760
        %6464 = vmatpush1.msra.mxu0 %v6463
        %6465 = vmatprep.subr.mxu0 0.0
        %v6466 = vand.u32 %v6061, 4294901760
        %6467 = vmatpush1.msra.mxu0 %v6466
        %6468 = vmatprep.subr.mxu0 0.0
        %v6469 = vand.u32 %v6062, 4294901760
        %6470 = vmatpush1.msra.mxu0 %v6469
        %6471 = vmatprep.subr.mxu0 0.0
        %v6472 = vand.u32 %v6063, 4294901760
        %6473 = vmatpush1.msra.mxu0 %v6472
        %6474 = vmatprep.subr.mxu0 0.0
        %v6475 = vand.u32 %v6064, 4294901760
        %6476 = vmatpush1.msra.mxu0 %v6475
        %6477 = vmatprep.subr.mxu0 0.0
        %v6478 = vand.u32 %v6065, 4294901760
        %6479 = vmatpush1.msra.mxu0 %v6478
        %6480 = vmatprep.subr.mxu0 0.0
        %v6481 = vand.u32 %v6066, 4294901760
        %6482 = vmatpush1.msra.mxu0 %v6481
        %6483 = vmatprep.subr.mxu0 0.0
        %v6484 = vand.u32 %v6067, 4294901760
        %6485 = vmatpush1.msra.mxu0 %v6484
        %6486 = vmatprep.subr.mxu0 0.0
        %v6487 = vand.u32 %v6068, 4294901760
        %6488 = vmatpush1.msra.mxu0 %v6487
        %6489 = vmatprep.subr.mxu0 0.0
        %v6490 = vand.u32 %v6069, 4294901760
        %6491 = vmatpush1.msra.mxu0 %v6490
        %6492 = vmatprep.subr.mxu0 0.0
        %v6493 = vand.u32 %v6070, 4294901760
        %6494 = vmatpush1.msra.mxu0 %v6493
        %6495 = vmatprep.subr.mxu0 0.0
        %6496 = vmatpush1.msra.mxu0 0.0
        %6497 = vmatprep.subr.mxu0 0.0
        %6498 = vmatpush1.msra.mxu0 0.0
        %6499 = vmatprep.subr.mxu0 0.0
        %6500 = vmatpush1.msra.mxu0 0.0
        %6501 = vmatprep.subr.mxu0 0.0
        %6502 = vmatpush1.msra.mxu0 0.0
        %6503 = vmatprep.subr.mxu0 0.0
        %6504 = vmatpush1.msra.mxu0 0.0
        %6505 = vmatprep.subr.mxu0 0.0
        %6506 = vmatpush1.msra.mxu0 0.0
        %6507 = vmatprep.subr.mxu0 0.0
        %6508 = vmatpush1.msra.mxu0 0.0
        %6509 = vmatprep.subr.mxu0 0.0
        %6510 = vmatpush1.msra.mxu0 0.0
        %6511 = vmatprep.subr.mxu0 0.0
        %6512 = vmatpush1.msra.mxu0 0.0
        %6513 = vmatprep.subr.mxu0 0.0
        %6514 = vmatpush1.msra.mxu0 0.0
        %6515 = vmatprep.subr.mxu0 0.0
        %6516 = vmatpush1.msra.mxu0 0.0
        %6517 = vmatprep.subr.mxu0 0.0
        %6518 = vmatpush1.msra.mxu0 0.0
        %6519 = vmatprep.subr.mxu0 0.0
        %6520 = vmatpush1.msra.mxu0 0.0
        %6521 = vmatprep.subr.mxu0 0.0
        %6522 = vmatpush1.msra.mxu0 0.0
        %6523 = vmatprep.subr.mxu0 0.0
        %6524 = vmatpush1.msra.mxu0 0.0
        %6525 = vmatprep.subr.mxu0 0.0
        %6526 = vmatpush1.msra.mxu0 0.0
        %6527 = vmatprep.mubr.f32.mxu0 0.0
        %v6528 = vand.u32 %v6073, 4294901760
        %v6529 = vsub.f32 %v6073, %v6528
        %v6530 = vand.u32 %v6529, 4294901760
        %6531 = vmatmul.mubr.f32.gmra.mrb[0].mxu0 %v6530
        %v6532 = vpop.f32.mrb[0].mxu0
        %v6533 = vadd.f32 %v6437, %v6532
        %v6534 = vpop.f32.mrb[0].mxu0
        %6535 = vmatprep.mubr.f32.mxu0 0.0
        %v6536 = vand.u32 %v6075, 4294901760
        %v6537 = vsub.f32 %v6075, %v6536
        %v6538 = vand.u32 %v6537, 4294901760
        %6539 = vmatmul.mubr.f32.gmra.mrb[0].mxu0 %v6538
        %v6540 = vpop.f32.mrb[0].mxu0
        %v6541 = vadd.f32 %v6444, %v6540
        %v6542 = vpop.f32.mrb[0].mxu0
        %6543 = vdwg.mxu0
        %6544 = vmatprep.subr.mxu0 0.0
        %v6545 = vand.u32 %v6055, 4294901760
        %v6546 = vsub.f32 %v6055, %v6545
        %v6547 = vand.u32 %v6546, 4294901760
        %6548 = vmatpush1.msra.mxu0 %v6547
        %6549 = vmatprep.subr.mxu0 0.0
        %v6550 = vand.u32 %v6056, 4294901760
        %v6551 = vsub.f32 %v6056, %v6550
        %v6552 = vand.u32 %v6551, 4294901760
        %6553 = vmatpush1.msra.mxu0 %v6552
        %6554 = vmatprep.subr.mxu0 0.0
        %v6555 = vand.u32 %v6057, 4294901760
        %v6556 = vsub.f32 %v6057, %v6555
        %v6557 = vand.u32 %v6556, 4294901760
        %6558 = vmatpush1.msra.mxu0 %v6557
        %6559 = vmatprep.subr.mxu0 0.0
        %v6560 = vand.u32 %v6058, 4294901760
        %v6561 = vsub.f32 %v6058, %v6560
        %v6562 = vand.u32 %v6561, 4294901760
        %6563 = vmatpush1.msra.mxu0 %v6562
        %6564 = vmatprep.subr.mxu0 0.0
        %v6565 = vand.u32 %v6059, 4294901760
        %v6566 = vsub.f32 %v6059, %v6565
        %v6567 = vand.u32 %v6566, 4294901760
        %6568 = vmatpush1.msra.mxu0 %v6567
        %6569 = vmatprep.subr.mxu0 0.0
        %v6570 = vand.u32 %v6060, 4294901760
        %v6571 = vsub.f32 %v6060, %v6570
        %v6572 = vand.u32 %v6571, 4294901760
        %6573 = vmatpush1.msra.mxu0 %v6572
        %6574 = vmatprep.subr.mxu0 0.0
        %v6575 = vand.u32 %v6061, 4294901760
        %v6576 = vsub.f32 %v6061, %v6575
        %v6577 = vand.u32 %v6576, 4294901760
        %6578 = vmatpush1.msra.mxu0 %v6577
        %6579 = vmatprep.subr.mxu0 0.0
        %v6580 = vand.u32 %v6062, 4294901760
        %v6581 = vsub.f32 %v6062, %v6580
        %v6582 = vand.u32 %v6581, 4294901760
        %6583 = vmatpush1.msra.mxu0 %v6582
        %6584 = vmatprep.subr.mxu0 0.0
        %v6585 = vand.u32 %v6063, 4294901760
        %v6586 = vsub.f32 %v6063, %v6585
        %v6587 = vand.u32 %v6586, 4294901760
        %6588 = vmatpush1.msra.mxu0 %v6587
        %6589 = vmatprep.subr.mxu0 0.0
        %v6590 = vand.u32 %v6064, 4294901760
        %v6591 = vsub.f32 %v6064, %v6590
        %v6592 = vand.u32 %v6591, 4294901760
        %6593 = vmatpush1.msra.mxu0 %v6592
        %6594 = vmatprep.subr.mxu0 0.0
        %v6595 = vand.u32 %v6065, 4294901760
        %v6596 = vsub.f32 %v6065, %v6595
        %v6597 = vand.u32 %v6596, 4294901760
        %6598 = vmatpush1.msra.mxu0 %v6597
        %6599 = vmatprep.subr.mxu0 0.0
        %v6600 = vand.u32 %v6066, 4294901760
        %v6601 = vsub.f32 %v6066, %v6600
        %v6602 = vand.u32 %v6601, 4294901760
        %6603 = vmatpush1.msra.mxu0 %v6602
        %6604 = vmatprep.subr.mxu0 0.0
        %v6605 = vand.u32 %v6067, 4294901760
        %v6606 = vsub.f32 %v6067, %v6605
        %v6607 = vand.u32 %v6606, 4294901760
        %6608 = vmatpush1.msra.mxu0 %v6607
        %6609 = vmatprep.subr.mxu0 0.0
        %v6610 = vand.u32 %v6068, 4294901760
        %v6611 = vsub.f32 %v6068, %v6610
        %v6612 = vand.u32 %v6611, 4294901760
        %6613 = vmatpush1.msra.mxu0 %v6612
        %6614 = vmatprep.subr.mxu0 0.0
        %v6615 = vand.u32 %v6069, 4294901760
        %v6616 = vsub.f32 %v6069, %v6615
        %v6617 = vand.u32 %v6616, 4294901760
        %6618 = vmatpush1.msra.mxu0 %v6617
        %6619 = vmatprep.subr.mxu0 0.0
        %v6620 = vand.u32 %v6070, 4294901760
        %v6621 = vsub.f32 %v6070, %v6620
        %v6622 = vand.u32 %v6621, 4294901760
        %6623 = vmatpush1.msra.mxu0 %v6622
        %6624 = vmatprep.subr.mxu0 0.0
        %6625 = vmatpush1.msra.mxu0 0.0
        %6626 = vmatprep.subr.mxu0 0.0
        %6627 = vmatpush1.msra.mxu0 0.0
        %6628 = vmatprep.subr.mxu0 0.0
        %6629 = vmatpush1.msra.mxu0 0.0
        %6630 = vmatprep.subr.mxu0 0.0
        %6631 = vmatpush1.msra.mxu0 0.0
        %6632 = vmatprep.subr.mxu0 0.0
        %6633 = vmatpush1.msra.mxu0 0.0
        %6634 = vmatprep.subr.mxu0 0.0
        %6635 = vmatpush1.msra.mxu0 0.0
        %6636 = vmatprep.subr.mxu0 0.0
        %6637 = vmatpush1.msra.mxu0 0.0
        %6638 = vmatprep.subr.mxu0 0.0
        %6639 = vmatpush1.msra.mxu0 0.0
        %6640 = vmatprep.subr.mxu0 0.0
        %6641 = vmatpush1.msra.mxu0 0.0
        %6642 = vmatprep.subr.mxu0 0.0
        %6643 = vmatpush1.msra.mxu0 0.0
        %6644 = vmatprep.subr.mxu0 0.0
        %6645 = vmatpush1.msra.mxu0 0.0
        %6646 = vmatprep.subr.mxu0 0.0
        %6647 = vmatpush1.msra.mxu0 0.0
        %6648 = vmatprep.subr.mxu0 0.0
        %6649 = vmatpush1.msra.mxu0 0.0
        %6650 = vmatprep.subr.mxu0 0.0
        %6651 = vmatpush1.msra.mxu0 0.0
        %6652 = vmatprep.subr.mxu0 0.0
        %6653 = vmatpush1.msra.mxu0 0.0
        %6654 = vmatprep.subr.mxu0 0.0
        %6655 = vmatpush1.msra.mxu0 0.0
        %6656 = vmatprep.mubr.f32.mxu0 0.0
        %v6657 = vand.u32 %v6073, 4294901760
        %6658 = vmatmul.mubr.f32.gmra.mrb[0].mxu0 %v6657
        %v6659 = vpop.f32.mrb[0].mxu0
        %v6660 = vadd.f32 %v6533, %v6659
        %v6661 = vpop.f32.mrb[0].mxu0
        %6662 = vmatprep.mubr.f32.mxu0 0.0
        %v6663 = vand.u32 %v6075, 4294901760
        %6664 = vmatmul.mubr.f32.gmra.mrb[0].mxu0 %v6663
        %v6665 = vpop.f32.mrb[0].mxu0
        %v6666 = vadd.f32 %v6541, %v6665
        %v6667 = vpop.f32.mrb[0].mxu0
        %6668 = vdwg.mxu0
        %6669 = vmatprep.subr.mxu0 0.0
        %v6670 = vand.u32 %v6055, 4294901760
        %6671 = vmatpush1.msra.mxu0 %v6670
        %6672 = vmatprep.subr.mxu0 0.0
        %v6673 = vand.u32 %v6056, 4294901760
        %6674 = vmatpush1.msra.mxu0 %v6673
        %6675 = vmatprep.subr.mxu0 0.0
        %v6676 = vand.u32 %v6057, 4294901760
        %6677 = vmatpush1.msra.mxu0 %v6676
        %6678 = vmatprep.subr.mxu0 0.0
        %v6679 = vand.u32 %v6058, 4294901760
        %6680 = vmatpush1.msra.mxu0 %v6679
        %6681 = vmatprep.subr.mxu0 0.0
        %v6682 = vand.u32 %v6059, 4294901760
        %6683 = vmatpush1.msra.mxu0 %v6682
        %6684 = vmatprep.subr.mxu0 0.0
        %v6685 = vand.u32 %v6060, 4294901760
        %6686 = vmatpush1.msra.mxu0 %v6685
        %6687 = vmatprep.subr.mxu0 0.0
        %v6688 = vand.u32 %v6061, 4294901760
        %6689 = vmatpush1.msra.mxu0 %v6688
        %6690 = vmatprep.subr.mxu0 0.0
        %v6691 = vand.u32 %v6062, 4294901760
        %6692 = vmatpush1.msra.mxu0 %v6691
        %6693 = vmatprep.subr.mxu0 0.0
        %v6694 = vand.u32 %v6063, 4294901760
        %6695 = vmatpush1.msra.mxu0 %v6694
        %6696 = vmatprep.subr.mxu0 0.0
        %v6697 = vand.u32 %v6064, 4294901760
        %6698 = vmatpush1.msra.mxu0 %v6697
        %6699 = vmatprep.subr.mxu0 0.0
        %v6700 = vand.u32 %v6065, 4294901760
        %6701 = vmatpush1.msra.mxu0 %v6700
        %6702 = vmatprep.subr.mxu0 0.0
        %v6703 = vand.u32 %v6066, 4294901760
        %6704 = vmatpush1.msra.mxu0 %v6703
        %6705 = vmatprep.subr.mxu0 0.0
        %v6706 = vand.u32 %v6067, 4294901760
        %6707 = vmatpush1.msra.mxu0 %v6706
        %6708 = vmatprep.subr.mxu0 0.0
        %v6709 = vand.u32 %v6068, 4294901760
        %6710 = vmatpush1.msra.mxu0 %v6709
        %6711 = vmatprep.subr.mxu0 0.0
        %v6712 = vand.u32 %v6069, 4294901760
        %6713 = vmatpush1.msra.mxu0 %v6712
        %6714 = vmatprep.subr.mxu0 0.0
        %v6715 = vand.u32 %v6070, 4294901760
        %6716 = vmatpush1.msra.mxu0 %v6715
        %6717 = vmatprep.subr.mxu0 0.0
        %6718 = vmatpush1.msra.mxu0 0.0
        %6719 = vmatprep.subr.mxu0 0.0
        %6720 = vmatpush1.msra.mxu0 0.0
        %6721 = vmatprep.subr.mxu0 0.0
        %6722 = vmatpush1.msra.mxu0 0.0
        %6723 = vmatprep.subr.mxu0 0.0
        %6724 = vmatpush1.msra.mxu0 0.0
        %6725 = vmatprep.subr.mxu0 0.0
        %6726 = vmatpush1.msra.mxu0 0.0
        %6727 = vmatprep.subr.mxu0 0.0
        %6728 = vmatpush1.msra.mxu0 0.0
        %6729 = vmatprep.subr.mxu0 0.0
        %6730 = vmatpush1.msra.mxu0 0.0
        %6731 = vmatprep.subr.mxu0 0.0
        %6732 = vmatpush1.msra.mxu0 0.0
        %6733 = vmatprep.subr.mxu0 0.0
        %6734 = vmatpush1.msra.mxu0 0.0
        %6735 = vmatprep.subr.mxu0 0.0
        %6736 = vmatpush1.msra.mxu0 0.0
        %6737 = vmatprep.subr.mxu0 0.0
        %6738 = vmatpush1.msra.mxu0 0.0
        %6739 = vmatprep.subr.mxu0 0.0
        %6740 = vmatpush1.msra.mxu0 0.0
        %6741 = vmatprep.subr.mxu0 0.0
        %6742 = vmatpush1.msra.mxu0 0.0
        %6743 = vmatprep.subr.mxu0 0.0
        %6744 = vmatpush1.msra.mxu0 0.0
        %6745 = vmatprep.subr.mxu0 0.0
        %6746 = vmatpush1.msra.mxu0 0.0
        %6747 = vmatprep.subr.mxu0 0.0
        %6748 = vmatpush1.msra.mxu0 0.0
        %6749 = vmatprep.mubr.f32.mxu0 0.0
        %v6750 = vand.u32 %v6073, 4294901760
        %6751 = vmatmul.mubr.f32.gmra.mrb[0].mxu0 %v6750
        %v6752 = vpop.f32.mrb[0].mxu0
        %v6753 = vadd.f32 %v6660, %v6752
        %v6754 = vpop.f32.mrb[0].mxu0
        %6755 = vmatprep.mubr.f32.mxu0 0.0
        %v6756 = vand.u32 %v6075, 4294901760
        %6757 = vmatmul.mubr.f32.gmra.mrb[0].mxu0 %v6756
        %v6758 = vpop.f32.mrb[0].mxu0
        %v6759 = vadd.f32 %v6666, %v6758
        %v6760 = vpop.f32.mrb[0].mxu0
        %6761 = vdwg.mxu0
        %v6762 = vadd.f32 %v6052, %v6753
        %v6763 = vadd.f32 %v6053, %v6759
        %v6764 = vadd.f32 %v6762, %v6763
        %v6765 = vrot.slane %v6764, 4
        %v6766 = vadd.f32 %v6764, %v6765
        %v6767 = vrot.slane %v6766, 2
        %v6768 = vadd.f32 %v6766, %v6767
        %v6769 = vrot.slane %v6768, 1
        %v6770 = vadd.f32 %v6768, %v6769
        %6771 = vrot.lane.b32.xlu0 %v6770, 8
        %v6772 = vpop.permute.xlu0 %6771
        %v6773 = vadd.f32 %v6770, %v6772
        %6774 = vrot.lane.b32.xlu0 %v6773, 16
        %v6775 = vpop.permute.xlu0 %6774
        %v6776 = vadd.f32 %v6773, %v6775
        %6777 = vrot.lane.b32.xlu0 %v6776, 32
        %v6778 = vpop.permute.xlu0 %6777
        %v6779 = vadd.f32 %v6776, %v6778
        %6780 = vrot.lane.b32.xlu0 %v6779, 64
        %v6781 = vpop.permute.xlu0 %6780
        %v6782 = vadd.f32 %v6779, %v6781
        %v6783 = vmul.f32 %v6762, %v6762
        %v6784 = vmul.f32 %v6763, %v6763
        %v6785 = vadd.f32 %v6783, %v6784
        %v6786 = vrot.slane %v6785, 4
        %v6787 = vadd.f32 %v6785, %v6786
        %v6788 = vrot.slane %v6787, 2
        %v6789 = vadd.f32 %v6787, %v6788
        %v6790 = vrot.slane %v6789, 1
        %v6791 = vadd.f32 %v6789, %v6790
        %6792 = vrot.lane.b32.xlu0 %v6791, 8
        %v6793 = vpop.permute.xlu0 %6792
        %v6794 = vadd.f32 %v6791, %v6793
        %6795 = vrot.lane.b32.xlu0 %v6794, 16
        %v6796 = vpop.permute.xlu0 %6795
        %v6797 = vadd.f32 %v6794, %v6796
        %6798 = vrot.lane.b32.xlu0 %v6797, 32
        %v6799 = vpop.permute.xlu0 %6798
        %v6800 = vadd.f32 %v6797, %v6799
        %6801 = vrot.lane.b32.xlu0 %v6800, 64
        %v6802 = vpop.permute.xlu0 %6801
        %v6803 = vadd.f32 %v6800, %v6802
        %v6804 = vmul.f32 %v6782, 0.00390625
        %v6805 = vmul.f32 %v6803, 0.00390625
        %v6806 = vmul.f32 %v6804, %v6804
        %v6807 = vsub.f32 %v6805, %v6806
        %v6808 = vlaneseq
        %v6809 = vshrl.u32 %v6808, 7
        %v6810 = vsub.s32 0, %v6809
        %v6811 = vrot.slane %v6804, %v6810
        %v6812 = vsub.f32 %v6762, %v6811
        %v6813 = vsub.f32 %v6763, %v6811
        %v6814 = vadd.f32 %v6807, 1e-05
        %v6815 = vrsqrt.pop %v6814
        %v6816 = vlaneseq
        %v6817 = vshrl.u32 %v6816, 7
        %v6818 = vsub.s32 0, %v6817
        %v6819 = vrot.slane %v6815, %v6818
        %v6820 = vmul.f32 %v6812, %v6819
        %v6821 = vmul.f32 %v6813, %v6819
        %vm6822 = vcmp.ge.f32.partialorder %v6820, 0.0
        %vm6823 = vcmp.ge.f32.partialorder %v6821, 0.0
        %v6824 = vmul.f32 %v6820, 0.2
        %v6825 = vmul.f32 %v6821, 0.2
        %v6826 = vsel %vm6822, %v6820, %v6824
        %v6827 = vsel %vm6823, %v6821, %v6825
        %v6828 = vadd.f32 %v204, %v6826
        %v6829 = vadd.f32 %v205, %v6827
        %6830 = vst [vmem:[%s203] sm:$0xff] %v6828
        %6831 = vst [vmem:[%s203 + $0x8] sm:$0xff] %v6829
        %s6832 = sand.u32 %s97, 1
        %s6833 = scalar_lea.sflag [#allocation4], %s6832
        %s6834 = sand.u32 %s97, 1
        %s6835 = smul.addr %s6834, 16
        %s6836 = scalar_lea.vmem [#allocation7], %s6835
        // Predicated region
        $region41: #{tpu_custom_call.1} parent=31 // pred_check
          %p6837 = pneg %p107
        $region42: #{tpu_custom_call.1} parent=31 // pred_check_branch
          %6839 = sbr.rel (%p6837) target = $region44
        $region43: #{tpu_custom_call.1} parent=31 // pred_region
          %s6841 = ssub.s32 256, 256
          %6842 = vsyncadd %s6833, %s6841
          %s6843 = smul.addr %s21, 2
          %s6844 = smul.addr %s6843, 128
          %s6845 = scalar_lea.hbm %s3, %s6844
          %s6846 = sshll.u32 %s6836, 4
          %s6847 = int_to_ptr.vmem [resolvable:$true] %s6846
          %6852 = dma.vmem_to_hbm [thread:$0]  %s6847, 256, %s6845, %s6833, 128, 128, 8
        $region44: #{tpu_custom_call.1} parent=31 // pred_fallthru
          _
      $region32: #{tpu_custom_call.1} parent=5 // pred_fallthru
        _
      %p6853 = scmp.le.s32.totalorder 2, %s16
      // Predicated region
      $region45: #{tpu_custom_call.1} parent=5 // pred_check
        %p6854 = pneg %p6853
      $region46: #{tpu_custom_call.1} parent=5 // pred_check_branch
        %6856 = sbr.rel (%p6854) target = $region48
      $region47: #{tpu_custom_call.1} parent=5 // pred_region
        %s6857 = ssub.s32 %s16, 2
        // Predicated region
        $region49: #{tpu_custom_call.1} parent=47 // pred_check
          %p6858 = pneg %p113
        $region50: #{tpu_custom_call.1} parent=47 // pred_check_branch
          %6860 = sbr.rel (%p6858) target = $region52
        $region51: #{tpu_custom_call.1} parent=47 // pred_region
          %s6861 = sand.u32 %s98, 1
          %s6862 = scalar_lea.sflag [#allocation4], %s6861
          %s6863 = sand.u32 %s98, 1
          %s6864 = smul.addr %s6863, 16
          %s6865 = scalar_lea.vmem [#allocation7], %s6864
          %6866 = dma.done %s6862, 256
        $region52: #{tpu_custom_call.1} parent=47 // pred_fallthru
          _
      $region48: #{tpu_custom_call.1} parent=5 // pred_fallthru
        _
    $region6: #{tpu_custom_call.1} parent=1 // loop_footer
      %s20 = sadd.s32 1, %s16
    $region7: #{tpu_custom_call.1} parent=1 // loop_footer_branch
      %15 = sbr.rel target = $region3
    $region8: #{tpu_custom_call.1} parent=1 // loop_exit
      _
    %6867 = vsyncpa [#allocation3], 1
    %s6868 = scalar_lea.sflag [#allocation3], 1
    %6869 = vsyncpa %s6868, 1
    %6870 = vsyncpa [#allocation6], 1
    %6871 = vsyncpa [#allocation4], 1
    %s6872 = scalar_lea.sflag [#allocation4], 1
    %6873 = vsyncpa %s6872, 1

</llo_original>
